<compile_context>
chip_gen: v7x
topology: tpu7x:2x2x1
jax: 0.10.0
libtpu: 0.0.40
codegen_flags: <defaults>
</compile_context>

<pallas_src>
import numpy as np
import jax
import jax.numpy as jnp
from jax import lax
from jax.experimental import pallas as pl
from jax.experimental.pallas import tpu as pltpu


# ----------------------------------------------------------------------------
# Fused whole-sequence kernel (no grid; time loop inside the kernel)
# ----------------------------------------------------------------------------
def _make_decoder_call(T, B, N, H, K, L, compute_dtype):
    BN = B * N
    cdt = compute_dtype

    def cheb_stack(sb, z):
        """Chebyshev diffusion chain of z (BN, F) stacked along the contraction
        axis -> (BN, (K+1)*F) in the MXU compute dtype."""
        f = z.shape[-1]
        parts = [z]
        if K >= 1:
            t0 = z.reshape(B, N, f)                       # leading-dim split (free)
            t1 = jnp.einsum('bnm,bmf->bnf', sb, t0.astype(cdt),
                            preferred_element_type=jnp.float32)
            parts.append(t1.reshape(BN, f))
            tm2, tm1 = t0, t1
            for _ in range(2, K + 1):
                tk = 2.0 * jnp.einsum('bnm,bmf->bnf', sb, tm1.astype(cdt),
                                      preferred_element_type=jnp.float32) - tm2
                parts.append(tk.reshape(BN, f))
                tm2, tm1 = tm1, tk
        d = parts[0] if len(parts) == 1 else jnp.concatenate(parts, axis=-1)
        return d.astype(cdt)

    def gru_cell(sb, h, x_gate, x_cand, w_hg, w_hc, b_g, b_c):
        # h, x_* and all gate math stay f32 (VPU); only MXU operands are bf16.
        d_h = cheb_stack(sb, h)                           # (BN, M*H)
        pre_g = x_gate + jnp.dot(d_h, w_hg, preferred_element_type=jnp.float32) + b_g
        g = jax.nn.sigmoid(pre_g)                         # (BN, 2H)
        r = g[:, :H]
        u = g[:, H:]
        d_rh = cheb_stack(sb, r * h)                      # (BN, M*H)
        c = jnp.tanh(x_cand + jnp.dot(d_rh, w_hc,
                                      preferred_element_type=jnp.float32) + b_c)
        return u * h + (1.0 - u) * c

    def kernel(xs_ref, h0_ref, s_ref, w0hg_ref, w0hc_ref,
               wx_ref, whg_ref, whc_ref, b_ref, out_ref):
        # Hoist all loop-invariant loads out of the time loop.
        sb = s_ref[...]                                   # (B, N, N) bf16
        w0hg = w0hg_ref[...]                              # (M*H, 2H)
        w0hc = w0hc_ref[...]                              # (M*H, H)
        wx = [wx_ref[l] for l in range(L - 1)]            # (M*H, 3H) each
        whg = [whg_ref[l] for l in range(L - 1)]          # (M*H, 2H) each
        whc = [whc_ref[l] for l in range(L - 1)]          # (M*H, H) each
        b_g = [b_ref[l, :, :2 * H] for l in range(L)]     # (1, 2H) f32
        b_c = [b_ref[l, :, 2 * H:] for l in range(L)]     # (1, H)  f32

        def step(t, hs):
            # layer-0 x-branch (teacher-forced inputs) precomputed outside and
            # streamed packed as [r | u | c] contributions.
            x_all = xs_ref[t].astype(jnp.float32)         # (BN, 3H)
            new_hs = []
            x = None
            for l in range(L):
                if l > 0:
                    d_x = cheb_stack(sb, x)
                    x_all = jnp.dot(d_x, wx[l - 1],
                                    preferred_element_type=jnp.float32)
                xg = x_all[:, :2 * H]
                xc = x_all[:, 2 * H:]
                w_hg = w0hg if l == 0 else whg[l - 1]
                w_hc = w0hc if l == 0 else whc[l - 1]
                h_new = gru_cell(sb, hs[l], xg, xc, w_hg, w_hc, b_g[l], b_c[l])
                new_hs.append(h_new)
                x = h_new
            out_ref[t] = x                                # VMEM store; HBM DMA once at end
            return tuple(new_hs)

        h_init = tuple(h0_ref[l] for l in range(L))
        lax.fori_loop(0, T, step, h_init, unroll=True)

    vmem = pl.BlockSpec(memory_space=pltpu.MemorySpace.VMEM)
    return pl.pallas_call(
        kernel,
        out_shape=jax.ShapeDtypeStruct((T, BN, H), jnp.float32),
        in_specs=[vmem] * 9,
        out_specs=vmem,
        compiler_params=pltpu.CompilerParams(
            vmem_limit_bytes=32 * 1024 * 1024),
    )


# ----------------------------------------------------------------------------
# Parameter construction / reshaping glue
# ----------------------------------------------------------------------------
def _xavier_normal(key, shape, gain=1.414):
    fan_in, fan_out = shape[0], shape[1]
    std = gain * np.sqrt(2.0 / (fan_in + fan_out))
    return (std * jax.random.normal(key, shape)).astype(jnp.float32)


def init_dcgru_decoder_params(key, input_dim, hid_dim, output_dim,
                              max_diffusion_step, num_rnn_layers):
    """Synthetic parameters in the PyTorch layout of DCGRUDecoder.__init__."""
    M = max_diffusion_step + 1          # supports_len = 1 (filter_type='laplacian')
    params = []
    for layer in range(num_rnn_layers):
        din = input_dim if layer == 0 else hid_dim
        C = din + hid_dim
        key, k1, k2, k3, k4 = jax.random.split(key, 5)
        p = dict(
            wg=_xavier_normal(k1, (C * M, 2 * hid_dim)),      # dconv_gate.weight
            bg=jnp.zeros((2 * hid_dim,), jnp.float32),        # dconv_gate.biases
            wc=_xavier_normal(k2, (C * M, hid_dim)),          # dconv_candidate.weight
            bc=jnp.zeros((hid_dim,), jnp.float32),            # dconv_candidate.biases
        )
        if layer == num_rnn_layers - 1:
            # nn.Linear(hid_dim, output_dim): y = x @ W.T + b  -> store W.T
            p["wp"] = _xavier_normal(k3, (output_dim, hid_dim), gain=1.0).T
            p["bp"] = (0.01 * jax.random.normal(k4, (output_dim,))).astype(jnp.float32)
        params.append(p)
    return params


def _split_dconv_weight(w, din, H, M):
    """PyTorch DiffusionGraphConv weight (C*M, out), row index c*M + m with c
    indexing concat([x, h]) -> (x-part (M, din, out), h-part (M, H, out))."""
    C = din + H
    out = w.shape[1]
    w = w.reshape(C, M, out).transpose(1, 0, 2)       # (M, C, out)
    return w[:, :din, :], w[:, din:, :]


def _prepare_kernel_params(params, input_dim, H, K, L, compute_dtype):
    M = K + 1
    p0 = params[0]
    gx0, gh0 = _split_dconv_weight(p0["wg"], input_dim, H, M)   # (M,din,2H),(M,H,2H)
    cx0, ch0 = _split_dconv_weight(p0["wc"], input_dim, H, M)   # (M,din,H), (M,H,H)
    kp = dict(
        # layer-0 x-branch weights, r|u|c fused (wrapper-side precompute, f32)
        w0x_all=jnp.concatenate([gx0, cx0], axis=-1),           # (M, din, 3H)
        # layer-0 h-branch weights, Chebyshev-stacked rows (m, f)
        w0hg=gh0.reshape(M * H, 2 * H).astype(compute_dtype),
        w0hc=ch0.reshape(M * H, H).astype(compute_dtype),
    )
    wx, whg, whc, bias = [], [], [], []
    bias.append(jnp.concatenate([p0["bg"], p0["bc"]])[None, :])  # (1, 3H)
    for l in range(1, L):
        p = params[l]
        gx, gh = _split_dconv_weight(p["wg"], H, H, M)
        cxw, chw = _split_dconv_weight(p["wc"], H, H, M)
        wx.append(jnp.concatenate([gx, cxw], axis=-1).reshape(M * H, 3 * H))
        whg.append(gh.reshape(M * H, 2 * H))
        whc.append(chw.reshape(M * H, H))
        bias.append(jnp.concatenate([p["bg"], p["bc"]])[None, :])
    kp.update(
        wx=jnp.stack(wx).astype(compute_dtype),       # (L-1, M*H, 3H)
        whg=jnp.stack(whg).astype(compute_dtype),     # (L-1, M*H, 2H)
        whc=jnp.stack(whc).astype(compute_dtype),     # (L-1, M*H, H)
        bias=jnp.stack(bias).astype(jnp.float32),     # (L, 1, 3H)
        wp=params[L - 1]["wp"], bp=params[L - 1]["bp"],
    )
    return kp


# ----------------------------------------------------------------------------
# Forward pass (wrapper)
# ----------------------------------------------------------------------------
def dcgru_decoder_forward(inputs, support, initial_hidden_state, params,
                          input_dim, hid_dim, output_dim, max_diffusion_step,
                          num_rnn_layers, teacher_forcing_ratio=1.0,
                          compute_dtype=jnp.bfloat16):
    """
    inputs:               (seq_length, B, N, input_dim)
    support:              (N, N) dense graph support
    initial_hidden_state: (num_layers, B, N * hid_dim)
    returns:              (seq_length, B, N * output_dim)  (row 0 stays zero,
                          exactly like the PyTorch reference)
    """
    seq_length, B, N, _ = inputs.shape
    H, P, K, L = hid_dim, output_dim, max_diffusion_step, num_rnn_layers
    M = K + 1
    BN = B * N
    T = seq_length - 1
    assert L >= 2, "decoder needs at least the input cell and the projection cell"
    # TODO(synk): only the deterministic fully-teacher-forced schedule is
    # supported (the PyTorch decoder samples host-side np.random per step).
    assert teacher_forcing_ratio >= 1.0

    kp = _prepare_kernel_params(params, input_dim, H, K, L, compute_dtype)
    support = support.astype(jnp.float32)

    # ---- layer-0 x-branch diffusion conv over ALL teacher-forced inputs,
    #      packed as one (T, BN, 3H) [r|u|c] stream ----
    x_seq = inputs[:T].astype(jnp.float32)                       # (T, B, N, Din)
    chain = [x_seq]
    if K >= 1:
        x1 = jnp.einsum('nm,tbmd->tbnd', support, x_seq)
        chain.append(x1)
        xm2, xm1 = x_seq, x1
        for _ in range(2, K + 1):
            xk = 2.0 * jnp.einsum('nm,tbmd->tbnd', support, xm1) - xm2
            chain.append(xk)
            xm2, xm1 = xm1, xk
    w0x = kp["w0x_all"]                                          # (M, Din, 3H)
    xs = sum(jnp.einsum('tbnd,dh->tbnh', chain[m], w0x[m]) for m in range(M))
    xs = xs.reshape(T, BN, 3 * H).astype(compute_dtype)

    h0 = initial_hidden_state.astype(jnp.float32).reshape(L, BN, H)
    # TODO(synk): torch.sparse.mm uses a COO sparse support; we use dense matmul.
    sb = jnp.broadcast_to(support.astype(compute_dtype)[None], (B, N, N))

    call = _make_decoder_call(T, B, N, H, K, L, compute_dtype)
    h_seq = call(xs, h0, sb, kp["w0hg"], kp["w0hc"],
                 kp["wx"], kp["whg"], kp["whc"], kp["bias"])     # (T, BN, H) f32

    # output projection (last layer) applied once over all steps
    proj = jnp.einsum('tbnh,hp->tbnp', h_seq.reshape(T, B, N, H), kp["wp"]) + kp["bp"]
    out = proj.reshape(T, B, N * P)
    return jnp.concatenate(
        [jnp.zeros((1, B, N * P), jnp.float32), out], axis=0)


# ----------------------------------------------------------------------------
# Plain-JAX reference mirroring the PyTorch math (Precision.HIGHEST)
# ----------------------------------------------------------------------------
def _reference_forward(inputs, support, h0, params, input_dim, H, P, K, L):
    seq, B, N, _ = inputs.shape
    HIGH = jax.lax.Precision.HIGHEST

    def dgc(x, state, w, b):
        feat = jnp.concatenate([x, state], axis=-1)              # (B, N, C)
        chain = [feat]
        if K >= 1:
            x1 = jnp.einsum('nm,bmc->bnc', support, feat, precision=HIGH)
            chain.append(x1)
            xm2, xm1 = feat, x1
            for _ in range(2, K + 1):
                xk = 2.0 * jnp.einsum('nm,bmc->bnc', support, xm1,
                                      precision=HIGH) - xm2
                chain.append(xk)
                xm2, xm1 = xm1, xk
        stacked = jnp.stack(chain, axis=-1)                      # (B, N, C, M)
        flat = stacked.reshape(B * N, -1)                        # (B*N, C*M)
        return (jnp.dot(flat, w, precision=HIGH) + b).reshape(B, N, -1)

    hidden = [h0[l].reshape(B, N, H) for l in range(L)]
    outs = [jnp.zeros((B, N * P), jnp.float32)]
    cur = inputs[0]
    for t in range(1, seq):
        new_hidden = []
        out = None
        for l in range(L):
            p = params[l]
            gate = jax.nn.sigmoid(dgc(cur, hidden[l], p["wg"], p["bg"]))
            r, u = gate[..., :H], gate[..., H:]
            c = jnp.tanh(dgc(cur, r * hidden[l], p["wc"], p["bc"]))
            new_h = u * hidden[l] + (1.0 - u) * c
            new_hidden.append(new_h)
            if l == L - 1:
                out = (jnp.dot(new_h.reshape(B * N, H), p["wp"], precision=HIGH)
                       + p["bp"]).reshape(B, N * P)
            else:
                cur = new_h
        hidden = new_hidden
        outs.append(out)
        cur = inputs[t]                 # always teacher forced (ratio >= 1.0)
    return jnp.stack(outs, axis=0)


# ----------------------------------------------------------------------------
if __name__ == "__main__":
    key = jax.random.PRNGKey(0)
    seq, B, N = 8, 2, 16
    input_dim, output_dim, hid_dim = 1, 1, 32
    max_diffusion_step, num_rnn_layers = 2, 2

    k_in, k_h, k_sup, k_par = jax.random.split(key, 4)
    inputs = jax.random.normal(k_in, (seq, B, N, input_dim), dtype=jnp.float32)
    init_hidden = jax.random.normal(
        k_h, (num_rnn_layers, B, N * hid_dim), dtype=jnp.float32)

    # Dense row-normalized support (filter_type='laplacian' -> 1 support).
    a = jax.random.uniform(k_sup, (N, N), dtype=jnp.float32)
    a = 0.5 * (a + a.T)
    support = (a / jnp.sum(a, axis=1, keepdims=True)).astype(jnp.float32)

    params = init_dcgru_decoder_params(k_par, input_dim, hid_dim, output_dim,
                                       max_diffusion_step, num_rnn_layers)

    fwd = jax.jit(lambda x, s, h, p: dcgru_decoder_forward(
        x, s, h, p, input_dim, hid_dim, output_dim,
        max_diffusion_step, num_rnn_layers, teacher_forcing_ratio=1.0))
    out = jax.block_until_ready(fwd(inputs, support, init_hidden, params))

    assert out.shape == (seq, B, N * output_dim)
    assert bool(jnp.all(jnp.isfinite(out)))

    # Reference runs at Precision.HIGHEST (f32); the kernel deliberately feeds
    # bf16 operands to the MXU (f32 accumulate), so over the 7-step recurrence
    # the expected max-abs difference is a few 1e-2.
    ref = _reference_forward(inputs, support, init_hidden, params,
                             input_dim, hid_dim, output_dim,
                             max_diffusion_step, num_rnn_layers)

    # Structural check: relative L2 error must stay at bf16-rounding scale
    # (~1e-2); any layout / gate-split / transpose bug would make it O(1).
    rel = float(jnp.linalg.norm(out - ref) / (jnp.linalg.norm(ref) + 1e-12))
    assert rel < 5e-2, rel

    # Element-wise check with the documented bf16 tolerance.
    assert bool(jnp.allclose(out, ref, rtol=1e-1, atol=1e-1)), \
        float(jnp.max(jnp.abs(out - ref)))

    print("KERNEL_OK")
</pallas_src>

<mosaic_0001>
module attributes {stable_mosaic.version = 11 : i64} {
  func.func @kernel(%arg0: memref<7x32x96xbf16, #tpu.memory_space<vmem>>, %arg1: memref<2x32x32xf32, #tpu.memory_space<vmem>>, %arg2: memref<2x16x16xbf16, #tpu.memory_space<vmem>>, %arg3: memref<96x64xbf16, #tpu.memory_space<vmem>>, %arg4: memref<96x32xbf16, #tpu.memory_space<vmem>>, %arg5: memref<1x96x96xbf16, #tpu.memory_space<vmem>>, %arg6: memref<1x96x64xbf16, #tpu.memory_space<vmem>>, %arg7: memref<1x96x32xbf16, #tpu.memory_space<vmem>>, %arg8: memref<2x1x96xf32, #tpu.memory_space<vmem>>, %arg9: memref<7x32x32xf32, #tpu.memory_space<vmem>>) attributes {dimension_semantics = [], scalar_prefetch = 0 : i64, scratch_operands = 0 : i64, tpu.core_type = #tpu.core_type<tc>} {
    %c0 = arith.constant 0 : index
    %c0_0 = arith.constant 0 : index
    %c0_1 = arith.constant 0 : index
    %0 = vector.load %arg2[%c0, %c0_0, %c0_1] : memref<2x16x16xbf16, #tpu.memory_space<vmem>>, vector<2x16x16xbf16>
    %c0_2 = arith.constant 0 : index
    %c0_3 = arith.constant 0 : index
    %1 = vector.load %arg3[%c0_2, %c0_3] : memref<96x64xbf16, #tpu.memory_space<vmem>>, vector<96x64xbf16>
    %c0_4 = arith.constant 0 : index
    %c0_5 = arith.constant 0 : index
    %2 = vector.load %arg4[%c0_4, %c0_5] : memref<96x32xbf16, #tpu.memory_space<vmem>>, vector<96x32xbf16>
    %c0_6 = arith.constant 0 : index
    %c0_7 = arith.constant 0 : index
    %c0_8 = arith.constant 0 : index
    %3 = vector.load %arg5[%c0_6, %c0_7, %c0_8] : memref<1x96x96xbf16, #tpu.memory_space<vmem>>, vector<1x96x96xbf16>
    %4 = vector.shape_cast %3 : vector<1x96x96xbf16> to vector<96x96xbf16>
    %c0_9 = arith.constant 0 : index
    %c0_10 = arith.constant 0 : index
    %c0_11 = arith.constant 0 : index
    %5 = vector.load %arg6[%c0_9, %c0_10, %c0_11] : memref<1x96x64xbf16, #tpu.memory_space<vmem>>, vector<1x96x64xbf16>
    %6 = vector.shape_cast %5 : vector<1x96x64xbf16> to vector<96x64xbf16>
    %c0_12 = arith.constant 0 : index
    %c0_13 = arith.constant 0 : index
    %c0_14 = arith.constant 0 : index
    %7 = vector.load %arg7[%c0_12, %c0_13, %c0_14] : memref<1x96x32xbf16, #tpu.memory_space<vmem>>, vector<1x96x32xbf16>
    %8 = vector.shape_cast %7 : vector<1x96x32xbf16> to vector<96x32xbf16>
    %c0_15 = arith.constant 0 : index
    %c0_16 = arith.constant 0 : index
    %c0_17 = arith.constant 0 : index
    %9 = vector.load %arg8[%c0_15, %c0_16, %c0_17] : memref<2x1x96xf32, #tpu.memory_space<vmem>>, vector<1x1x64xf32>
    %10 = vector.shape_cast %9 : vector<1x1x64xf32> to vector<1x64xf32>
    %c1 = arith.constant 1 : index
    %c0_18 = arith.constant 0 : index
    %c0_19 = arith.constant 0 : index
    %11 = vector.load %arg8[%c1, %c0_18, %c0_19] : memref<2x1x96xf32, #tpu.memory_space<vmem>>, vector<1x1x64xf32>
    %12 = vector.shape_cast %11 : vector<1x1x64xf32> to vector<1x64xf32>
    %c0_20 = arith.constant 0 : index
    %c0_21 = arith.constant 0 : index
    %c64 = arith.constant 64 : index
    %13 = vector.load %arg8[%c0_20, %c0_21, %c64] : memref<2x1x96xf32, #tpu.memory_space<vmem>>, vector<1x1x32xf32>
    %14 = vector.shape_cast %13 : vector<1x1x32xf32> to vector<1x32xf32>
    %c1_22 = arith.constant 1 : index
    %c0_23 = arith.constant 0 : index
    %c64_24 = arith.constant 64 : index
    %15 = vector.load %arg8[%c1_22, %c0_23, %c64_24] : memref<2x1x96xf32, #tpu.memory_space<vmem>>, vector<1x1x32xf32>
    %16 = vector.shape_cast %15 : vector<1x1x32xf32> to vector<1x32xf32>
    %c0_25 = arith.constant 0 : index
    %c0_26 = arith.constant 0 : index
    %c0_27 = arith.constant 0 : index
    %17 = vector.load %arg1[%c0_25, %c0_26, %c0_27] : memref<2x32x32xf32, #tpu.memory_space<vmem>>, vector<1x32x32xf32>
    %18 = vector.shape_cast %17 : vector<1x32x32xf32> to vector<32x32xf32>
    %c1_28 = arith.constant 1 : index
    %c0_29 = arith.constant 0 : index
    %c0_30 = arith.constant 0 : index
    %19 = vector.load %arg1[%c1_28, %c0_29, %c0_30] : memref<2x32x32xf32, #tpu.memory_space<vmem>>, vector<1x32x32xf32>
    %20 = vector.shape_cast %19 : vector<1x32x32xf32> to vector<32x32xf32>
    %c0_i32 = arith.constant 0 : i32
    %21 = arith.index_cast %c0_i32 : i32 to index
    %c0_31 = arith.constant 0 : index
    %c0_32 = arith.constant 0 : index
    %22 = vector.load %arg0[%21, %c0_31, %c0_32] : memref<7x32x96xbf16, #tpu.memory_space<vmem>>, vector<1x32x96xbf16>
    %23 = vector.shape_cast %22 : vector<1x32x96xbf16> to vector<32x96xbf16>
    %24 = arith.extf %23 : vector<32x96xbf16> to vector<32x96xf32>
    %25 = vector.extract_strided_slice %24 {offsets = [0, 0], sizes = [32, 64], strides = [1, 1]} : vector<32x96xf32> to vector<32x64xf32>
    %26 = vector.extract_strided_slice %24 {offsets = [0, 64], sizes = [32, 32], strides = [1, 1]} : vector<32x96xf32> to vector<32x32xf32>
    %27 = vector.shape_cast %18 : vector<32x32xf32> to vector<2x16x32xf32>
    %28 = arith.truncf %27 : vector<2x16x32xf32> to vector<2x16x32xbf16>
    "tpu.trace_start"() <{level = 10 : i32, message = "bnm,bmf->bnf"}> : () -> ()
    %cst = arith.constant dense<0.000000e+00> : vector<2x16x32xf32>
    %29 = tpu.matmul %0, %28, %cst {dimension_numbers = #tpu.dot_dimension_numbers<[2], [1], [1], [2], [0, 0, 0, 1, 1, 2], [0], [0]>} : vector<2x16x16xbf16>, vector<2x16x32xbf16>, vector<2x16x32xf32> -> vector<2x16x32xf32>
    "tpu.trace_stop"() : () -> ()
    %30 = vector.shape_cast %29 : vector<2x16x32xf32> to vector<32x32xf32>
    %31 = arith.truncf %29 : vector<2x16x32xf32> to vector<2x16x32xbf16>
    "tpu.trace_start"() <{level = 10 : i32, message = "bnm,bmf->bnf"}> : () -> ()
    %cst_33 = arith.constant dense<0.000000e+00> : vector<2x16x32xf32>
    %32 = tpu.matmul %0, %31, %cst_33 {dimension_numbers = #tpu.dot_dimension_numbers<[2], [1], [1], [2], [0, 0, 0, 1, 1, 2], [0], [0]>} : vector<2x16x16xbf16>, vector<2x16x32xbf16>, vector<2x16x32xf32> -> vector<2x16x32xf32>
    "tpu.trace_stop"() : () -> ()
    %cst_34 = arith.constant 2.000000e+00 : f32
    %33 = vector.broadcast %cst_34 : f32 to vector<2x16x32xf32>
    %34 = arith.mulf %33, %32 : vector<2x16x32xf32>
    %35 = arith.subf %34, %27 : vector<2x16x32xf32>
    %36 = vector.shape_cast %35 : vector<2x16x32xf32> to vector<32x32xf32>
    %37 = tpu.concatenate %18, %30, %36 in 1 : vector<32x32xf32>, vector<32x32xf32>, vector<32x32xf32> -> vector<32x96xf32>
    %38 = arith.truncf %37 : vector<32x96xf32> to vector<32x96xbf16>
    %cst_35 = arith.constant dense<0.000000e+00> : vector<32x64xf32>
    %39 = tpu.matmul %38, %1, %cst_35 {dimension_numbers = #tpu.dot_dimension_numbers<[1], [0], [0], [1], [0, 0, 1, 1], [], []>} : vector<32x96xbf16>, vector<96x64xbf16>, vector<32x64xf32> -> vector<32x64xf32>
    %40 = arith.addf %25, %39 : vector<32x64xf32>
    %41 = vector.broadcast %10 : vector<1x64xf32> to vector<32x64xf32>
    %42 = arith.addf %40, %41 : vector<32x64xf32>
    %43 = arith.negf %42 : vector<32x64xf32>
    %44 = math.exp %43 : vector<32x64xf32>
    %cst_36 = arith.constant 1.000000e+00 : f32
    %45 = vector.broadcast %cst_36 : f32 to vector<32x64xf32>
    %46 = arith.addf %45, %44 : vector<32x64xf32>
    %47 = arith.divf %45, %46 : vector<32x64xf32>
    %48 = vector.extract_strided_slice %47 {offsets = [0, 0], sizes = [32, 32], strides = [1, 1]} : vector<32x64xf32> to vector<32x32xf32>
    %49 = vector.extract_strided_slice %47 {offsets = [0, 32], sizes = [32, 32], strides = [1, 1]} : vector<32x64xf32> to vector<32x32xf32>
    %50 = arith.mulf %48, %18 : vector<32x32xf32>
    %51 = vector.shape_cast %50 : vector<32x32xf32> to vector<2x16x32xf32>
    %52 = arith.truncf %51 : vector<2x16x32xf32> to vector<2x16x32xbf16>
    "tpu.trace_start"() <{level = 10 : i32, message = "bnm,bmf->bnf"}> : () -> ()
    %cst_37 = arith.constant dense<0.000000e+00> : vector<2x16x32xf32>
    %53 = tpu.matmul %0, %52, %cst_37 {dimension_numbers = #tpu.dot_dimension_numbers<[2], [1], [1], [2], [0, 0, 0, 1, 1, 2], [0], [0]>} : vector<2x16x16xbf16>, vector<2x16x32xbf16>, vector<2x16x32xf32> -> vector<2x16x32xf32>
    "tpu.trace_stop"() : () -> ()
    %54 = vector.shape_cast %53 : vector<2x16x32xf32> to vector<32x32xf32>
    %55 = arith.truncf %53 : vector<2x16x32xf32> to vector<2x16x32xbf16>
    "tpu.trace_start"() <{level = 10 : i32, message = "bnm,bmf->bnf"}> : () -> ()
    %cst_38 = arith.constant dense<0.000000e+00> : vector<2x16x32xf32>
    %56 = tpu.matmul %0, %55, %cst_38 {dimension_numbers = #tpu.dot_dimension_numbers<[2], [1], [1], [2], [0, 0, 0, 1, 1, 2], [0], [0]>} : vector<2x16x16xbf16>, vector<2x16x32xbf16>, vector<2x16x32xf32> -> vector<2x16x32xf32>
    "tpu.trace_stop"() : () -> ()
    %cst_39 = arith.constant 2.000000e+00 : f32
    %57 = vector.broadcast %cst_39 : f32 to vector<2x16x32xf32>
    %58 = arith.mulf %57, %56 : vector<2x16x32xf32>
    %59 = arith.subf %58, %51 : vector<2x16x32xf32>
    %60 = vector.shape_cast %59 : vector<2x16x32xf32> to vector<32x32xf32>
    %61 = tpu.concatenate %50, %54, %60 in 1 : vector<32x32xf32>, vector<32x32xf32>, vector<32x32xf32> -> vector<32x96xf32>
    %62 = arith.truncf %61 : vector<32x96xf32> to vector<32x96xbf16>
    %cst_40 = arith.constant dense<0.000000e+00> : vector<32x32xf32>
    %63 = tpu.matmul %62, %2, %cst_40 {dimension_numbers = #tpu.dot_dimension_numbers<[1], [0], [0], [1], [0, 0, 1, 1], [], []>} : vector<32x96xbf16>, vector<96x32xbf16>, vector<32x32xf32> -> vector<32x32xf32>
    %64 = arith.addf %26, %63 : vector<32x32xf32>
    %65 = vector.broadcast %14 : vector<1x32xf32> to vector<32x32xf32>
    %66 = arith.addf %64, %65 : vector<32x32xf32>
    %67 = math.tanh %66 : vector<32x32xf32>
    %68 = arith.mulf %49, %18 : vector<32x32xf32>
    %cst_41 = arith.constant 1.000000e+00 : f32
    %69 = vector.broadcast %cst_41 : f32 to vector<32x32xf32>
    %70 = arith.subf %69, %49 : vector<32x32xf32>
    %71 = arith.mulf %70, %67 : vector<32x32xf32>
    %72 = arith.addf %68, %71 : vector<32x32xf32>
    %73 = vector.shape_cast %72 : vector<32x32xf32> to vector<2x16x32xf32>
    %74 = arith.truncf %73 : vector<2x16x32xf32> to vector<2x16x32xbf16>
    "tpu.trace_start"() <{level = 10 : i32, message = "bnm,bmf->bnf"}> : () -> ()
    %cst_42 = arith.constant dense<0.000000e+00> : vector<2x16x32xf32>
    %75 = tpu.matmul %0, %74, %cst_42 {dimension_numbers = #tpu.dot_dimension_numbers<[2], [1], [1], [2], [0, 0, 0, 1, 1, 2], [0], [0]>} : vector<2x16x16xbf16>, vector<2x16x32xbf16>, vector<2x16x32xf32> -> vector<2x16x32xf32>
    "tpu.trace_stop"() : () -> ()
    %76 = vector.shape_cast %75 : vector<2x16x32xf32> to vector<32x32xf32>
    %77 = arith.truncf %75 : vector<2x16x32xf32> to vector<2x16x32xbf16>
    "tpu.trace_start"() <{level = 10 : i32, message = "bnm,bmf->bnf"}> : () -> ()
    %cst_43 = arith.constant dense<0.000000e+00> : vector<2x16x32xf32>
    %78 = tpu.matmul %0, %77, %cst_43 {dimension_numbers = #tpu.dot_dimension_numbers<[2], [1], [1], [2], [0, 0, 0, 1, 1, 2], [0], [0]>} : vector<2x16x16xbf16>, vector<2x16x32xbf16>, vector<2x16x32xf32> -> vector<2x16x32xf32>
    "tpu.trace_stop"() : () -> ()
    %cst_44 = arith.constant 2.000000e+00 : f32
    %79 = vector.broadcast %cst_44 : f32 to vector<2x16x32xf32>
    %80 = arith.mulf %79, %78 : vector<2x16x32xf32>
    %81 = arith.subf %80, %73 : vector<2x16x32xf32>
    %82 = vector.shape_cast %81 : vector<2x16x32xf32> to vector<32x32xf32>
    %83 = tpu.concatenate %72, %76, %82 in 1 : vector<32x32xf32>, vector<32x32xf32>, vector<32x32xf32> -> vector<32x96xf32>
    %84 = arith.truncf %83 : vector<32x96xf32> to vector<32x96xbf16>
    %cst_45 = arith.constant dense<0.000000e+00> : vector<32x96xf32>
    %85 = tpu.matmul %84, %4, %cst_45 {dimension_numbers = #tpu.dot_dimension_numbers<[1], [0], [0], [1], [0, 0, 1, 1], [], []>} : vector<32x96xbf16>, vector<96x96xbf16>, vector<32x96xf32> -> vector<32x96xf32>
    %86 = vector.extract_strided_slice %85 {offsets = [0, 0], sizes = [32, 64], strides = [1, 1]} : vector<32x96xf32> to vector<32x64xf32>
    %87 = vector.extract_strided_slice %85 {offsets = [0, 64], sizes = [32, 32], strides = [1, 1]} : vector<32x96xf32> to vector<32x32xf32>
    %88 = vector.shape_cast %20 : vector<32x32xf32> to vector<2x16x32xf32>
    %89 = arith.truncf %88 : vector<2x16x32xf32> to vector<2x16x32xbf16>
    "tpu.trace_start"() <{level = 10 : i32, message = "bnm,bmf->bnf"}> : () -> ()
    %cst_46 = arith.constant dense<0.000000e+00> : vector<2x16x32xf32>
    %90 = tpu.matmul %0, %89, %cst_46 {dimension_numbers = #tpu.dot_dimension_numbers<[2], [1], [1], [2], [0, 0, 0, 1, 1, 2], [0], [0]>} : vector<2x16x16xbf16>, vector<2x16x32xbf16>, vector<2x16x32xf32> -> vector<2x16x32xf32>
    "tpu.trace_stop"() : () -> ()
    %91 = vector.shape_cast %90 : vector<2x16x32xf32> to vector<32x32xf32>
    %92 = arith.truncf %90 : vector<2x16x32xf32> to vector<2x16x32xbf16>
    "tpu.trace_start"() <{level = 10 : i32, message = "bnm,bmf->bnf"}> : () -> ()
    %cst_47 = arith.constant dense<0.000000e+00> : vector<2x16x32xf32>
    %93 = tpu.matmul %0, %92, %cst_47 {dimension_numbers = #tpu.dot_dimension_numbers<[2], [1], [1], [2], [0, 0, 0, 1, 1, 2], [0], [0]>} : vector<2x16x16xbf16>, vector<2x16x32xbf16>, vector<2x16x32xf32> -> vector<2x16x32xf32>
    "tpu.trace_stop"() : () -> ()
    %cst_48 = arith.constant 2.000000e+00 : f32
    %94 = vector.broadcast %cst_48 : f32 to vector<2x16x32xf32>
    %95 = arith.mulf %94, %93 : vector<2x16x32xf32>
    %96 = arith.subf %95, %88 : vector<2x16x32xf32>
    %97 = vector.shape_cast %96 : vector<2x16x32xf32> to vector<32x32xf32>
    %98 = tpu.concatenate %20, %91, %97 in 1 : vector<32x32xf32>, vector<32x32xf32>, vector<32x32xf32> -> vector<32x96xf32>
    %99 = arith.truncf %98 : vector<32x96xf32> to vector<32x96xbf16>
    %cst_49 = arith.constant dense<0.000000e+00> : vector<32x64xf32>
    %100 = tpu.matmul %99, %6, %cst_49 {dimension_numbers = #tpu.dot_dimension_numbers<[1], [0], [0], [1], [0, 0, 1, 1], [], []>} : vector<32x96xbf16>, vector<96x64xbf16>, vector<32x64xf32> -> vector<32x64xf32>
    %101 = arith.addf %86, %100 : vector<32x64xf32>
    %102 = vector.broadcast %12 : vector<1x64xf32> to vector<32x64xf32>
    %103 = arith.addf %101, %102 : vector<32x64xf32>
    %104 = arith.negf %103 : vector<32x64xf32>
    %105 = math.exp %104 : vector<32x64xf32>
    %cst_50 = arith.constant 1.000000e+00 : f32
    %106 = vector.broadcast %cst_50 : f32 to vector<32x64xf32>
    %107 = arith.addf %106, %105 : vector<32x64xf32>
    %108 = arith.divf %106, %107 : vector<32x64xf32>
    %109 = vector.extract_strided_slice %108 {offsets = [0, 0], sizes = [32, 32], strides = [1, 1]} : vector<32x64xf32> to vector<32x32xf32>
    %110 = vector.extract_strided_slice %108 {offsets = [0, 32], sizes = [32, 32], strides = [1, 1]} : vector<32x64xf32> to vector<32x32xf32>
    %111 = arith.mulf %109, %20 : vector<32x32xf32>
    %112 = vector.shape_cast %111 : vector<32x32xf32> to vector<2x16x32xf32>
    %113 = arith.truncf %112 : vector<2x16x32xf32> to vector<2x16x32xbf16>
    "tpu.trace_start"() <{level = 10 : i32, message = "bnm,bmf->bnf"}> : () -> ()
    %cst_51 = arith.constant dense<0.000000e+00> : vector<2x16x32xf32>
    %114 = tpu.matmul %0, %113, %cst_51 {dimension_numbers = #tpu.dot_dimension_numbers<[2], [1], [1], [2], [0, 0, 0, 1, 1, 2], [0], [0]>} : vector<2x16x16xbf16>, vector<2x16x32xbf16>, vector<2x16x32xf32> -> vector<2x16x32xf32>
    "tpu.trace_stop"() : () -> ()
    %115 = vector.shape_cast %114 : vector<2x16x32xf32> to vector<32x32xf32>
    %116 = arith.truncf %114 : vector<2x16x32xf32> to vector<2x16x32xbf16>
    "tpu.trace_start"() <{level = 10 : i32, message = "bnm,bmf->bnf"}> : () -> ()
    %cst_52 = arith.constant dense<0.000000e+00> : vector<2x16x32xf32>
    %117 = tpu.matmul %0, %116, %cst_52 {dimension_numbers = #tpu.dot_dimension_numbers<[2], [1], [1], [2], [0, 0, 0, 1, 1, 2], [0], [0]>} : vector<2x16x16xbf16>, vector<2x16x32xbf16>, vector<2x16x32xf32> -> vector<2x16x32xf32>
    "tpu.trace_stop"() : () -> ()
    %cst_53 = arith.constant 2.000000e+00 : f32
    %118 = vector.broadcast %cst_53 : f32 to vector<2x16x32xf32>
    %119 = arith.mulf %118, %117 : vector<2x16x32xf32>
    %120 = arith.subf %119, %112 : vector<2x16x32xf32>
    %121 = vector.shape_cast %120 : vector<2x16x32xf32> to vector<32x32xf32>
    %122 = tpu.concatenate %111, %115, %121 in 1 : vector<32x32xf32>, vector<32x32xf32>, vector<32x32xf32> -> vector<32x96xf32>
    %123 = arith.truncf %122 : vector<32x96xf32> to vector<32x96xbf16>
    %cst_54 = arith.constant dense<0.000000e+00> : vector<32x32xf32>
    %124 = tpu.matmul %123, %8, %cst_54 {dimension_numbers = #tpu.dot_dimension_numbers<[1], [0], [0], [1], [0, 0, 1, 1], [], []>} : vector<32x96xbf16>, vector<96x32xbf16>, vector<32x32xf32> -> vector<32x32xf32>
    %125 = arith.addf %87, %124 : vector<32x32xf32>
    %126 = vector.broadcast %16 : vector<1x32xf32> to vector<32x32xf32>
    %127 = arith.addf %125, %126 : vector<32x32xf32>
    %128 = math.tanh %127 : vector<32x32xf32>
    %129 = arith.mulf %110, %20 : vector<32x32xf32>
    %cst_55 = arith.constant 1.000000e+00 : f32
    %130 = vector.broadcast %cst_55 : f32 to vector<32x32xf32>
    %131 = arith.subf %130, %110 : vector<32x32xf32>
    %132 = arith.mulf %131, %128 : vector<32x32xf32>
    %133 = arith.addf %129, %132 : vector<32x32xf32>
    %134 = arith.index_cast %c0_i32 : i32 to index
    %c0_56 = arith.constant 0 : index
    %c0_57 = arith.constant 0 : index
    %135 = vector.load %arg9[%134, %c0_56, %c0_57] : memref<7x32x32xf32, #tpu.memory_space<vmem>>, vector<1x32x32xf32>
    %136 = vector.shape_cast %135 : vector<1x32x32xf32> to vector<32x32xf32>
    %137 = vector.shape_cast %133 : vector<32x32xf32> to vector<1x32x32xf32>
    tpu.vector_store %arg9[%134, %c0_56, %c0_57], %137 {strides = array<i32>} : memref<7x32x32xf32, #tpu.memory_space<vmem>>, vector<1x32x32xf32>,
    %c1_i32 = arith.constant 1 : i32
    %138 = arith.index_cast %c1_i32 : i32 to index
    %c0_58 = arith.constant 0 : index
    %c0_59 = arith.constant 0 : index
    %139 = vector.load %arg0[%138, %c0_58, %c0_59] : memref<7x32x96xbf16, #tpu.memory_space<vmem>>, vector<1x32x96xbf16>
    %140 = vector.shape_cast %139 : vector<1x32x96xbf16> to vector<32x96xbf16>
    %141 = arith.extf %140 : vector<32x96xbf16> to vector<32x96xf32>
    %142 = vector.extract_strided_slice %141 {offsets = [0, 0], sizes = [32, 64], strides = [1, 1]} : vector<32x96xf32> to vector<32x64xf32>
    %143 = vector.extract_strided_slice %141 {offsets = [0, 64], sizes = [32, 32], strides = [1, 1]} : vector<32x96xf32> to vector<32x32xf32>
    %144 = vector.shape_cast %72 : vector<32x32xf32> to vector<2x16x32xf32>
    %145 = arith.truncf %144 : vector<2x16x32xf32> to vector<2x16x32xbf16>
    "tpu.trace_start"() <{level = 10 : i32, message = "bnm,bmf->bnf"}> : () -> ()
    %cst_60 = arith.constant dense<0.000000e+00> : vector<2x16x32xf32>
    %146 = tpu.matmul %0, %145, %cst_60 {dimension_numbers = #tpu.dot_dimension_numbers<[2], [1], [1], [2], [0, 0, 0, 1, 1, 2], [0], [0]>} : vector<2x16x16xbf16>, vector<2x16x32xbf16>, vector<2x16x32xf32> -> vector<2x16x32xf32>
    "tpu.trace_stop"() : () -> ()
    %147 = vector.shape_cast %146 : vector<2x16x32xf32> to vector<32x32xf32>
    %148 = arith.truncf %146 : vector<2x16x32xf32> to vector<2x16x32xbf16>
    "tpu.trace_start"() <{level = 10 : i32, message = "bnm,bmf->bnf"}> : () -> ()
    %cst_61 = arith.constant dense<0.000000e+00> : vector<2x16x32xf32>
    %149 = tpu.matmul %0, %148, %cst_61 {dimension_numbers = #tpu.dot_dimension_numbers<[2], [1], [1], [2], [0, 0, 0, 1, 1, 2], [0], [0]>} : vector<2x16x16xbf16>, vector<2x16x32xbf16>, vector<2x16x32xf32> -> vector<2x16x32xf32>
    "tpu.trace_stop"() : () -> ()
    %cst_62 = arith.constant 2.000000e+00 : f32
    %150 = vector.broadcast %cst_62 : f32 to vector<2x16x32xf32>
    %151 = arith.mulf %150, %149 : vector<2x16x32xf32>
    %152 = arith.subf %151, %144 : vector<2x16x32xf32>
    %153 = vector.shape_cast %152 : vector<2x16x32xf32> to vector<32x32xf32>
    %154 = tpu.concatenate %72, %147, %153 in 1 : vector<32x32xf32>, vector<32x32xf32>, vector<32x32xf32> -> vector<32x96xf32>
    %155 = arith.truncf %154 : vector<32x96xf32> to vector<32x96xbf16>
    %cst_63 = arith.constant dense<0.000000e+00> : vector<32x64xf32>
    %156 = tpu.matmul %155, %1, %cst_63 {dimension_numbers = #tpu.dot_dimension_numbers<[1], [0], [0], [1], [0, 0, 1, 1], [], []>} : vector<32x96xbf16>, vector<96x64xbf16>, vector<32x64xf32> -> vector<32x64xf32>
    %157 = arith.addf %142, %156 : vector<32x64xf32>
    %158 = vector.broadcast %10 : vector<1x64xf32> to vector<32x64xf32>
    %159 = arith.addf %157, %158 : vector<32x64xf32>
    %160 = arith.negf %159 : vector<32x64xf32>
    %161 = math.exp %160 : vector<32x64xf32>
    %cst_64 = arith.constant 1.000000e+00 : f32
    %162 = vector.broadcast %cst_64 : f32 to vector<32x64xf32>
    %163 = arith.addf %162, %161 : vector<32x64xf32>
    %164 = arith.divf %162, %163 : vector<32x64xf32>
    %165 = vector.extract_strided_slice %164 {offsets = [0, 0], sizes = [32, 32], strides = [1, 1]} : vector<32x64xf32> to vector<32x32xf32>
    %166 = vector.extract_strided_slice %164 {offsets = [0, 32], sizes = [32, 32], strides = [1, 1]} : vector<32x64xf32> to vector<32x32xf32>
    %167 = arith.mulf %165, %72 : vector<32x32xf32>
    %168 = vector.shape_cast %167 : vector<32x32xf32> to vector<2x16x32xf32>
    %169 = arith.truncf %168 : vector<2x16x32xf32> to vector<2x16x32xbf16>
    "tpu.trace_start"() <{level = 10 : i32, message = "bnm,bmf->bnf"}> : () -> ()
    %cst_65 = arith.constant dense<0.000000e+00> : vector<2x16x32xf32>
    %170 = tpu.matmul %0, %169, %cst_65 {dimension_numbers = #tpu.dot_dimension_numbers<[2], [1], [1], [2], [0, 0, 0, 1, 1, 2], [0], [0]>} : vector<2x16x16xbf16>, vector<2x16x32xbf16>, vector<2x16x32xf32> -> vector<2x16x32xf32>
    "tpu.trace_stop"() : () -> ()
    %171 = vector.shape_cast %170 : vector<2x16x32xf32> to vector<32x32xf32>
    %172 = arith.truncf %170 : vector<2x16x32xf32> to vector<2x16x32xbf16>
    "tpu.trace_start"() <{level = 10 : i32, message = "bnm,bmf->bnf"}> : () -> ()
    %cst_66 = arith.constant dense<0.000000e+00> : vector<2x16x32xf32>
    %173 = tpu.matmul %0, %172, %cst_66 {dimension_numbers = #tpu.dot_dimension_numbers<[2], [1], [1], [2], [0, 0, 0, 1, 1, 2], [0], [0]>} : vector<2x16x16xbf16>, vector<2x16x32xbf16>, vector<2x16x32xf32> -> vector<2x16x32xf32>
    "tpu.trace_stop"() : () -> ()
    %cst_67 = arith.constant 2.000000e+00 : f32
    %174 = vector.broadcast %cst_67 : f32 to vector<2x16x32xf32>
    %175 = arith.mulf %174, %173 : vector<2x16x32xf32>
    %176 = arith.subf %175, %168 : vector<2x16x32xf32>
    %177 = vector.shape_cast %176 : vector<2x16x32xf32> to vector<32x32xf32>
    %178 = tpu.concatenate %167, %171, %177 in 1 : vector<32x32xf32>, vector<32x32xf32>, vector<32x32xf32> -> vector<32x96xf32>
    %179 = arith.truncf %178 : vector<32x96xf32> to vector<32x96xbf16>
    %cst_68 = arith.constant dense<0.000000e+00> : vector<32x32xf32>
    %180 = tpu.matmul %179, %2, %cst_68 {dimension_numbers = #tpu.dot_dimension_numbers<[1], [0], [0], [1], [0, 0, 1, 1], [], []>} : vector<32x96xbf16>, vector<96x32xbf16>, vector<32x32xf32> -> vector<32x32xf32>
    %181 = arith.addf %143, %180 : vector<32x32xf32>
    %182 = vector.broadcast %14 : vector<1x32xf32> to vector<32x32xf32>
    %183 = arith.addf %181, %182 : vector<32x32xf32>
    %184 = math.tanh %183 : vector<32x32xf32>
    %185 = arith.mulf %166, %72 : vector<32x32xf32>
    %cst_69 = arith.constant 1.000000e+00 : f32
    %186 = vector.broadcast %cst_69 : f32 to vector<32x32xf32>
    %187 = arith.subf %186, %166 : vector<32x32xf32>
    %188 = arith.mulf %187, %184 : vector<32x32xf32>
    %189 = arith.addf %185, %188 : vector<32x32xf32>
    %190 = vector.shape_cast %189 : vector<32x32xf32> to vector<2x16x32xf32>
    %191 = arith.truncf %190 : vector<2x16x32xf32> to vector<2x16x32xbf16>
    "tpu.trace_start"() <{level = 10 : i32, message = "bnm,bmf->bnf"}> : () -> ()
    %cst_70 = arith.constant dense<0.000000e+00> : vector<2x16x32xf32>
    %192 = tpu.matmul %0, %191, %cst_70 {dimension_numbers = #tpu.dot_dimension_numbers<[2], [1], [1], [2], [0, 0, 0, 1, 1, 2], [0], [0]>} : vector<2x16x16xbf16>, vector<2x16x32xbf16>, vector<2x16x32xf32> -> vector<2x16x32xf32>
    "tpu.trace_stop"() : () -> ()
    %193 = vector.shape_cast %192 : vector<2x16x32xf32> to vector<32x32xf32>
    %194 = arith.truncf %192 : vector<2x16x32xf32> to vector<2x16x32xbf16>
    "tpu.trace_start"() <{level = 10 : i32, message = "bnm,bmf->bnf"}> : () -> ()
    %cst_71 = arith.constant dense<0.000000e+00> : vector<2x16x32xf32>
    %195 = tpu.matmul %0, %194, %cst_71 {dimension_numbers = #tpu.dot_dimension_numbers<[2], [1], [1], [2], [0, 0, 0, 1, 1, 2], [0], [0]>} : vector<2x16x16xbf16>, vector<2x16x32xbf16>, vector<2x16x32xf32> -> vector<2x16x32xf32>
    "tpu.trace_stop"() : () -> ()
    %cst_72 = arith.constant 2.000000e+00 : f32
    %196 = vector.broadcast %cst_72 : f32 to vector<2x16x32xf32>
    %197 = arith.mulf %196, %195 : vector<2x16x32xf32>
    %198 = arith.subf %197, %190 : vector<2x16x32xf32>
    %199 = vector.shape_cast %198 : vector<2x16x32xf32> to vector<32x32xf32>
    %200 = tpu.concatenate %189, %193, %199 in 1 : vector<32x32xf32>, vector<32x32xf32>, vector<32x32xf32> -> vector<32x96xf32>
    %201 = arith.truncf %200 : vector<32x96xf32> to vector<32x96xbf16>
    %cst_73 = arith.constant dense<0.000000e+00> : vector<32x96xf32>
    %202 = tpu.matmul %201, %4, %cst_73 {dimension_numbers = #tpu.dot_dimension_numbers<[1], [0], [0], [1], [0, 0, 1, 1], [], []>} : vector<32x96xbf16>, vector<96x96xbf16>, vector<32x96xf32> -> vector<32x96xf32>
    %203 = vector.extract_strided_slice %202 {offsets = [0, 0], sizes = [32, 64], strides = [1, 1]} : vector<32x96xf32> to vector<32x64xf32>
    %204 = vector.extract_strided_slice %202 {offsets = [0, 64], sizes = [32, 32], strides = [1, 1]} : vector<32x96xf32> to vector<32x32xf32>
    %205 = vector.shape_cast %133 : vector<32x32xf32> to vector<2x16x32xf32>
    %206 = arith.truncf %205 : vector<2x16x32xf32> to vector<2x16x32xbf16>
    "tpu.trace_start"() <{level = 10 : i32, message = "bnm,bmf->bnf"}> : () -> ()
    %cst_74 = arith.constant dense<0.000000e+00> : vector<2x16x32xf32>
    %207 = tpu.matmul %0, %206, %cst_74 {dimension_numbers = #tpu.dot_dimension_numbers<[2], [1], [1], [2], [0, 0, 0, 1, 1, 2], [0], [0]>} : vector<2x16x16xbf16>, vector<2x16x32xbf16>, vector<2x16x32xf32> -> vector<2x16x32xf32>
    "tpu.trace_stop"() : () -> ()
    %208 = vector.shape_cast %207 : vector<2x16x32xf32> to vector<32x32xf32>
    %209 = arith.truncf %207 : vector<2x16x32xf32> to vector<2x16x32xbf16>
    "tpu.trace_start"() <{level = 10 : i32, message = "bnm,bmf->bnf"}> : () -> ()
    %cst_75 = arith.constant dense<0.000000e+00> : vector<2x16x32xf32>
    %210 = tpu.matmul %0, %209, %cst_75 {dimension_numbers = #tpu.dot_dimension_numbers<[2], [1], [1], [2], [0, 0, 0, 1, 1, 2], [0], [0]>} : vector<2x16x16xbf16>, vector<2x16x32xbf16>, vector<2x16x32xf32> -> vector<2x16x32xf32>
    "tpu.trace_stop"() : () -> ()
    %cst_76 = arith.constant 2.000000e+00 : f32
    %211 = vector.broadcast %cst_76 : f32 to vector<2x16x32xf32>
    %212 = arith.mulf %211, %210 : vector<2x16x32xf32>
    %213 = arith.subf %212, %205 : vector<2x16x32xf32>
    %214 = vector.shape_cast %213 : vector<2x16x32xf32> to vector<32x32xf32>
    %215 = tpu.concatenate %133, %208, %214 in 1 : vector<32x32xf32>, vector<32x32xf32>, vector<32x32xf32> -> vector<32x96xf32>
    %216 = arith.truncf %215 : vector<32x96xf32> to vector<32x96xbf16>
    %cst_77 = arith.constant dense<0.000000e+00> : vector<32x64xf32>
    %217 = tpu.matmul %216, %6, %cst_77 {dimension_numbers = #tpu.dot_dimension_numbers<[1], [0], [0], [1], [0, 0, 1, 1], [], []>} : vector<32x96xbf16>, vector<96x64xbf16>, vector<32x64xf32> -> vector<32x64xf32>
    %218 = arith.addf %203, %217 : vector<32x64xf32>
    %219 = vector.broadcast %12 : vector<1x64xf32> to vector<32x64xf32>
    %220 = arith.addf %218, %219 : vector<32x64xf32>
    %221 = arith.negf %220 : vector<32x64xf32>
    %222 = math.exp %221 : vector<32x64xf32>
    %cst_78 = arith.constant 1.000000e+00 : f32
    %223 = vector.broadcast %cst_78 : f32 to vector<32x64xf32>
    %224 = arith.addf %223, %222 : vector<32x64xf32>
    %225 = arith.divf %223, %224 : vector<32x64xf32>
    %226 = vector.extract_strided_slice %225 {offsets = [0, 0], sizes = [32, 32], strides = [1, 1]} : vector<32x64xf32> to vector<32x32xf32>
    %227 = vector.extract_strided_slice %225 {offsets = [0, 32], sizes = [32, 32], strides = [1, 1]} : vector<32x64xf32> to vector<32x32xf32>
    %228 = arith.mulf %226, %133 : vector<32x32xf32>
    %229 = vector.shape_cast %228 : vector<32x32xf32> to vector<2x16x32xf32>
    %230 = arith.truncf %229 : vector<2x16x32xf32> to vector<2x16x32xbf16>
    "tpu.trace_start"() <{level = 10 : i32, message = "bnm,bmf->bnf"}> : () -> ()
    %cst_79 = arith.constant dense<0.000000e+00> : vector<2x16x32xf32>
    %231 = tpu.matmul %0, %230, %cst_79 {dimension_numbers = #tpu.dot_dimension_numbers<[2], [1], [1], [2], [0, 0, 0, 1, 1, 2], [0], [0]>} : vector<2x16x16xbf16>, vector<2x16x32xbf16>, vector<2x16x32xf32> -> vector<2x16x32xf32>
    "tpu.trace_stop"() : () -> ()
    %232 = vector.shape_cast %231 : vector<2x16x32xf32> to vector<32x32xf32>
    %233 = arith.truncf %231 : vector<2x16x32xf32> to vector<2x16x32xbf16>
    "tpu.trace_start"() <{level = 10 : i32, message = "bnm,bmf->bnf"}> : () -> ()
    %cst_80 = arith.constant dense<0.000000e+00> : vector<2x16x32xf32>
    %234 = tpu.matmul %0, %233, %cst_80 {dimension_numbers = #tpu.dot_dimension_numbers<[2], [1], [1], [2], [0, 0, 0, 1, 1, 2], [0], [0]>} : vector<2x16x16xbf16>, vector<2x16x32xbf16>, vector<2x16x32xf32> -> vector<2x16x32xf32>
    "tpu.trace_stop"() : () -> ()
    %cst_81 = arith.constant 2.000000e+00 : f32
    %235 = vector.broadcast %cst_81 : f32 to vector<2x16x32xf32>
    %236 = arith.mulf %235, %234 : vector<2x16x32xf32>
    %237 = arith.subf %236, %229 : vector<2x16x32xf32>
    %238 = vector.shape_cast %237 : vector<2x16x32xf32> to vector<32x32xf32>
    %239 = tpu.concatenate %228, %232, %238 in 1 : vector<32x32xf32>, vector<32x32xf32>, vector<32x32xf32> -> vector<32x96xf32>
    %240 = arith.truncf %239 : vector<32x96xf32> to vector<32x96xbf16>
    %cst_82 = arith.constant dense<0.000000e+00> : vector<32x32xf32>
    %241 = tpu.matmul %240, %8, %cst_82 {dimension_numbers = #tpu.dot_dimension_numbers<[1], [0], [0], [1], [0, 0, 1, 1], [], []>} : vector<32x96xbf16>, vector<96x32xbf16>, vector<32x32xf32> -> vector<32x32xf32>
    %242 = arith.addf %204, %241 : vector<32x32xf32>
    %243 = vector.broadcast %16 : vector<1x32xf32> to vector<32x32xf32>
    %244 = arith.addf %242, %243 : vector<32x32xf32>
    %245 = math.tanh %244 : vector<32x32xf32>
    %246 = arith.mulf %227, %133 : vector<32x32xf32>
    %cst_83 = arith.constant 1.000000e+00 : f32
    %247 = vector.broadcast %cst_83 : f32 to vector<32x32xf32>
    %248 = arith.subf %247, %227 : vector<32x32xf32>
    %249 = arith.mulf %248, %245 : vector<32x32xf32>
    %250 = arith.addf %246, %249 : vector<32x32xf32>
    %251 = arith.index_cast %c1_i32 : i32 to index
    %c0_84 = arith.constant 0 : index
    %c0_85 = arith.constant 0 : index
    %252 = vector.load %arg9[%251, %c0_84, %c0_85] : memref<7x32x32xf32, #tpu.memory_space<vmem>>, vector<1x32x32xf32>
    %253 = vector.shape_cast %252 : vector<1x32x32xf32> to vector<32x32xf32>
    %254 = vector.shape_cast %250 : vector<32x32xf32> to vector<1x32x32xf32>
    tpu.vector_store %arg9[%251, %c0_84, %c0_85], %254 {strides = array<i32>} : memref<7x32x32xf32, #tpu.memory_space<vmem>>, vector<1x32x32xf32>,
    %c2_i32 = arith.constant 2 : i32
    %255 = arith.index_cast %c2_i32 : i32 to index
    %c0_86 = arith.constant 0 : index
    %c0_87 = arith.constant 0 : index
    %256 = vector.load %arg0[%255, %c0_86, %c0_87] : memref<7x32x96xbf16, #tpu.memory_space<vmem>>, vector<1x32x96xbf16>
    %257 = vector.shape_cast %256 : vector<1x32x96xbf16> to vector<32x96xbf16>
    %258 = arith.extf %257 : vector<32x96xbf16> to vector<32x96xf32>
    %259 = vector.extract_strided_slice %258 {offsets = [0, 0], sizes = [32, 64], strides = [1, 1]} : vector<32x96xf32> to vector<32x64xf32>
    %260 = vector.extract_strided_slice %258 {offsets = [0, 64], sizes = [32, 32], strides = [1, 1]} : vector<32x96xf32> to vector<32x32xf32>
    %261 = vector.shape_cast %189 : vector<32x32xf32> to vector<2x16x32xf32>
    %262 = arith.truncf %261 : vector<2x16x32xf32> to vector<2x16x32xbf16>
    "tpu.trace_start"() <{level = 10 : i32, message = "bnm,bmf->bnf"}> : () -> ()
    %cst_88 = arith.constant dense<0.000000e+00> : vector<2x16x32xf32>
    %263 = tpu.matmul %0, %262, %cst_88 {dimension_numbers = #tpu.dot_dimension_numbers<[2], [1], [1], [2], [0, 0, 0, 1, 1, 2], [0], [0]>} : vector<2x16x16xbf16>, vector<2x16x32xbf16>, vector<2x16x32xf32> -> vector<2x16x32xf32>
    "tpu.trace_stop"() : () -> ()
    %264 = vector.shape_cast %263 : vector<2x16x32xf32> to vector<32x32xf32>
    %265 = arith.truncf %263 : vector<2x16x32xf32> to vector<2x16x32xbf16>
    "tpu.trace_start"() <{level = 10 : i32, message = "bnm,bmf->bnf"}> : () -> ()
    %cst_89 = arith.constant dense<0.000000e+00> : vector<2x16x32xf32>
    %266 = tpu.matmul %0, %265, %cst_89 {dimension_numbers = #tpu.dot_dimension_numbers<[2], [1], [1], [2], [0, 0, 0, 1, 1, 2], [0], [0]>} : vector<2x16x16xbf16>, vector<2x16x32xbf16>, vector<2x16x32xf32> -> vector<2x16x32xf32>
    "tpu.trace_stop"() : () -> ()
    %cst_90 = arith.constant 2.000000e+00 : f32
    %267 = vector.broadcast %cst_90 : f32 to vector<2x16x32xf32>
    %268 = arith.mulf %267, %266 : vector<2x16x32xf32>
    %269 = arith.subf %268, %261 : vector<2x16x32xf32>
    %270 = vector.shape_cast %269 : vector<2x16x32xf32> to vector<32x32xf32>
    %271 = tpu.concatenate %189, %264, %270 in 1 : vector<32x32xf32>, vector<32x32xf32>, vector<32x32xf32> -> vector<32x96xf32>
    %272 = arith.truncf %271 : vector<32x96xf32> to vector<32x96xbf16>
    %cst_91 = arith.constant dense<0.000000e+00> : vector<32x64xf32>
    %273 = tpu.matmul %272, %1, %cst_91 {dimension_numbers = #tpu.dot_dimension_numbers<[1], [0], [0], [1], [0, 0, 1, 1], [], []>} : vector<32x96xbf16>, vector<96x64xbf16>, vector<32x64xf32> -> vector<32x64xf32>
    %274 = arith.addf %259, %273 : vector<32x64xf32>
    %275 = vector.broadcast %10 : vector<1x64xf32> to vector<32x64xf32>
    %276 = arith.addf %274, %275 : vector<32x64xf32>
    %277 = arith.negf %276 : vector<32x64xf32>
    %278 = math.exp %277 : vector<32x64xf32>
    %cst_92 = arith.constant 1.000000e+00 : f32
    %279 = vector.broadcast %cst_92 : f32 to vector<32x64xf32>
    %280 = arith.addf %279, %278 : vector<32x64xf32>
    %281 = arith.divf %279, %280 : vector<32x64xf32>
    %282 = vector.extract_strided_slice %281 {offsets = [0, 0], sizes = [32, 32], strides = [1, 1]} : vector<32x64xf32> to vector<32x32xf32>
    %283 = vector.extract_strided_slice %281 {offsets = [0, 32], sizes = [32, 32], strides = [1, 1]} : vector<32x64xf32> to vector<32x32xf32>
    %284 = arith.mulf %282, %189 : vector<32x32xf32>
    %285 = vector.shape_cast %284 : vector<32x32xf32> to vector<2x16x32xf32>
    %286 = arith.truncf %285 : vector<2x16x32xf32> to vector<2x16x32xbf16>
    "tpu.trace_start"() <{level = 10 : i32, message = "bnm,bmf->bnf"}> : () -> ()
    %cst_93 = arith.constant dense<0.000000e+00> : vector<2x16x32xf32>
    %287 = tpu.matmul %0, %286, %cst_93 {dimension_numbers = #tpu.dot_dimension_numbers<[2], [1], [1], [2], [0, 0, 0, 1, 1, 2], [0], [0]>} : vector<2x16x16xbf16>, vector<2x16x32xbf16>, vector<2x16x32xf32> -> vector<2x16x32xf32>
    "tpu.trace_stop"() : () -> ()
    %288 = vector.shape_cast %287 : vector<2x16x32xf32> to vector<32x32xf32>
    %289 = arith.truncf %287 : vector<2x16x32xf32> to vector<2x16x32xbf16>
    "tpu.trace_start"() <{level = 10 : i32, message = "bnm,bmf->bnf"}> : () -> ()
    %cst_94 = arith.constant dense<0.000000e+00> : vector<2x16x32xf32>
    %290 = tpu.matmul %0, %289, %cst_94 {dimension_numbers = #tpu.dot_dimension_numbers<[2], [1], [1], [2], [0, 0, 0, 1, 1, 2], [0], [0]>} : vector<2x16x16xbf16>, vector<2x16x32xbf16>, vector<2x16x32xf32> -> vector<2x16x32xf32>
    "tpu.trace_stop"() : () -> ()
    %cst_95 = arith.constant 2.000000e+00 : f32
    %291 = vector.broadcast %cst_95 : f32 to vector<2x16x32xf32>
    %292 = arith.mulf %291, %290 : vector<2x16x32xf32>
    %293 = arith.subf %292, %285 : vector<2x16x32xf32>
    %294 = vector.shape_cast %293 : vector<2x16x32xf32> to vector<32x32xf32>
    %295 = tpu.concatenate %284, %288, %294 in 1 : vector<32x32xf32>, vector<32x32xf32>, vector<32x32xf32> -> vector<32x96xf32>
    %296 = arith.truncf %295 : vector<32x96xf32> to vector<32x96xbf16>
    %cst_96 = arith.constant dense<0.000000e+00> : vector<32x32xf32>
    %297 = tpu.matmul %296, %2, %cst_96 {dimension_numbers = #tpu.dot_dimension_numbers<[1], [0], [0], [1], [0, 0, 1, 1], [], []>} : vector<32x96xbf16>, vector<96x32xbf16>, vector<32x32xf32> -> vector<32x32xf32>
    %298 = arith.addf %260, %297 : vector<32x32xf32>
    %299 = vector.broadcast %14 : vector<1x32xf32> to vector<32x32xf32>
    %300 = arith.addf %298, %299 : vector<32x32xf32>
    %301 = math.tanh %300 : vector<32x32xf32>
    %302 = arith.mulf %283, %189 : vector<32x32xf32>
    %cst_97 = arith.constant 1.000000e+00 : f32
    %303 = vector.broadcast %cst_97 : f32 to vector<32x32xf32>
    %304 = arith.subf %303, %283 : vector<32x32xf32>
    %305 = arith.mulf %304, %301 : vector<32x32xf32>
    %306 = arith.addf %302, %305 : vector<32x32xf32>
    %307 = vector.shape_cast %306 : vector<32x32xf32> to vector<2x16x32xf32>
    %308 = arith.truncf %307 : vector<2x16x32xf32> to vector<2x16x32xbf16>
    "tpu.trace_start"() <{level = 10 : i32, message = "bnm,bmf->bnf"}> : () -> ()
    %cst_98 = arith.constant dense<0.000000e+00> : vector<2x16x32xf32>
    %309 = tpu.matmul %0, %308, %cst_98 {dimension_numbers = #tpu.dot_dimension_numbers<[2], [1], [1], [2], [0, 0, 0, 1, 1, 2], [0], [0]>} : vector<2x16x16xbf16>, vector<2x16x32xbf16>, vector<2x16x32xf32> -> vector<2x16x32xf32>
    "tpu.trace_stop"() : () -> ()
    %310 = vector.shape_cast %309 : vector<2x16x32xf32> to vector<32x32xf32>
    %311 = arith.truncf %309 : vector<2x16x32xf32> to vector<2x16x32xbf16>
    "tpu.trace_start"() <{level = 10 : i32, message = "bnm,bmf->bnf"}> : () -> ()
    %cst_99 = arith.constant dense<0.000000e+00> : vector<2x16x32xf32>
    %312 = tpu.matmul %0, %311, %cst_99 {dimension_numbers = #tpu.dot_dimension_numbers<[2], [1], [1], [2], [0, 0, 0, 1, 1, 2], [0], [0]>} : vector<2x16x16xbf16>, vector<2x16x32xbf16>, vector<2x16x32xf32> -> vector<2x16x32xf32>
    "tpu.trace_stop"() : () -> ()
    %cst_100 = arith.constant 2.000000e+00 : f32
    %313 = vector.broadcast %cst_100 : f32 to vector<2x16x32xf32>
    %314 = arith.mulf %313, %312 : vector<2x16x32xf32>
    %315 = arith.subf %314, %307 : vector<2x16x32xf32>
    %316 = vector.shape_cast %315 : vector<2x16x32xf32> to vector<32x32xf32>
    %317 = tpu.concatenate %306, %310, %316 in 1 : vector<32x32xf32>, vector<32x32xf32>, vector<32x32xf32> -> vector<32x96xf32>
    %318 = arith.truncf %317 : vector<32x96xf32> to vector<32x96xbf16>
    %cst_101 = arith.constant dense<0.000000e+00> : vector<32x96xf32>
    %319 = tpu.matmul %318, %4, %cst_101 {dimension_numbers = #tpu.dot_dimension_numbers<[1], [0], [0], [1], [0, 0, 1, 1], [], []>} : vector<32x96xbf16>, vector<96x96xbf16>, vector<32x96xf32> -> vector<32x96xf32>
    %320 = vector.extract_strided_slice %319 {offsets = [0, 0], sizes = [32, 64], strides = [1, 1]} : vector<32x96xf32> to vector<32x64xf32>
    %321 = vector.extract_strided_slice %319 {offsets = [0, 64], sizes = [32, 32], strides = [1, 1]} : vector<32x96xf32> to vector<32x32xf32>
    %322 = vector.shape_cast %250 : vector<32x32xf32> to vector<2x16x32xf32>
    %323 = arith.truncf %322 : vector<2x16x32xf32> to vector<2x16x32xbf16>
    "tpu.trace_start"() <{level = 10 : i32, message = "bnm,bmf->bnf"}> : () -> ()
    %cst_102 = arith.constant dense<0.000000e+00> : vector<2x16x32xf32>
    %324 = tpu.matmul %0, %323, %cst_102 {dimension_numbers = #tpu.dot_dimension_numbers<[2], [1], [1], [2], [0, 0, 0, 1, 1, 2], [0], [0]>} : vector<2x16x16xbf16>, vector<2x16x32xbf16>, vector<2x16x32xf32> -> vector<2x16x32xf32>
    "tpu.trace_stop"() : () -> ()
    %325 = vector.shape_cast %324 : vector<2x16x32xf32> to vector<32x32xf32>
    %326 = arith.truncf %324 : vector<2x16x32xf32> to vector<2x16x32xbf16>
    "tpu.trace_start"() <{level = 10 : i32, message = "bnm,bmf->bnf"}> : () -> ()
    %cst_103 = arith.constant dense<0.000000e+00> : vector<2x16x32xf32>
    %327 = tpu.matmul %0, %326, %cst_103 {dimension_numbers = #tpu.dot_dimension_numbers<[2], [1], [1], [2], [0, 0, 0, 1, 1, 2], [0], [0]>} : vector<2x16x16xbf16>, vector<2x16x32xbf16>, vector<2x16x32xf32> -> vector<2x16x32xf32>
    "tpu.trace_stop"() : () -> ()
    %cst_104 = arith.constant 2.000000e+00 : f32
    %328 = vector.broadcast %cst_104 : f32 to vector<2x16x32xf32>
    %329 = arith.mulf %328, %327 : vector<2x16x32xf32>
    %330 = arith.subf %329, %322 : vector<2x16x32xf32>
    %331 = vector.shape_cast %330 : vector<2x16x32xf32> to vector<32x32xf32>
    %332 = tpu.concatenate %250, %325, %331 in 1 : vector<32x32xf32>, vector<32x32xf32>, vector<32x32xf32> -> vector<32x96xf32>
    %333 = arith.truncf %332 : vector<32x96xf32> to vector<32x96xbf16>
    %cst_105 = arith.constant dense<0.000000e+00> : vector<32x64xf32>
    %334 = tpu.matmul %333, %6, %cst_105 {dimension_numbers = #tpu.dot_dimension_numbers<[1], [0], [0], [1], [0, 0, 1, 1], [], []>} : vector<32x96xbf16>, vector<96x64xbf16>, vector<32x64xf32> -> vector<32x64xf32>
    %335 = arith.addf %320, %334 : vector<32x64xf32>
    %336 = vector.broadcast %12 : vector<1x64xf32> to vector<32x64xf32>
    %337 = arith.addf %335, %336 : vector<32x64xf32>
    %338 = arith.negf %337 : vector<32x64xf32>
    %339 = math.exp %338 : vector<32x64xf32>
    %cst_106 = arith.constant 1.000000e+00 : f32
    %340 = vector.broadcast %cst_106 : f32 to vector<32x64xf32>
    %341 = arith.addf %340, %339 : vector<32x64xf32>
    %342 = arith.divf %340, %341 : vector<32x64xf32>
    %343 = vector.extract_strided_slice %342 {offsets = [0, 0], sizes = [32, 32], strides = [1, 1]} : vector<32x64xf32> to vector<32x32xf32>
    %344 = vector.extract_strided_slice %342 {offsets = [0, 32], sizes = [32, 32], strides = [1, 1]} : vector<32x64xf32> to vector<32x32xf32>
    %345 = arith.mulf %343, %250 : vector<32x32xf32>
    %346 = vector.shape_cast %345 : vector<32x32xf32> to vector<2x16x32xf32>
    %347 = arith.truncf %346 : vector<2x16x32xf32> to vector<2x16x32xbf16>
    "tpu.trace_start"() <{level = 10 : i32, message = "bnm,bmf->bnf"}> : () -> ()
    %cst_107 = arith.constant dense<0.000000e+00> : vector<2x16x32xf32>
    %348 = tpu.matmul %0, %347, %cst_107 {dimension_numbers = #tpu.dot_dimension_numbers<[2], [1], [1], [2], [0, 0, 0, 1, 1, 2], [0], [0]>} : vector<2x16x16xbf16>, vector<2x16x32xbf16>, vector<2x16x32xf32> -> vector<2x16x32xf32>
    "tpu.trace_stop"() : () -> ()
    %349 = vector.shape_cast %348 : vector<2x16x32xf32> to vector<32x32xf32>
    %350 = arith.truncf %348 : vector<2x16x32xf32> to vector<2x16x32xbf16>
    "tpu.trace_start"() <{level = 10 : i32, message = "bnm,bmf->bnf"}> : () -> ()
    %cst_108 = arith.constant dense<0.000000e+00> : vector<2x16x32xf32>
    %351 = tpu.matmul %0, %350, %cst_108 {dimension_numbers = #tpu.dot_dimension_numbers<[2], [1], [1], [2], [0, 0, 0, 1, 1, 2], [0], [0]>} : vector<2x16x16xbf16>, vector<2x16x32xbf16>, vector<2x16x32xf32> -> vector<2x16x32xf32>
    "tpu.trace_stop"() : () -> ()
    %cst_109 = arith.constant 2.000000e+00 : f32
    %352 = vector.broadcast %cst_109 : f32 to vector<2x16x32xf32>
    %353 = arith.mulf %352, %351 : vector<2x16x32xf32>
    %354 = arith.subf %353, %346 : vector<2x16x32xf32>
    %355 = vector.shape_cast %354 : vector<2x16x32xf32> to vector<32x32xf32>
    %356 = tpu.concatenate %345, %349, %355 in 1 : vector<32x32xf32>, vector<32x32xf32>, vector<32x32xf32> -> vector<32x96xf32>
    %357 = arith.truncf %356 : vector<32x96xf32> to vector<32x96xbf16>
    %cst_110 = arith.constant dense<0.000000e+00> : vector<32x32xf32>
    %358 = tpu.matmul %357, %8, %cst_110 {dimension_numbers = #tpu.dot_dimension_numbers<[1], [0], [0], [1], [0, 0, 1, 1], [], []>} : vector<32x96xbf16>, vector<96x32xbf16>, vector<32x32xf32> -> vector<32x32xf32>
    %359 = arith.addf %321, %358 : vector<32x32xf32>
    %360 = vector.broadcast %16 : vector<1x32xf32> to vector<32x32xf32>
    %361 = arith.addf %359, %360 : vector<32x32xf32>
    %362 = math.tanh %361 : vector<32x32xf32>
    %363 = arith.mulf %344, %250 : vector<32x32xf32>
    %cst_111 = arith.constant 1.000000e+00 : f32
    %364 = vector.broadcast %cst_111 : f32 to vector<32x32xf32>
    %365 = arith.subf %364, %344 : vector<32x32xf32>
    %366 = arith.mulf %365, %362 : vector<32x32xf32>
    %367 = arith.addf %363, %366 : vector<32x32xf32>
    %368 = arith.index_cast %c2_i32 : i32 to index
    %c0_112 = arith.constant 0 : index
    %c0_113 = arith.constant 0 : index
    %369 = vector.load %arg9[%368, %c0_112, %c0_113] : memref<7x32x32xf32, #tpu.memory_space<vmem>>, vector<1x32x32xf32>
    %370 = vector.shape_cast %369 : vector<1x32x32xf32> to vector<32x32xf32>
    %371 = vector.shape_cast %367 : vector<32x32xf32> to vector<1x32x32xf32>
    tpu.vector_store %arg9[%368, %c0_112, %c0_113], %371 {strides = array<i32>} : memref<7x32x32xf32, #tpu.memory_space<vmem>>, vector<1x32x32xf32>,
    %c3_i32 = arith.constant 3 : i32
    %372 = arith.index_cast %c3_i32 : i32 to index
    %c0_114 = arith.constant 0 : index
    %c0_115 = arith.constant 0 : index
    %373 = vector.load %arg0[%372, %c0_114, %c0_115] : memref<7x32x96xbf16, #tpu.memory_space<vmem>>, vector<1x32x96xbf16>
    %374 = vector.shape_cast %373 : vector<1x32x96xbf16> to vector<32x96xbf16>
    %375 = arith.extf %374 : vector<32x96xbf16> to vector<32x96xf32>
    %376 = vector.extract_strided_slice %375 {offsets = [0, 0], sizes = [32, 64], strides = [1, 1]} : vector<32x96xf32> to vector<32x64xf32>
    %377 = vector.extract_strided_slice %375 {offsets = [0, 64], sizes = [32, 32], strides = [1, 1]} : vector<32x96xf32> to vector<32x32xf32>
    %378 = vector.shape_cast %306 : vector<32x32xf32> to vector<2x16x32xf32>
    %379 = arith.truncf %378 : vector<2x16x32xf32> to vector<2x16x32xbf16>
    "tpu.trace_start"() <{level = 10 : i32, message = "bnm,bmf->bnf"}> : () -> ()
    %cst_116 = arith.constant dense<0.000000e+00> : vector<2x16x32xf32>
    %380 = tpu.matmul %0, %379, %cst_116 {dimension_numbers = #tpu.dot_dimension_numbers<[2], [1], [1], [2], [0, 0, 0, 1, 1, 2], [0], [0]>} : vector<2x16x16xbf16>, vector<2x16x32xbf16>, vector<2x16x32xf32> -> vector<2x16x32xf32>
    "tpu.trace_stop"() : () -> ()
    %381 = vector.shape_cast %380 : vector<2x16x32xf32> to vector<32x32xf32>
    %382 = arith.truncf %380 : vector<2x16x32xf32> to vector<2x16x32xbf16>
    "tpu.trace_start"() <{level = 10 : i32, message = "bnm,bmf->bnf"}> : () -> ()
    %cst_117 = arith.constant dense<0.000000e+00> : vector<2x16x32xf32>
    %383 = tpu.matmul %0, %382, %cst_117 {dimension_numbers = #tpu.dot_dimension_numbers<[2], [1], [1], [2], [0, 0, 0, 1, 1, 2], [0], [0]>} : vector<2x16x16xbf16>, vector<2x16x32xbf16>, vector<2x16x32xf32> -> vector<2x16x32xf32>
    "tpu.trace_stop"() : () -> ()
    %cst_118 = arith.constant 2.000000e+00 : f32
    %384 = vector.broadcast %cst_118 : f32 to vector<2x16x32xf32>
    %385 = arith.mulf %384, %383 : vector<2x16x32xf32>
    %386 = arith.subf %385, %378 : vector<2x16x32xf32>
    %387 = vector.shape_cast %386 : vector<2x16x32xf32> to vector<32x32xf32>
    %388 = tpu.concatenate %306, %381, %387 in 1 : vector<32x32xf32>, vector<32x32xf32>, vector<32x32xf32> -> vector<32x96xf32>
    %389 = arith.truncf %388 : vector<32x96xf32> to vector<32x96xbf16>
    %cst_119 = arith.constant dense<0.000000e+00> : vector<32x64xf32>
    %390 = tpu.matmul %389, %1, %cst_119 {dimension_numbers = #tpu.dot_dimension_numbers<[1], [0], [0], [1], [0, 0, 1, 1], [], []>} : vector<32x96xbf16>, vector<96x64xbf16>, vector<32x64xf32> -> vector<32x64xf32>
    %391 = arith.addf %376, %390 : vector<32x64xf32>
    %392 = vector.broadcast %10 : vector<1x64xf32> to vector<32x64xf32>
    %393 = arith.addf %391, %392 : vector<32x64xf32>
    %394 = arith.negf %393 : vector<32x64xf32>
    %395 = math.exp %394 : vector<32x64xf32>
    %cst_120 = arith.constant 1.000000e+00 : f32
    %396 = vector.broadcast %cst_120 : f32 to vector<32x64xf32>
    %397 = arith.addf %396, %395 : vector<32x64xf32>
    %398 = arith.divf %396, %397 : vector<32x64xf32>
    %399 = vector.extract_strided_slice %398 {offsets = [0, 0], sizes = [32, 32], strides = [1, 1]} : vector<32x64xf32> to vector<32x32xf32>
    %400 = vector.extract_strided_slice %398 {offsets = [0, 32], sizes = [32, 32], strides = [1, 1]} : vector<32x64xf32> to vector<32x32xf32>
    %401 = arith.mulf %399, %306 : vector<32x32xf32>
    %402 = vector.shape_cast %401 : vector<32x32xf32> to vector<2x16x32xf32>
    %403 = arith.truncf %402 : vector<2x16x32xf32> to vector<2x16x32xbf16>
    "tpu.trace_start"() <{level = 10 : i32, message = "bnm,bmf->bnf"}> : () -> ()
    %cst_121 = arith.constant dense<0.000000e+00> : vector<2x16x32xf32>
    %404 = tpu.matmul %0, %403, %cst_121 {dimension_numbers = #tpu.dot_dimension_numbers<[2], [1], [1], [2], [0, 0, 0, 1, 1, 2], [0], [0]>} : vector<2x16x16xbf16>, vector<2x16x32xbf16>, vector<2x16x32xf32> -> vector<2x16x32xf32>
    "tpu.trace_stop"() : () -> ()
    %405 = vector.shape_cast %404 : vector<2x16x32xf32> to vector<32x32xf32>
    %406 = arith.truncf %404 : vector<2x16x32xf32> to vector<2x16x32xbf16>
    "tpu.trace_start"() <{level = 10 : i32, message = "bnm,bmf->bnf"}> : () -> ()
    %cst_122 = arith.constant dense<0.000000e+00> : vector<2x16x32xf32>
    %407 = tpu.matmul %0, %406, %cst_122 {dimension_numbers = #tpu.dot_dimension_numbers<[2], [1], [1], [2], [0, 0, 0, 1, 1, 2], [0], [0]>} : vector<2x16x16xbf16>, vector<2x16x32xbf16>, vector<2x16x32xf32> -> vector<2x16x32xf32>
    "tpu.trace_stop"() : () -> ()
    %cst_123 = arith.constant 2.000000e+00 : f32
    %408 = vector.broadcast %cst_123 : f32 to vector<2x16x32xf32>
    %409 = arith.mulf %408, %407 : vector<2x16x32xf32>
    %410 = arith.subf %409, %402 : vector<2x16x32xf32>
    %411 = vector.shape_cast %410 : vector<2x16x32xf32> to vector<32x32xf32>
    %412 = tpu.concatenate %401, %405, %411 in 1 : vector<32x32xf32>, vector<32x32xf32>, vector<32x32xf32> -> vector<32x96xf32>
    %413 = arith.truncf %412 : vector<32x96xf32> to vector<32x96xbf16>
    %cst_124 = arith.constant dense<0.000000e+00> : vector<32x32xf32>
    %414 = tpu.matmul %413, %2, %cst_124 {dimension_numbers = #tpu.dot_dimension_numbers<[1], [0], [0], [1], [0, 0, 1, 1], [], []>} : vector<32x96xbf16>, vector<96x32xbf16>, vector<32x32xf32> -> vector<32x32xf32>
    %415 = arith.addf %377, %414 : vector<32x32xf32>
    %416 = vector.broadcast %14 : vector<1x32xf32> to vector<32x32xf32>
    %417 = arith.addf %415, %416 : vector<32x32xf32>
    %418 = math.tanh %417 : vector<32x32xf32>
    %419 = arith.mulf %400, %306 : vector<32x32xf32>
    %cst_125 = arith.constant 1.000000e+00 : f32
    %420 = vector.broadcast %cst_125 : f32 to vector<32x32xf32>
    %421 = arith.subf %420, %400 : vector<32x32xf32>
    %422 = arith.mulf %421, %418 : vector<32x32xf32>
    %423 = arith.addf %419, %422 : vector<32x32xf32>
    %424 = vector.shape_cast %423 : vector<32x32xf32> to vector<2x16x32xf32>
    %425 = arith.truncf %424 : vector<2x16x32xf32> to vector<2x16x32xbf16>
    "tpu.trace_start"() <{level = 10 : i32, message = "bnm,bmf->bnf"}> : () -> ()
    %cst_126 = arith.constant dense<0.000000e+00> : vector<2x16x32xf32>
    %426 = tpu.matmul %0, %425, %cst_126 {dimension_numbers = #tpu.dot_dimension_numbers<[2], [1], [1], [2], [0, 0, 0, 1, 1, 2], [0], [0]>} : vector<2x16x16xbf16>, vector<2x16x32xbf16>, vector<2x16x32xf32> -> vector<2x16x32xf32>
    "tpu.trace_stop"() : () -> ()
    %427 = vector.shape_cast %426 : vector<2x16x32xf32> to vector<32x32xf32>
    %428 = arith.truncf %426 : vector<2x16x32xf32> to vector<2x16x32xbf16>
    "tpu.trace_start"() <{level = 10 : i32, message = "bnm,bmf->bnf"}> : () -> ()
    %cst_127 = arith.constant dense<0.000000e+00> : vector<2x16x32xf32>
    %429 = tpu.matmul %0, %428, %cst_127 {dimension_numbers = #tpu.dot_dimension_numbers<[2], [1], [1], [2], [0, 0, 0, 1, 1, 2], [0], [0]>} : vector<2x16x16xbf16>, vector<2x16x32xbf16>, vector<2x16x32xf32> -> vector<2x16x32xf32>
    "tpu.trace_stop"() : () -> ()
    %cst_128 = arith.constant 2.000000e+00 : f32
    %430 = vector.broadcast %cst_128 : f32 to vector<2x16x32xf32>
    %431 = arith.mulf %430, %429 : vector<2x16x32xf32>
    %432 = arith.subf %431, %424 : vector<2x16x32xf32>
    %433 = vector.shape_cast %432 : vector<2x16x32xf32> to vector<32x32xf32>
    %434 = tpu.concatenate %423, %427, %433 in 1 : vector<32x32xf32>, vector<32x32xf32>, vector<32x32xf32> -> vector<32x96xf32>
    %435 = arith.truncf %434 : vector<32x96xf32> to vector<32x96xbf16>
    %cst_129 = arith.constant dense<0.000000e+00> : vector<32x96xf32>
    %436 = tpu.matmul %435, %4, %cst_129 {dimension_numbers = #tpu.dot_dimension_numbers<[1], [0], [0], [1], [0, 0, 1, 1], [], []>} : vector<32x96xbf16>, vector<96x96xbf16>, vector<32x96xf32> -> vector<32x96xf32>
    %437 = vector.extract_strided_slice %436 {offsets = [0, 0], sizes = [32, 64], strides = [1, 1]} : vector<32x96xf32> to vector<32x64xf32>
    %438 = vector.extract_strided_slice %436 {offsets = [0, 64], sizes = [32, 32], strides = [1, 1]} : vector<32x96xf32> to vector<32x32xf32>
    %439 = vector.shape_cast %367 : vector<32x32xf32> to vector<2x16x32xf32>
    %440 = arith.truncf %439 : vector<2x16x32xf32> to vector<2x16x32xbf16>
    "tpu.trace_start"() <{level = 10 : i32, message = "bnm,bmf->bnf"}> : () -> ()
    %cst_130 = arith.constant dense<0.000000e+00> : vector<2x16x32xf32>
    %441 = tpu.matmul %0, %440, %cst_130 {dimension_numbers = #tpu.dot_dimension_numbers<[2], [1], [1], [2], [0, 0, 0, 1, 1, 2], [0], [0]>} : vector<2x16x16xbf16>, vector<2x16x32xbf16>, vector<2x16x32xf32> -> vector<2x16x32xf32>
    "tpu.trace_stop"() : () -> ()
    %442 = vector.shape_cast %441 : vector<2x16x32xf32> to vector<32x32xf32>
    %443 = arith.truncf %441 : vector<2x16x32xf32> to vector<2x16x32xbf16>
    "tpu.trace_start"() <{level = 10 : i32, message = "bnm,bmf->bnf"}> : () -> ()
    %cst_131 = arith.constant dense<0.000000e+00> : vector<2x16x32xf32>
    %444 = tpu.matmul %0, %443, %cst_131 {dimension_numbers = #tpu.dot_dimension_numbers<[2], [1], [1], [2], [0, 0, 0, 1, 1, 2], [0], [0]>} : vector<2x16x16xbf16>, vector<2x16x32xbf16>, vector<2x16x32xf32> -> vector<2x16x32xf32>
    "tpu.trace_stop"() : () -> ()
    %cst_132 = arith.constant 2.000000e+00 : f32
    %445 = vector.broadcast %cst_132 : f32 to vector<2x16x32xf32>
    %446 = arith.mulf %445, %444 : vector<2x16x32xf32>
    %447 = arith.subf %446, %439 : vector<2x16x32xf32>
    %448 = vector.shape_cast %447 : vector<2x16x32xf32> to vector<32x32xf32>
    %449 = tpu.concatenate %367, %442, %448 in 1 : vector<32x32xf32>, vector<32x32xf32>, vector<32x32xf32> -> vector<32x96xf32>
    %450 = arith.truncf %449 : vector<32x96xf32> to vector<32x96xbf16>
    %cst_133 = arith.constant dense<0.000000e+00> : vector<32x64xf32>
    %451 = tpu.matmul %450, %6, %cst_133 {dimension_numbers = #tpu.dot_dimension_numbers<[1], [0], [0], [1], [0, 0, 1, 1], [], []>} : vector<32x96xbf16>, vector<96x64xbf16>, vector<32x64xf32> -> vector<32x64xf32>
    %452 = arith.addf %437, %451 : vector<32x64xf32>
    %453 = vector.broadcast %12 : vector<1x64xf32> to vector<32x64xf32>
    %454 = arith.addf %452, %453 : vector<32x64xf32>
    %455 = arith.negf %454 : vector<32x64xf32>
    %456 = math.exp %455 : vector<32x64xf32>
    %cst_134 = arith.constant 1.000000e+00 : f32
    %457 = vector.broadcast %cst_134 : f32 to vector<32x64xf32>
    %458 = arith.addf %457, %456 : vector<32x64xf32>
    %459 = arith.divf %457, %458 : vector<32x64xf32>
    %460 = vector.extract_strided_slice %459 {offsets = [0, 0], sizes = [32, 32], strides = [1, 1]} : vector<32x64xf32> to vector<32x32xf32>
    %461 = vector.extract_strided_slice %459 {offsets = [0, 32], sizes = [32, 32], strides = [1, 1]} : vector<32x64xf32> to vector<32x32xf32>
    %462 = arith.mulf %460, %367 : vector<32x32xf32>
    %463 = vector.shape_cast %462 : vector<32x32xf32> to vector<2x16x32xf32>
    %464 = arith.truncf %463 : vector<2x16x32xf32> to vector<2x16x32xbf16>
    "tpu.trace_start"() <{level = 10 : i32, message = "bnm,bmf->bnf"}> : () -> ()
    %cst_135 = arith.constant dense<0.000000e+00> : vector<2x16x32xf32>
    %465 = tpu.matmul %0, %464, %cst_135 {dimension_numbers = #tpu.dot_dimension_numbers<[2], [1], [1], [2], [0, 0, 0, 1, 1, 2], [0], [0]>} : vector<2x16x16xbf16>, vector<2x16x32xbf16>, vector<2x16x32xf32> -> vector<2x16x32xf32>
    "tpu.trace_stop"() : () -> ()
    %466 = vector.shape_cast %465 : vector<2x16x32xf32> to vector<32x32xf32>
    %467 = arith.truncf %465 : vector<2x16x32xf32> to vector<2x16x32xbf16>
    "tpu.trace_start"() <{level = 10 : i32, message = "bnm,bmf->bnf"}> : () -> ()
    %cst_136 = arith.constant dense<0.000000e+00> : vector<2x16x32xf32>
    %468 = tpu.matmul %0, %467, %cst_136 {dimension_numbers = #tpu.dot_dimension_numbers<[2], [1], [1], [2], [0, 0, 0, 1, 1, 2], [0], [0]>} : vector<2x16x16xbf16>, vector<2x16x32xbf16>, vector<2x16x32xf32> -> vector<2x16x32xf32>
    "tpu.trace_stop"() : () -> ()
    %cst_137 = arith.constant 2.000000e+00 : f32
    %469 = vector.broadcast %cst_137 : f32 to vector<2x16x32xf32>
    %470 = arith.mulf %469, %468 : vector<2x16x32xf32>
    %471 = arith.subf %470, %463 : vector<2x16x32xf32>
    %472 = vector.shape_cast %471 : vector<2x16x32xf32> to vector<32x32xf32>
    %473 = tpu.concatenate %462, %466, %472 in 1 : vector<32x32xf32>, vector<32x32xf32>, vector<32x32xf32> -> vector<32x96xf32>
    %474 = arith.truncf %473 : vector<32x96xf32> to vector<32x96xbf16>
    %cst_138 = arith.constant dense<0.000000e+00> : vector<32x32xf32>
    %475 = tpu.matmul %474, %8, %cst_138 {dimension_numbers = #tpu.dot_dimension_numbers<[1], [0], [0], [1], [0, 0, 1, 1], [], []>} : vector<32x96xbf16>, vector<96x32xbf16>, vector<32x32xf32> -> vector<32x32xf32>
    %476 = arith.addf %438, %475 : vector<32x32xf32>
    %477 = vector.broadcast %16 : vector<1x32xf32> to vector<32x32xf32>
    %478 = arith.addf %476, %477 : vector<32x32xf32>
    %479 = math.tanh %478 : vector<32x32xf32>
    %480 = arith.mulf %461, %367 : vector<32x32xf32>
    %cst_139 = arith.constant 1.000000e+00 : f32
    %481 = vector.broadcast %cst_139 : f32 to vector<32x32xf32>
    %482 = arith.subf %481, %461 : vector<32x32xf32>
    %483 = arith.mulf %482, %479 : vector<32x32xf32>
    %484 = arith.addf %480, %483 : vector<32x32xf32>
    %485 = arith.index_cast %c3_i32 : i32 to index
    %c0_140 = arith.constant 0 : index
    %c0_141 = arith.constant 0 : index
    %486 = vector.load %arg9[%485, %c0_140, %c0_141] : memref<7x32x32xf32, #tpu.memory_space<vmem>>, vector<1x32x32xf32>
    %487 = vector.shape_cast %486 : vector<1x32x32xf32> to vector<32x32xf32>
    %488 = vector.shape_cast %484 : vector<32x32xf32> to vector<1x32x32xf32>
    tpu.vector_store %arg9[%485, %c0_140, %c0_141], %488 {strides = array<i32>} : memref<7x32x32xf32, #tpu.memory_space<vmem>>, vector<1x32x32xf32>,
    %c4_i32 = arith.constant 4 : i32
    %489 = arith.index_cast %c4_i32 : i32 to index
    %c0_142 = arith.constant 0 : index
    %c0_143 = arith.constant 0 : index
    %490 = vector.load %arg0[%489, %c0_142, %c0_143] : memref<7x32x96xbf16, #tpu.memory_space<vmem>>, vector<1x32x96xbf16>
    %491 = vector.shape_cast %490 : vector<1x32x96xbf16> to vector<32x96xbf16>
    %492 = arith.extf %491 : vector<32x96xbf16> to vector<32x96xf32>
    %493 = vector.extract_strided_slice %492 {offsets = [0, 0], sizes = [32, 64], strides = [1, 1]} : vector<32x96xf32> to vector<32x64xf32>
    %494 = vector.extract_strided_slice %492 {offsets = [0, 64], sizes = [32, 32], strides = [1, 1]} : vector<32x96xf32> to vector<32x32xf32>
    %495 = vector.shape_cast %423 : vector<32x32xf32> to vector<2x16x32xf32>
    %496 = arith.truncf %495 : vector<2x16x32xf32> to vector<2x16x32xbf16>
    "tpu.trace_start"() <{level = 10 : i32, message = "bnm,bmf->bnf"}> : () -> ()
    %cst_144 = arith.constant dense<0.000000e+00> : vector<2x16x32xf32>
    %497 = tpu.matmul %0, %496, %cst_144 {dimension_numbers = #tpu.dot_dimension_numbers<[2], [1], [1], [2], [0, 0, 0, 1, 1, 2], [0], [0]>} : vector<2x16x16xbf16>, vector<2x16x32xbf16>, vector<2x16x32xf32> -> vector<2x16x32xf32>
    "tpu.trace_stop"() : () -> ()
    %498 = vector.shape_cast %497 : vector<2x16x32xf32> to vector<32x32xf32>
    %499 = arith.truncf %497 : vector<2x16x32xf32> to vector<2x16x32xbf16>
    "tpu.trace_start"() <{level = 10 : i32, message = "bnm,bmf->bnf"}> : () -> ()
    %cst_145 = arith.constant dense<0.000000e+00> : vector<2x16x32xf32>
    %500 = tpu.matmul %0, %499, %cst_145 {dimension_numbers = #tpu.dot_dimension_numbers<[2], [1], [1], [2], [0, 0, 0, 1, 1, 2], [0], [0]>} : vector<2x16x16xbf16>, vector<2x16x32xbf16>, vector<2x16x32xf32> -> vector<2x16x32xf32>
    "tpu.trace_stop"() : () -> ()
    %cst_146 = arith.constant 2.000000e+00 : f32
    %501 = vector.broadcast %cst_146 : f32 to vector<2x16x32xf32>
    %502 = arith.mulf %501, %500 : vector<2x16x32xf32>
    %503 = arith.subf %502, %495 : vector<2x16x32xf32>
    %504 = vector.shape_cast %503 : vector<2x16x32xf32> to vector<32x32xf32>
    %505 = tpu.concatenate %423, %498, %504 in 1 : vector<32x32xf32>, vector<32x32xf32>, vector<32x32xf32> -> vector<32x96xf32>
    %506 = arith.truncf %505 : vector<32x96xf32> to vector<32x96xbf16>
    %cst_147 = arith.constant dense<0.000000e+00> : vector<32x64xf32>
    %507 = tpu.matmul %506, %1, %cst_147 {dimension_numbers = #tpu.dot_dimension_numbers<[1], [0], [0], [1], [0, 0, 1, 1], [], []>} : vector<32x96xbf16>, vector<96x64xbf16>, vector<32x64xf32> -> vector<32x64xf32>
    %508 = arith.addf %493, %507 : vector<32x64xf32>
    %509 = vector.broadcast %10 : vector<1x64xf32> to vector<32x64xf32>
    %510 = arith.addf %508, %509 : vector<32x64xf32>
    %511 = arith.negf %510 : vector<32x64xf32>
    %512 = math.exp %511 : vector<32x64xf32>
    %cst_148 = arith.constant 1.000000e+00 : f32
    %513 = vector.broadcast %cst_148 : f32 to vector<32x64xf32>
    %514 = arith.addf %513, %512 : vector<32x64xf32>
    %515 = arith.divf %513, %514 : vector<32x64xf32>
    %516 = vector.extract_strided_slice %515 {offsets = [0, 0], sizes = [32, 32], strides = [1, 1]} : vector<32x64xf32> to vector<32x32xf32>
    %517 = vector.extract_strided_slice %515 {offsets = [0, 32], sizes = [32, 32], strides = [1, 1]} : vector<32x64xf32> to vector<32x32xf32>
    %518 = arith.mulf %516, %423 : vector<32x32xf32>
    %519 = vector.shape_cast %518 : vector<32x32xf32> to vector<2x16x32xf32>
    %520 = arith.truncf %519 : vector<2x16x32xf32> to vector<2x16x32xbf16>
    "tpu.trace_start"() <{level = 10 : i32, message = "bnm,bmf->bnf"}> : () -> ()
    %cst_149 = arith.constant dense<0.000000e+00> : vector<2x16x32xf32>
    %521 = tpu.matmul %0, %520, %cst_149 {dimension_numbers = #tpu.dot_dimension_numbers<[2], [1], [1], [2], [0, 0, 0, 1, 1, 2], [0], [0]>} : vector<2x16x16xbf16>, vector<2x16x32xbf16>, vector<2x16x32xf32> -> vector<2x16x32xf32>
    "tpu.trace_stop"() : () -> ()
    %522 = vector.shape_cast %521 : vector<2x16x32xf32> to vector<32x32xf32>
    %523 = arith.truncf %521 : vector<2x16x32xf32> to vector<2x16x32xbf16>
    "tpu.trace_start"() <{level = 10 : i32, message = "bnm,bmf->bnf"}> : () -> ()
    %cst_150 = arith.constant dense<0.000000e+00> : vector<2x16x32xf32>
    %524 = tpu.matmul %0, %523, %cst_150 {dimension_numbers = #tpu.dot_dimension_numbers<[2], [1], [1], [2], [0, 0, 0, 1, 1, 2], [0], [0]>} : vector<2x16x16xbf16>, vector<2x16x32xbf16>, vector<2x16x32xf32> -> vector<2x16x32xf32>
    "tpu.trace_stop"() : () -> ()
    %cst_151 = arith.constant 2.000000e+00 : f32
    %525 = vector.broadcast %cst_151 : f32 to vector<2x16x32xf32>
    %526 = arith.mulf %525, %524 : vector<2x16x32xf32>
    %527 = arith.subf %526, %519 : vector<2x16x32xf32>
    %528 = vector.shape_cast %527 : vector<2x16x32xf32> to vector<32x32xf32>
    %529 = tpu.concatenate %518, %522, %528 in 1 : vector<32x32xf32>, vector<32x32xf32>, vector<32x32xf32> -> vector<32x96xf32>
    %530 = arith.truncf %529 : vector<32x96xf32> to vector<32x96xbf16>
    %cst_152 = arith.constant dense<0.000000e+00> : vector<32x32xf32>
    %531 = tpu.matmul %530, %2, %cst_152 {dimension_numbers = #tpu.dot_dimension_numbers<[1], [0], [0], [1], [0, 0, 1, 1], [], []>} : vector<32x96xbf16>, vector<96x32xbf16>, vector<32x32xf32> -> vector<32x32xf32>
    %532 = arith.addf %494, %531 : vector<32x32xf32>
    %533 = vector.broadcast %14 : vector<1x32xf32> to vector<32x32xf32>
    %534 = arith.addf %532, %533 : vector<32x32xf32>
    %535 = math.tanh %534 : vector<32x32xf32>
    %536 = arith.mulf %517, %423 : vector<32x32xf32>
    %cst_153 = arith.constant 1.000000e+00 : f32
    %537 = vector.broadcast %cst_153 : f32 to vector<32x32xf32>
    %538 = arith.subf %537, %517 : vector<32x32xf32>
    %539 = arith.mulf %538, %535 : vector<32x32xf32>
    %540 = arith.addf %536, %539 : vector<32x32xf32>
    %541 = vector.shape_cast %540 : vector<32x32xf32> to vector<2x16x32xf32>
    %542 = arith.truncf %541 : vector<2x16x32xf32> to vector<2x16x32xbf16>
    "tpu.trace_start"() <{level = 10 : i32, message = "bnm,bmf->bnf"}> : () -> ()
    %cst_154 = arith.constant dense<0.000000e+00> : vector<2x16x32xf32>
    %543 = tpu.matmul %0, %542, %cst_154 {dimension_numbers = #tpu.dot_dimension_numbers<[2], [1], [1], [2], [0, 0, 0, 1, 1, 2], [0], [0]>} : vector<2x16x16xbf16>, vector<2x16x32xbf16>, vector<2x16x32xf32> -> vector<2x16x32xf32>
    "tpu.trace_stop"() : () -> ()
    %544 = vector.shape_cast %543 : vector<2x16x32xf32> to vector<32x32xf32>
    %545 = arith.truncf %543 : vector<2x16x32xf32> to vector<2x16x32xbf16>
    "tpu.trace_start"() <{level = 10 : i32, message = "bnm,bmf->bnf"}> : () -> ()
    %cst_155 = arith.constant dense<0.000000e+00> : vector<2x16x32xf32>
    %546 = tpu.matmul %0, %545, %cst_155 {dimension_numbers = #tpu.dot_dimension_numbers<[2], [1], [1], [2], [0, 0, 0, 1, 1, 2], [0], [0]>} : vector<2x16x16xbf16>, vector<2x16x32xbf16>, vector<2x16x32xf32> -> vector<2x16x32xf32>
    "tpu.trace_stop"() : () -> ()
    %cst_156 = arith.constant 2.000000e+00 : f32
    %547 = vector.broadcast %cst_156 : f32 to vector<2x16x32xf32>
    %548 = arith.mulf %547, %546 : vector<2x16x32xf32>
    %549 = arith.subf %548, %541 : vector<2x16x32xf32>
    %550 = vector.shape_cast %549 : vector<2x16x32xf32> to vector<32x32xf32>
    %551 = tpu.concatenate %540, %544, %550 in 1 : vector<32x32xf32>, vector<32x32xf32>, vector<32x32xf32> -> vector<32x96xf32>
    %552 = arith.truncf %551 : vector<32x96xf32> to vector<32x96xbf16>
    %cst_157 = arith.constant dense<0.000000e+00> : vector<32x96xf32>
    %553 = tpu.matmul %552, %4, %cst_157 {dimension_numbers = #tpu.dot_dimension_numbers<[1], [0], [0], [1], [0, 0, 1, 1], [], []>} : vector<32x96xbf16>, vector<96x96xbf16>, vector<32x96xf32> -> vector<32x96xf32>
    %554 = vector.extract_strided_slice %553 {offsets = [0, 0], sizes = [32, 64], strides = [1, 1]} : vector<32x96xf32> to vector<32x64xf32>
    %555 = vector.extract_strided_slice %553 {offsets = [0, 64], sizes = [32, 32], strides = [1, 1]} : vector<32x96xf32> to vector<32x32xf32>
    %556 = vector.shape_cast %484 : vector<32x32xf32> to vector<2x16x32xf32>
    %557 = arith.truncf %556 : vector<2x16x32xf32> to vector<2x16x32xbf16>
    "tpu.trace_start"() <{level = 10 : i32, message = "bnm,bmf->bnf"}> : () -> ()
    %cst_158 = arith.constant dense<0.000000e+00> : vector<2x16x32xf32>
    %558 = tpu.matmul %0, %557, %cst_158 {dimension_numbers = #tpu.dot_dimension_numbers<[2], [1], [1], [2], [0, 0, 0, 1, 1, 2], [0], [0]>} : vector<2x16x16xbf16>, vector<2x16x32xbf16>, vector<2x16x32xf32> -> vector<2x16x32xf32>
    "tpu.trace_stop"() : () -> ()
    %559 = vector.shape_cast %558 : vector<2x16x32xf32> to vector<32x32xf32>
    %560 = arith.truncf %558 : vector<2x16x32xf32> to vector<2x16x32xbf16>
    "tpu.trace_start"() <{level = 10 : i32, message = "bnm,bmf->bnf"}> : () -> ()
    %cst_159 = arith.constant dense<0.000000e+00> : vector<2x16x32xf32>
    %561 = tpu.matmul %0, %560, %cst_159 {dimension_numbers = #tpu.dot_dimension_numbers<[2], [1], [1], [2], [0, 0, 0, 1, 1, 2], [0], [0]>} : vector<2x16x16xbf16>, vector<2x16x32xbf16>, vector<2x16x32xf32> -> vector<2x16x32xf32>
    "tpu.trace_stop"() : () -> ()
    %cst_160 = arith.constant 2.000000e+00 : f32
    %562 = vector.broadcast %cst_160 : f32 to vector<2x16x32xf32>
    %563 = arith.mulf %562, %561 : vector<2x16x32xf32>
    %564 = arith.subf %563, %556 : vector<2x16x32xf32>
    %565 = vector.shape_cast %564 : vector<2x16x32xf32> to vector<32x32xf32>
    %566 = tpu.concatenate %484, %559, %565 in 1 : vector<32x32xf32>, vector<32x32xf32>, vector<32x32xf32> -> vector<32x96xf32>
    %567 = arith.truncf %566 : vector<32x96xf32> to vector<32x96xbf16>
    %cst_161 = arith.constant dense<0.000000e+00> : vector<32x64xf32>
    %568 = tpu.matmul %567, %6, %cst_161 {dimension_numbers = #tpu.dot_dimension_numbers<[1], [0], [0], [1], [0, 0, 1, 1], [], []>} : vector<32x96xbf16>, vector<96x64xbf16>, vector<32x64xf32> -> vector<32x64xf32>
    %569 = arith.addf %554, %568 : vector<32x64xf32>
    %570 = vector.broadcast %12 : vector<1x64xf32> to vector<32x64xf32>
    %571 = arith.addf %569, %570 : vector<32x64xf32>
    %572 = arith.negf %571 : vector<32x64xf32>
    %573 = math.exp %572 : vector<32x64xf32>
    %cst_162 = arith.constant 1.000000e+00 : f32
    %574 = vector.broadcast %cst_162 : f32 to vector<32x64xf32>
    %575 = arith.addf %574, %573 : vector<32x64xf32>
    %576 = arith.divf %574, %575 : vector<32x64xf32>
    %577 = vector.extract_strided_slice %576 {offsets = [0, 0], sizes = [32, 32], strides = [1, 1]} : vector<32x64xf32> to vector<32x32xf32>
    %578 = vector.extract_strided_slice %576 {offsets = [0, 32], sizes = [32, 32], strides = [1, 1]} : vector<32x64xf32> to vector<32x32xf32>
    %579 = arith.mulf %577, %484 : vector<32x32xf32>
    %580 = vector.shape_cast %579 : vector<32x32xf32> to vector<2x16x32xf32>
    %581 = arith.truncf %580 : vector<2x16x32xf32> to vector<2x16x32xbf16>
    "tpu.trace_start"() <{level = 10 : i32, message = "bnm,bmf->bnf"}> : () -> ()
    %cst_163 = arith.constant dense<0.000000e+00> : vector<2x16x32xf32>
    %582 = tpu.matmul %0, %581, %cst_163 {dimension_numbers = #tpu.dot_dimension_numbers<[2], [1], [1], [2], [0, 0, 0, 1, 1, 2], [0], [0]>} : vector<2x16x16xbf16>, vector<2x16x32xbf16>, vector<2x16x32xf32> -> vector<2x16x32xf32>
    "tpu.trace_stop"() : () -> ()
    %583 = vector.shape_cast %582 : vector<2x16x32xf32> to vector<32x32xf32>
    %584 = arith.truncf %582 : vector<2x16x32xf32> to vector<2x16x32xbf16>
    "tpu.trace_start"() <{level = 10 : i32, message = "bnm,bmf->bnf"}> : () -> ()
    %cst_164 = arith.constant dense<0.000000e+00> : vector<2x16x32xf32>
    %585 = tpu.matmul %0, %584, %cst_164 {dimension_numbers = #tpu.dot_dimension_numbers<[2], [1], [1], [2], [0, 0, 0, 1, 1, 2], [0], [0]>} : vector<2x16x16xbf16>, vector<2x16x32xbf16>, vector<2x16x32xf32> -> vector<2x16x32xf32>
    "tpu.trace_stop"() : () -> ()
    %cst_165 = arith.constant 2.000000e+00 : f32
    %586 = vector.broadcast %cst_165 : f32 to vector<2x16x32xf32>
    %587 = arith.mulf %586, %585 : vector<2x16x32xf32>
    %588 = arith.subf %587, %580 : vector<2x16x32xf32>
    %589 = vector.shape_cast %588 : vector<2x16x32xf32> to vector<32x32xf32>
    %590 = tpu.concatenate %579, %583, %589 in 1 : vector<32x32xf32>, vector<32x32xf32>, vector<32x32xf32> -> vector<32x96xf32>
    %591 = arith.truncf %590 : vector<32x96xf32> to vector<32x96xbf16>
    %cst_166 = arith.constant dense<0.000000e+00> : vector<32x32xf32>
    %592 = tpu.matmul %591, %8, %cst_166 {dimension_numbers = #tpu.dot_dimension_numbers<[1], [0], [0], [1], [0, 0, 1, 1], [], []>} : vector<32x96xbf16>, vector<96x32xbf16>, vector<32x32xf32> -> vector<32x32xf32>
    %593 = arith.addf %555, %592 : vector<32x32xf32>
    %594 = vector.broadcast %16 : vector<1x32xf32> to vector<32x32xf32>
    %595 = arith.addf %593, %594 : vector<32x32xf32>
    %596 = math.tanh %595 : vector<32x32xf32>
    %597 = arith.mulf %578, %484 : vector<32x32xf32>
    %cst_167 = arith.constant 1.000000e+00 : f32
    %598 = vector.broadcast %cst_167 : f32 to vector<32x32xf32>
    %599 = arith.subf %598, %578 : vector<32x32xf32>
    %600 = arith.mulf %599, %596 : vector<32x32xf32>
    %601 = arith.addf %597, %600 : vector<32x32xf32>
    %602 = arith.index_cast %c4_i32 : i32 to index
    %c0_168 = arith.constant 0 : index
    %c0_169 = arith.constant 0 : index
    %603 = vector.load %arg9[%602, %c0_168, %c0_169] : memref<7x32x32xf32, #tpu.memory_space<vmem>>, vector<1x32x32xf32>
    %604 = vector.shape_cast %603 : vector<1x32x32xf32> to vector<32x32xf32>
    %605 = vector.shape_cast %601 : vector<32x32xf32> to vector<1x32x32xf32>
    tpu.vector_store %arg9[%602, %c0_168, %c0_169], %605 {strides = array<i32>} : memref<7x32x32xf32, #tpu.memory_space<vmem>>, vector<1x32x32xf32>,
    %c5_i32 = arith.constant 5 : i32
    %606 = arith.index_cast %c5_i32 : i32 to index
    %c0_170 = arith.constant 0 : index
    %c0_171 = arith.constant 0 : index
    %607 = vector.load %arg0[%606, %c0_170, %c0_171] : memref<7x32x96xbf16, #tpu.memory_space<vmem>>, vector<1x32x96xbf16>
    %608 = vector.shape_cast %607 : vector<1x32x96xbf16> to vector<32x96xbf16>
    %609 = arith.extf %608 : vector<32x96xbf16> to vector<32x96xf32>
    %610 = vector.extract_strided_slice %609 {offsets = [0, 0], sizes = [32, 64], strides = [1, 1]} : vector<32x96xf32> to vector<32x64xf32>
    %611 = vector.extract_strided_slice %609 {offsets = [0, 64], sizes = [32, 32], strides = [1, 1]} : vector<32x96xf32> to vector<32x32xf32>
    %612 = vector.shape_cast %540 : vector<32x32xf32> to vector<2x16x32xf32>
    %613 = arith.truncf %612 : vector<2x16x32xf32> to vector<2x16x32xbf16>
    "tpu.trace_start"() <{level = 10 : i32, message = "bnm,bmf->bnf"}> : () -> ()
    %cst_172 = arith.constant dense<0.000000e+00> : vector<2x16x32xf32>
    %614 = tpu.matmul %0, %613, %cst_172 {dimension_numbers = #tpu.dot_dimension_numbers<[2], [1], [1], [2], [0, 0, 0, 1, 1, 2], [0], [0]>} : vector<2x16x16xbf16>, vector<2x16x32xbf16>, vector<2x16x32xf32> -> vector<2x16x32xf32>
    "tpu.trace_stop"() : () -> ()
    %615 = vector.shape_cast %614 : vector<2x16x32xf32> to vector<32x32xf32>
    %616 = arith.truncf %614 : vector<2x16x32xf32> to vector<2x16x32xbf16>
    "tpu.trace_start"() <{level = 10 : i32, message = "bnm,bmf->bnf"}> : () -> ()
    %cst_173 = arith.constant dense<0.000000e+00> : vector<2x16x32xf32>
    %617 = tpu.matmul %0, %616, %cst_173 {dimension_numbers = #tpu.dot_dimension_numbers<[2], [1], [1], [2], [0, 0, 0, 1, 1, 2], [0], [0]>} : vector<2x16x16xbf16>, vector<2x16x32xbf16>, vector<2x16x32xf32> -> vector<2x16x32xf32>
    "tpu.trace_stop"() : () -> ()
    %cst_174 = arith.constant 2.000000e+00 : f32
    %618 = vector.broadcast %cst_174 : f32 to vector<2x16x32xf32>
    %619 = arith.mulf %618, %617 : vector<2x16x32xf32>
    %620 = arith.subf %619, %612 : vector<2x16x32xf32>
    %621 = vector.shape_cast %620 : vector<2x16x32xf32> to vector<32x32xf32>
    %622 = tpu.concatenate %540, %615, %621 in 1 : vector<32x32xf32>, vector<32x32xf32>, vector<32x32xf32> -> vector<32x96xf32>
    %623 = arith.truncf %622 : vector<32x96xf32> to vector<32x96xbf16>
    %cst_175 = arith.constant dense<0.000000e+00> : vector<32x64xf32>
    %624 = tpu.matmul %623, %1, %cst_175 {dimension_numbers = #tpu.dot_dimension_numbers<[1], [0], [0], [1], [0, 0, 1, 1], [], []>} : vector<32x96xbf16>, vector<96x64xbf16>, vector<32x64xf32> -> vector<32x64xf32>
    %625 = arith.addf %610, %624 : vector<32x64xf32>
    %626 = vector.broadcast %10 : vector<1x64xf32> to vector<32x64xf32>
    %627 = arith.addf %625, %626 : vector<32x64xf32>
    %628 = arith.negf %627 : vector<32x64xf32>
    %629 = math.exp %628 : vector<32x64xf32>
    %cst_176 = arith.constant 1.000000e+00 : f32
    %630 = vector.broadcast %cst_176 : f32 to vector<32x64xf32>
    %631 = arith.addf %630, %629 : vector<32x64xf32>
    %632 = arith.divf %630, %631 : vector<32x64xf32>
    %633 = vector.extract_strided_slice %632 {offsets = [0, 0], sizes = [32, 32], strides = [1, 1]} : vector<32x64xf32> to vector<32x32xf32>
    %634 = vector.extract_strided_slice %632 {offsets = [0, 32], sizes = [32, 32], strides = [1, 1]} : vector<32x64xf32> to vector<32x32xf32>
    %635 = arith.mulf %633, %540 : vector<32x32xf32>
    %636 = vector.shape_cast %635 : vector<32x32xf32> to vector<2x16x32xf32>
    %637 = arith.truncf %636 : vector<2x16x32xf32> to vector<2x16x32xbf16>
    "tpu.trace_start"() <{level = 10 : i32, message = "bnm,bmf->bnf"}> : () -> ()
    %cst_177 = arith.constant dense<0.000000e+00> : vector<2x16x32xf32>
    %638 = tpu.matmul %0, %637, %cst_177 {dimension_numbers = #tpu.dot_dimension_numbers<[2], [1], [1], [2], [0, 0, 0, 1, 1, 2], [0], [0]>} : vector<2x16x16xbf16>, vector<2x16x32xbf16>, vector<2x16x32xf32> -> vector<2x16x32xf32>
    "tpu.trace_stop"() : () -> ()
    %639 = vector.shape_cast %638 : vector<2x16x32xf32> to vector<32x32xf32>
    %640 = arith.truncf %638 : vector<2x16x32xf32> to vector<2x16x32xbf16>
    "tpu.trace_start"() <{level = 10 : i32, message = "bnm,bmf->bnf"}> : () -> ()
    %cst_178 = arith.constant dense<0.000000e+00> : vector<2x16x32xf32>
    %641 = tpu.matmul %0, %640, %cst_178 {dimension_numbers = #tpu.dot_dimension_numbers<[2], [1], [1], [2], [0, 0, 0, 1, 1, 2], [0], [0]>} : vector<2x16x16xbf16>, vector<2x16x32xbf16>, vector<2x16x32xf32> -> vector<2x16x32xf32>
    "tpu.trace_stop"() : () -> ()
    %cst_179 = arith.constant 2.000000e+00 : f32
    %642 = vector.broadcast %cst_179 : f32 to vector<2x16x32xf32>
    %643 = arith.mulf %642, %641 : vector<2x16x32xf32>
    %644 = arith.subf %643, %636 : vector<2x16x32xf32>
    %645 = vector.shape_cast %644 : vector<2x16x32xf32> to vector<32x32xf32>
    %646 = tpu.concatenate %635, %639, %645 in 1 : vector<32x32xf32>, vector<32x32xf32>, vector<32x32xf32> -> vector<32x96xf32>
    %647 = arith.truncf %646 : vector<32x96xf32> to vector<32x96xbf16>
    %cst_180 = arith.constant dense<0.000000e+00> : vector<32x32xf32>
    %648 = tpu.matmul %647, %2, %cst_180 {dimension_numbers = #tpu.dot_dimension_numbers<[1], [0], [0], [1], [0, 0, 1, 1], [], []>} : vector<32x96xbf16>, vector<96x32xbf16>, vector<32x32xf32> -> vector<32x32xf32>
    %649 = arith.addf %611, %648 : vector<32x32xf32>
    %650 = vector.broadcast %14 : vector<1x32xf32> to vector<32x32xf32>
    %651 = arith.addf %649, %650 : vector<32x32xf32>
    %652 = math.tanh %651 : vector<32x32xf32>
    %653 = arith.mulf %634, %540 : vector<32x32xf32>
    %cst_181 = arith.constant 1.000000e+00 : f32
    %654 = vector.broadcast %cst_181 : f32 to vector<32x32xf32>
    %655 = arith.subf %654, %634 : vector<32x32xf32>
    %656 = arith.mulf %655, %652 : vector<32x32xf32>
    %657 = arith.addf %653, %656 : vector<32x32xf32>
    %658 = vector.shape_cast %657 : vector<32x32xf32> to vector<2x16x32xf32>
    %659 = arith.truncf %658 : vector<2x16x32xf32> to vector<2x16x32xbf16>
    "tpu.trace_start"() <{level = 10 : i32, message = "bnm,bmf->bnf"}> : () -> ()
    %cst_182 = arith.constant dense<0.000000e+00> : vector<2x16x32xf32>
    %660 = tpu.matmul %0, %659, %cst_182 {dimension_numbers = #tpu.dot_dimension_numbers<[2], [1], [1], [2], [0, 0, 0, 1, 1, 2], [0], [0]>} : vector<2x16x16xbf16>, vector<2x16x32xbf16>, vector<2x16x32xf32> -> vector<2x16x32xf32>
    "tpu.trace_stop"() : () -> ()
    %661 = vector.shape_cast %660 : vector<2x16x32xf32> to vector<32x32xf32>
    %662 = arith.truncf %660 : vector<2x16x32xf32> to vector<2x16x32xbf16>
    "tpu.trace_start"() <{level = 10 : i32, message = "bnm,bmf->bnf"}> : () -> ()
    %cst_183 = arith.constant dense<0.000000e+00> : vector<2x16x32xf32>
    %663 = tpu.matmul %0, %662, %cst_183 {dimension_numbers = #tpu.dot_dimension_numbers<[2], [1], [1], [2], [0, 0, 0, 1, 1, 2], [0], [0]>} : vector<2x16x16xbf16>, vector<2x16x32xbf16>, vector<2x16x32xf32> -> vector<2x16x32xf32>
    "tpu.trace_stop"() : () -> ()
    %cst_184 = arith.constant 2.000000e+00 : f32
    %664 = vector.broadcast %cst_184 : f32 to vector<2x16x32xf32>
    %665 = arith.mulf %664, %663 : vector<2x16x32xf32>
    %666 = arith.subf %665, %658 : vector<2x16x32xf32>
    %667 = vector.shape_cast %666 : vector<2x16x32xf32> to vector<32x32xf32>
    %668 = tpu.concatenate %657, %661, %667 in 1 : vector<32x32xf32>, vector<32x32xf32>, vector<32x32xf32> -> vector<32x96xf32>
    %669 = arith.truncf %668 : vector<32x96xf32> to vector<32x96xbf16>
    %cst_185 = arith.constant dense<0.000000e+00> : vector<32x96xf32>
    %670 = tpu.matmul %669, %4, %cst_185 {dimension_numbers = #tpu.dot_dimension_numbers<[1], [0], [0], [1], [0, 0, 1, 1], [], []>} : vector<32x96xbf16>, vector<96x96xbf16>, vector<32x96xf32> -> vector<32x96xf32>
    %671 = vector.extract_strided_slice %670 {offsets = [0, 0], sizes = [32, 64], strides = [1, 1]} : vector<32x96xf32> to vector<32x64xf32>
    %672 = vector.extract_strided_slice %670 {offsets = [0, 64], sizes = [32, 32], strides = [1, 1]} : vector<32x96xf32> to vector<32x32xf32>
    %673 = vector.shape_cast %601 : vector<32x32xf32> to vector<2x16x32xf32>
    %674 = arith.truncf %673 : vector<2x16x32xf32> to vector<2x16x32xbf16>
    "tpu.trace_start"() <{level = 10 : i32, message = "bnm,bmf->bnf"}> : () -> ()
    %cst_186 = arith.constant dense<0.000000e+00> : vector<2x16x32xf32>
    %675 = tpu.matmul %0, %674, %cst_186 {dimension_numbers = #tpu.dot_dimension_numbers<[2], [1], [1], [2], [0, 0, 0, 1, 1, 2], [0], [0]>} : vector<2x16x16xbf16>, vector<2x16x32xbf16>, vector<2x16x32xf32> -> vector<2x16x32xf32>
    "tpu.trace_stop"() : () -> ()
    %676 = vector.shape_cast %675 : vector<2x16x32xf32> to vector<32x32xf32>
    %677 = arith.truncf %675 : vector<2x16x32xf32> to vector<2x16x32xbf16>
    "tpu.trace_start"() <{level = 10 : i32, message = "bnm,bmf->bnf"}> : () -> ()
    %cst_187 = arith.constant dense<0.000000e+00> : vector<2x16x32xf32>
    %678 = tpu.matmul %0, %677, %cst_187 {dimension_numbers = #tpu.dot_dimension_numbers<[2], [1], [1], [2], [0, 0, 0, 1, 1, 2], [0], [0]>} : vector<2x16x16xbf16>, vector<2x16x32xbf16>, vector<2x16x32xf32> -> vector<2x16x32xf32>
    "tpu.trace_stop"() : () -> ()
    %cst_188 = arith.constant 2.000000e+00 : f32
    %679 = vector.broadcast %cst_188 : f32 to vector<2x16x32xf32>
    %680 = arith.mulf %679, %678 : vector<2x16x32xf32>
    %681 = arith.subf %680, %673 : vector<2x16x32xf32>
    %682 = vector.shape_cast %681 : vector<2x16x32xf32> to vector<32x32xf32>
    %683 = tpu.concatenate %601, %676, %682 in 1 : vector<32x32xf32>, vector<32x32xf32>, vector<32x32xf32> -> vector<32x96xf32>
    %684 = arith.truncf %683 : vector<32x96xf32> to vector<32x96xbf16>
    %cst_189 = arith.constant dense<0.000000e+00> : vector<32x64xf32>
    %685 = tpu.matmul %684, %6, %cst_189 {dimension_numbers = #tpu.dot_dimension_numbers<[1], [0], [0], [1], [0, 0, 1, 1], [], []>} : vector<32x96xbf16>, vector<96x64xbf16>, vector<32x64xf32> -> vector<32x64xf32>
    %686 = arith.addf %671, %685 : vector<32x64xf32>
    %687 = vector.broadcast %12 : vector<1x64xf32> to vector<32x64xf32>
    %688 = arith.addf %686, %687 : vector<32x64xf32>
    %689 = arith.negf %688 : vector<32x64xf32>
    %690 = math.exp %689 : vector<32x64xf32>
    %cst_190 = arith.constant 1.000000e+00 : f32
    %691 = vector.broadcast %cst_190 : f32 to vector<32x64xf32>
    %692 = arith.addf %691, %690 : vector<32x64xf32>
    %693 = arith.divf %691, %692 : vector<32x64xf32>
    %694 = vector.extract_strided_slice %693 {offsets = [0, 0], sizes = [32, 32], strides = [1, 1]} : vector<32x64xf32> to vector<32x32xf32>
    %695 = vector.extract_strided_slice %693 {offsets = [0, 32], sizes = [32, 32], strides = [1, 1]} : vector<32x64xf32> to vector<32x32xf32>
    %696 = arith.mulf %694, %601 : vector<32x32xf32>
    %697 = vector.shape_cast %696 : vector<32x32xf32> to vector<2x16x32xf32>
    %698 = arith.truncf %697 : vector<2x16x32xf32> to vector<2x16x32xbf16>
    "tpu.trace_start"() <{level = 10 : i32, message = "bnm,bmf->bnf"}> : () -> ()
    %cst_191 = arith.constant dense<0.000000e+00> : vector<2x16x32xf32>
    %699 = tpu.matmul %0, %698, %cst_191 {dimension_numbers = #tpu.dot_dimension_numbers<[2], [1], [1], [2], [0, 0, 0, 1, 1, 2], [0], [0]>} : vector<2x16x16xbf16>, vector<2x16x32xbf16>, vector<2x16x32xf32> -> vector<2x16x32xf32>
    "tpu.trace_stop"() : () -> ()
    %700 = vector.shape_cast %699 : vector<2x16x32xf32> to vector<32x32xf32>
    %701 = arith.truncf %699 : vector<2x16x32xf32> to vector<2x16x32xbf16>
    "tpu.trace_start"() <{level = 10 : i32, message = "bnm,bmf->bnf"}> : () -> ()
    %cst_192 = arith.constant dense<0.000000e+00> : vector<2x16x32xf32>
    %702 = tpu.matmul %0, %701, %cst_192 {dimension_numbers = #tpu.dot_dimension_numbers<[2], [1], [1], [2], [0, 0, 0, 1, 1, 2], [0], [0]>} : vector<2x16x16xbf16>, vector<2x16x32xbf16>, vector<2x16x32xf32> -> vector<2x16x32xf32>
    "tpu.trace_stop"() : () -> ()
    %cst_193 = arith.constant 2.000000e+00 : f32
    %703 = vector.broadcast %cst_193 : f32 to vector<2x16x32xf32>
    %704 = arith.mulf %703, %702 : vector<2x16x32xf32>
    %705 = arith.subf %704, %697 : vector<2x16x32xf32>
    %706 = vector.shape_cast %705 : vector<2x16x32xf32> to vector<32x32xf32>
    %707 = tpu.concatenate %696, %700, %706 in 1 : vector<32x32xf32>, vector<32x32xf32>, vector<32x32xf32> -> vector<32x96xf32>
    %708 = arith.truncf %707 : vector<32x96xf32> to vector<32x96xbf16>
    %cst_194 = arith.constant dense<0.000000e+00> : vector<32x32xf32>
    %709 = tpu.matmul %708, %8, %cst_194 {dimension_numbers = #tpu.dot_dimension_numbers<[1], [0], [0], [1], [0, 0, 1, 1], [], []>} : vector<32x96xbf16>, vector<96x32xbf16>, vector<32x32xf32> -> vector<32x32xf32>
    %710 = arith.addf %672, %709 : vector<32x32xf32>
    %711 = vector.broadcast %16 : vector<1x32xf32> to vector<32x32xf32>
    %712 = arith.addf %710, %711 : vector<32x32xf32>
    %713 = math.tanh %712 : vector<32x32xf32>
    %714 = arith.mulf %695, %601 : vector<32x32xf32>
    %cst_195 = arith.constant 1.000000e+00 : f32
    %715 = vector.broadcast %cst_195 : f32 to vector<32x32xf32>
    %716 = arith.subf %715, %695 : vector<32x32xf32>
    %717 = arith.mulf %716, %713 : vector<32x32xf32>
    %718 = arith.addf %714, %717 : vector<32x32xf32>
    %719 = arith.index_cast %c5_i32 : i32 to index
    %c0_196 = arith.constant 0 : index
    %c0_197 = arith.constant 0 : index
    %720 = vector.load %arg9[%719, %c0_196, %c0_197] : memref<7x32x32xf32, #tpu.memory_space<vmem>>, vector<1x32x32xf32>
    %721 = vector.shape_cast %720 : vector<1x32x32xf32> to vector<32x32xf32>
    %722 = vector.shape_cast %718 : vector<32x32xf32> to vector<1x32x32xf32>
    tpu.vector_store %arg9[%719, %c0_196, %c0_197], %722 {strides = array<i32>} : memref<7x32x32xf32, #tpu.memory_space<vmem>>, vector<1x32x32xf32>,
    %c6_i32 = arith.constant 6 : i32
    %723 = arith.index_cast %c6_i32 : i32 to index
    %c0_198 = arith.constant 0 : index
    %c0_199 = arith.constant 0 : index
    %724 = vector.load %arg0[%723, %c0_198, %c0_199] : memref<7x32x96xbf16, #tpu.memory_space<vmem>>, vector<1x32x96xbf16>
    %725 = vector.shape_cast %724 : vector<1x32x96xbf16> to vector<32x96xbf16>
    %726 = arith.extf %725 : vector<32x96xbf16> to vector<32x96xf32>
    %727 = vector.extract_strided_slice %726 {offsets = [0, 0], sizes = [32, 64], strides = [1, 1]} : vector<32x96xf32> to vector<32x64xf32>
    %728 = vector.extract_strided_slice %726 {offsets = [0, 64], sizes = [32, 32], strides = [1, 1]} : vector<32x96xf32> to vector<32x32xf32>
    %729 = vector.shape_cast %657 : vector<32x32xf32> to vector<2x16x32xf32>
    %730 = arith.truncf %729 : vector<2x16x32xf32> to vector<2x16x32xbf16>
    "tpu.trace_start"() <{level = 10 : i32, message = "bnm,bmf->bnf"}> : () -> ()
    %cst_200 = arith.constant dense<0.000000e+00> : vector<2x16x32xf32>
    %731 = tpu.matmul %0, %730, %cst_200 {dimension_numbers = #tpu.dot_dimension_numbers<[2], [1], [1], [2], [0, 0, 0, 1, 1, 2], [0], [0]>} : vector<2x16x16xbf16>, vector<2x16x32xbf16>, vector<2x16x32xf32> -> vector<2x16x32xf32>
    "tpu.trace_stop"() : () -> ()
    %732 = vector.shape_cast %731 : vector<2x16x32xf32> to vector<32x32xf32>
    %733 = arith.truncf %731 : vector<2x16x32xf32> to vector<2x16x32xbf16>
    "tpu.trace_start"() <{level = 10 : i32, message = "bnm,bmf->bnf"}> : () -> ()
    %cst_201 = arith.constant dense<0.000000e+00> : vector<2x16x32xf32>
    %734 = tpu.matmul %0, %733, %cst_201 {dimension_numbers = #tpu.dot_dimension_numbers<[2], [1], [1], [2], [0, 0, 0, 1, 1, 2], [0], [0]>} : vector<2x16x16xbf16>, vector<2x16x32xbf16>, vector<2x16x32xf32> -> vector<2x16x32xf32>
    "tpu.trace_stop"() : () -> ()
    %cst_202 = arith.constant 2.000000e+00 : f32
    %735 = vector.broadcast %cst_202 : f32 to vector<2x16x32xf32>
    %736 = arith.mulf %735, %734 : vector<2x16x32xf32>
    %737 = arith.subf %736, %729 : vector<2x16x32xf32>
    %738 = vector.shape_cast %737 : vector<2x16x32xf32> to vector<32x32xf32>
    %739 = tpu.concatenate %657, %732, %738 in 1 : vector<32x32xf32>, vector<32x32xf32>, vector<32x32xf32> -> vector<32x96xf32>
    %740 = arith.truncf %739 : vector<32x96xf32> to vector<32x96xbf16>
    %cst_203 = arith.constant dense<0.000000e+00> : vector<32x64xf32>
    %741 = tpu.matmul %740, %1, %cst_203 {dimension_numbers = #tpu.dot_dimension_numbers<[1], [0], [0], [1], [0, 0, 1, 1], [], []>} : vector<32x96xbf16>, vector<96x64xbf16>, vector<32x64xf32> -> vector<32x64xf32>
    %742 = arith.addf %727, %741 : vector<32x64xf32>
    %743 = vector.broadcast %10 : vector<1x64xf32> to vector<32x64xf32>
    %744 = arith.addf %742, %743 : vector<32x64xf32>
    %745 = arith.negf %744 : vector<32x64xf32>
    %746 = math.exp %745 : vector<32x64xf32>
    %cst_204 = arith.constant 1.000000e+00 : f32
    %747 = vector.broadcast %cst_204 : f32 to vector<32x64xf32>
    %748 = arith.addf %747, %746 : vector<32x64xf32>
    %749 = arith.divf %747, %748 : vector<32x64xf32>
    %750 = vector.extract_strided_slice %749 {offsets = [0, 0], sizes = [32, 32], strides = [1, 1]} : vector<32x64xf32> to vector<32x32xf32>
    %751 = vector.extract_strided_slice %749 {offsets = [0, 32], sizes = [32, 32], strides = [1, 1]} : vector<32x64xf32> to vector<32x32xf32>
    %752 = arith.mulf %750, %657 : vector<32x32xf32>
    %753 = vector.shape_cast %752 : vector<32x32xf32> to vector<2x16x32xf32>
    %754 = arith.truncf %753 : vector<2x16x32xf32> to vector<2x16x32xbf16>
    "tpu.trace_start"() <{level = 10 : i32, message = "bnm,bmf->bnf"}> : () -> ()
    %cst_205 = arith.constant dense<0.000000e+00> : vector<2x16x32xf32>
    %755 = tpu.matmul %0, %754, %cst_205 {dimension_numbers = #tpu.dot_dimension_numbers<[2], [1], [1], [2], [0, 0, 0, 1, 1, 2], [0], [0]>} : vector<2x16x16xbf16>, vector<2x16x32xbf16>, vector<2x16x32xf32> -> vector<2x16x32xf32>
    "tpu.trace_stop"() : () -> ()
    %756 = vector.shape_cast %755 : vector<2x16x32xf32> to vector<32x32xf32>
    %757 = arith.truncf %755 : vector<2x16x32xf32> to vector<2x16x32xbf16>
    "tpu.trace_start"() <{level = 10 : i32, message = "bnm,bmf->bnf"}> : () -> ()
    %cst_206 = arith.constant dense<0.000000e+00> : vector<2x16x32xf32>
    %758 = tpu.matmul %0, %757, %cst_206 {dimension_numbers = #tpu.dot_dimension_numbers<[2], [1], [1], [2], [0, 0, 0, 1, 1, 2], [0], [0]>} : vector<2x16x16xbf16>, vector<2x16x32xbf16>, vector<2x16x32xf32> -> vector<2x16x32xf32>
    "tpu.trace_stop"() : () -> ()
    %cst_207 = arith.constant 2.000000e+00 : f32
    %759 = vector.broadcast %cst_207 : f32 to vector<2x16x32xf32>
    %760 = arith.mulf %759, %758 : vector<2x16x32xf32>
    %761 = arith.subf %760, %753 : vector<2x16x32xf32>
    %762 = vector.shape_cast %761 : vector<2x16x32xf32> to vector<32x32xf32>
    %763 = tpu.concatenate %752, %756, %762 in 1 : vector<32x32xf32>, vector<32x32xf32>, vector<32x32xf32> -> vector<32x96xf32>
    %764 = arith.truncf %763 : vector<32x96xf32> to vector<32x96xbf16>
    %cst_208 = arith.constant dense<0.000000e+00> : vector<32x32xf32>
    %765 = tpu.matmul %764, %2, %cst_208 {dimension_numbers = #tpu.dot_dimension_numbers<[1], [0], [0], [1], [0, 0, 1, 1], [], []>} : vector<32x96xbf16>, vector<96x32xbf16>, vector<32x32xf32> -> vector<32x32xf32>
    %766 = arith.addf %728, %765 : vector<32x32xf32>
    %767 = vector.broadcast %14 : vector<1x32xf32> to vector<32x32xf32>
    %768 = arith.addf %766, %767 : vector<32x32xf32>
    %769 = math.tanh %768 : vector<32x32xf32>
    %770 = arith.mulf %751, %657 : vector<32x32xf32>
    %cst_209 = arith.constant 1.000000e+00 : f32
    %771 = vector.broadcast %cst_209 : f32 to vector<32x32xf32>
    %772 = arith.subf %771, %751 : vector<32x32xf32>
    %773 = arith.mulf %772, %769 : vector<32x32xf32>
    %774 = arith.addf %770, %773 : vector<32x32xf32>
    %775 = vector.shape_cast %774 : vector<32x32xf32> to vector<2x16x32xf32>
    %776 = arith.truncf %775 : vector<2x16x32xf32> to vector<2x16x32xbf16>
    "tpu.trace_start"() <{level = 10 : i32, message = "bnm,bmf->bnf"}> : () -> ()
    %cst_210 = arith.constant dense<0.000000e+00> : vector<2x16x32xf32>
    %777 = tpu.matmul %0, %776, %cst_210 {dimension_numbers = #tpu.dot_dimension_numbers<[2], [1], [1], [2], [0, 0, 0, 1, 1, 2], [0], [0]>} : vector<2x16x16xbf16>, vector<2x16x32xbf16>, vector<2x16x32xf32> -> vector<2x16x32xf32>
    "tpu.trace_stop"() : () -> ()
    %778 = vector.shape_cast %777 : vector<2x16x32xf32> to vector<32x32xf32>
    %779 = arith.truncf %777 : vector<2x16x32xf32> to vector<2x16x32xbf16>
    "tpu.trace_start"() <{level = 10 : i32, message = "bnm,bmf->bnf"}> : () -> ()
    %cst_211 = arith.constant dense<0.000000e+00> : vector<2x16x32xf32>
    %780 = tpu.matmul %0, %779, %cst_211 {dimension_numbers = #tpu.dot_dimension_numbers<[2], [1], [1], [2], [0, 0, 0, 1, 1, 2], [0], [0]>} : vector<2x16x16xbf16>, vector<2x16x32xbf16>, vector<2x16x32xf32> -> vector<2x16x32xf32>
    "tpu.trace_stop"() : () -> ()
    %cst_212 = arith.constant 2.000000e+00 : f32
    %781 = vector.broadcast %cst_212 : f32 to vector<2x16x32xf32>
    %782 = arith.mulf %781, %780 : vector<2x16x32xf32>
    %783 = arith.subf %782, %775 : vector<2x16x32xf32>
    %784 = vector.shape_cast %783 : vector<2x16x32xf32> to vector<32x32xf32>
    %785 = tpu.concatenate %774, %778, %784 in 1 : vector<32x32xf32>, vector<32x32xf32>, vector<32x32xf32> -> vector<32x96xf32>
    %786 = arith.truncf %785 : vector<32x96xf32> to vector<32x96xbf16>
    %cst_213 = arith.constant dense<0.000000e+00> : vector<32x96xf32>
    %787 = tpu.matmul %786, %4, %cst_213 {dimension_numbers = #tpu.dot_dimension_numbers<[1], [0], [0], [1], [0, 0, 1, 1], [], []>} : vector<32x96xbf16>, vector<96x96xbf16>, vector<32x96xf32> -> vector<32x96xf32>
    %788 = vector.extract_strided_slice %787 {offsets = [0, 0], sizes = [32, 64], strides = [1, 1]} : vector<32x96xf32> to vector<32x64xf32>
    %789 = vector.extract_strided_slice %787 {offsets = [0, 64], sizes = [32, 32], strides = [1, 1]} : vector<32x96xf32> to vector<32x32xf32>
    %790 = vector.shape_cast %718 : vector<32x32xf32> to vector<2x16x32xf32>
    %791 = arith.truncf %790 : vector<2x16x32xf32> to vector<2x16x32xbf16>
    "tpu.trace_start"() <{level = 10 : i32, message = "bnm,bmf->bnf"}> : () -> ()
    %cst_214 = arith.constant dense<0.000000e+00> : vector<2x16x32xf32>
    %792 = tpu.matmul %0, %791, %cst_214 {dimension_numbers = #tpu.dot_dimension_numbers<[2], [1], [1], [2], [0, 0, 0, 1, 1, 2], [0], [0]>} : vector<2x16x16xbf16>, vector<2x16x32xbf16>, vector<2x16x32xf32> -> vector<2x16x32xf32>
    "tpu.trace_stop"() : () -> ()
    %793 = vector.shape_cast %792 : vector<2x16x32xf32> to vector<32x32xf32>
    %794 = arith.truncf %792 : vector<2x16x32xf32> to vector<2x16x32xbf16>
    "tpu.trace_start"() <{level = 10 : i32, message = "bnm,bmf->bnf"}> : () -> ()
    %cst_215 = arith.constant dense<0.000000e+00> : vector<2x16x32xf32>
    %795 = tpu.matmul %0, %794, %cst_215 {dimension_numbers = #tpu.dot_dimension_numbers<[2], [1], [1], [2], [0, 0, 0, 1, 1, 2], [0], [0]>} : vector<2x16x16xbf16>, vector<2x16x32xbf16>, vector<2x16x32xf32> -> vector<2x16x32xf32>
    "tpu.trace_stop"() : () -> ()
    %cst_216 = arith.constant 2.000000e+00 : f32
    %796 = vector.broadcast %cst_216 : f32 to vector<2x16x32xf32>
    %797 = arith.mulf %796, %795 : vector<2x16x32xf32>
    %798 = arith.subf %797, %790 : vector<2x16x32xf32>
    %799 = vector.shape_cast %798 : vector<2x16x32xf32> to vector<32x32xf32>
    %800 = tpu.concatenate %718, %793, %799 in 1 : vector<32x32xf32>, vector<32x32xf32>, vector<32x32xf32> -> vector<32x96xf32>
    %801 = arith.truncf %800 : vector<32x96xf32> to vector<32x96xbf16>
    %cst_217 = arith.constant dense<0.000000e+00> : vector<32x64xf32>
    %802 = tpu.matmul %801, %6, %cst_217 {dimension_numbers = #tpu.dot_dimension_numbers<[1], [0], [0], [1], [0, 0, 1, 1], [], []>} : vector<32x96xbf16>, vector<96x64xbf16>, vector<32x64xf32> -> vector<32x64xf32>
    %803 = arith.addf %788, %802 : vector<32x64xf32>
    %804 = vector.broadcast %12 : vector<1x64xf32> to vector<32x64xf32>
    %805 = arith.addf %803, %804 : vector<32x64xf32>
    %806 = arith.negf %805 : vector<32x64xf32>
    %807 = math.exp %806 : vector<32x64xf32>
    %cst_218 = arith.constant 1.000000e+00 : f32
    %808 = vector.broadcast %cst_218 : f32 to vector<32x64xf32>
    %809 = arith.addf %808, %807 : vector<32x64xf32>
    %810 = arith.divf %808, %809 : vector<32x64xf32>
    %811 = vector.extract_strided_slice %810 {offsets = [0, 0], sizes = [32, 32], strides = [1, 1]} : vector<32x64xf32> to vector<32x32xf32>
    %812 = vector.extract_strided_slice %810 {offsets = [0, 32], sizes = [32, 32], strides = [1, 1]} : vector<32x64xf32> to vector<32x32xf32>
    %813 = arith.mulf %811, %718 : vector<32x32xf32>
    %814 = vector.shape_cast %813 : vector<32x32xf32> to vector<2x16x32xf32>
    %815 = arith.truncf %814 : vector<2x16x32xf32> to vector<2x16x32xbf16>
    "tpu.trace_start"() <{level = 10 : i32, message = "bnm,bmf->bnf"}> : () -> ()
    %cst_219 = arith.constant dense<0.000000e+00> : vector<2x16x32xf32>
    %816 = tpu.matmul %0, %815, %cst_219 {dimension_numbers = #tpu.dot_dimension_numbers<[2], [1], [1], [2], [0, 0, 0, 1, 1, 2], [0], [0]>} : vector<2x16x16xbf16>, vector<2x16x32xbf16>, vector<2x16x32xf32> -> vector<2x16x32xf32>
    "tpu.trace_stop"() : () -> ()
    %817 = vector.shape_cast %816 : vector<2x16x32xf32> to vector<32x32xf32>
    %818 = arith.truncf %816 : vector<2x16x32xf32> to vector<2x16x32xbf16>
    "tpu.trace_start"() <{level = 10 : i32, message = "bnm,bmf->bnf"}> : () -> ()
    %cst_220 = arith.constant dense<0.000000e+00> : vector<2x16x32xf32>
    %819 = tpu.matmul %0, %818, %cst_220 {dimension_numbers = #tpu.dot_dimension_numbers<[2], [1], [1], [2], [0, 0, 0, 1, 1, 2], [0], [0]>} : vector<2x16x16xbf16>, vector<2x16x32xbf16>, vector<2x16x32xf32> -> vector<2x16x32xf32>
    "tpu.trace_stop"() : () -> ()
    %cst_221 = arith.constant 2.000000e+00 : f32
    %820 = vector.broadcast %cst_221 : f32 to vector<2x16x32xf32>
    %821 = arith.mulf %820, %819 : vector<2x16x32xf32>
    %822 = arith.subf %821, %814 : vector<2x16x32xf32>
    %823 = vector.shape_cast %822 : vector<2x16x32xf32> to vector<32x32xf32>
    %824 = tpu.concatenate %813, %817, %823 in 1 : vector<32x32xf32>, vector<32x32xf32>, vector<32x32xf32> -> vector<32x96xf32>
    %825 = arith.truncf %824 : vector<32x96xf32> to vector<32x96xbf16>
    %cst_222 = arith.constant dense<0.000000e+00> : vector<32x32xf32>
    %826 = tpu.matmul %825, %8, %cst_222 {dimension_numbers = #tpu.dot_dimension_numbers<[1], [0], [0], [1], [0, 0, 1, 1], [], []>} : vector<32x96xbf16>, vector<96x32xbf16>, vector<32x32xf32> -> vector<32x32xf32>
    %827 = arith.addf %789, %826 : vector<32x32xf32>
    %828 = vector.broadcast %16 : vector<1x32xf32> to vector<32x32xf32>
    %829 = arith.addf %827, %828 : vector<32x32xf32>
    %830 = math.tanh %829 : vector<32x32xf32>
    %831 = arith.mulf %812, %718 : vector<32x32xf32>
    %cst_223 = arith.constant 1.000000e+00 : f32
    %832 = vector.broadcast %cst_223 : f32 to vector<32x32xf32>
    %833 = arith.subf %832, %812 : vector<32x32xf32>
    %834 = arith.mulf %833, %830 : vector<32x32xf32>
    %835 = arith.addf %831, %834 : vector<32x32xf32>
    %836 = arith.index_cast %c6_i32 : i32 to index
    %c0_224 = arith.constant 0 : index
    %c0_225 = arith.constant 0 : index
    %837 = vector.load %arg9[%836, %c0_224, %c0_225] : memref<7x32x32xf32, #tpu.memory_space<vmem>>, vector<1x32x32xf32>
    %838 = vector.shape_cast %837 : vector<1x32x32xf32> to vector<32x32xf32>
    %839 = vector.shape_cast %835 : vector<32x32xf32> to vector<1x32x32xf32>
    tpu.vector_store %arg9[%836, %c0_224, %c0_225], %839 {strides = array<i32>} : memref<7x32x32xf32, #tpu.memory_space<vmem>>, vector<1x32x32xf32>,
    %c7_i32 = arith.constant 7 : i32
    return
  }
}

</mosaic_0001>

<llo_original>
// kernel: _lambda_.1
$region0: #{_lambda_.1}
  #allocation0 [shape = 'u32[]', space=smem, size = 0x4, offset = 0x4, fixed_abs, tag = 'smem constant byte address 0x4 - core index']
  #allocation1 [shape = 'u32[144,128]{1,0:T(1,128)}', space=vmem, size = 0x12000, scoped, tag = 'internal scratch']
  %s0 = inlined_call_operand.vmem [shape: bf16[7,32,96], index: 0, kind: input, shape index: {}]
  %s1 = inlined_call_operand.vmem [shape: f32[2,32,32], index: 1, kind: input, shape index: {}]
  %s2 = inlined_call_operand.vmem [shape: bf16[2,16,16], index: 2, kind: input, shape index: {}]
  %s3 = inlined_call_operand.vmem [shape: bf16[96,64], index: 3, kind: input, shape index: {}]
  %s4 = inlined_call_operand.vmem [shape: bf16[96,32], index: 4, kind: input, shape index: {}]
  %s5 = inlined_call_operand.vmem [shape: bf16[1,96,96], index: 5, kind: input, shape index: {}]
  %s6 = inlined_call_operand.vmem [shape: bf16[1,96,64], index: 6, kind: input, shape index: {}]
  %s7 = inlined_call_operand.vmem [shape: bf16[1,96,32], index: 7, kind: input, shape index: {}]
  %s8 = inlined_call_operand.vmem [shape: f32[2,1,96], index: 8, kind: input, shape index: {}]
  %s9 = inlined_call_operand.vmem [shape: f32[7,32,32], index: 9, kind: output, shape index: {}]
  %s10 = sld [smem:[#allocation0]]
  $region46: #{_lambda_.1} parent=0
    _
  %s12 = ssub.s32 1, %s10
  %s13 = scalar_select 0, %s12, %s10
  // Predicated region
  $region2: #{_lambda_.1} parent=0 // pred_check
    _
  $region3: #{_lambda_.1} parent=0 // pred_check_branch
    %15 = sbr.rel (0) target = $region5
  $region4: #{_lambda_.1} parent=0 // pred_region
    _
  $region5: #{_lambda_.1} parent=0 // pred_fallthru
    _
  // Predicated region
  $region6: #{_lambda_.1} parent=0 // pred_check
    _
  $region7: #{_lambda_.1} parent=0 // pred_check_branch
    %17 = sbr.rel (0) target = $region9
  $region8: #{_lambda_.1} parent=0 // pred_region
    _
  $region9: #{_lambda_.1} parent=0 // pred_fallthru
    _
  // Predicated region
  $region10: #{_lambda_.1} parent=0 // pred_check
    _
  $region11: #{_lambda_.1} parent=0 // pred_check_branch
    %19 = sbr.rel (0) target = $region13
  $region12: #{_lambda_.1} parent=0 // pred_region
    _
  $region13: #{_lambda_.1} parent=0 // pred_fallthru
    _
  // Predicated region
  $region14: #{_lambda_.1} parent=0 // pred_check
    _
  $region15: #{_lambda_.1} parent=0 // pred_check_branch
    %21 = sbr.rel (0) target = $region17
  $region16: #{_lambda_.1} parent=0 // pred_region
    _
  $region17: #{_lambda_.1} parent=0 // pred_fallthru
    _
  // Predicated region
  $region18: #{_lambda_.1} parent=0 // pred_check
    _
  $region19: #{_lambda_.1} parent=0 // pred_check_branch
    %23 = sbr.rel (0) target = $region21
  $region20: #{_lambda_.1} parent=0 // pred_region
    _
  $region21: #{_lambda_.1} parent=0 // pred_fallthru
    _
  // Predicated region
  $region22: #{_lambda_.1} parent=0 // pred_check
    _
  $region23: #{_lambda_.1} parent=0 // pred_check_branch
    %25 = sbr.rel (0) target = $region25
  $region24: #{_lambda_.1} parent=0 // pred_region
    _
  $region25: #{_lambda_.1} parent=0 // pred_fallthru
    _
  // Predicated region
  $region26: #{_lambda_.1} parent=0 // pred_check
    _
  $region27: #{_lambda_.1} parent=0 // pred_check_branch
    %27 = sbr.rel (0) target = $region29
  $region28: #{_lambda_.1} parent=0 // pred_region
    _
  $region29: #{_lambda_.1} parent=0 // pred_fallthru
    _
  // Predicated region
  $region30: #{_lambda_.1} parent=0 // pred_check
    _
  $region31: #{_lambda_.1} parent=0 // pred_check_branch
    %29 = sbr.rel (0) target = $region33
  $region32: #{_lambda_.1} parent=0 // pred_region
    _
  $region33: #{_lambda_.1} parent=0 // pred_fallthru
    _
  // Predicated region
  $region34: #{_lambda_.1} parent=0 // pred_check
    _
  $region35: #{_lambda_.1} parent=0 // pred_check_branch
    %31 = sbr.rel (0) target = $region37
  $region36: #{_lambda_.1} parent=0 // pred_region
    _
  $region37: #{_lambda_.1} parent=0 // pred_fallthru
    _
  %v33 = vld [vmem:[%s2] sm:$0xf]
  %v34 = vld [vmem:[%s2 + $0x4] sm:$0xf]
  %v35 = vld [vmem:[%s2 + $0x8] sm:$0xf]
  %v36 = vld [vmem:[%s2 + $0xc] sm:$0xf]
  %v37 = vld [vmem:[%s3] sm:$0xf]
  %v38 = vld [vmem:[%s3 + $0x4] sm:$0xf]
  %v39 = vld [vmem:[%s3 + $0x8] sm:$0xf]
  %v40 = vld [vmem:[%s3 + $0xc] sm:$0xf]
  %v41 = vld [vmem:[%s3 + $0x10] sm:$0xf]
  %v42 = vld [vmem:[%s3 + $0x14] sm:$0xf]
  %v43 = vld [vmem:[%s3 + $0x18] sm:$0xf]
  %v44 = vld [vmem:[%s3 + $0x1c] sm:$0xf]
  %v45 = vld [vmem:[%s3 + $0x20] sm:$0xf]
  %v46 = vld [vmem:[%s3 + $0x24] sm:$0xf]
  %v47 = vld [vmem:[%s3 + $0x28] sm:$0xf]
  %v48 = vld [vmem:[%s3 + $0x2c] sm:$0xf]
  %v49 = vld [vmem:[%s4] sm:$0xf]
  %v50 = vld [vmem:[%s4 + $0x4] sm:$0xf]
  %v51 = vld [vmem:[%s4 + $0x8] sm:$0xf]
  %v52 = vld [vmem:[%s4 + $0xc] sm:$0xf]
  %v53 = vld [vmem:[%s4 + $0x10] sm:$0xf]
  %v54 = vld [vmem:[%s4 + $0x14] sm:$0xf]
  %v55 = vld [vmem:[%s4 + $0x18] sm:$0xf]
  %v56 = vld [vmem:[%s4 + $0x1c] sm:$0xf]
  %v57 = vld [vmem:[%s4 + $0x20] sm:$0xf]
  %v58 = vld [vmem:[%s4 + $0x24] sm:$0xf]
  %v59 = vld [vmem:[%s4 + $0x28] sm:$0xf]
  %v60 = vld [vmem:[%s4 + $0x2c] sm:$0xf]
  %v61 = vld [vmem:[%s5] sm:$0xf]
  %v62 = vld [vmem:[%s5 + $0x4] sm:$0xf]
  %v63 = vld [vmem:[%s5 + $0x8] sm:$0xf]
  %v64 = vld [vmem:[%s5 + $0xc] sm:$0xf]
  %v65 = vld [vmem:[%s5 + $0x10] sm:$0xf]
  %v66 = vld [vmem:[%s5 + $0x14] sm:$0xf]
  %v67 = vld [vmem:[%s5 + $0x18] sm:$0xf]
  %v68 = vld [vmem:[%s5 + $0x1c] sm:$0xf]
  %v69 = vld [vmem:[%s5 + $0x20] sm:$0xf]
  %v70 = vld [vmem:[%s5 + $0x24] sm:$0xf]
  %v71 = vld [vmem:[%s5 + $0x28] sm:$0xf]
  %v72 = vld [vmem:[%s5 + $0x2c] sm:$0xf]
  %v73 = vld [vmem:[%s6] sm:$0xf]
  %v74 = vld [vmem:[%s6 + $0x4] sm:$0xf]
  %v75 = vld [vmem:[%s6 + $0x8] sm:$0xf]
  %v76 = vld [vmem:[%s6 + $0xc] sm:$0xf]
  %v77 = vld [vmem:[%s6 + $0x10] sm:$0xf]
  %v78 = vld [vmem:[%s6 + $0x14] sm:$0xf]
  %v79 = vld [vmem:[%s6 + $0x18] sm:$0xf]
  %v80 = vld [vmem:[%s6 + $0x1c] sm:$0xf]
  %v81 = vld [vmem:[%s6 + $0x20] sm:$0xf]
  %v82 = vld [vmem:[%s6 + $0x24] sm:$0xf]
  %v83 = vld [vmem:[%s6 + $0x28] sm:$0xf]
  %v84 = vld [vmem:[%s6 + $0x2c] sm:$0xf]
  %v85 = vld [vmem:[%s7] sm:$0xf]
  %v86 = vld [vmem:[%s7 + $0x4] sm:$0xf]
  %v87 = vld [vmem:[%s7 + $0x8] sm:$0xf]
  %v88 = vld [vmem:[%s7 + $0xc] sm:$0xf]
  %v89 = vld [vmem:[%s7 + $0x10] sm:$0xf]
  %v90 = vld [vmem:[%s7 + $0x14] sm:$0xf]
  %v91 = vld [vmem:[%s7 + $0x18] sm:$0xf]
  %v92 = vld [vmem:[%s7 + $0x1c] sm:$0xf]
  %v93 = vld [vmem:[%s7 + $0x20] sm:$0xf]
  %v94 = vld [vmem:[%s7 + $0x24] sm:$0xf]
  %v95 = vld [vmem:[%s7 + $0x28] sm:$0xf]
  %v96 = vld [vmem:[%s7 + $0x2c] sm:$0xf]
  %v97 = vld [vmem:[%s8] sm:$0x1]
  %s98 = scalar_lea.vmem %s8, 1
  %v99 = vld [vmem:[%s98] sm:$0x1]
  %v100 = vld [vmem:[%s1] sm:$0xff]
  %v101 = vld [vmem:[%s1 + $0x8] sm:$0xff]
  %v102 = vld [vmem:[%s1 + $0x10] sm:$0xff]
  %v103 = vld [vmem:[%s1 + $0x18] sm:$0xff]
  %s104 = scalar_lea.vmem %s1, 32
  %v105 = vld [vmem:[%s104] sm:$0xff]
  %v106 = vld [vmem:[%s104 + $0x8] sm:$0xff]
  %v107 = vld [vmem:[%s104 + $0x10] sm:$0xff]
  %v108 = vld [vmem:[%s104 + $0x18] sm:$0xff]
  %v109 = vld [vmem:[%s0] sm:$0xf]
  %v110 = vld [vmem:[%s0 + $0x4] sm:$0xf]
  %v111 = vld [vmem:[%s0 + $0x8] sm:$0xf]
  %v112 = vld [vmem:[%s0 + $0xc] sm:$0xf]
  %v113 = vunpack.c.l.bf16 %v109
  %v114 = vunpack.c.l.bf16 %v110
  %v115 = vunpack.c.l.bf16 %v111
  %v116 = vunpack.c.l.bf16 %v112
  %v117 = vpack.c.bf16 %v101, %v100
  %v118 = vpack.c.bf16 %v103, %v102
  %v121 = vunpack.c.l.b16 %v33
  %v122 = vunpack.c.l.b16 %v34
  %v123 = vpack.c.b16 %v122, %v121
  %vm124 = vcmask 130048
  %v126 = vsel %vm124, %v123, 0
  %128 = vmatprep.subr.bf16.mxu0 0
  %129 = vmatpush1.bf16.msra.mxu0 %v117
  %130 = vmatprep.subr.bf16.mxu0 0
  %131 = vmatpush1.bf16.msra.mxu0 0
  %132 = vmatprep.subr.bf16.mxu0 0
  %133 = vmatpush1.bf16.msra.mxu0 0
  %134 = vmatprep.subr.bf16.mxu0 0
  %135 = vmatpush1.bf16.msra.mxu0 0
  %136 = vmatprep.subr.bf16.mxu0 0
  %137 = vmatpush1.bf16.msra.mxu0 0
  %138 = vmatprep.subr.bf16.mxu0 0
  %139 = vmatpush1.bf16.msra.mxu0 0
  %140 = vmatprep.subr.bf16.mxu0 0
  %141 = vmatpush1.bf16.msra.mxu0 0
  %142 = vmatprep.subr.bf16.mxu0 0
  %143 = vmatpush1.bf16.msra.mxu0 0
  %144 = vmatprep.subr.bf16.mxu0 0
  %145 = vmatpush1.bf16.msra.mxu0 0
  %146 = vmatprep.subr.bf16.mxu0 0
  %147 = vmatpush1.bf16.msra.mxu0 0
  %148 = vmatprep.subr.bf16.mxu0 0
  %149 = vmatpush1.bf16.msra.mxu0 0
  %150 = vmatprep.subr.bf16.mxu0 0
  %151 = vmatpush1.bf16.msra.mxu0 0
  %152 = vmatprep.subr.bf16.mxu0 0
  %153 = vmatpush1.bf16.msra.mxu0 0
  %154 = vmatprep.subr.bf16.mxu0 0
  %155 = vmatpush1.bf16.msra.mxu0 0
  %156 = vmatprep.subr.bf16.mxu0 0
  %157 = vmatpush1.bf16.msra.mxu0 0
  %158 = vmatprep.subr.bf16.mxu0 0
  %159 = vmatpush1.bf16.msra.mxu0 0
  %160 = vmatprep.mubr.bf16.mxu0 0
  %161 = vmatmul.mubr.bf16.gmra.mrb[0].mxu0 %v126
  %v162 = vpop.f32.mrb[0].mxu0
  %v163 = vadd.f32 0.0, %v162
  %v164 = vpop.f32.mrb[0].mxu0
  %v165 = vpop.f32.mrb[0].mxu0
  %v166 = vadd.f32 0.0, %v165
  %v167 = vpop.f32.mrb[0].mxu0
  %168 = vdwg.mxu0
  %v171 = vunpack.c.l.b16 %v35
  %v172 = vunpack.c.l.b16 %v36
  %v173 = vpack.c.b16 %v172, %v171
  %v175 = vsel %vm124, %v173, 0
  %177 = vmatprep.subr.bf16.mxu0 0
  %178 = vmatpush1.bf16.msra.mxu0 %v118
  %179 = vmatprep.subr.bf16.mxu0 0
  %180 = vmatpush1.bf16.msra.mxu0 0
  %181 = vmatprep.subr.bf16.mxu0 0
  %182 = vmatpush1.bf16.msra.mxu0 0
  %183 = vmatprep.subr.bf16.mxu0 0
  %184 = vmatpush1.bf16.msra.mxu0 0
  %185 = vmatprep.subr.bf16.mxu0 0
  %186 = vmatpush1.bf16.msra.mxu0 0
  %187 = vmatprep.subr.bf16.mxu0 0
  %188 = vmatpush1.bf16.msra.mxu0 0
  %189 = vmatprep.subr.bf16.mxu0 0
  %190 = vmatpush1.bf16.msra.mxu0 0
  %191 = vmatprep.subr.bf16.mxu0 0
  %192 = vmatpush1.bf16.msra.mxu0 0
  %193 = vmatprep.subr.bf16.mxu0 0
  %194 = vmatpush1.bf16.msra.mxu0 0
  %195 = vmatprep.subr.bf16.mxu0 0
  %196 = vmatpush1.bf16.msra.mxu0 0
  %197 = vmatprep.subr.bf16.mxu0 0
  %198 = vmatpush1.bf16.msra.mxu0 0
  %199 = vmatprep.subr.bf16.mxu0 0
  %200 = vmatpush1.bf16.msra.mxu0 0
  %201 = vmatprep.subr.bf16.mxu0 0
  %202 = vmatpush1.bf16.msra.mxu0 0
  %203 = vmatprep.subr.bf16.mxu0 0
  %204 = vmatpush1.bf16.msra.mxu0 0
  %205 = vmatprep.subr.bf16.mxu0 0
  %206 = vmatpush1.bf16.msra.mxu0 0
  %207 = vmatprep.subr.bf16.mxu0 0
  %208 = vmatpush1.bf16.msra.mxu0 0
  %209 = vmatprep.mubr.bf16.mxu0 0
  %210 = vmatmul.mubr.bf16.gmra.mrb[0].mxu0 %v175
  %v211 = vpop.f32.mrb[0].mxu0
  %v212 = vadd.f32 0.0, %v211
  %v213 = vpop.f32.mrb[0].mxu0
  %v214 = vpop.f32.mrb[0].mxu0
  %v215 = vadd.f32 0.0, %v214
  %v216 = vpop.f32.mrb[0].mxu0
  %217 = vdwg.mxu0
  %v218 = vpack.c.bf16 %v166, %v163
  %v219 = vpack.c.bf16 %v215, %v212
  %220 = vmatprep.subr.bf16.mxu0 0
  %221 = vmatpush1.bf16.msra.mxu0 %v218
  %222 = vmatprep.subr.bf16.mxu0 0
  %223 = vmatpush1.bf16.msra.mxu0 0
  %224 = vmatprep.subr.bf16.mxu0 0
  %225 = vmatpush1.bf16.msra.mxu0 0
  %226 = vmatprep.subr.bf16.mxu0 0
  %227 = vmatpush1.bf16.msra.mxu0 0
  %228 = vmatprep.subr.bf16.mxu0 0
  %229 = vmatpush1.bf16.msra.mxu0 0
  %230 = vmatprep.subr.bf16.mxu0 0
  %231 = vmatpush1.bf16.msra.mxu0 0
  %232 = vmatprep.subr.bf16.mxu0 0
  %233 = vmatpush1.bf16.msra.mxu0 0
  %234 = vmatprep.subr.bf16.mxu0 0
  %235 = vmatpush1.bf16.msra.mxu0 0
  %236 = vmatprep.subr.bf16.mxu0 0
  %237 = vmatpush1.bf16.msra.mxu0 0
  %238 = vmatprep.subr.bf16.mxu0 0
  %239 = vmatpush1.bf16.msra.mxu0 0
  %240 = vmatprep.subr.bf16.mxu0 0
  %241 = vmatpush1.bf16.msra.mxu0 0
  %242 = vmatprep.subr.bf16.mxu0 0
  %243 = vmatpush1.bf16.msra.mxu0 0
  %244 = vmatprep.subr.bf16.mxu0 0
  %245 = vmatpush1.bf16.msra.mxu0 0
  %246 = vmatprep.subr.bf16.mxu0 0
  %247 = vmatpush1.bf16.msra.mxu0 0
  %248 = vmatprep.subr.bf16.mxu0 0
  %249 = vmatpush1.bf16.msra.mxu0 0
  %250 = vmatprep.subr.bf16.mxu0 0
  %251 = vmatpush1.bf16.msra.mxu0 0
  %252 = vmatprep.mubr.bf16.mxu0 0
  %253 = vmatmul.mubr.bf16.gmra.mrb[0].mxu0 %v126
  %v254 = vpop.f32.mrb[0].mxu0
  %v255 = vadd.f32 0.0, %v254
  %v256 = vpop.f32.mrb[0].mxu0
  %v257 = vpop.f32.mrb[0].mxu0
  %v258 = vadd.f32 0.0, %v257
  %v259 = vpop.f32.mrb[0].mxu0
  %260 = vdwg.mxu0
  %261 = vmatprep.subr.bf16.mxu0 0
  %262 = vmatpush1.bf16.msra.mxu0 %v219
  %263 = vmatprep.subr.bf16.mxu0 0
  %264 = vmatpush1.bf16.msra.mxu0 0
  %265 = vmatprep.subr.bf16.mxu0 0
  %266 = vmatpush1.bf16.msra.mxu0 0
  %267 = vmatprep.subr.bf16.mxu0 0
  %268 = vmatpush1.bf16.msra.mxu0 0
  %269 = vmatprep.subr.bf16.mxu0 0
  %270 = vmatpush1.bf16.msra.mxu0 0
  %271 = vmatprep.subr.bf16.mxu0 0
  %272 = vmatpush1.bf16.msra.mxu0 0
  %273 = vmatprep.subr.bf16.mxu0 0
  %274 = vmatpush1.bf16.msra.mxu0 0
  %275 = vmatprep.subr.bf16.mxu0 0
  %276 = vmatpush1.bf16.msra.mxu0 0
  %277 = vmatprep.subr.bf16.mxu0 0
  %278 = vmatpush1.bf16.msra.mxu0 0
  %279 = vmatprep.subr.bf16.mxu0 0
  %280 = vmatpush1.bf16.msra.mxu0 0
  %281 = vmatprep.subr.bf16.mxu0 0
  %282 = vmatpush1.bf16.msra.mxu0 0
  %283 = vmatprep.subr.bf16.mxu0 0
  %284 = vmatpush1.bf16.msra.mxu0 0
  %285 = vmatprep.subr.bf16.mxu0 0
  %286 = vmatpush1.bf16.msra.mxu0 0
  %287 = vmatprep.subr.bf16.mxu0 0
  %288 = vmatpush1.bf16.msra.mxu0 0
  %289 = vmatprep.subr.bf16.mxu0 0
  %290 = vmatpush1.bf16.msra.mxu0 0
  %291 = vmatprep.subr.bf16.mxu0 0
  %292 = vmatpush1.bf16.msra.mxu0 0
  %293 = vmatprep.mubr.bf16.mxu0 0
  %294 = vmatmul.mubr.bf16.gmra.mrb[0].mxu0 %v175
  %v295 = vpop.f32.mrb[0].mxu0
  %v296 = vadd.f32 0.0, %v295
  %v297 = vpop.f32.mrb[0].mxu0
  %v298 = vpop.f32.mrb[0].mxu0
  %v299 = vadd.f32 0.0, %v298
  %v300 = vpop.f32.mrb[0].mxu0
  %301 = vdwg.mxu0
  %v302 = vmul.f32 %v255, 2.0
  %v303 = vmul.f32 %v258, 2.0
  %v304 = vmul.f32 %v296, 2.0
  %v305 = vmul.f32 %v299, 2.0
  %v306 = vsub.f32 %v302, %v100
  %v307 = vsub.f32 %v303, %v101
  %v308 = vsub.f32 %v304, %v102
  %v309 = vsub.f32 %v305, %v103
  %314 = vrot.lane.b32.xlu0 %v163, 32
  %v315 = vpop.permute.xlu0 %314
  %316 = vrot.lane.b32.xlu0 %v166, 32
  %v317 = vpop.permute.xlu0 %316
  %318 = vrot.lane.b32.xlu0 %v212, 32
  %v319 = vpop.permute.xlu0 %318
  %320 = vrot.lane.b32.xlu0 %v215, 32
  %v321 = vpop.permute.xlu0 %320
  %330 = vrot.lane.b32.xlu0 %v306, 64
  %v331 = vpop.permute.xlu0 %330
  %332 = vrot.lane.b32.xlu0 %v307, 64
  %v333 = vpop.permute.xlu0 %332
  %334 = vrot.lane.b32.xlu0 %v308, 64
  %v335 = vpop.permute.xlu0 %334
  %336 = vrot.lane.b32.xlu0 %v309, 64
  %v337 = vpop.permute.xlu0 %336
  %vm342 = vcmask 261120
  %v343 = vsel %vm342, %v100, %v315
  %v344 = vsel %vm342, %v101, %v317
  %v345 = vsel %vm342, %v102, %v319
  %v346 = vsel %vm342, %v103, %v321
  %vm347 = vcmask 523264
  %v348 = vsel %vm347, %v343, %v331
  %v349 = vsel %vm347, %v344, %v333
  %v350 = vsel %vm347, %v345, %v335
  %v351 = vsel %vm347, %v346, %v337
  %v352 = vpack.c.bf16 %v349, %v348
  %v353 = vpack.c.bf16 %v351, %v350
  %v366 = vunpack.c.l.b16 %v37
  %v367 = vunpack.c.l.b16 %v38
  %v368 = vunpack.c.l.b16 %v39
  %v369 = vunpack.c.l.b16 %v40
  %v370 = vunpack.c.l.b16 %v41
  %v371 = vunpack.c.l.b16 %v42
  %v372 = vunpack.c.l.b16 %v43
  %v373 = vunpack.c.l.b16 %v44
  %v374 = vunpack.c.l.b16 %v45
  %v375 = vunpack.c.l.b16 %v46
  %v376 = vunpack.c.l.b16 %v47
  %v377 = vunpack.c.l.b16 %v48
  %v378 = vpack.c.b16 %v367, %v366
  %v379 = vpack.c.b16 %v369, %v368
  %v380 = vpack.c.b16 %v371, %v370
  %v381 = vpack.c.b16 %v373, %v372
  %v382 = vpack.c.b16 %v375, %v374
  %v383 = vpack.c.b16 %v377, %v376
  %vm390 = vcmask 785408
  %v392 = vsel %vm390, %v352, 0
  %v395 = vsel %vm390, %v353, 0
  %397 = vmatprep.subr.bf16.mxu0 0
  %398 = vmatpush1.bf16.msra.mxu0 %v378
  %399 = vmatprep.subr.bf16.mxu0 0
  %400 = vmatpush1.bf16.msra.mxu0 %v379
  %401 = vmatprep.subr.bf16.mxu0 0
  %402 = vmatpush1.bf16.msra.mxu0 %v380
  %403 = vmatprep.subr.bf16.mxu0 0
  %404 = vmatpush1.bf16.msra.mxu0 %v381
  %405 = vmatprep.subr.bf16.mxu0 0
  %406 = vmatpush1.bf16.msra.mxu0 %v382
  %407 = vmatprep.subr.bf16.mxu0 0
  %408 = vmatpush1.bf16.msra.mxu0 %v383
  %409 = vmatprep.subr.bf16.mxu0 0
  %410 = vmatpush1.bf16.msra.mxu0 0
  %411 = vmatprep.subr.bf16.mxu0 0
  %412 = vmatpush1.bf16.msra.mxu0 0
  %413 = vmatprep.subr.bf16.mxu0 0
  %414 = vmatpush1.bf16.msra.mxu0 0
  %415 = vmatprep.subr.bf16.mxu0 0
  %416 = vmatpush1.bf16.msra.mxu0 0
  %417 = vmatprep.subr.bf16.mxu0 0
  %418 = vmatpush1.bf16.msra.mxu0 0
  %419 = vmatprep.subr.bf16.mxu0 0
  %420 = vmatpush1.bf16.msra.mxu0 0
  %421 = vmatprep.subr.bf16.mxu0 0
  %422 = vmatpush1.bf16.msra.mxu0 0
  %423 = vmatprep.subr.bf16.mxu0 0
  %424 = vmatpush1.bf16.msra.mxu0 0
  %425 = vmatprep.subr.bf16.mxu0 0
  %426 = vmatpush1.bf16.msra.mxu0 0
  %427 = vmatprep.subr.bf16.mxu0 0
  %428 = vmatpush1.bf16.msra.mxu0 0
  %429 = vmatprep.mubr.bf16.mxu0 0
  %430 = vmatmul.mubr.bf16.gmra.mrb[0].mxu0 %v392
  %v431 = vpop.f32.mrb[0].mxu0
  %v432 = vadd.f32 0.0, %v431
  %v433 = vpop.f32.mrb[0].mxu0
  %v434 = vpop.f32.mrb[0].mxu0
  %v435 = vadd.f32 0.0, %v434
  %v436 = vpop.f32.mrb[0].mxu0
  %437 = vmatprep.mubr.bf16.mxu0 0
  %438 = vmatmul.mubr.bf16.gmra.mrb[0].mxu0 %v395
  %v439 = vpop.f32.mrb[0].mxu0
  %v440 = vadd.f32 0.0, %v439
  %v441 = vpop.f32.mrb[0].mxu0
  %v442 = vpop.f32.mrb[0].mxu0
  %v443 = vadd.f32 0.0, %v442
  %v444 = vpop.f32.mrb[0].mxu0
  %445 = vdwg.mxu0
  %v446 = vadd.f32 %v113, %v432
  %v447 = vadd.f32 %v114, %v435
  %v448 = vadd.f32 %v115, %v440
  %v449 = vadd.f32 %v116, %v443
  %v451 = vlaneseq
  %v452 = vshrl.u32 %v451, 7
  %v453 = vsub.s32 0, %v452
  %v454 = vrot.slane %v97, %v453
  %v456 = vadd.f32 %v446, %v454
  %v457 = vadd.f32 %v447, %v454
  %v458 = vadd.f32 %v448, %v454
  %v459 = vadd.f32 %v449, %v454
  %v460 = vxor.u32 %v456, 2147483648
  %v461 = vxor.u32 %v457, 2147483648
  %v462 = vxor.u32 %v458, 2147483648
  %v463 = vxor.u32 %v459, 2147483648
  %v464 = vmul.f32 %v460, 1.442695
  %v465 = vpow.pop %v464
  %v466 = vmul.f32 %v461, 1.442695
  %v467 = vpow.pop %v466
  %v468 = vmul.f32 %v462, 1.442695
  %v469 = vpow.pop %v468
  %v470 = vmul.f32 %v463, 1.442695
  %v471 = vpow.pop %v470
  %v472 = vadd.f32 %v465, 1.0
  %v473 = vadd.f32 %v467, 1.0
  %v474 = vadd.f32 %v469, 1.0
  %v475 = vadd.f32 %v471, 1.0
  %v476 = vrcp.pop %v472
  %v477 = vmul.f32 1.0, %v476
  %v478 = vrcp.pop %v473
  %v479 = vmul.f32 1.0, %v478
  %v480 = vrcp.pop %v474
  %v481 = vmul.f32 1.0, %v480
  %v482 = vrcp.pop %v475
  %v483 = vmul.f32 1.0, %v482
  %v484 = vmul.f32 %v477, %v100
  %v485 = vmul.f32 %v479, %v101
  %v486 = vmul.f32 %v481, %v102
  %v487 = vmul.f32 %v483, %v103
  %v488 = vpack.c.bf16 %v485, %v484
  %v489 = vpack.c.bf16 %v487, %v486
  %490 = vmatprep.subr.bf16.mxu0 0
  %491 = vmatpush1.bf16.msra.mxu0 %v488
  %492 = vmatprep.subr.bf16.mxu0 0
  %493 = vmatpush1.bf16.msra.mxu0 0
  %494 = vmatprep.subr.bf16.mxu0 0
  %495 = vmatpush1.bf16.msra.mxu0 0
  %496 = vmatprep.subr.bf16.mxu0 0
  %497 = vmatpush1.bf16.msra.mxu0 0
  %498 = vmatprep.subr.bf16.mxu0 0
  %499 = vmatpush1.bf16.msra.mxu0 0
  %500 = vmatprep.subr.bf16.mxu0 0
  %501 = vmatpush1.bf16.msra.mxu0 0
  %502 = vmatprep.subr.bf16.mxu0 0
  %503 = vmatpush1.bf16.msra.mxu0 0
  %504 = vmatprep.subr.bf16.mxu0 0
  %505 = vmatpush1.bf16.msra.mxu0 0
  %506 = vmatprep.subr.bf16.mxu0 0
  %507 = vmatpush1.bf16.msra.mxu0 0
  %508 = vmatprep.subr.bf16.mxu0 0
  %509 = vmatpush1.bf16.msra.mxu0 0
  %510 = vmatprep.subr.bf16.mxu0 0
  %511 = vmatpush1.bf16.msra.mxu0 0
  %512 = vmatprep.subr.bf16.mxu0 0
  %513 = vmatpush1.bf16.msra.mxu0 0
  %514 = vmatprep.subr.bf16.mxu0 0
  %515 = vmatpush1.bf16.msra.mxu0 0
  %516 = vmatprep.subr.bf16.mxu0 0
  %517 = vmatpush1.bf16.msra.mxu0 0
  %518 = vmatprep.subr.bf16.mxu0 0
  %519 = vmatpush1.bf16.msra.mxu0 0
  %520 = vmatprep.subr.bf16.mxu0 0
  %521 = vmatpush1.bf16.msra.mxu0 0
  %522 = vmatprep.mubr.bf16.mxu0 0
  %523 = vmatmul.mubr.bf16.gmra.mrb[0].mxu0 %v126
  %v524 = vpop.f32.mrb[0].mxu0
  %v525 = vadd.f32 0.0, %v524
  %v526 = vpop.f32.mrb[0].mxu0
  %v527 = vpop.f32.mrb[0].mxu0
  %v528 = vadd.f32 0.0, %v527
  %v529 = vpop.f32.mrb[0].mxu0
  %530 = vdwg.mxu0
  %531 = vmatprep.subr.bf16.mxu0 0
  %532 = vmatpush1.bf16.msra.mxu0 %v489
  %533 = vmatprep.subr.bf16.mxu0 0
  %534 = vmatpush1.bf16.msra.mxu0 0
  %535 = vmatprep.subr.bf16.mxu0 0
  %536 = vmatpush1.bf16.msra.mxu0 0
  %537 = vmatprep.subr.bf16.mxu0 0
  %538 = vmatpush1.bf16.msra.mxu0 0
  %539 = vmatprep.subr.bf16.mxu0 0
  %540 = vmatpush1.bf16.msra.mxu0 0
  %541 = vmatprep.subr.bf16.mxu0 0
  %542 = vmatpush1.bf16.msra.mxu0 0
  %543 = vmatprep.subr.bf16.mxu0 0
  %544 = vmatpush1.bf16.msra.mxu0 0
  %545 = vmatprep.subr.bf16.mxu0 0
  %546 = vmatpush1.bf16.msra.mxu0 0
  %547 = vmatprep.subr.bf16.mxu0 0
  %548 = vmatpush1.bf16.msra.mxu0 0
  %549 = vmatprep.subr.bf16.mxu0 0
  %550 = vmatpush1.bf16.msra.mxu0 0
  %551 = vmatprep.subr.bf16.mxu0 0
  %552 = vmatpush1.bf16.msra.mxu0 0
  %553 = vmatprep.subr.bf16.mxu0 0
  %554 = vmatpush1.bf16.msra.mxu0 0
  %555 = vmatprep.subr.bf16.mxu0 0
  %556 = vmatpush1.bf16.msra.mxu0 0
  %557 = vmatprep.subr.bf16.mxu0 0
  %558 = vmatpush1.bf16.msra.mxu0 0
  %559 = vmatprep.subr.bf16.mxu0 0
  %560 = vmatpush1.bf16.msra.mxu0 0
  %561 = vmatprep.subr.bf16.mxu0 0
  %562 = vmatpush1.bf16.msra.mxu0 0
  %563 = vmatprep.mubr.bf16.mxu0 0
  %564 = vmatmul.mubr.bf16.gmra.mrb[0].mxu0 %v175
  %v565 = vpop.f32.mrb[0].mxu0
  %v566 = vadd.f32 0.0, %v565
  %v567 = vpop.f32.mrb[0].mxu0
  %v568 = vpop.f32.mrb[0].mxu0
  %v569 = vadd.f32 0.0, %v568
  %v570 = vpop.f32.mrb[0].mxu0
  %571 = vdwg.mxu0
  %v572 = vpack.c.bf16 %v528, %v525
  %v573 = vpack.c.bf16 %v569, %v566
  %574 = vmatprep.subr.bf16.mxu0 0
  %575 = vmatpush1.bf16.msra.mxu0 %v572
  %576 = vmatprep.subr.bf16.mxu0 0
  %577 = vmatpush1.bf16.msra.mxu0 0
  %578 = vmatprep.subr.bf16.mxu0 0
  %579 = vmatpush1.bf16.msra.mxu0 0
  %580 = vmatprep.subr.bf16.mxu0 0
  %581 = vmatpush1.bf16.msra.mxu0 0
  %582 = vmatprep.subr.bf16.mxu0 0
  %583 = vmatpush1.bf16.msra.mxu0 0
  %584 = vmatprep.subr.bf16.mxu0 0
  %585 = vmatpush1.bf16.msra.mxu0 0
  %586 = vmatprep.subr.bf16.mxu0 0
  %587 = vmatpush1.bf16.msra.mxu0 0
  %588 = vmatprep.subr.bf16.mxu0 0
  %589 = vmatpush1.bf16.msra.mxu0 0
  %590 = vmatprep.subr.bf16.mxu0 0
  %591 = vmatpush1.bf16.msra.mxu0 0
  %592 = vmatprep.subr.bf16.mxu0 0
  %593 = vmatpush1.bf16.msra.mxu0 0
  %594 = vmatprep.subr.bf16.mxu0 0
  %595 = vmatpush1.bf16.msra.mxu0 0
  %596 = vmatprep.subr.bf16.mxu0 0
  %597 = vmatpush1.bf16.msra.mxu0 0
  %598 = vmatprep.subr.bf16.mxu0 0
  %599 = vmatpush1.bf16.msra.mxu0 0
  %600 = vmatprep.subr.bf16.mxu0 0
  %601 = vmatpush1.bf16.msra.mxu0 0
  %602 = vmatprep.subr.bf16.mxu0 0
  %603 = vmatpush1.bf16.msra.mxu0 0
  %604 = vmatprep.subr.bf16.mxu0 0
  %605 = vmatpush1.bf16.msra.mxu0 0
  %606 = vmatprep.mubr.bf16.mxu0 0
  %607 = vmatmul.mubr.bf16.gmra.mrb[0].mxu0 %v126
  %v608 = vpop.f32.mrb[0].mxu0
  %v609 = vadd.f32 0.0, %v608
  %v610 = vpop.f32.mrb[0].mxu0
  %v611 = vpop.f32.mrb[0].mxu0
  %v612 = vadd.f32 0.0, %v611
  %v613 = vpop.f32.mrb[0].mxu0
  %614 = vdwg.mxu0
  %615 = vmatprep.subr.bf16.mxu0 0
  %616 = vmatpush1.bf16.msra.mxu0 %v573
  %617 = vmatprep.subr.bf16.mxu0 0
  %618 = vmatpush1.bf16.msra.mxu0 0
  %619 = vmatprep.subr.bf16.mxu0 0
  %620 = vmatpush1.bf16.msra.mxu0 0
  %621 = vmatprep.subr.bf16.mxu0 0
  %622 = vmatpush1.bf16.msra.mxu0 0
  %623 = vmatprep.subr.bf16.mxu0 0
  %624 = vmatpush1.bf16.msra.mxu0 0
  %625 = vmatprep.subr.bf16.mxu0 0
  %626 = vmatpush1.bf16.msra.mxu0 0
  %627 = vmatprep.subr.bf16.mxu0 0
  %628 = vmatpush1.bf16.msra.mxu0 0
  %629 = vmatprep.subr.bf16.mxu0 0
  %630 = vmatpush1.bf16.msra.mxu0 0
  %631 = vmatprep.subr.bf16.mxu0 0
  %632 = vmatpush1.bf16.msra.mxu0 0
  %633 = vmatprep.subr.bf16.mxu0 0
  %634 = vmatpush1.bf16.msra.mxu0 0
  %635 = vmatprep.subr.bf16.mxu0 0
  %636 = vmatpush1.bf16.msra.mxu0 0
  %637 = vmatprep.subr.bf16.mxu0 0
  %638 = vmatpush1.bf16.msra.mxu0 0
  %639 = vmatprep.subr.bf16.mxu0 0
  %640 = vmatpush1.bf16.msra.mxu0 0
  %641 = vmatprep.subr.bf16.mxu0 0
  %642 = vmatpush1.bf16.msra.mxu0 0
  %643 = vmatprep.subr.bf16.mxu0 0
  %644 = vmatpush1.bf16.msra.mxu0 0
  %645 = vmatprep.subr.bf16.mxu0 0
  %646 = vmatpush1.bf16.msra.mxu0 0
  %647 = vmatprep.mubr.bf16.mxu0 0
  %648 = vmatmul.mubr.bf16.gmra.mrb[0].mxu0 %v175
  %v649 = vpop.f32.mrb[0].mxu0
  %v650 = vadd.f32 0.0, %v649
  %v651 = vpop.f32.mrb[0].mxu0
  %v652 = vpop.f32.mrb[0].mxu0
  %v653 = vadd.f32 0.0, %v652
  %v654 = vpop.f32.mrb[0].mxu0
  %655 = vdwg.mxu0
  %v656 = vmul.f32 %v609, 2.0
  %v657 = vmul.f32 %v612, 2.0
  %v658 = vmul.f32 %v650, 2.0
  %v659 = vmul.f32 %v653, 2.0
  %v660 = vsub.f32 %v656, %v484
  %v661 = vsub.f32 %v657, %v485
  %v662 = vsub.f32 %v658, %v486
  %v663 = vsub.f32 %v659, %v487
  %668 = vrot.lane.b32.xlu0 %v525, 32
  %v669 = vpop.permute.xlu0 %668
  %670 = vrot.lane.b32.xlu0 %v528, 32
  %v671 = vpop.permute.xlu0 %670
  %672 = vrot.lane.b32.xlu0 %v566, 32
  %v673 = vpop.permute.xlu0 %672
  %674 = vrot.lane.b32.xlu0 %v569, 32
  %v675 = vpop.permute.xlu0 %674
  %684 = vrot.lane.b32.xlu0 %v660, 64
  %v685 = vpop.permute.xlu0 %684
  %686 = vrot.lane.b32.xlu0 %v661, 64
  %v687 = vpop.permute.xlu0 %686
  %688 = vrot.lane.b32.xlu0 %v662, 64
  %v689 = vpop.permute.xlu0 %688
  %690 = vrot.lane.b32.xlu0 %v663, 64
  %v691 = vpop.permute.xlu0 %690
  %v696 = vsel %vm342, %v484, %v669
  %v697 = vsel %vm342, %v485, %v671
  %v698 = vsel %vm342, %v486, %v673
  %v699 = vsel %vm342, %v487, %v675
  %v700 = vsel %vm347, %v696, %v685
  %v701 = vsel %vm347, %v697, %v687
  %v702 = vsel %vm347, %v698, %v689
  %v703 = vsel %vm347, %v699, %v691
  %v704 = vpack.c.bf16 %v701, %v700
  %v705 = vpack.c.bf16 %v703, %v702
  %v718 = vunpack.c.l.b16 %v49
  %v719 = vunpack.c.l.b16 %v50
  %v720 = vunpack.c.l.b16 %v51
  %v721 = vunpack.c.l.b16 %v52
  %v722 = vunpack.c.l.b16 %v53
  %v723 = vunpack.c.l.b16 %v54
  %v724 = vunpack.c.l.b16 %v55
  %v725 = vunpack.c.l.b16 %v56
  %v726 = vunpack.c.l.b16 %v57
  %v727 = vunpack.c.l.b16 %v58
  %v728 = vunpack.c.l.b16 %v59
  %v729 = vunpack.c.l.b16 %v60
  %v730 = vpack.c.b16 %v719, %v718
  %v731 = vpack.c.b16 %v721, %v720
  %v732 = vpack.c.b16 %v723, %v722
  %v733 = vpack.c.b16 %v725, %v724
  %v734 = vpack.c.b16 %v727, %v726
  %v735 = vpack.c.b16 %v729, %v728
  %v743 = vsel %vm390, %v704, 0
  %v746 = vsel %vm390, %v705, 0
  %748 = vmatprep.subr.bf16.mxu0 0
  %749 = vmatpush1.bf16.msra.mxu0 %v730
  %750 = vmatprep.subr.bf16.mxu0 0
  %751 = vmatpush1.bf16.msra.mxu0 %v731
  %752 = vmatprep.subr.bf16.mxu0 0
  %753 = vmatpush1.bf16.msra.mxu0 %v732
  %754 = vmatprep.subr.bf16.mxu0 0
  %755 = vmatpush1.bf16.msra.mxu0 %v733
  %756 = vmatprep.subr.bf16.mxu0 0
  %757 = vmatpush1.bf16.msra.mxu0 %v734
  %758 = vmatprep.subr.bf16.mxu0 0
  %759 = vmatpush1.bf16.msra.mxu0 %v735
  %760 = vmatprep.subr.bf16.mxu0 0
  %761 = vmatpush1.bf16.msra.mxu0 0
  %762 = vmatprep.subr.bf16.mxu0 0
  %763 = vmatpush1.bf16.msra.mxu0 0
  %764 = vmatprep.subr.bf16.mxu0 0
  %765 = vmatpush1.bf16.msra.mxu0 0
  %766 = vmatprep.subr.bf16.mxu0 0
  %767 = vmatpush1.bf16.msra.mxu0 0
  %768 = vmatprep.subr.bf16.mxu0 0
  %769 = vmatpush1.bf16.msra.mxu0 0
  %770 = vmatprep.subr.bf16.mxu0 0
  %771 = vmatpush1.bf16.msra.mxu0 0
  %772 = vmatprep.subr.bf16.mxu0 0
  %773 = vmatpush1.bf16.msra.mxu0 0
  %774 = vmatprep.subr.bf16.mxu0 0
  %775 = vmatpush1.bf16.msra.mxu0 0
  %776 = vmatprep.subr.bf16.mxu0 0
  %777 = vmatpush1.bf16.msra.mxu0 0
  %778 = vmatprep.subr.bf16.mxu0 0
  %779 = vmatpush1.bf16.msra.mxu0 0
  %780 = vmatprep.mubr.bf16.mxu0 0
  %781 = vmatmul.mubr.bf16.gmra.mrb[0].mxu0 %v743
  %v782 = vpop.f32.mrb[0].mxu0
  %v783 = vadd.f32 0.0, %v782
  %v784 = vpop.f32.mrb[0].mxu0
  %v785 = vpop.f32.mrb[0].mxu0
  %v786 = vadd.f32 0.0, %v785
  %v787 = vpop.f32.mrb[0].mxu0
  %788 = vmatprep.mubr.bf16.mxu0 0
  %789 = vmatmul.mubr.bf16.gmra.mrb[0].mxu0 %v746
  %v790 = vpop.f32.mrb[0].mxu0
  %v791 = vadd.f32 0.0, %v790
  %v792 = vpop.f32.mrb[0].mxu0
  %v793 = vpop.f32.mrb[0].mxu0
  %v794 = vadd.f32 0.0, %v793
  %v795 = vpop.f32.mrb[0].mxu0
  %796 = vdwg.mxu0
  %801 = vrot.lane.b32.xlu0 %v783, 64
  %v802 = vpop.permute.xlu0 %801
  %803 = vrot.lane.b32.xlu0 %v786, 64
  %v804 = vpop.permute.xlu0 %803
  %805 = vrot.lane.b32.xlu0 %v791, 64
  %v806 = vpop.permute.xlu0 %805
  %807 = vrot.lane.b32.xlu0 %v794, 64
  %v808 = vpop.permute.xlu0 %807
  %v813 = vadd.f32 %v113, %v802
  %v814 = vadd.f32 %v114, %v804
  %v815 = vadd.f32 %v115, %v806
  %v816 = vadd.f32 %v116, %v808
  %v817 = vadd.f32 %v813, %v454
  %v818 = vadd.f32 %v814, %v454
  %v819 = vadd.f32 %v815, %v454
  %v820 = vadd.f32 %v816, %v454
  %v821 = vtanh.pop %v817
  %v822 = vtanh.pop %v818
  %v823 = vtanh.pop %v819
  %v824 = vtanh.pop %v820
  %829 = vrot.lane.b32.xlu0 %v100, 32
  %v830 = vpop.permute.xlu0 %829
  %831 = vrot.lane.b32.xlu0 %v101, 32
  %v832 = vpop.permute.xlu0 %831
  %833 = vrot.lane.b32.xlu0 %v102, 32
  %v834 = vpop.permute.xlu0 %833
  %835 = vrot.lane.b32.xlu0 %v103, 32
  %v836 = vpop.permute.xlu0 %835
  %v841 = vmul.f32 %v477, %v830
  %v842 = vmul.f32 %v479, %v832
  %v843 = vmul.f32 %v481, %v834
  %v844 = vmul.f32 %v483, %v836
  %v845 = vsub.f32 1.0, %v477
  %v846 = vsub.f32 1.0, %v479
  %v847 = vsub.f32 1.0, %v481
  %v848 = vsub.f32 1.0, %v483
  %853 = vrot.lane.b32.xlu0 %v821, 96
  %v854 = vpop.permute.xlu0 %853
  %855 = vrot.lane.b32.xlu0 %v822, 96
  %v856 = vpop.permute.xlu0 %855
  %857 = vrot.lane.b32.xlu0 %v823, 96
  %v858 = vpop.permute.xlu0 %857
  %859 = vrot.lane.b32.xlu0 %v824, 96
  %v860 = vpop.permute.xlu0 %859
  %v865 = vmul.f32 %v845, %v854
  %v866 = vmul.f32 %v846, %v856
  %v867 = vmul.f32 %v847, %v858
  %v868 = vmul.f32 %v848, %v860
  %v869 = vadd.f32 %v841, %v865
  %v870 = vadd.f32 %v842, %v866
  %v871 = vadd.f32 %v843, %v867
  %v872 = vadd.f32 %v844, %v868
  %v873 = vpack.c.bf16 %v870, %v869
  %v874 = vpack.c.bf16 %v872, %v871
  %876 = vrot.lane.b32.xlu0 %v873, 96
  %v877 = vpop.permute.xlu0 %876
  %879 = vmatprep.subr.bf16.mxu0 0
  %880 = vmatpush1.bf16.msra.mxu0 %v877
  %881 = vmatprep.subr.bf16.mxu0 0
  %882 = vmatpush1.bf16.msra.mxu0 0
  %883 = vmatprep.subr.bf16.mxu0 0
  %884 = vmatpush1.bf16.msra.mxu0 0
  %885 = vmatprep.subr.bf16.mxu0 0
  %886 = vmatpush1.bf16.msra.mxu0 0
  %887 = vmatprep.subr.bf16.mxu0 0
  %888 = vmatpush1.bf16.msra.mxu0 0
  %889 = vmatprep.subr.bf16.mxu0 0
  %890 = vmatpush1.bf16.msra.mxu0 0
  %891 = vmatprep.subr.bf16.mxu0 0
  %892 = vmatpush1.bf16.msra.mxu0 0
  %893 = vmatprep.subr.bf16.mxu0 0
  %894 = vmatpush1.bf16.msra.mxu0 0
  %895 = vmatprep.subr.bf16.mxu0 0
  %896 = vmatpush1.bf16.msra.mxu0 0
  %897 = vmatprep.subr.bf16.mxu0 0
  %898 = vmatpush1.bf16.msra.mxu0 0
  %899 = vmatprep.subr.bf16.mxu0 0
  %900 = vmatpush1.bf16.msra.mxu0 0
  %901 = vmatprep.subr.bf16.mxu0 0
  %902 = vmatpush1.bf16.msra.mxu0 0
  %903 = vmatprep.subr.bf16.mxu0 0
  %904 = vmatpush1.bf16.msra.mxu0 0
  %905 = vmatprep.subr.bf16.mxu0 0
  %906 = vmatpush1.bf16.msra.mxu0 0
  %907 = vmatprep.subr.bf16.mxu0 0
  %908 = vmatpush1.bf16.msra.mxu0 0
  %909 = vmatprep.subr.bf16.mxu0 0
  %910 = vmatpush1.bf16.msra.mxu0 0
  %911 = vmatprep.mubr.bf16.mxu0 0
  %912 = vmatmul.mubr.bf16.gmra.mrb[0].mxu0 %v126
  %v913 = vpop.f32.mrb[0].mxu0
  %v914 = vadd.f32 0.0, %v913
  %v915 = vpop.f32.mrb[0].mxu0
  %v916 = vpop.f32.mrb[0].mxu0
  %v917 = vadd.f32 0.0, %v916
  %v918 = vpop.f32.mrb[0].mxu0
  %919 = vdwg.mxu0
  %921 = vrot.lane.b32.xlu0 %v874, 96
  %v922 = vpop.permute.xlu0 %921
  %924 = vmatprep.subr.bf16.mxu0 0
  %925 = vmatpush1.bf16.msra.mxu0 %v922
  %926 = vmatprep.subr.bf16.mxu0 0
  %927 = vmatpush1.bf16.msra.mxu0 0
  %928 = vmatprep.subr.bf16.mxu0 0
  %929 = vmatpush1.bf16.msra.mxu0 0
  %930 = vmatprep.subr.bf16.mxu0 0
  %931 = vmatpush1.bf16.msra.mxu0 0
  %932 = vmatprep.subr.bf16.mxu0 0
  %933 = vmatpush1.bf16.msra.mxu0 0
  %934 = vmatprep.subr.bf16.mxu0 0
  %935 = vmatpush1.bf16.msra.mxu0 0
  %936 = vmatprep.subr.bf16.mxu0 0
  %937 = vmatpush1.bf16.msra.mxu0 0
  %938 = vmatprep.subr.bf16.mxu0 0
  %939 = vmatpush1.bf16.msra.mxu0 0
  %940 = vmatprep.subr.bf16.mxu0 0
  %941 = vmatpush1.bf16.msra.mxu0 0
  %942 = vmatprep.subr.bf16.mxu0 0
  %943 = vmatpush1.bf16.msra.mxu0 0
  %944 = vmatprep.subr.bf16.mxu0 0
  %945 = vmatpush1.bf16.msra.mxu0 0
  %946 = vmatprep.subr.bf16.mxu0 0
  %947 = vmatpush1.bf16.msra.mxu0 0
  %948 = vmatprep.subr.bf16.mxu0 0
  %949 = vmatpush1.bf16.msra.mxu0 0
  %950 = vmatprep.subr.bf16.mxu0 0
  %951 = vmatpush1.bf16.msra.mxu0 0
  %952 = vmatprep.subr.bf16.mxu0 0
  %953 = vmatpush1.bf16.msra.mxu0 0
  %954 = vmatprep.subr.bf16.mxu0 0
  %955 = vmatpush1.bf16.msra.mxu0 0
  %956 = vmatprep.mubr.bf16.mxu0 0
  %957 = vmatmul.mubr.bf16.gmra.mrb[0].mxu0 %v175
  %v958 = vpop.f32.mrb[0].mxu0
  %v959 = vadd.f32 0.0, %v958
  %v960 = vpop.f32.mrb[0].mxu0
  %v961 = vpop.f32.mrb[0].mxu0
  %v962 = vadd.f32 0.0, %v961
  %v963 = vpop.f32.mrb[0].mxu0
  %964 = vdwg.mxu0
  %v965 = vpack.c.bf16 %v917, %v914
  %v966 = vpack.c.bf16 %v962, %v959
  %967 = vmatprep.subr.bf16.mxu0 0
  %968 = vmatpush1.bf16.msra.mxu0 %v965
  %969 = vmatprep.subr.bf16.mxu0 0
  %970 = vmatpush1.bf16.msra.mxu0 0
  %971 = vmatprep.subr.bf16.mxu0 0
  %972 = vmatpush1.bf16.msra.mxu0 0
  %973 = vmatprep.subr.bf16.mxu0 0
  %974 = vmatpush1.bf16.msra.mxu0 0
  %975 = vmatprep.subr.bf16.mxu0 0
  %976 = vmatpush1.bf16.msra.mxu0 0
  %977 = vmatprep.subr.bf16.mxu0 0
  %978 = vmatpush1.bf16.msra.mxu0 0
  %979 = vmatprep.subr.bf16.mxu0 0
  %980 = vmatpush1.bf16.msra.mxu0 0
  %981 = vmatprep.subr.bf16.mxu0 0
  %982 = vmatpush1.bf16.msra.mxu0 0
  %983 = vmatprep.subr.bf16.mxu0 0
  %984 = vmatpush1.bf16.msra.mxu0 0
  %985 = vmatprep.subr.bf16.mxu0 0
  %986 = vmatpush1.bf16.msra.mxu0 0
  %987 = vmatprep.subr.bf16.mxu0 0
  %988 = vmatpush1.bf16.msra.mxu0 0
  %989 = vmatprep.subr.bf16.mxu0 0
  %990 = vmatpush1.bf16.msra.mxu0 0
  %991 = vmatprep.subr.bf16.mxu0 0
  %992 = vmatpush1.bf16.msra.mxu0 0
  %993 = vmatprep.subr.bf16.mxu0 0
  %994 = vmatpush1.bf16.msra.mxu0 0
  %995 = vmatprep.subr.bf16.mxu0 0
  %996 = vmatpush1.bf16.msra.mxu0 0
  %997 = vmatprep.subr.bf16.mxu0 0
  %998 = vmatpush1.bf16.msra.mxu0 0
  %999 = vmatprep.mubr.bf16.mxu0 0
  %1000 = vmatmul.mubr.bf16.gmra.mrb[0].mxu0 %v126
  %v1001 = vpop.f32.mrb[0].mxu0
  %v1002 = vadd.f32 0.0, %v1001
  %v1003 = vpop.f32.mrb[0].mxu0
  %v1004 = vpop.f32.mrb[0].mxu0
  %v1005 = vadd.f32 0.0, %v1004
  %v1006 = vpop.f32.mrb[0].mxu0
  %1007 = vdwg.mxu0
  %1008 = vmatprep.subr.bf16.mxu0 0
  %1009 = vmatpush1.bf16.msra.mxu0 %v966
  %1010 = vmatprep.subr.bf16.mxu0 0
  %1011 = vmatpush1.bf16.msra.mxu0 0
  %1012 = vmatprep.subr.bf16.mxu0 0
  %1013 = vmatpush1.bf16.msra.mxu0 0
  %1014 = vmatprep.subr.bf16.mxu0 0
  %1015 = vmatpush1.bf16.msra.mxu0 0
  %1016 = vmatprep.subr.bf16.mxu0 0
  %1017 = vmatpush1.bf16.msra.mxu0 0
  %1018 = vmatprep.subr.bf16.mxu0 0
  %1019 = vmatpush1.bf16.msra.mxu0 0
  %1020 = vmatprep.subr.bf16.mxu0 0
  %1021 = vmatpush1.bf16.msra.mxu0 0
  %1022 = vmatprep.subr.bf16.mxu0 0
  %1023 = vmatpush1.bf16.msra.mxu0 0
  %1024 = vmatprep.subr.bf16.mxu0 0
  %1025 = vmatpush1.bf16.msra.mxu0 0
  %1026 = vmatprep.subr.bf16.mxu0 0
  %1027 = vmatpush1.bf16.msra.mxu0 0
  %1028 = vmatprep.subr.bf16.mxu0 0
  %1029 = vmatpush1.bf16.msra.mxu0 0
  %1030 = vmatprep.subr.bf16.mxu0 0
  %1031 = vmatpush1.bf16.msra.mxu0 0
  %1032 = vmatprep.subr.bf16.mxu0 0
  %1033 = vmatpush1.bf16.msra.mxu0 0
  %1034 = vmatprep.subr.bf16.mxu0 0
  %1035 = vmatpush1.bf16.msra.mxu0 0
  %1036 = vmatprep.subr.bf16.mxu0 0
  %1037 = vmatpush1.bf16.msra.mxu0 0
  %1038 = vmatprep.subr.bf16.mxu0 0
  %1039 = vmatpush1.bf16.msra.mxu0 0
  %1040 = vmatprep.mubr.bf16.mxu0 0
  %1041 = vmatmul.mubr.bf16.gmra.mrb[0].mxu0 %v175
  %v1042 = vpop.f32.mrb[0].mxu0
  %v1043 = vadd.f32 0.0, %v1042
  %v1044 = vpop.f32.mrb[0].mxu0
  %v1045 = vpop.f32.mrb[0].mxu0
  %v1046 = vadd.f32 0.0, %v1045
  %v1047 = vpop.f32.mrb[0].mxu0
  %1048 = vdwg.mxu0
  %v1049 = vmul.f32 %v1002, 2.0
  %v1050 = vmul.f32 %v1005, 2.0
  %v1051 = vmul.f32 %v1043, 2.0
  %v1052 = vmul.f32 %v1046, 2.0
  %1057 = vrot.lane.b32.xlu0 %v869, 96
  %v1058 = vpop.permute.xlu0 %1057
  %1059 = vrot.lane.b32.xlu0 %v870, 96
  %v1060 = vpop.permute.xlu0 %1059
  %1061 = vrot.lane.b32.xlu0 %v871, 96
  %v1062 = vpop.permute.xlu0 %1061
  %1063 = vrot.lane.b32.xlu0 %v872, 96
  %v1064 = vpop.permute.xlu0 %1063
  %v1069 = vsub.f32 %v1049, %v1058
  %v1070 = vsub.f32 %v1050, %v1060
  %v1071 = vsub.f32 %v1051, %v1062
  %v1072 = vsub.f32 %v1052, %v1064
  %1077 = vrot.lane.b32.xlu0 %v914, 32
  %v1078 = vpop.permute.xlu0 %1077
  %1079 = vrot.lane.b32.xlu0 %v917, 32
  %v1080 = vpop.permute.xlu0 %1079
  %1081 = vrot.lane.b32.xlu0 %v959, 32
  %v1082 = vpop.permute.xlu0 %1081
  %1083 = vrot.lane.b32.xlu0 %v962, 32
  %v1084 = vpop.permute.xlu0 %1083
  %1093 = vrot.lane.b32.xlu0 %v1069, 64
  %v1094 = vpop.permute.xlu0 %1093
  %1095 = vrot.lane.b32.xlu0 %v1070, 64
  %v1096 = vpop.permute.xlu0 %1095
  %1097 = vrot.lane.b32.xlu0 %v1071, 64
  %v1098 = vpop.permute.xlu0 %1097
  %1099 = vrot.lane.b32.xlu0 %v1072, 64
  %v1100 = vpop.permute.xlu0 %1099
  %v1105 = vsel %vm342, %v1058, %v1078
  %v1106 = vsel %vm342, %v1060, %v1080
  %v1107 = vsel %vm342, %v1062, %v1082
  %v1108 = vsel %vm342, %v1064, %v1084
  %v1109 = vsel %vm347, %v1105, %v1094
  %v1110 = vsel %vm347, %v1106, %v1096
  %v1111 = vsel %vm347, %v1107, %v1098
  %v1112 = vsel %vm347, %v1108, %v1100
  %v1113 = vpack.c.bf16 %v1110, %v1109
  %v1114 = vpack.c.bf16 %v1112, %v1111
  %v1127 = vunpack.c.l.b16 %v61
  %v1128 = vunpack.c.l.b16 %v62
  %v1129 = vunpack.c.l.b16 %v63
  %v1130 = vunpack.c.l.b16 %v64
  %v1131 = vunpack.c.l.b16 %v65
  %v1132 = vunpack.c.l.b16 %v66
  %v1133 = vunpack.c.l.b16 %v67
  %v1134 = vunpack.c.l.b16 %v68
  %v1135 = vunpack.c.l.b16 %v69
  %v1136 = vunpack.c.l.b16 %v70
  %v1137 = vunpack.c.l.b16 %v71
  %v1138 = vunpack.c.l.b16 %v72
  %v1139 = vpack.c.b16 %v1128, %v1127
  %v1140 = vpack.c.b16 %v1130, %v1129
  %v1141 = vpack.c.b16 %v1132, %v1131
  %v1142 = vpack.c.b16 %v1134, %v1133
  %v1143 = vpack.c.b16 %v1136, %v1135
  %v1144 = vpack.c.b16 %v1138, %v1137
  %v1152 = vsel %vm390, %v1113, 0
  %v1155 = vsel %vm390, %v1114, 0
  %1157 = vmatprep.subr.bf16.mxu0 0
  %1158 = vmatpush1.bf16.msra.mxu0 %v1139
  %1159 = vmatprep.subr.bf16.mxu0 0
  %1160 = vmatpush1.bf16.msra.mxu0 %v1140
  %1161 = vmatprep.subr.bf16.mxu0 0
  %1162 = vmatpush1.bf16.msra.mxu0 %v1141
  %1163 = vmatprep.subr.bf16.mxu0 0
  %1164 = vmatpush1.bf16.msra.mxu0 %v1142
  %1165 = vmatprep.subr.bf16.mxu0 0
  %1166 = vmatpush1.bf16.msra.mxu0 %v1143
  %1167 = vmatprep.subr.bf16.mxu0 0
  %1168 = vmatpush1.bf16.msra.mxu0 %v1144
  %1169 = vmatprep.subr.bf16.mxu0 0
  %1170 = vmatpush1.bf16.msra.mxu0 0
  %1171 = vmatprep.subr.bf16.mxu0 0
  %1172 = vmatpush1.bf16.msra.mxu0 0
  %1173 = vmatprep.subr.bf16.mxu0 0
  %1174 = vmatpush1.bf16.msra.mxu0 0
  %1175 = vmatprep.subr.bf16.mxu0 0
  %1176 = vmatpush1.bf16.msra.mxu0 0
  %1177 = vmatprep.subr.bf16.mxu0 0
  %1178 = vmatpush1.bf16.msra.mxu0 0
  %1179 = vmatprep.subr.bf16.mxu0 0
  %1180 = vmatpush1.bf16.msra.mxu0 0
  %1181 = vmatprep.subr.bf16.mxu0 0
  %1182 = vmatpush1.bf16.msra.mxu0 0
  %1183 = vmatprep.subr.bf16.mxu0 0
  %1184 = vmatpush1.bf16.msra.mxu0 0
  %1185 = vmatprep.subr.bf16.mxu0 0
  %1186 = vmatpush1.bf16.msra.mxu0 0
  %1187 = vmatprep.subr.bf16.mxu0 0
  %1188 = vmatpush1.bf16.msra.mxu0 0
  %1189 = vmatprep.mubr.bf16.mxu0 0
  %1190 = vmatmul.mubr.bf16.gmra.mrb[0].mxu0 %v1152
  %v1191 = vpop.f32.mrb[0].mxu0
  %v1192 = vadd.f32 0.0, %v1191
  %v1193 = vpop.f32.mrb[0].mxu0
  %v1194 = vpop.f32.mrb[0].mxu0
  %v1195 = vadd.f32 0.0, %v1194
  %v1196 = vpop.f32.mrb[0].mxu0
  %1197 = vmatprep.mubr.bf16.mxu0 0
  %1198 = vmatmul.mubr.bf16.gmra.mrb[0].mxu0 %v1155
  %v1199 = vpop.f32.mrb[0].mxu0
  %v1200 = vadd.f32 0.0, %v1199
  %v1201 = vpop.f32.mrb[0].mxu0
  %v1202 = vpop.f32.mrb[0].mxu0
  %v1203 = vadd.f32 0.0, %v1202
  %v1204 = vpop.f32.mrb[0].mxu0
  %1205 = vdwg.mxu0
  %v1206 = vpack.c.bf16 %v106, %v105
  %v1207 = vpack.c.bf16 %v108, %v107
  %1208 = vmatprep.subr.bf16.mxu0 0
  %1209 = vmatpush1.bf16.msra.mxu0 %v1206
  %1210 = vmatprep.subr.bf16.mxu0 0
  %1211 = vmatpush1.bf16.msra.mxu0 0
  %1212 = vmatprep.subr.bf16.mxu0 0
  %1213 = vmatpush1.bf16.msra.mxu0 0
  %1214 = vmatprep.subr.bf16.mxu0 0
  %1215 = vmatpush1.bf16.msra.mxu0 0
  %1216 = vmatprep.subr.bf16.mxu0 0
  %1217 = vmatpush1.bf16.msra.mxu0 0
  %1218 = vmatprep.subr.bf16.mxu0 0
  %1219 = vmatpush1.bf16.msra.mxu0 0
  %1220 = vmatprep.subr.bf16.mxu0 0
  %1221 = vmatpush1.bf16.msra.mxu0 0
  %1222 = vmatprep.subr.bf16.mxu0 0
  %1223 = vmatpush1.bf16.msra.mxu0 0
  %1224 = vmatprep.subr.bf16.mxu0 0
  %1225 = vmatpush1.bf16.msra.mxu0 0
  %1226 = vmatprep.subr.bf16.mxu0 0
  %1227 = vmatpush1.bf16.msra.mxu0 0
  %1228 = vmatprep.subr.bf16.mxu0 0
  %1229 = vmatpush1.bf16.msra.mxu0 0
  %1230 = vmatprep.subr.bf16.mxu0 0
  %1231 = vmatpush1.bf16.msra.mxu0 0
  %1232 = vmatprep.subr.bf16.mxu0 0
  %1233 = vmatpush1.bf16.msra.mxu0 0
  %1234 = vmatprep.subr.bf16.mxu0 0
  %1235 = vmatpush1.bf16.msra.mxu0 0
  %1236 = vmatprep.subr.bf16.mxu0 0
  %1237 = vmatpush1.bf16.msra.mxu0 0
  %1238 = vmatprep.subr.bf16.mxu0 0
  %1239 = vmatpush1.bf16.msra.mxu0 0
  %1240 = vmatprep.mubr.bf16.mxu0 0
  %1241 = vmatmul.mubr.bf16.gmra.mrb[0].mxu0 %v126
  %v1242 = vpop.f32.mrb[0].mxu0
  %v1243 = vadd.f32 0.0, %v1242
  %v1244 = vpop.f32.mrb[0].mxu0
  %v1245 = vpop.f32.mrb[0].mxu0
  %v1246 = vadd.f32 0.0, %v1245
  %v1247 = vpop.f32.mrb[0].mxu0
  %1248 = vdwg.mxu0
  %1249 = vmatprep.subr.bf16.mxu0 0
  %1250 = vmatpush1.bf16.msra.mxu0 %v1207
  %1251 = vmatprep.subr.bf16.mxu0 0
  %1252 = vmatpush1.bf16.msra.mxu0 0
  %1253 = vmatprep.subr.bf16.mxu0 0
  %1254 = vmatpush1.bf16.msra.mxu0 0
  %1255 = vmatprep.subr.bf16.mxu0 0
  %1256 = vmatpush1.bf16.msra.mxu0 0
  %1257 = vmatprep.subr.bf16.mxu0 0
  %1258 = vmatpush1.bf16.msra.mxu0 0
  %1259 = vmatprep.subr.bf16.mxu0 0
  %1260 = vmatpush1.bf16.msra.mxu0 0
  %1261 = vmatprep.subr.bf16.mxu0 0
  %1262 = vmatpush1.bf16.msra.mxu0 0
  %1263 = vmatprep.subr.bf16.mxu0 0
  %1264 = vmatpush1.bf16.msra.mxu0 0
  %1265 = vmatprep.subr.bf16.mxu0 0
  %1266 = vmatpush1.bf16.msra.mxu0 0
  %1267 = vmatprep.subr.bf16.mxu0 0
  %1268 = vmatpush1.bf16.msra.mxu0 0
  %1269 = vmatprep.subr.bf16.mxu0 0
  %1270 = vmatpush1.bf16.msra.mxu0 0
  %1271 = vmatprep.subr.bf16.mxu0 0
  %1272 = vmatpush1.bf16.msra.mxu0 0
  %1273 = vmatprep.subr.bf16.mxu0 0
  %1274 = vmatpush1.bf16.msra.mxu0 0
  %1275 = vmatprep.subr.bf16.mxu0 0
  %1276 = vmatpush1.bf16.msra.mxu0 0
  %1277 = vmatprep.subr.bf16.mxu0 0
  %1278 = vmatpush1.bf16.msra.mxu0 0
  %1279 = vmatprep.subr.bf16.mxu0 0
  %1280 = vmatpush1.bf16.msra.mxu0 0
  %1281 = vmatprep.mubr.bf16.mxu0 0
  %1282 = vmatmul.mubr.bf16.gmra.mrb[0].mxu0 %v175
  %v1283 = vpop.f32.mrb[0].mxu0
  %v1284 = vadd.f32 0.0, %v1283
  %v1285 = vpop.f32.mrb[0].mxu0
  %v1286 = vpop.f32.mrb[0].mxu0
  %v1287 = vadd.f32 0.0, %v1286
  %v1288 = vpop.f32.mrb[0].mxu0
  %1289 = vdwg.mxu0
  %v1290 = vpack.c.bf16 %v1246, %v1243
  %v1291 = vpack.c.bf16 %v1287, %v1284
  %1292 = vmatprep.subr.bf16.mxu0 0
  %1293 = vmatpush1.bf16.msra.mxu0 %v1290
  %1294 = vmatprep.subr.bf16.mxu0 0
  %1295 = vmatpush1.bf16.msra.mxu0 0
  %1296 = vmatprep.subr.bf16.mxu0 0
  %1297 = vmatpush1.bf16.msra.mxu0 0
  %1298 = vmatprep.subr.bf16.mxu0 0
  %1299 = vmatpush1.bf16.msra.mxu0 0
  %1300 = vmatprep.subr.bf16.mxu0 0
  %1301 = vmatpush1.bf16.msra.mxu0 0
  %1302 = vmatprep.subr.bf16.mxu0 0
  %1303 = vmatpush1.bf16.msra.mxu0 0
  %1304 = vmatprep.subr.bf16.mxu0 0
  %1305 = vmatpush1.bf16.msra.mxu0 0
  %1306 = vmatprep.subr.bf16.mxu0 0
  %1307 = vmatpush1.bf16.msra.mxu0 0
  %1308 = vmatprep.subr.bf16.mxu0 0
  %1309 = vmatpush1.bf16.msra.mxu0 0
  %1310 = vmatprep.subr.bf16.mxu0 0
  %1311 = vmatpush1.bf16.msra.mxu0 0
  %1312 = vmatprep.subr.bf16.mxu0 0
  %1313 = vmatpush1.bf16.msra.mxu0 0
  %1314 = vmatprep.subr.bf16.mxu0 0
  %1315 = vmatpush1.bf16.msra.mxu0 0
  %1316 = vmatprep.subr.bf16.mxu0 0
  %1317 = vmatpush1.bf16.msra.mxu0 0
  %1318 = vmatprep.subr.bf16.mxu0 0
  %1319 = vmatpush1.bf16.msra.mxu0 0
  %1320 = vmatprep.subr.bf16.mxu0 0
  %1321 = vmatpush1.bf16.msra.mxu0 0
  %1322 = vmatprep.subr.bf16.mxu0 0
  %1323 = vmatpush1.bf16.msra.mxu0 0
  %1324 = vmatprep.mubr.bf16.mxu0 0
  %1325 = vmatmul.mubr.bf16.gmra.mrb[0].mxu0 %v126
  %v1326 = vpop.f32.mrb[0].mxu0
  %v1327 = vadd.f32 0.0, %v1326
  %v1328 = vpop.f32.mrb[0].mxu0
  %v1329 = vpop.f32.mrb[0].mxu0
  %v1330 = vadd.f32 0.0, %v1329
  %v1331 = vpop.f32.mrb[0].mxu0
  %1332 = vdwg.mxu0
  %1333 = vmatprep.subr.bf16.mxu0 0
  %1334 = vmatpush1.bf16.msra.mxu0 %v1291
  %1335 = vmatprep.subr.bf16.mxu0 0
  %1336 = vmatpush1.bf16.msra.mxu0 0
  %1337 = vmatprep.subr.bf16.mxu0 0
  %1338 = vmatpush1.bf16.msra.mxu0 0
  %1339 = vmatprep.subr.bf16.mxu0 0
  %1340 = vmatpush1.bf16.msra.mxu0 0
  %1341 = vmatprep.subr.bf16.mxu0 0
  %1342 = vmatpush1.bf16.msra.mxu0 0
  %1343 = vmatprep.subr.bf16.mxu0 0
  %1344 = vmatpush1.bf16.msra.mxu0 0
  %1345 = vmatprep.subr.bf16.mxu0 0
  %1346 = vmatpush1.bf16.msra.mxu0 0
  %1347 = vmatprep.subr.bf16.mxu0 0
  %1348 = vmatpush1.bf16.msra.mxu0 0
  %1349 = vmatprep.subr.bf16.mxu0 0
  %1350 = vmatpush1.bf16.msra.mxu0 0
  %1351 = vmatprep.subr.bf16.mxu0 0
  %1352 = vmatpush1.bf16.msra.mxu0 0
  %1353 = vmatprep.subr.bf16.mxu0 0
  %1354 = vmatpush1.bf16.msra.mxu0 0
  %1355 = vmatprep.subr.bf16.mxu0 0
  %1356 = vmatpush1.bf16.msra.mxu0 0
  %1357 = vmatprep.subr.bf16.mxu0 0
  %1358 = vmatpush1.bf16.msra.mxu0 0
  %1359 = vmatprep.subr.bf16.mxu0 0
  %1360 = vmatpush1.bf16.msra.mxu0 0
  %1361 = vmatprep.subr.bf16.mxu0 0
  %1362 = vmatpush1.bf16.msra.mxu0 0
  %1363 = vmatprep.subr.bf16.mxu0 0
  %1364 = vmatpush1.bf16.msra.mxu0 0
  %1365 = vmatprep.mubr.bf16.mxu0 0
  %1366 = vmatmul.mubr.bf16.gmra.mrb[0].mxu0 %v175
  %v1367 = vpop.f32.mrb[0].mxu0
  %v1368 = vadd.f32 0.0, %v1367
  %v1369 = vpop.f32.mrb[0].mxu0
  %v1370 = vpop.f32.mrb[0].mxu0
  %v1371 = vadd.f32 0.0, %v1370
  %v1372 = vpop.f32.mrb[0].mxu0
  %1373 = vdwg.mxu0
  %v1374 = vmul.f32 %v1327, 2.0
  %v1375 = vmul.f32 %v1330, 2.0
  %v1376 = vmul.f32 %v1368, 2.0
  %v1377 = vmul.f32 %v1371, 2.0
  %v1378 = vsub.f32 %v1374, %v105
  %v1379 = vsub.f32 %v1375, %v106
  %v1380 = vsub.f32 %v1376, %v107
  %v1381 = vsub.f32 %v1377, %v108
  %1386 = vrot.lane.b32.xlu0 %v1243, 32
  %v1387 = vpop.permute.xlu0 %1386
  %1388 = vrot.lane.b32.xlu0 %v1246, 32
  %v1389 = vpop.permute.xlu0 %1388
  %1390 = vrot.lane.b32.xlu0 %v1284, 32
  %v1391 = vpop.permute.xlu0 %1390
  %1392 = vrot.lane.b32.xlu0 %v1287, 32
  %v1393 = vpop.permute.xlu0 %1392
  %1402 = vrot.lane.b32.xlu0 %v1378, 64
  %v1403 = vpop.permute.xlu0 %1402
  %1404 = vrot.lane.b32.xlu0 %v1379, 64
  %v1405 = vpop.permute.xlu0 %1404
  %1406 = vrot.lane.b32.xlu0 %v1380, 64
  %v1407 = vpop.permute.xlu0 %1406
  %1408 = vrot.lane.b32.xlu0 %v1381, 64
  %v1409 = vpop.permute.xlu0 %1408
  %v1414 = vsel %vm342, %v105, %v1387
  %v1415 = vsel %vm342, %v106, %v1389
  %v1416 = vsel %vm342, %v107, %v1391
  %v1417 = vsel %vm342, %v108, %v1393
  %v1418 = vsel %vm347, %v1414, %v1403
  %v1419 = vsel %vm347, %v1415, %v1405
  %v1420 = vsel %vm347, %v1416, %v1407
  %v1421 = vsel %vm347, %v1417, %v1409
  %v1422 = vpack.c.bf16 %v1419, %v1418
  %v1423 = vpack.c.bf16 %v1421, %v1420
  %v1436 = vunpack.c.l.b16 %v73
  %v1437 = vunpack.c.l.b16 %v74
  %v1438 = vunpack.c.l.b16 %v75
  %v1439 = vunpack.c.l.b16 %v76
  %v1440 = vunpack.c.l.b16 %v77
  %v1441 = vunpack.c.l.b16 %v78
  %v1442 = vunpack.c.l.b16 %v79
  %v1443 = vunpack.c.l.b16 %v80
  %v1444 = vunpack.c.l.b16 %v81
  %v1445 = vunpack.c.l.b16 %v82
  %v1446 = vunpack.c.l.b16 %v83
  %v1447 = vunpack.c.l.b16 %v84
  %v1448 = vpack.c.b16 %v1437, %v1436
  %v1449 = vpack.c.b16 %v1439, %v1438
  %v1450 = vpack.c.b16 %v1441, %v1440
  %v1451 = vpack.c.b16 %v1443, %v1442
  %v1452 = vpack.c.b16 %v1445, %v1444
  %v1453 = vpack.c.b16 %v1447, %v1446
  %v1461 = vsel %vm390, %v1422, 0
  %v1464 = vsel %vm390, %v1423, 0
  %1466 = vmatprep.subr.bf16.mxu0 0
  %1467 = vmatpush1.bf16.msra.mxu0 %v1448
  %1468 = vmatprep.subr.bf16.mxu0 0
  %1469 = vmatpush1.bf16.msra.mxu0 %v1449
  %1470 = vmatprep.subr.bf16.mxu0 0
  %1471 = vmatpush1.bf16.msra.mxu0 %v1450
  %1472 = vmatprep.subr.bf16.mxu0 0
  %1473 = vmatpush1.bf16.msra.mxu0 %v1451
  %1474 = vmatprep.subr.bf16.mxu0 0
  %1475 = vmatpush1.bf16.msra.mxu0 %v1452
  %1476 = vmatprep.subr.bf16.mxu0 0
  %1477 = vmatpush1.bf16.msra.mxu0 %v1453
  %1478 = vmatprep.subr.bf16.mxu0 0
  %1479 = vmatpush1.bf16.msra.mxu0 0
  %1480 = vmatprep.subr.bf16.mxu0 0
  %1481 = vmatpush1.bf16.msra.mxu0 0
  %1482 = vmatprep.subr.bf16.mxu0 0
  %1483 = vmatpush1.bf16.msra.mxu0 0
  %1484 = vmatprep.subr.bf16.mxu0 0
  %1485 = vmatpush1.bf16.msra.mxu0 0
  %1486 = vmatprep.subr.bf16.mxu0 0
  %1487 = vmatpush1.bf16.msra.mxu0 0
  %1488 = vmatprep.subr.bf16.mxu0 0
  %1489 = vmatpush1.bf16.msra.mxu0 0
  %1490 = vmatprep.subr.bf16.mxu0 0
  %1491 = vmatpush1.bf16.msra.mxu0 0
  %1492 = vmatprep.subr.bf16.mxu0 0
  %1493 = vmatpush1.bf16.msra.mxu0 0
  %1494 = vmatprep.subr.bf16.mxu0 0
  %1495 = vmatpush1.bf16.msra.mxu0 0
  %1496 = vmatprep.subr.bf16.mxu0 0
  %1497 = vmatpush1.bf16.msra.mxu0 0
  %1498 = vmatprep.mubr.bf16.mxu0 0
  %1499 = vmatmul.mubr.bf16.gmra.mrb[0].mxu0 %v1461
  %v1500 = vpop.f32.mrb[0].mxu0
  %v1501 = vadd.f32 0.0, %v1500
  %v1502 = vpop.f32.mrb[0].mxu0
  %v1503 = vpop.f32.mrb[0].mxu0
  %v1504 = vadd.f32 0.0, %v1503
  %v1505 = vpop.f32.mrb[0].mxu0
  %1506 = vmatprep.mubr.bf16.mxu0 0
  %1507 = vmatmul.mubr.bf16.gmra.mrb[0].mxu0 %v1464
  %v1508 = vpop.f32.mrb[0].mxu0
  %v1509 = vadd.f32 0.0, %v1508
  %v1510 = vpop.f32.mrb[0].mxu0
  %v1511 = vpop.f32.mrb[0].mxu0
  %v1512 = vadd.f32 0.0, %v1511
  %v1513 = vpop.f32.mrb[0].mxu0
  %1514 = vdwg.mxu0
  %v1515 = vadd.f32 %v1192, %v1501
  %v1516 = vadd.f32 %v1195, %v1504
  %v1517 = vadd.f32 %v1200, %v1509
  %v1518 = vadd.f32 %v1203, %v1512
  %v1520 = vlaneseq
  %v1521 = vshrl.u32 %v1520, 7
  %v1522 = vsub.s32 0, %v1521
  %v1523 = vrot.slane %v99, %v1522
  %v1525 = vadd.f32 %v1515, %v1523
  %v1526 = vadd.f32 %v1516, %v1523
  %v1527 = vadd.f32 %v1517, %v1523
  %v1528 = vadd.f32 %v1518, %v1523
  %v1529 = vxor.u32 %v1525, 2147483648
  %v1530 = vxor.u32 %v1526, 2147483648
  %v1531 = vxor.u32 %v1527, 2147483648
  %v1532 = vxor.u32 %v1528, 2147483648
  %v1533 = vmul.f32 %v1529, 1.442695
  %v1534 = vpow.pop %v1533
  %v1535 = vmul.f32 %v1530, 1.442695
  %v1536 = vpow.pop %v1535
  %v1537 = vmul.f32 %v1531, 1.442695
  %v1538 = vpow.pop %v1537
  %v1539 = vmul.f32 %v1532, 1.442695
  %v1540 = vpow.pop %v1539
  %v1541 = vadd.f32 %v1534, 1.0
  %v1542 = vadd.f32 %v1536, 1.0
  %v1543 = vadd.f32 %v1538, 1.0
  %v1544 = vadd.f32 %v1540, 1.0
  %v1545 = vrcp.pop %v1541
  %v1546 = vmul.f32 1.0, %v1545
  %v1547 = vrcp.pop %v1542
  %v1548 = vmul.f32 1.0, %v1547
  %v1549 = vrcp.pop %v1543
  %v1550 = vmul.f32 1.0, %v1549
  %v1551 = vrcp.pop %v1544
  %v1552 = vmul.f32 1.0, %v1551
  %v1553 = vmul.f32 %v1546, %v105
  %v1554 = vmul.f32 %v1548, %v106
  %v1555 = vmul.f32 %v1550, %v107
  %v1556 = vmul.f32 %v1552, %v108
  %v1557 = vpack.c.bf16 %v1554, %v1553
  %v1558 = vpack.c.bf16 %v1556, %v1555
  %1559 = vmatprep.subr.bf16.mxu0 0
  %1560 = vmatpush1.bf16.msra.mxu0 %v1557
  %1561 = vmatprep.subr.bf16.mxu0 0
  %1562 = vmatpush1.bf16.msra.mxu0 0
  %1563 = vmatprep.subr.bf16.mxu0 0
  %1564 = vmatpush1.bf16.msra.mxu0 0
  %1565 = vmatprep.subr.bf16.mxu0 0
  %1566 = vmatpush1.bf16.msra.mxu0 0
  %1567 = vmatprep.subr.bf16.mxu0 0
  %1568 = vmatpush1.bf16.msra.mxu0 0
  %1569 = vmatprep.subr.bf16.mxu0 0
  %1570 = vmatpush1.bf16.msra.mxu0 0
  %1571 = vmatprep.subr.bf16.mxu0 0
  %1572 = vmatpush1.bf16.msra.mxu0 0
  %1573 = vmatprep.subr.bf16.mxu0 0
  %1574 = vmatpush1.bf16.msra.mxu0 0
  %1575 = vmatprep.subr.bf16.mxu0 0
  %1576 = vmatpush1.bf16.msra.mxu0 0
  %1577 = vmatprep.subr.bf16.mxu0 0
  %1578 = vmatpush1.bf16.msra.mxu0 0
  %1579 = vmatprep.subr.bf16.mxu0 0
  %1580 = vmatpush1.bf16.msra.mxu0 0
  %1581 = vmatprep.subr.bf16.mxu0 0
  %1582 = vmatpush1.bf16.msra.mxu0 0
  %1583 = vmatprep.subr.bf16.mxu0 0
  %1584 = vmatpush1.bf16.msra.mxu0 0
  %1585 = vmatprep.subr.bf16.mxu0 0
  %1586 = vmatpush1.bf16.msra.mxu0 0
  %1587 = vmatprep.subr.bf16.mxu0 0
  %1588 = vmatpush1.bf16.msra.mxu0 0
  %1589 = vmatprep.subr.bf16.mxu0 0
  %1590 = vmatpush1.bf16.msra.mxu0 0
  %1591 = vmatprep.mubr.bf16.mxu0 0
  %1592 = vmatmul.mubr.bf16.gmra.mrb[0].mxu0 %v126
  %v1593 = vpop.f32.mrb[0].mxu0
  %v1594 = vadd.f32 0.0, %v1593
  %v1595 = vpop.f32.mrb[0].mxu0
  %v1596 = vpop.f32.mrb[0].mxu0
  %v1597 = vadd.f32 0.0, %v1596
  %v1598 = vpop.f32.mrb[0].mxu0
  %1599 = vdwg.mxu0
  %1600 = vmatprep.subr.bf16.mxu0 0
  %1601 = vmatpush1.bf16.msra.mxu0 %v1558
  %1602 = vmatprep.subr.bf16.mxu0 0
  %1603 = vmatpush1.bf16.msra.mxu0 0
  %1604 = vmatprep.subr.bf16.mxu0 0
  %1605 = vmatpush1.bf16.msra.mxu0 0
  %1606 = vmatprep.subr.bf16.mxu0 0
  %1607 = vmatpush1.bf16.msra.mxu0 0
  %1608 = vmatprep.subr.bf16.mxu0 0
  %1609 = vmatpush1.bf16.msra.mxu0 0
  %1610 = vmatprep.subr.bf16.mxu0 0
  %1611 = vmatpush1.bf16.msra.mxu0 0
  %1612 = vmatprep.subr.bf16.mxu0 0
  %1613 = vmatpush1.bf16.msra.mxu0 0
  %1614 = vmatprep.subr.bf16.mxu0 0
  %1615 = vmatpush1.bf16.msra.mxu0 0
  %1616 = vmatprep.subr.bf16.mxu0 0
  %1617 = vmatpush1.bf16.msra.mxu0 0
  %1618 = vmatprep.subr.bf16.mxu0 0
  %1619 = vmatpush1.bf16.msra.mxu0 0
  %1620 = vmatprep.subr.bf16.mxu0 0
  %1621 = vmatpush1.bf16.msra.mxu0 0
  %1622 = vmatprep.subr.bf16.mxu0 0
  %1623 = vmatpush1.bf16.msra.mxu0 0
  %1624 = vmatprep.subr.bf16.mxu0 0
  %1625 = vmatpush1.bf16.msra.mxu0 0
  %1626 = vmatprep.subr.bf16.mxu0 0
  %1627 = vmatpush1.bf16.msra.mxu0 0
  %1628 = vmatprep.subr.bf16.mxu0 0
  %1629 = vmatpush1.bf16.msra.mxu0 0
  %1630 = vmatprep.subr.bf16.mxu0 0
  %1631 = vmatpush1.bf16.msra.mxu0 0
  %1632 = vmatprep.mubr.bf16.mxu0 0
  %1633 = vmatmul.mubr.bf16.gmra.mrb[0].mxu0 %v175
  %v1634 = vpop.f32.mrb[0].mxu0
  %v1635 = vadd.f32 0.0, %v1634
  %v1636 = vpop.f32.mrb[0].mxu0
  %v1637 = vpop.f32.mrb[0].mxu0
  %v1638 = vadd.f32 0.0, %v1637
  %v1639 = vpop.f32.mrb[0].mxu0
  %1640 = vdwg.mxu0
  %v1641 = vpack.c.bf16 %v1597, %v1594
  %v1642 = vpack.c.bf16 %v1638, %v1635
  %1643 = vmatprep.subr.bf16.mxu0 0
  %1644 = vmatpush1.bf16.msra.mxu0 %v1641
  %1645 = vmatprep.subr.bf16.mxu0 0
  %1646 = vmatpush1.bf16.msra.mxu0 0
  %1647 = vmatprep.subr.bf16.mxu0 0
  %1648 = vmatpush1.bf16.msra.mxu0 0
  %1649 = vmatprep.subr.bf16.mxu0 0
  %1650 = vmatpush1.bf16.msra.mxu0 0
  %1651 = vmatprep.subr.bf16.mxu0 0
  %1652 = vmatpush1.bf16.msra.mxu0 0
  %1653 = vmatprep.subr.bf16.mxu0 0
  %1654 = vmatpush1.bf16.msra.mxu0 0
  %1655 = vmatprep.subr.bf16.mxu0 0
  %1656 = vmatpush1.bf16.msra.mxu0 0
  %1657 = vmatprep.subr.bf16.mxu0 0
  %1658 = vmatpush1.bf16.msra.mxu0 0
  %1659 = vmatprep.subr.bf16.mxu0 0
  %1660 = vmatpush1.bf16.msra.mxu0 0
  %1661 = vmatprep.subr.bf16.mxu0 0
  %1662 = vmatpush1.bf16.msra.mxu0 0
  %1663 = vmatprep.subr.bf16.mxu0 0
  %1664 = vmatpush1.bf16.msra.mxu0 0
  %1665 = vmatprep.subr.bf16.mxu0 0
  %1666 = vmatpush1.bf16.msra.mxu0 0
  %1667 = vmatprep.subr.bf16.mxu0 0
  %1668 = vmatpush1.bf16.msra.mxu0 0
  %1669 = vmatprep.subr.bf16.mxu0 0
  %1670 = vmatpush1.bf16.msra.mxu0 0
  %1671 = vmatprep.subr.bf16.mxu0 0
  %1672 = vmatpush1.bf16.msra.mxu0 0
  %1673 = vmatprep.subr.bf16.mxu0 0
  %1674 = vmatpush1.bf16.msra.mxu0 0
  %1675 = vmatprep.mubr.bf16.mxu0 0
  %1676 = vmatmul.mubr.bf16.gmra.mrb[0].mxu0 %v126
  %v1677 = vpop.f32.mrb[0].mxu0
  %v1678 = vadd.f32 0.0, %v1677
  %v1679 = vpop.f32.mrb[0].mxu0
  %v1680 = vpop.f32.mrb[0].mxu0
  %v1681 = vadd.f32 0.0, %v1680
  %v1682 = vpop.f32.mrb[0].mxu0
  %1683 = vdwg.mxu0
  %1684 = vmatprep.subr.bf16.mxu0 0
  %1685 = vmatpush1.bf16.msra.mxu0 %v1642
  %1686 = vmatprep.subr.bf16.mxu0 0
  %1687 = vmatpush1.bf16.msra.mxu0 0
  %1688 = vmatprep.subr.bf16.mxu0 0
  %1689 = vmatpush1.bf16.msra.mxu0 0
  %1690 = vmatprep.subr.bf16.mxu0 0
  %1691 = vmatpush1.bf16.msra.mxu0 0
  %1692 = vmatprep.subr.bf16.mxu0 0
  %1693 = vmatpush1.bf16.msra.mxu0 0
  %1694 = vmatprep.subr.bf16.mxu0 0
  %1695 = vmatpush1.bf16.msra.mxu0 0
  %1696 = vmatprep.subr.bf16.mxu0 0
  %1697 = vmatpush1.bf16.msra.mxu0 0
  %1698 = vmatprep.subr.bf16.mxu0 0
  %1699 = vmatpush1.bf16.msra.mxu0 0
  %1700 = vmatprep.subr.bf16.mxu0 0
  %1701 = vmatpush1.bf16.msra.mxu0 0
  %1702 = vmatprep.subr.bf16.mxu0 0
  %1703 = vmatpush1.bf16.msra.mxu0 0
  %1704 = vmatprep.subr.bf16.mxu0 0
  %1705 = vmatpush1.bf16.msra.mxu0 0
  %1706 = vmatprep.subr.bf16.mxu0 0
  %1707 = vmatpush1.bf16.msra.mxu0 0
  %1708 = vmatprep.subr.bf16.mxu0 0
  %1709 = vmatpush1.bf16.msra.mxu0 0
  %1710 = vmatprep.subr.bf16.mxu0 0
  %1711 = vmatpush1.bf16.msra.mxu0 0
  %1712 = vmatprep.subr.bf16.mxu0 0
  %1713 = vmatpush1.bf16.msra.mxu0 0
  %1714 = vmatprep.subr.bf16.mxu0 0
  %1715 = vmatpush1.bf16.msra.mxu0 0
  %1716 = vmatprep.mubr.bf16.mxu0 0
  %1717 = vmatmul.mubr.bf16.gmra.mrb[0].mxu0 %v175
  %v1718 = vpop.f32.mrb[0].mxu0
  %v1719 = vadd.f32 0.0, %v1718
  %v1720 = vpop.f32.mrb[0].mxu0
  %v1721 = vpop.f32.mrb[0].mxu0
  %v1722 = vadd.f32 0.0, %v1721
  %v1723 = vpop.f32.mrb[0].mxu0
  %1724 = vdwg.mxu0
  %v1725 = vmul.f32 %v1678, 2.0
  %v1726 = vmul.f32 %v1681, 2.0
  %v1727 = vmul.f32 %v1719, 2.0
  %v1728 = vmul.f32 %v1722, 2.0
  %v1729 = vsub.f32 %v1725, %v1553
  %v1730 = vsub.f32 %v1726, %v1554
  %v1731 = vsub.f32 %v1727, %v1555
  %v1732 = vsub.f32 %v1728, %v1556
  %1737 = vrot.lane.b32.xlu0 %v1594, 32
  %v1738 = vpop.permute.xlu0 %1737
  %1739 = vrot.lane.b32.xlu0 %v1597, 32
  %v1740 = vpop.permute.xlu0 %1739
  %1741 = vrot.lane.b32.xlu0 %v1635, 32
  %v1742 = vpop.permute.xlu0 %1741
  %1743 = vrot.lane.b32.xlu0 %v1638, 32
  %v1744 = vpop.permute.xlu0 %1743
  %1753 = vrot.lane.b32.xlu0 %v1729, 64
  %v1754 = vpop.permute.xlu0 %1753
  %1755 = vrot.lane.b32.xlu0 %v1730, 64
  %v1756 = vpop.permute.xlu0 %1755
  %1757 = vrot.lane.b32.xlu0 %v1731, 64
  %v1758 = vpop.permute.xlu0 %1757
  %1759 = vrot.lane.b32.xlu0 %v1732, 64
  %v1760 = vpop.permute.xlu0 %1759
  %v1765 = vsel %vm342, %v1553, %v1738
  %v1766 = vsel %vm342, %v1554, %v1740
  %v1767 = vsel %vm342, %v1555, %v1742
  %v1768 = vsel %vm342, %v1556, %v1744
  %v1769 = vsel %vm347, %v1765, %v1754
  %v1770 = vsel %vm347, %v1766, %v1756
  %v1771 = vsel %vm347, %v1767, %v1758
  %v1772 = vsel %vm347, %v1768, %v1760
  %v1773 = vpack.c.bf16 %v1770, %v1769
  %v1774 = vpack.c.bf16 %v1772, %v1771
  %v1787 = vunpack.c.l.b16 %v85
  %v1788 = vunpack.c.l.b16 %v86
  %v1789 = vunpack.c.l.b16 %v87
  %v1790 = vunpack.c.l.b16 %v88
  %v1791 = vunpack.c.l.b16 %v89
  %v1792 = vunpack.c.l.b16 %v90
  %v1793 = vunpack.c.l.b16 %v91
  %v1794 = vunpack.c.l.b16 %v92
  %v1795 = vunpack.c.l.b16 %v93
  %v1796 = vunpack.c.l.b16 %v94
  %v1797 = vunpack.c.l.b16 %v95
  %v1798 = vunpack.c.l.b16 %v96
  %v1799 = vpack.c.b16 %v1788, %v1787
  %v1800 = vpack.c.b16 %v1790, %v1789
  %v1801 = vpack.c.b16 %v1792, %v1791
  %v1802 = vpack.c.b16 %v1794, %v1793
  %v1803 = vpack.c.b16 %v1796, %v1795
  %v1804 = vpack.c.b16 %v1798, %v1797
  %v1812 = vsel %vm390, %v1773, 0
  %v1815 = vsel %vm390, %v1774, 0
  %1817 = vmatprep.subr.bf16.mxu0 0
  %1818 = vmatpush1.bf16.msra.mxu0 %v1799
  %1819 = vmatprep.subr.bf16.mxu0 0
  %1820 = vmatpush1.bf16.msra.mxu0 %v1800
  %1821 = vmatprep.subr.bf16.mxu0 0
  %1822 = vmatpush1.bf16.msra.mxu0 %v1801
  %1823 = vmatprep.subr.bf16.mxu0 0
  %1824 = vmatpush1.bf16.msra.mxu0 %v1802
  %1825 = vmatprep.subr.bf16.mxu0 0
  %1826 = vmatpush1.bf16.msra.mxu0 %v1803
  %1827 = vmatprep.subr.bf16.mxu0 0
  %1828 = vmatpush1.bf16.msra.mxu0 %v1804
  %1829 = vmatprep.subr.bf16.mxu0 0
  %1830 = vmatpush1.bf16.msra.mxu0 0
  %1831 = vmatprep.subr.bf16.mxu0 0
  %1832 = vmatpush1.bf16.msra.mxu0 0
  %1833 = vmatprep.subr.bf16.mxu0 0
  %1834 = vmatpush1.bf16.msra.mxu0 0
  %1835 = vmatprep.subr.bf16.mxu0 0
  %1836 = vmatpush1.bf16.msra.mxu0 0
  %1837 = vmatprep.subr.bf16.mxu0 0
  %1838 = vmatpush1.bf16.msra.mxu0 0
  %1839 = vmatprep.subr.bf16.mxu0 0
  %1840 = vmatpush1.bf16.msra.mxu0 0
  %1841 = vmatprep.subr.bf16.mxu0 0
  %1842 = vmatpush1.bf16.msra.mxu0 0
  %1843 = vmatprep.subr.bf16.mxu0 0
  %1844 = vmatpush1.bf16.msra.mxu0 0
  %1845 = vmatprep.subr.bf16.mxu0 0
  %1846 = vmatpush1.bf16.msra.mxu0 0
  %1847 = vmatprep.subr.bf16.mxu0 0
  %1848 = vmatpush1.bf16.msra.mxu0 0
  %1849 = vmatprep.mubr.bf16.mxu0 0
  %1850 = vmatmul.mubr.bf16.gmra.mrb[0].mxu0 %v1812
  %v1851 = vpop.f32.mrb[0].mxu0
  %v1852 = vadd.f32 0.0, %v1851
  %v1853 = vpop.f32.mrb[0].mxu0
  %v1854 = vpop.f32.mrb[0].mxu0
  %v1855 = vadd.f32 0.0, %v1854
  %v1856 = vpop.f32.mrb[0].mxu0
  %1857 = vmatprep.mubr.bf16.mxu0 0
  %1858 = vmatmul.mubr.bf16.gmra.mrb[0].mxu0 %v1815
  %v1859 = vpop.f32.mrb[0].mxu0
  %v1860 = vadd.f32 0.0, %v1859
  %v1861 = vpop.f32.mrb[0].mxu0
  %v1862 = vpop.f32.mrb[0].mxu0
  %v1863 = vadd.f32 0.0, %v1862
  %v1864 = vpop.f32.mrb[0].mxu0
  %1865 = vdwg.mxu0
  %1870 = vrot.lane.b32.xlu0 %v1852, 64
  %v1871 = vpop.permute.xlu0 %1870
  %1872 = vrot.lane.b32.xlu0 %v1855, 64
  %v1873 = vpop.permute.xlu0 %1872
  %1874 = vrot.lane.b32.xlu0 %v1860, 64
  %v1875 = vpop.permute.xlu0 %1874
  %1876 = vrot.lane.b32.xlu0 %v1863, 64
  %v1877 = vpop.permute.xlu0 %1876
  %v1882 = vadd.f32 %v1192, %v1871
  %v1883 = vadd.f32 %v1195, %v1873
  %v1884 = vadd.f32 %v1200, %v1875
  %v1885 = vadd.f32 %v1203, %v1877
  %v1886 = vadd.f32 %v1882, %v1523
  %v1887 = vadd.f32 %v1883, %v1523
  %v1888 = vadd.f32 %v1884, %v1523
  %v1889 = vadd.f32 %v1885, %v1523
  %v1890 = vtanh.pop %v1886
  %v1891 = vtanh.pop %v1887
  %v1892 = vtanh.pop %v1888
  %v1893 = vtanh.pop %v1889
  %1898 = vrot.lane.b32.xlu0 %v105, 32
  %v1899 = vpop.permute.xlu0 %1898
  %1900 = vrot.lane.b32.xlu0 %v106, 32
  %v1901 = vpop.permute.xlu0 %1900
  %1902 = vrot.lane.b32.xlu0 %v107, 32
  %v1903 = vpop.permute.xlu0 %1902
  %1904 = vrot.lane.b32.xlu0 %v108, 32
  %v1905 = vpop.permute.xlu0 %1904
  %v1910 = vmul.f32 %v1546, %v1899
  %v1911 = vmul.f32 %v1548, %v1901
  %v1912 = vmul.f32 %v1550, %v1903
  %v1913 = vmul.f32 %v1552, %v1905
  %v1914 = vsub.f32 1.0, %v1546
  %v1915 = vsub.f32 1.0, %v1548
  %v1916 = vsub.f32 1.0, %v1550
  %v1917 = vsub.f32 1.0, %v1552
  %1922 = vrot.lane.b32.xlu0 %v1890, 96
  %v1923 = vpop.permute.xlu0 %1922
  %1924 = vrot.lane.b32.xlu0 %v1891, 96
  %v1925 = vpop.permute.xlu0 %1924
  %1926 = vrot.lane.b32.xlu0 %v1892, 96
  %v1927 = vpop.permute.xlu0 %1926
  %1928 = vrot.lane.b32.xlu0 %v1893, 96
  %v1929 = vpop.permute.xlu0 %1928
  %v1934 = vmul.f32 %v1914, %v1923
  %v1935 = vmul.f32 %v1915, %v1925
  %v1936 = vmul.f32 %v1916, %v1927
  %v1937 = vmul.f32 %v1917, %v1929
  %v1938 = vadd.f32 %v1910, %v1934
  %v1939 = vadd.f32 %v1911, %v1935
  %v1940 = vadd.f32 %v1912, %v1936
  %v1941 = vadd.f32 %v1913, %v1937
  %1946 = vrot.lane.b32.xlu0 %v1938, 96
  %v1947 = vpop.permute.xlu0 %1946
  %1948 = vrot.lane.b32.xlu0 %v1939, 96
  %v1949 = vpop.permute.xlu0 %1948
  %1950 = vrot.lane.b32.xlu0 %v1940, 96
  %v1951 = vpop.permute.xlu0 %1950
  %1952 = vrot.lane.b32.xlu0 %v1941, 96
  %v1953 = vpop.permute.xlu0 %1952
  %1958 = vst.msk [vmem:[%s9] sm:$0xff] %vm342, %v1947
  %1959 = vst.msk [vmem:[%s9 + $0x8] sm:$0xff] %vm342, %v1949
  %1960 = vst.msk [vmem:[%s9 + $0x10] sm:$0xff] %vm342, %v1951
  %1961 = vst.msk [vmem:[%s9 + $0x18] sm:$0xff] %vm342, %v1953
  %s1962 = scalar_lea.vmem %s0, 16
  %v1963 = vld [vmem:[%s1962] sm:$0xf]
  %v1964 = vld [vmem:[%s1962 + $0x4] sm:$0xf]
  %v1965 = vld [vmem:[%s1962 + $0x8] sm:$0xf]
  %v1966 = vld [vmem:[%s1962 + $0xc] sm:$0xf]
  %v1967 = vunpack.c.l.bf16 %v1963
  %v1968 = vunpack.c.l.bf16 %v1964
  %v1969 = vunpack.c.l.bf16 %v1965
  %v1970 = vunpack.c.l.bf16 %v1966
  %1971 = vmatprep.subr.bf16.mxu0 0
  %1972 = vmatpush1.bf16.msra.mxu0 %v378
  %1973 = vmatprep.subr.bf16.mxu0 0
  %1974 = vmatpush1.bf16.msra.mxu0 %v379
  %1975 = vmatprep.subr.bf16.mxu0 0
  %1976 = vmatpush1.bf16.msra.mxu0 %v380
  %1977 = vmatprep.subr.bf16.mxu0 0
  %1978 = vmatpush1.bf16.msra.mxu0 %v381
  %1979 = vmatprep.subr.bf16.mxu0 0
  %1980 = vmatpush1.bf16.msra.mxu0 %v382
  %1981 = vmatprep.subr.bf16.mxu0 0
  %1982 = vmatpush1.bf16.msra.mxu0 %v383
  %1983 = vmatprep.subr.bf16.mxu0 0
  %1984 = vmatpush1.bf16.msra.mxu0 0
  %1985 = vmatprep.subr.bf16.mxu0 0
  %1986 = vmatpush1.bf16.msra.mxu0 0
  %1987 = vmatprep.subr.bf16.mxu0 0
  %1988 = vmatpush1.bf16.msra.mxu0 0
  %1989 = vmatprep.subr.bf16.mxu0 0
  %1990 = vmatpush1.bf16.msra.mxu0 0
  %1991 = vmatprep.subr.bf16.mxu0 0
  %1992 = vmatpush1.bf16.msra.mxu0 0
  %1993 = vmatprep.subr.bf16.mxu0 0
  %1994 = vmatpush1.bf16.msra.mxu0 0
  %1995 = vmatprep.subr.bf16.mxu0 0
  %1996 = vmatpush1.bf16.msra.mxu0 0
  %1997 = vmatprep.subr.bf16.mxu0 0
  %1998 = vmatpush1.bf16.msra.mxu0 0
  %1999 = vmatprep.subr.bf16.mxu0 0
  %2000 = vmatpush1.bf16.msra.mxu0 0
  %2001 = vmatprep.subr.bf16.mxu0 0
  %2002 = vmatpush1.bf16.msra.mxu0 0
  %2003 = vmatprep.mubr.bf16.mxu0 0
  %2004 = vmatmul.mubr.bf16.gmra.mrb[0].mxu0 %v1152
  %v2005 = vpop.f32.mrb[0].mxu0
  %v2006 = vadd.f32 0.0, %v2005
  %v2007 = vpop.f32.mrb[0].mxu0
  %v2008 = vpop.f32.mrb[0].mxu0
  %v2009 = vadd.f32 0.0, %v2008
  %v2010 = vpop.f32.mrb[0].mxu0
  %2011 = vmatprep.mubr.bf16.mxu0 0
  %2012 = vmatmul.mubr.bf16.gmra.mrb[0].mxu0 %v1155
  %v2013 = vpop.f32.mrb[0].mxu0
  %v2014 = vadd.f32 0.0, %v2013
  %v2015 = vpop.f32.mrb[0].mxu0
  %v2016 = vpop.f32.mrb[0].mxu0
  %v2017 = vadd.f32 0.0, %v2016
  %v2018 = vpop.f32.mrb[0].mxu0
  %2019 = vdwg.mxu0
  %v2020 = vadd.f32 %v1967, %v2006
  %v2021 = vadd.f32 %v1968, %v2009
  %v2022 = vadd.f32 %v1969, %v2014
  %v2023 = vadd.f32 %v1970, %v2017
  %v2024 = vadd.f32 %v2020, %v454
  %v2025 = vadd.f32 %v2021, %v454
  %v2026 = vadd.f32 %v2022, %v454
  %v2027 = vadd.f32 %v2023, %v454
  %v2028 = vxor.u32 %v2024, 2147483648
  %v2029 = vxor.u32 %v2025, 2147483648
  %v2030 = vxor.u32 %v2026, 2147483648
  %v2031 = vxor.u32 %v2027, 2147483648
  %v2032 = vmul.f32 %v2028, 1.442695
  %v2033 = vpow.pop %v2032
  %v2034 = vmul.f32 %v2029, 1.442695
  %v2035 = vpow.pop %v2034
  %v2036 = vmul.f32 %v2030, 1.442695
  %v2037 = vpow.pop %v2036
  %v2038 = vmul.f32 %v2031, 1.442695
  %v2039 = vpow.pop %v2038
  %v2040 = vadd.f32 %v2033, 1.0
  %v2041 = vadd.f32 %v2035, 1.0
  %v2042 = vadd.f32 %v2037, 1.0
  %v2043 = vadd.f32 %v2039, 1.0
  %v2044 = vrcp.pop %v2040
  %v2045 = vmul.f32 1.0, %v2044
  %v2046 = vrcp.pop %v2041
  %v2047 = vmul.f32 1.0, %v2046
  %v2048 = vrcp.pop %v2042
  %v2049 = vmul.f32 1.0, %v2048
  %v2050 = vrcp.pop %v2043
  %v2051 = vmul.f32 1.0, %v2050
  %v2052 = vmul.f32 %v2045, %v1058
  %v2053 = vmul.f32 %v2047, %v1060
  %v2054 = vmul.f32 %v2049, %v1062
  %v2055 = vmul.f32 %v2051, %v1064
  %v2056 = vpack.c.bf16 %v2053, %v2052
  %v2057 = vpack.c.bf16 %v2055, %v2054
  %2058 = vmatprep.subr.bf16.mxu0 0
  %2059 = vmatpush1.bf16.msra.mxu0 %v2056
  %2060 = vmatprep.subr.bf16.mxu0 0
  %2061 = vmatpush1.bf16.msra.mxu0 0
  %2062 = vmatprep.subr.bf16.mxu0 0
  %2063 = vmatpush1.bf16.msra.mxu0 0
  %2064 = vmatprep.subr.bf16.mxu0 0
  %2065 = vmatpush1.bf16.msra.mxu0 0
  %2066 = vmatprep.subr.bf16.mxu0 0
  %2067 = vmatpush1.bf16.msra.mxu0 0
  %2068 = vmatprep.subr.bf16.mxu0 0
  %2069 = vmatpush1.bf16.msra.mxu0 0
  %2070 = vmatprep.subr.bf16.mxu0 0
  %2071 = vmatpush1.bf16.msra.mxu0 0
  %2072 = vmatprep.subr.bf16.mxu0 0
  %2073 = vmatpush1.bf16.msra.mxu0 0
  %2074 = vmatprep.subr.bf16.mxu0 0
  %2075 = vmatpush1.bf16.msra.mxu0 0
  %2076 = vmatprep.subr.bf16.mxu0 0
  %2077 = vmatpush1.bf16.msra.mxu0 0
  %2078 = vmatprep.subr.bf16.mxu0 0
  %2079 = vmatpush1.bf16.msra.mxu0 0
  %2080 = vmatprep.subr.bf16.mxu0 0
  %2081 = vmatpush1.bf16.msra.mxu0 0
  %2082 = vmatprep.subr.bf16.mxu0 0
  %2083 = vmatpush1.bf16.msra.mxu0 0
  %2084 = vmatprep.subr.bf16.mxu0 0
  %2085 = vmatpush1.bf16.msra.mxu0 0
  %2086 = vmatprep.subr.bf16.mxu0 0
  %2087 = vmatpush1.bf16.msra.mxu0 0
  %2088 = vmatprep.subr.bf16.mxu0 0
  %2089 = vmatpush1.bf16.msra.mxu0 0
  %2090 = vmatprep.mubr.bf16.mxu0 0
  %2091 = vmatmul.mubr.bf16.gmra.mrb[0].mxu0 %v126
  %v2092 = vpop.f32.mrb[0].mxu0
  %v2093 = vadd.f32 0.0, %v2092
  %v2094 = vpop.f32.mrb[0].mxu0
  %v2095 = vpop.f32.mrb[0].mxu0
  %v2096 = vadd.f32 0.0, %v2095
  %v2097 = vpop.f32.mrb[0].mxu0
  %2098 = vdwg.mxu0
  %2099 = vmatprep.subr.bf16.mxu0 0
  %2100 = vmatpush1.bf16.msra.mxu0 %v2057
  %2101 = vmatprep.subr.bf16.mxu0 0
  %2102 = vmatpush1.bf16.msra.mxu0 0
  %2103 = vmatprep.subr.bf16.mxu0 0
  %2104 = vmatpush1.bf16.msra.mxu0 0
  %2105 = vmatprep.subr.bf16.mxu0 0
  %2106 = vmatpush1.bf16.msra.mxu0 0
  %2107 = vmatprep.subr.bf16.mxu0 0
  %2108 = vmatpush1.bf16.msra.mxu0 0
  %2109 = vmatprep.subr.bf16.mxu0 0
  %2110 = vmatpush1.bf16.msra.mxu0 0
  %2111 = vmatprep.subr.bf16.mxu0 0
  %2112 = vmatpush1.bf16.msra.mxu0 0
  %2113 = vmatprep.subr.bf16.mxu0 0
  %2114 = vmatpush1.bf16.msra.mxu0 0
  %2115 = vmatprep.subr.bf16.mxu0 0
  %2116 = vmatpush1.bf16.msra.mxu0 0
  %2117 = vmatprep.subr.bf16.mxu0 0
  %2118 = vmatpush1.bf16.msra.mxu0 0
  %2119 = vmatprep.subr.bf16.mxu0 0
  %2120 = vmatpush1.bf16.msra.mxu0 0
  %2121 = vmatprep.subr.bf16.mxu0 0
  %2122 = vmatpush1.bf16.msra.mxu0 0
  %2123 = vmatprep.subr.bf16.mxu0 0
  %2124 = vmatpush1.bf16.msra.mxu0 0
  %2125 = vmatprep.subr.bf16.mxu0 0
  %2126 = vmatpush1.bf16.msra.mxu0 0
  %2127 = vmatprep.subr.bf16.mxu0 0
  %2128 = vmatpush1.bf16.msra.mxu0 0
  %2129 = vmatprep.subr.bf16.mxu0 0
  %2130 = vmatpush1.bf16.msra.mxu0 0
  %2131 = vmatprep.mubr.bf16.mxu0 0
  %2132 = vmatmul.mubr.bf16.gmra.mrb[0].mxu0 %v175
  %v2133 = vpop.f32.mrb[0].mxu0
  %v2134 = vadd.f32 0.0, %v2133
  %v2135 = vpop.f32.mrb[0].mxu0
  %v2136 = vpop.f32.mrb[0].mxu0
  %v2137 = vadd.f32 0.0, %v2136
  %v2138 = vpop.f32.mrb[0].mxu0
  %2139 = vdwg.mxu0
  %v2140 = vpack.c.bf16 %v2096, %v2093
  %v2141 = vpack.c.bf16 %v2137, %v2134
  %2142 = vmatprep.subr.bf16.mxu0 0
  %2143 = vmatpush1.bf16.msra.mxu0 %v2140
  %2144 = vmatprep.subr.bf16.mxu0 0
  %2145 = vmatpush1.bf16.msra.mxu0 0
  %2146 = vmatprep.subr.bf16.mxu0 0
  %2147 = vmatpush1.bf16.msra.mxu0 0
  %2148 = vmatprep.subr.bf16.mxu0 0
  %2149 = vmatpush1.bf16.msra.mxu0 0
  %2150 = vmatprep.subr.bf16.mxu0 0
  %2151 = vmatpush1.bf16.msra.mxu0 0
  %2152 = vmatprep.subr.bf16.mxu0 0
  %2153 = vmatpush1.bf16.msra.mxu0 0
  %2154 = vmatprep.subr.bf16.mxu0 0
  %2155 = vmatpush1.bf16.msra.mxu0 0
  %2156 = vmatprep.subr.bf16.mxu0 0
  %2157 = vmatpush1.bf16.msra.mxu0 0
  %2158 = vmatprep.subr.bf16.mxu0 0
  %2159 = vmatpush1.bf16.msra.mxu0 0
  %2160 = vmatprep.subr.bf16.mxu0 0
  %2161 = vmatpush1.bf16.msra.mxu0 0
  %2162 = vmatprep.subr.bf16.mxu0 0
  %2163 = vmatpush1.bf16.msra.mxu0 0
  %2164 = vmatprep.subr.bf16.mxu0 0
  %2165 = vmatpush1.bf16.msra.mxu0 0
  %2166 = vmatprep.subr.bf16.mxu0 0
  %2167 = vmatpush1.bf16.msra.mxu0 0
  %2168 = vmatprep.subr.bf16.mxu0 0
  %2169 = vmatpush1.bf16.msra.mxu0 0
  %2170 = vmatprep.subr.bf16.mxu0 0
  %2171 = vmatpush1.bf16.msra.mxu0 0
  %2172 = vmatprep.subr.bf16.mxu0 0
  %2173 = vmatpush1.bf16.msra.mxu0 0
  %2174 = vmatprep.mubr.bf16.mxu0 0
  %2175 = vmatmul.mubr.bf16.gmra.mrb[0].mxu0 %v126
  %v2176 = vpop.f32.mrb[0].mxu0
  %v2177 = vadd.f32 0.0, %v2176
  %v2178 = vpop.f32.mrb[0].mxu0
  %v2179 = vpop.f32.mrb[0].mxu0
  %v2180 = vadd.f32 0.0, %v2179
  %v2181 = vpop.f32.mrb[0].mxu0
  %2182 = vdwg.mxu0
  %2183 = vmatprep.subr.bf16.mxu0 0
  %2184 = vmatpush1.bf16.msra.mxu0 %v2141
  %2185 = vmatprep.subr.bf16.mxu0 0
  %2186 = vmatpush1.bf16.msra.mxu0 0
  %2187 = vmatprep.subr.bf16.mxu0 0
  %2188 = vmatpush1.bf16.msra.mxu0 0
  %2189 = vmatprep.subr.bf16.mxu0 0
  %2190 = vmatpush1.bf16.msra.mxu0 0
  %2191 = vmatprep.subr.bf16.mxu0 0
  %2192 = vmatpush1.bf16.msra.mxu0 0
  %2193 = vmatprep.subr.bf16.mxu0 0
  %2194 = vmatpush1.bf16.msra.mxu0 0
  %2195 = vmatprep.subr.bf16.mxu0 0
  %2196 = vmatpush1.bf16.msra.mxu0 0
  %2197 = vmatprep.subr.bf16.mxu0 0
  %2198 = vmatpush1.bf16.msra.mxu0 0
  %2199 = vmatprep.subr.bf16.mxu0 0
  %2200 = vmatpush1.bf16.msra.mxu0 0
  %2201 = vmatprep.subr.bf16.mxu0 0
  %2202 = vmatpush1.bf16.msra.mxu0 0
  %2203 = vmatprep.subr.bf16.mxu0 0
  %2204 = vmatpush1.bf16.msra.mxu0 0
  %2205 = vmatprep.subr.bf16.mxu0 0
  %2206 = vmatpush1.bf16.msra.mxu0 0
  %2207 = vmatprep.subr.bf16.mxu0 0
  %2208 = vmatpush1.bf16.msra.mxu0 0
  %2209 = vmatprep.subr.bf16.mxu0 0
  %2210 = vmatpush1.bf16.msra.mxu0 0
  %2211 = vmatprep.subr.bf16.mxu0 0
  %2212 = vmatpush1.bf16.msra.mxu0 0
  %2213 = vmatprep.subr.bf16.mxu0 0
  %2214 = vmatpush1.bf16.msra.mxu0 0
  %2215 = vmatprep.mubr.bf16.mxu0 0
  %2216 = vmatmul.mubr.bf16.gmra.mrb[0].mxu0 %v175
  %v2217 = vpop.f32.mrb[0].mxu0
  %v2218 = vadd.f32 0.0, %v2217
  %v2219 = vpop.f32.mrb[0].mxu0
  %v2220 = vpop.f32.mrb[0].mxu0
  %v2221 = vadd.f32 0.0, %v2220
  %v2222 = vpop.f32.mrb[0].mxu0
  %2223 = vdwg.mxu0
  %v2224 = vmul.f32 %v2177, 2.0
  %v2225 = vmul.f32 %v2180, 2.0
  %v2226 = vmul.f32 %v2218, 2.0
  %v2227 = vmul.f32 %v2221, 2.0
  %v2228 = vsub.f32 %v2224, %v2052
  %v2229 = vsub.f32 %v2225, %v2053
  %v2230 = vsub.f32 %v2226, %v2054
  %v2231 = vsub.f32 %v2227, %v2055
  %2236 = vrot.lane.b32.xlu0 %v2093, 32
  %v2237 = vpop.permute.xlu0 %2236
  %2238 = vrot.lane.b32.xlu0 %v2096, 32
  %v2239 = vpop.permute.xlu0 %2238
  %2240 = vrot.lane.b32.xlu0 %v2134, 32
  %v2241 = vpop.permute.xlu0 %2240
  %2242 = vrot.lane.b32.xlu0 %v2137, 32
  %v2243 = vpop.permute.xlu0 %2242
  %2252 = vrot.lane.b32.xlu0 %v2228, 64
  %v2253 = vpop.permute.xlu0 %2252
  %2254 = vrot.lane.b32.xlu0 %v2229, 64
  %v2255 = vpop.permute.xlu0 %2254
  %2256 = vrot.lane.b32.xlu0 %v2230, 64
  %v2257 = vpop.permute.xlu0 %2256
  %2258 = vrot.lane.b32.xlu0 %v2231, 64
  %v2259 = vpop.permute.xlu0 %2258
  %v2264 = vsel %vm342, %v2052, %v2237
  %v2265 = vsel %vm342, %v2053, %v2239
  %v2266 = vsel %vm342, %v2054, %v2241
  %v2267 = vsel %vm342, %v2055, %v2243
  %v2268 = vsel %vm347, %v2264, %v2253
  %v2269 = vsel %vm347, %v2265, %v2255
  %v2270 = vsel %vm347, %v2266, %v2257
  %v2271 = vsel %vm347, %v2267, %v2259
  %v2272 = vpack.c.bf16 %v2269, %v2268
  %v2273 = vpack.c.bf16 %v2271, %v2270
  %v2275 = vsel %vm390, %v2272, 0
  %v2278 = vsel %vm390, %v2273, 0
  %2280 = vmatprep.subr.bf16.mxu0 0
  %2281 = vmatpush1.bf16.msra.mxu0 %v730
  %2282 = vmatprep.subr.bf16.mxu0 0
  %2283 = vmatpush1.bf16.msra.mxu0 %v731
  %2284 = vmatprep.subr.bf16.mxu0 0
  %2285 = vmatpush1.bf16.msra.mxu0 %v732
  %2286 = vmatprep.subr.bf16.mxu0 0
  %2287 = vmatpush1.bf16.msra.mxu0 %v733
  %2288 = vmatprep.subr.bf16.mxu0 0
  %2289 = vmatpush1.bf16.msra.mxu0 %v734
  %2290 = vmatprep.subr.bf16.mxu0 0
  %2291 = vmatpush1.bf16.msra.mxu0 %v735
  %2292 = vmatprep.subr.bf16.mxu0 0
  %2293 = vmatpush1.bf16.msra.mxu0 0
  %2294 = vmatprep.subr.bf16.mxu0 0
  %2295 = vmatpush1.bf16.msra.mxu0 0
  %2296 = vmatprep.subr.bf16.mxu0 0
  %2297 = vmatpush1.bf16.msra.mxu0 0
  %2298 = vmatprep.subr.bf16.mxu0 0
  %2299 = vmatpush1.bf16.msra.mxu0 0
  %2300 = vmatprep.subr.bf16.mxu0 0
  %2301 = vmatpush1.bf16.msra.mxu0 0
  %2302 = vmatprep.subr.bf16.mxu0 0
  %2303 = vmatpush1.bf16.msra.mxu0 0
  %2304 = vmatprep.subr.bf16.mxu0 0
  %2305 = vmatpush1.bf16.msra.mxu0 0
  %2306 = vmatprep.subr.bf16.mxu0 0
  %2307 = vmatpush1.bf16.msra.mxu0 0
  %2308 = vmatprep.subr.bf16.mxu0 0
  %2309 = vmatpush1.bf16.msra.mxu0 0
  %2310 = vmatprep.subr.bf16.mxu0 0
  %2311 = vmatpush1.bf16.msra.mxu0 0
  %2312 = vmatprep.mubr.bf16.mxu0 0
  %2313 = vmatmul.mubr.bf16.gmra.mrb[0].mxu0 %v2275
  %v2314 = vpop.f32.mrb[0].mxu0
  %v2315 = vadd.f32 0.0, %v2314
  %v2316 = vpop.f32.mrb[0].mxu0
  %v2317 = vpop.f32.mrb[0].mxu0
  %v2318 = vadd.f32 0.0, %v2317
  %v2319 = vpop.f32.mrb[0].mxu0
  %2320 = vmatprep.mubr.bf16.mxu0 0
  %2321 = vmatmul.mubr.bf16.gmra.mrb[0].mxu0 %v2278
  %v2322 = vpop.f32.mrb[0].mxu0
  %v2323 = vadd.f32 0.0, %v2322
  %v2324 = vpop.f32.mrb[0].mxu0
  %v2325 = vpop.f32.mrb[0].mxu0
  %v2326 = vadd.f32 0.0, %v2325
  %v2327 = vpop.f32.mrb[0].mxu0
  %2328 = vdwg.mxu0
  %2333 = vrot.lane.b32.xlu0 %v2315, 64
  %v2334 = vpop.permute.xlu0 %2333
  %2335 = vrot.lane.b32.xlu0 %v2318, 64
  %v2336 = vpop.permute.xlu0 %2335
  %2337 = vrot.lane.b32.xlu0 %v2323, 64
  %v2338 = vpop.permute.xlu0 %2337
  %2339 = vrot.lane.b32.xlu0 %v2326, 64
  %v2340 = vpop.permute.xlu0 %2339
  %v2345 = vadd.f32 %v1967, %v2334
  %v2346 = vadd.f32 %v1968, %v2336
  %v2347 = vadd.f32 %v1969, %v2338
  %v2348 = vadd.f32 %v1970, %v2340
  %v2349 = vadd.f32 %v2345, %v454
  %v2350 = vadd.f32 %v2346, %v454
  %v2351 = vadd.f32 %v2347, %v454
  %v2352 = vadd.f32 %v2348, %v454
  %v2353 = vtanh.pop %v2349
  %v2354 = vtanh.pop %v2350
  %v2355 = vtanh.pop %v2351
  %v2356 = vtanh.pop %v2352
  %v2357 = vmul.f32 %v2045, %v869
  %v2358 = vmul.f32 %v2047, %v870
  %v2359 = vmul.f32 %v2049, %v871
  %v2360 = vmul.f32 %v2051, %v872
  %v2361 = vsub.f32 1.0, %v2045
  %v2362 = vsub.f32 1.0, %v2047
  %v2363 = vsub.f32 1.0, %v2049
  %v2364 = vsub.f32 1.0, %v2051
  %2369 = vrot.lane.b32.xlu0 %v2353, 96
  %v2370 = vpop.permute.xlu0 %2369
  %2371 = vrot.lane.b32.xlu0 %v2354, 96
  %v2372 = vpop.permute.xlu0 %2371
  %2373 = vrot.lane.b32.xlu0 %v2355, 96
  %v2374 = vpop.permute.xlu0 %2373
  %2375 = vrot.lane.b32.xlu0 %v2356, 96
  %v2376 = vpop.permute.xlu0 %2375
  %v2381 = vmul.f32 %v2361, %v2370
  %v2382 = vmul.f32 %v2362, %v2372
  %v2383 = vmul.f32 %v2363, %v2374
  %v2384 = vmul.f32 %v2364, %v2376
  %v2385 = vadd.f32 %v2357, %v2381
  %v2386 = vadd.f32 %v2358, %v2382
  %v2387 = vadd.f32 %v2359, %v2383
  %v2388 = vadd.f32 %v2360, %v2384
  %v2389 = vpack.c.bf16 %v2386, %v2385
  %v2390 = vpack.c.bf16 %v2388, %v2387
  %2392 = vrot.lane.b32.xlu0 %v2389, 96
  %v2393 = vpop.permute.xlu0 %2392
  %2395 = vmatprep.subr.bf16.mxu0 0
  %2396 = vmatpush1.bf16.msra.mxu0 %v2393
  %2397 = vmatprep.subr.bf16.mxu0 0
  %2398 = vmatpush1.bf16.msra.mxu0 0
  %2399 = vmatprep.subr.bf16.mxu0 0
  %2400 = vmatpush1.bf16.msra.mxu0 0
  %2401 = vmatprep.subr.bf16.mxu0 0
  %2402 = vmatpush1.bf16.msra.mxu0 0
  %2403 = vmatprep.subr.bf16.mxu0 0
  %2404 = vmatpush1.bf16.msra.mxu0 0
  %2405 = vmatprep.subr.bf16.mxu0 0
  %2406 = vmatpush1.bf16.msra.mxu0 0
  %2407 = vmatprep.subr.bf16.mxu0 0
  %2408 = vmatpush1.bf16.msra.mxu0 0
  %2409 = vmatprep.subr.bf16.mxu0 0
  %2410 = vmatpush1.bf16.msra.mxu0 0
  %2411 = vmatprep.subr.bf16.mxu0 0
  %2412 = vmatpush1.bf16.msra.mxu0 0
  %2413 = vmatprep.subr.bf16.mxu0 0
  %2414 = vmatpush1.bf16.msra.mxu0 0
  %2415 = vmatprep.subr.bf16.mxu0 0
  %2416 = vmatpush1.bf16.msra.mxu0 0
  %2417 = vmatprep.subr.bf16.mxu0 0
  %2418 = vmatpush1.bf16.msra.mxu0 0
  %2419 = vmatprep.subr.bf16.mxu0 0
  %2420 = vmatpush1.bf16.msra.mxu0 0
  %2421 = vmatprep.subr.bf16.mxu0 0
  %2422 = vmatpush1.bf16.msra.mxu0 0
  %2423 = vmatprep.subr.bf16.mxu0 0
  %2424 = vmatpush1.bf16.msra.mxu0 0
  %2425 = vmatprep.subr.bf16.mxu0 0
  %2426 = vmatpush1.bf16.msra.mxu0 0
  %2427 = vmatprep.mubr.bf16.mxu0 0
  %2428 = vmatmul.mubr.bf16.gmra.mrb[0].mxu0 %v126
  %v2429 = vpop.f32.mrb[0].mxu0
  %v2430 = vadd.f32 0.0, %v2429
  %v2431 = vpop.f32.mrb[0].mxu0
  %v2432 = vpop.f32.mrb[0].mxu0
  %v2433 = vadd.f32 0.0, %v2432
  %v2434 = vpop.f32.mrb[0].mxu0
  %2435 = vdwg.mxu0
  %2437 = vrot.lane.b32.xlu0 %v2390, 96
  %v2438 = vpop.permute.xlu0 %2437
  %2440 = vmatprep.subr.bf16.mxu0 0
  %2441 = vmatpush1.bf16.msra.mxu0 %v2438
  %2442 = vmatprep.subr.bf16.mxu0 0
  %2443 = vmatpush1.bf16.msra.mxu0 0
  %2444 = vmatprep.subr.bf16.mxu0 0
  %2445 = vmatpush1.bf16.msra.mxu0 0
  %2446 = vmatprep.subr.bf16.mxu0 0
  %2447 = vmatpush1.bf16.msra.mxu0 0
  %2448 = vmatprep.subr.bf16.mxu0 0
  %2449 = vmatpush1.bf16.msra.mxu0 0
  %2450 = vmatprep.subr.bf16.mxu0 0
  %2451 = vmatpush1.bf16.msra.mxu0 0
  %2452 = vmatprep.subr.bf16.mxu0 0
  %2453 = vmatpush1.bf16.msra.mxu0 0
  %2454 = vmatprep.subr.bf16.mxu0 0
  %2455 = vmatpush1.bf16.msra.mxu0 0
  %2456 = vmatprep.subr.bf16.mxu0 0
  %2457 = vmatpush1.bf16.msra.mxu0 0
  %2458 = vmatprep.subr.bf16.mxu0 0
  %2459 = vmatpush1.bf16.msra.mxu0 0
  %2460 = vmatprep.subr.bf16.mxu0 0
  %2461 = vmatpush1.bf16.msra.mxu0 0
  %2462 = vmatprep.subr.bf16.mxu0 0
  %2463 = vmatpush1.bf16.msra.mxu0 0
  %2464 = vmatprep.subr.bf16.mxu0 0
  %2465 = vmatpush1.bf16.msra.mxu0 0
  %2466 = vmatprep.subr.bf16.mxu0 0
  %2467 = vmatpush1.bf16.msra.mxu0 0
  %2468 = vmatprep.subr.bf16.mxu0 0
  %2469 = vmatpush1.bf16.msra.mxu0 0
  %2470 = vmatprep.subr.bf16.mxu0 0
  %2471 = vmatpush1.bf16.msra.mxu0 0
  %2472 = vmatprep.mubr.bf16.mxu0 0
  %2473 = vmatmul.mubr.bf16.gmra.mrb[0].mxu0 %v175
  %v2474 = vpop.f32.mrb[0].mxu0
  %v2475 = vadd.f32 0.0, %v2474
  %v2476 = vpop.f32.mrb[0].mxu0
  %v2477 = vpop.f32.mrb[0].mxu0
  %v2478 = vadd.f32 0.0, %v2477
  %v2479 = vpop.f32.mrb[0].mxu0
  %2480 = vdwg.mxu0
  %v2481 = vpack.c.bf16 %v2433, %v2430
  %v2482 = vpack.c.bf16 %v2478, %v2475
  %2483 = vmatprep.subr.bf16.mxu0 0
  %2484 = vmatpush1.bf16.msra.mxu0 %v2481
  %2485 = vmatprep.subr.bf16.mxu0 0
  %2486 = vmatpush1.bf16.msra.mxu0 0
  %2487 = vmatprep.subr.bf16.mxu0 0
  %2488 = vmatpush1.bf16.msra.mxu0 0
  %2489 = vmatprep.subr.bf16.mxu0 0
  %2490 = vmatpush1.bf16.msra.mxu0 0
  %2491 = vmatprep.subr.bf16.mxu0 0
  %2492 = vmatpush1.bf16.msra.mxu0 0
  %2493 = vmatprep.subr.bf16.mxu0 0
  %2494 = vmatpush1.bf16.msra.mxu0 0
  %2495 = vmatprep.subr.bf16.mxu0 0
  %2496 = vmatpush1.bf16.msra.mxu0 0
  %2497 = vmatprep.subr.bf16.mxu0 0
  %2498 = vmatpush1.bf16.msra.mxu0 0
  %2499 = vmatprep.subr.bf16.mxu0 0
  %2500 = vmatpush1.bf16.msra.mxu0 0
  %2501 = vmatprep.subr.bf16.mxu0 0
  %2502 = vmatpush1.bf16.msra.mxu0 0
  %2503 = vmatprep.subr.bf16.mxu0 0
  %2504 = vmatpush1.bf16.msra.mxu0 0
  %2505 = vmatprep.subr.bf16.mxu0 0
  %2506 = vmatpush1.bf16.msra.mxu0 0
  %2507 = vmatprep.subr.bf16.mxu0 0
  %2508 = vmatpush1.bf16.msra.mxu0 0
  %2509 = vmatprep.subr.bf16.mxu0 0
  %2510 = vmatpush1.bf16.msra.mxu0 0
  %2511 = vmatprep.subr.bf16.mxu0 0
  %2512 = vmatpush1.bf16.msra.mxu0 0
  %2513 = vmatprep.subr.bf16.mxu0 0
  %2514 = vmatpush1.bf16.msra.mxu0 0
  %2515 = vmatprep.mubr.bf16.mxu0 0
  %2516 = vmatmul.mubr.bf16.gmra.mrb[0].mxu0 %v126
  %v2517 = vpop.f32.mrb[0].mxu0
  %v2518 = vadd.f32 0.0, %v2517
  %v2519 = vpop.f32.mrb[0].mxu0
  %v2520 = vpop.f32.mrb[0].mxu0
  %v2521 = vadd.f32 0.0, %v2520
  %v2522 = vpop.f32.mrb[0].mxu0
  %2523 = vdwg.mxu0
  %2524 = vmatprep.subr.bf16.mxu0 0
  %2525 = vmatpush1.bf16.msra.mxu0 %v2482
  %2526 = vmatprep.subr.bf16.mxu0 0
  %2527 = vmatpush1.bf16.msra.mxu0 0
  %2528 = vmatprep.subr.bf16.mxu0 0
  %2529 = vmatpush1.bf16.msra.mxu0 0
  %2530 = vmatprep.subr.bf16.mxu0 0
  %2531 = vmatpush1.bf16.msra.mxu0 0
  %2532 = vmatprep.subr.bf16.mxu0 0
  %2533 = vmatpush1.bf16.msra.mxu0 0
  %2534 = vmatprep.subr.bf16.mxu0 0
  %2535 = vmatpush1.bf16.msra.mxu0 0
  %2536 = vmatprep.subr.bf16.mxu0 0
  %2537 = vmatpush1.bf16.msra.mxu0 0
  %2538 = vmatprep.subr.bf16.mxu0 0
  %2539 = vmatpush1.bf16.msra.mxu0 0
  %2540 = vmatprep.subr.bf16.mxu0 0
  %2541 = vmatpush1.bf16.msra.mxu0 0
  %2542 = vmatprep.subr.bf16.mxu0 0
  %2543 = vmatpush1.bf16.msra.mxu0 0
  %2544 = vmatprep.subr.bf16.mxu0 0
  %2545 = vmatpush1.bf16.msra.mxu0 0
  %2546 = vmatprep.subr.bf16.mxu0 0
  %2547 = vmatpush1.bf16.msra.mxu0 0
  %2548 = vmatprep.subr.bf16.mxu0 0
  %2549 = vmatpush1.bf16.msra.mxu0 0
  %2550 = vmatprep.subr.bf16.mxu0 0
  %2551 = vmatpush1.bf16.msra.mxu0 0
  %2552 = vmatprep.subr.bf16.mxu0 0
  %2553 = vmatpush1.bf16.msra.mxu0 0
  %2554 = vmatprep.subr.bf16.mxu0 0
  %2555 = vmatpush1.bf16.msra.mxu0 0
  %2556 = vmatprep.mubr.bf16.mxu0 0
  %2557 = vmatmul.mubr.bf16.gmra.mrb[0].mxu0 %v175
  %v2558 = vpop.f32.mrb[0].mxu0
  %v2559 = vadd.f32 0.0, %v2558
  %v2560 = vpop.f32.mrb[0].mxu0
  %v2561 = vpop.f32.mrb[0].mxu0
  %v2562 = vadd.f32 0.0, %v2561
  %v2563 = vpop.f32.mrb[0].mxu0
  %2564 = vdwg.mxu0
  %v2565 = vmul.f32 %v2518, 2.0
  %v2566 = vmul.f32 %v2521, 2.0
  %v2567 = vmul.f32 %v2559, 2.0
  %v2568 = vmul.f32 %v2562, 2.0
  %2573 = vrot.lane.b32.xlu0 %v2385, 96
  %v2574 = vpop.permute.xlu0 %2573
  %2575 = vrot.lane.b32.xlu0 %v2386, 96
  %v2576 = vpop.permute.xlu0 %2575
  %2577 = vrot.lane.b32.xlu0 %v2387, 96
  %v2578 = vpop.permute.xlu0 %2577
  %2579 = vrot.lane.b32.xlu0 %v2388, 96
  %v2580 = vpop.permute.xlu0 %2579
  %v2585 = vsub.f32 %v2565, %v2574
  %v2586 = vsub.f32 %v2566, %v2576
  %v2587 = vsub.f32 %v2567, %v2578
  %v2588 = vsub.f32 %v2568, %v2580
  %2593 = vrot.lane.b32.xlu0 %v2430, 32
  %v2594 = vpop.permute.xlu0 %2593
  %2595 = vrot.lane.b32.xlu0 %v2433, 32
  %v2596 = vpop.permute.xlu0 %2595
  %2597 = vrot.lane.b32.xlu0 %v2475, 32
  %v2598 = vpop.permute.xlu0 %2597
  %2599 = vrot.lane.b32.xlu0 %v2478, 32
  %v2600 = vpop.permute.xlu0 %2599
  %2609 = vrot.lane.b32.xlu0 %v2585, 64
  %v2610 = vpop.permute.xlu0 %2609
  %2611 = vrot.lane.b32.xlu0 %v2586, 64
  %v2612 = vpop.permute.xlu0 %2611
  %2613 = vrot.lane.b32.xlu0 %v2587, 64
  %v2614 = vpop.permute.xlu0 %2613
  %2615 = vrot.lane.b32.xlu0 %v2588, 64
  %v2616 = vpop.permute.xlu0 %2615
  %v2621 = vsel %vm342, %v2574, %v2594
  %v2622 = vsel %vm342, %v2576, %v2596
  %v2623 = vsel %vm342, %v2578, %v2598
  %v2624 = vsel %vm342, %v2580, %v2600
  %v2625 = vsel %vm347, %v2621, %v2610
  %v2626 = vsel %vm347, %v2622, %v2612
  %v2627 = vsel %vm347, %v2623, %v2614
  %v2628 = vsel %vm347, %v2624, %v2616
  %v2629 = vpack.c.bf16 %v2626, %v2625
  %v2630 = vpack.c.bf16 %v2628, %v2627
  %v2632 = vsel %vm390, %v2629, 0
  %v2635 = vsel %vm390, %v2630, 0
  %2637 = vmatprep.subr.bf16.mxu0 0
  %2638 = vmatpush1.bf16.msra.mxu0 %v1139
  %2639 = vmatprep.subr.bf16.mxu0 0
  %2640 = vmatpush1.bf16.msra.mxu0 %v1140
  %2641 = vmatprep.subr.bf16.mxu0 0
  %2642 = vmatpush1.bf16.msra.mxu0 %v1141
  %2643 = vmatprep.subr.bf16.mxu0 0
  %2644 = vmatpush1.bf16.msra.mxu0 %v1142
  %2645 = vmatprep.subr.bf16.mxu0 0
  %2646 = vmatpush1.bf16.msra.mxu0 %v1143
  %2647 = vmatprep.subr.bf16.mxu0 0
  %2648 = vmatpush1.bf16.msra.mxu0 %v1144
  %2649 = vmatprep.subr.bf16.mxu0 0
  %2650 = vmatpush1.bf16.msra.mxu0 0
  %2651 = vmatprep.subr.bf16.mxu0 0
  %2652 = vmatpush1.bf16.msra.mxu0 0
  %2653 = vmatprep.subr.bf16.mxu0 0
  %2654 = vmatpush1.bf16.msra.mxu0 0
  %2655 = vmatprep.subr.bf16.mxu0 0
  %2656 = vmatpush1.bf16.msra.mxu0 0
  %2657 = vmatprep.subr.bf16.mxu0 0
  %2658 = vmatpush1.bf16.msra.mxu0 0
  %2659 = vmatprep.subr.bf16.mxu0 0
  %2660 = vmatpush1.bf16.msra.mxu0 0
  %2661 = vmatprep.subr.bf16.mxu0 0
  %2662 = vmatpush1.bf16.msra.mxu0 0
  %2663 = vmatprep.subr.bf16.mxu0 0
  %2664 = vmatpush1.bf16.msra.mxu0 0
  %2665 = vmatprep.subr.bf16.mxu0 0
  %2666 = vmatpush1.bf16.msra.mxu0 0
  %2667 = vmatprep.subr.bf16.mxu0 0
  %2668 = vmatpush1.bf16.msra.mxu0 0
  %2669 = vmatprep.mubr.bf16.mxu0 0
  %2670 = vmatmul.mubr.bf16.gmra.mrb[0].mxu0 %v2632
  %v2671 = vpop.f32.mrb[0].mxu0
  %v2672 = vadd.f32 0.0, %v2671
  %v2673 = vpop.f32.mrb[0].mxu0
  %v2674 = vpop.f32.mrb[0].mxu0
  %v2675 = vadd.f32 0.0, %v2674
  %v2676 = vpop.f32.mrb[0].mxu0
  %2677 = vmatprep.mubr.bf16.mxu0 0
  %2678 = vmatmul.mubr.bf16.gmra.mrb[0].mxu0 %v2635
  %v2679 = vpop.f32.mrb[0].mxu0
  %v2680 = vadd.f32 0.0, %v2679
  %v2681 = vpop.f32.mrb[0].mxu0
  %v2682 = vpop.f32.mrb[0].mxu0
  %v2683 = vadd.f32 0.0, %v2682
  %v2684 = vpop.f32.mrb[0].mxu0
  %2685 = vdwg.mxu0
  %v2686 = vpack.c.bf16 %v1939, %v1938
  %v2687 = vpack.c.bf16 %v1941, %v1940
  %2689 = vrot.lane.b32.xlu0 %v2686, 96
  %v2690 = vpop.permute.xlu0 %2689
  %2692 = vmatprep.subr.bf16.mxu0 0
  %2693 = vmatpush1.bf16.msra.mxu0 %v2690
  %2694 = vmatprep.subr.bf16.mxu0 0
  %2695 = vmatpush1.bf16.msra.mxu0 0
  %2696 = vmatprep.subr.bf16.mxu0 0
  %2697 = vmatpush1.bf16.msra.mxu0 0
  %2698 = vmatprep.subr.bf16.mxu0 0
  %2699 = vmatpush1.bf16.msra.mxu0 0
  %2700 = vmatprep.subr.bf16.mxu0 0
  %2701 = vmatpush1.bf16.msra.mxu0 0
  %2702 = vmatprep.subr.bf16.mxu0 0
  %2703 = vmatpush1.bf16.msra.mxu0 0
  %2704 = vmatprep.subr.bf16.mxu0 0
  %2705 = vmatpush1.bf16.msra.mxu0 0
  %2706 = vmatprep.subr.bf16.mxu0 0
  %2707 = vmatpush1.bf16.msra.mxu0 0
  %2708 = vmatprep.subr.bf16.mxu0 0
  %2709 = vmatpush1.bf16.msra.mxu0 0
  %2710 = vmatprep.subr.bf16.mxu0 0
  %2711 = vmatpush1.bf16.msra.mxu0 0
  %2712 = vmatprep.subr.bf16.mxu0 0
  %2713 = vmatpush1.bf16.msra.mxu0 0
  %2714 = vmatprep.subr.bf16.mxu0 0
  %2715 = vmatpush1.bf16.msra.mxu0 0
  %2716 = vmatprep.subr.bf16.mxu0 0
  %2717 = vmatpush1.bf16.msra.mxu0 0
  %2718 = vmatprep.subr.bf16.mxu0 0
  %2719 = vmatpush1.bf16.msra.mxu0 0
  %2720 = vmatprep.subr.bf16.mxu0 0
  %2721 = vmatpush1.bf16.msra.mxu0 0
  %2722 = vmatprep.subr.bf16.mxu0 0
  %2723 = vmatpush1.bf16.msra.mxu0 0
  %2724 = vmatprep.mubr.bf16.mxu0 0
  %2725 = vmatmul.mubr.bf16.gmra.mrb[0].mxu0 %v126
  %v2726 = vpop.f32.mrb[0].mxu0
  %v2727 = vadd.f32 0.0, %v2726
  %v2728 = vpop.f32.mrb[0].mxu0
  %v2729 = vpop.f32.mrb[0].mxu0
  %v2730 = vadd.f32 0.0, %v2729
  %v2731 = vpop.f32.mrb[0].mxu0
  %2732 = vdwg.mxu0
  %2734 = vrot.lane.b32.xlu0 %v2687, 96
  %v2735 = vpop.permute.xlu0 %2734
  %2737 = vmatprep.subr.bf16.mxu0 0
  %2738 = vmatpush1.bf16.msra.mxu0 %v2735
  %2739 = vmatprep.subr.bf16.mxu0 0
  %2740 = vmatpush1.bf16.msra.mxu0 0
  %2741 = vmatprep.subr.bf16.mxu0 0
  %2742 = vmatpush1.bf16.msra.mxu0 0
  %2743 = vmatprep.subr.bf16.mxu0 0
  %2744 = vmatpush1.bf16.msra.mxu0 0
  %2745 = vmatprep.subr.bf16.mxu0 0
  %2746 = vmatpush1.bf16.msra.mxu0 0
  %2747 = vmatprep.subr.bf16.mxu0 0
  %2748 = vmatpush1.bf16.msra.mxu0 0
  %2749 = vmatprep.subr.bf16.mxu0 0
  %2750 = vmatpush1.bf16.msra.mxu0 0
  %2751 = vmatprep.subr.bf16.mxu0 0
  %2752 = vmatpush1.bf16.msra.mxu0 0
  %2753 = vmatprep.subr.bf16.mxu0 0
  %2754 = vmatpush1.bf16.msra.mxu0 0
  %2755 = vmatprep.subr.bf16.mxu0 0
  %2756 = vmatpush1.bf16.msra.mxu0 0
  %2757 = vmatprep.subr.bf16.mxu0 0
  %2758 = vmatpush1.bf16.msra.mxu0 0
  %2759 = vmatprep.subr.bf16.mxu0 0
  %2760 = vmatpush1.bf16.msra.mxu0 0
  %2761 = vmatprep.subr.bf16.mxu0 0
  %2762 = vmatpush1.bf16.msra.mxu0 0
  %2763 = vmatprep.subr.bf16.mxu0 0
  %2764 = vmatpush1.bf16.msra.mxu0 0
  %2765 = vmatprep.subr.bf16.mxu0 0
  %2766 = vmatpush1.bf16.msra.mxu0 0
  %2767 = vmatprep.subr.bf16.mxu0 0
  %2768 = vmatpush1.bf16.msra.mxu0 0
  %2769 = vmatprep.mubr.bf16.mxu0 0
  %2770 = vmatmul.mubr.bf16.gmra.mrb[0].mxu0 %v175
  %v2771 = vpop.f32.mrb[0].mxu0
  %v2772 = vadd.f32 0.0, %v2771
  %v2773 = vpop.f32.mrb[0].mxu0
  %v2774 = vpop.f32.mrb[0].mxu0
  %v2775 = vadd.f32 0.0, %v2774
  %v2776 = vpop.f32.mrb[0].mxu0
  %2777 = vdwg.mxu0
  %v2778 = vpack.c.bf16 %v2730, %v2727
  %v2779 = vpack.c.bf16 %v2775, %v2772
  %2780 = vmatprep.subr.bf16.mxu0 0
  %2781 = vmatpush1.bf16.msra.mxu0 %v2778
  %2782 = vmatprep.subr.bf16.mxu0 0
  %2783 = vmatpush1.bf16.msra.mxu0 0
  %2784 = vmatprep.subr.bf16.mxu0 0
  %2785 = vmatpush1.bf16.msra.mxu0 0
  %2786 = vmatprep.subr.bf16.mxu0 0
  %2787 = vmatpush1.bf16.msra.mxu0 0
  %2788 = vmatprep.subr.bf16.mxu0 0
  %2789 = vmatpush1.bf16.msra.mxu0 0
  %2790 = vmatprep.subr.bf16.mxu0 0
  %2791 = vmatpush1.bf16.msra.mxu0 0
  %2792 = vmatprep.subr.bf16.mxu0 0
  %2793 = vmatpush1.bf16.msra.mxu0 0
  %2794 = vmatprep.subr.bf16.mxu0 0
  %2795 = vmatpush1.bf16.msra.mxu0 0
  %2796 = vmatprep.subr.bf16.mxu0 0
  %2797 = vmatpush1.bf16.msra.mxu0 0
  %2798 = vmatprep.subr.bf16.mxu0 0
  %2799 = vmatpush1.bf16.msra.mxu0 0
  %2800 = vmatprep.subr.bf16.mxu0 0
  %2801 = vmatpush1.bf16.msra.mxu0 0
  %2802 = vmatprep.subr.bf16.mxu0 0
  %2803 = vmatpush1.bf16.msra.mxu0 0
  %2804 = vmatprep.subr.bf16.mxu0 0
  %2805 = vmatpush1.bf16.msra.mxu0 0
  %2806 = vmatprep.subr.bf16.mxu0 0
  %2807 = vmatpush1.bf16.msra.mxu0 0
  %2808 = vmatprep.subr.bf16.mxu0 0
  %2809 = vmatpush1.bf16.msra.mxu0 0
  %2810 = vmatprep.subr.bf16.mxu0 0
  %2811 = vmatpush1.bf16.msra.mxu0 0
  %2812 = vmatprep.mubr.bf16.mxu0 0
  %2813 = vmatmul.mubr.bf16.gmra.mrb[0].mxu0 %v126
  %v2814 = vpop.f32.mrb[0].mxu0
  %v2815 = vadd.f32 0.0, %v2814
  %v2816 = vpop.f32.mrb[0].mxu0
  %v2817 = vpop.f32.mrb[0].mxu0
  %v2818 = vadd.f32 0.0, %v2817
  %v2819 = vpop.f32.mrb[0].mxu0
  %2820 = vdwg.mxu0
  %2821 = vmatprep.subr.bf16.mxu0 0
  %2822 = vmatpush1.bf16.msra.mxu0 %v2779
  %2823 = vmatprep.subr.bf16.mxu0 0
  %2824 = vmatpush1.bf16.msra.mxu0 0
  %2825 = vmatprep.subr.bf16.mxu0 0
  %2826 = vmatpush1.bf16.msra.mxu0 0
  %2827 = vmatprep.subr.bf16.mxu0 0
  %2828 = vmatpush1.bf16.msra.mxu0 0
  %2829 = vmatprep.subr.bf16.mxu0 0
  %2830 = vmatpush1.bf16.msra.mxu0 0
  %2831 = vmatprep.subr.bf16.mxu0 0
  %2832 = vmatpush1.bf16.msra.mxu0 0
  %2833 = vmatprep.subr.bf16.mxu0 0
  %2834 = vmatpush1.bf16.msra.mxu0 0
  %2835 = vmatprep.subr.bf16.mxu0 0
  %2836 = vmatpush1.bf16.msra.mxu0 0
  %2837 = vmatprep.subr.bf16.mxu0 0
  %2838 = vmatpush1.bf16.msra.mxu0 0
  %2839 = vmatprep.subr.bf16.mxu0 0
  %2840 = vmatpush1.bf16.msra.mxu0 0
  %2841 = vmatprep.subr.bf16.mxu0 0
  %2842 = vmatpush1.bf16.msra.mxu0 0
  %2843 = vmatprep.subr.bf16.mxu0 0
  %2844 = vmatpush1.bf16.msra.mxu0 0
  %2845 = vmatprep.subr.bf16.mxu0 0
  %2846 = vmatpush1.bf16.msra.mxu0 0
  %2847 = vmatprep.subr.bf16.mxu0 0
  %2848 = vmatpush1.bf16.msra.mxu0 0
  %2849 = vmatprep.subr.bf16.mxu0 0
  %2850 = vmatpush1.bf16.msra.mxu0 0
  %2851 = vmatprep.subr.bf16.mxu0 0
  %2852 = vmatpush1.bf16.msra.mxu0 0
  %2853 = vmatprep.mubr.bf16.mxu0 0
  %2854 = vmatmul.mubr.bf16.gmra.mrb[0].mxu0 %v175
  %v2855 = vpop.f32.mrb[0].mxu0
  %v2856 = vadd.f32 0.0, %v2855
  %v2857 = vpop.f32.mrb[0].mxu0
  %v2858 = vpop.f32.mrb[0].mxu0
  %v2859 = vadd.f32 0.0, %v2858
  %v2860 = vpop.f32.mrb[0].mxu0
  %2861 = vdwg.mxu0
  %v2862 = vmul.f32 %v2815, 2.0
  %v2863 = vmul.f32 %v2818, 2.0
  %v2864 = vmul.f32 %v2856, 2.0
  %v2865 = vmul.f32 %v2859, 2.0
  %v2866 = vsub.f32 %v2862, %v1947
  %v2867 = vsub.f32 %v2863, %v1949
  %v2868 = vsub.f32 %v2864, %v1951
  %v2869 = vsub.f32 %v2865, %v1953
  %2874 = vrot.lane.b32.xlu0 %v2727, 32
  %v2875 = vpop.permute.xlu0 %2874
  %2876 = vrot.lane.b32.xlu0 %v2730, 32
  %v2877 = vpop.permute.xlu0 %2876
  %2878 = vrot.lane.b32.xlu0 %v2772, 32
  %v2879 = vpop.permute.xlu0 %2878
  %2880 = vrot.lane.b32.xlu0 %v2775, 32
  %v2881 = vpop.permute.xlu0 %2880
  %2890 = vrot.lane.b32.xlu0 %v2866, 64
  %v2891 = vpop.permute.xlu0 %2890
  %2892 = vrot.lane.b32.xlu0 %v2867, 64
  %v2893 = vpop.permute.xlu0 %2892
  %2894 = vrot.lane.b32.xlu0 %v2868, 64
  %v2895 = vpop.permute.xlu0 %2894
  %2896 = vrot.lane.b32.xlu0 %v2869, 64
  %v2897 = vpop.permute.xlu0 %2896
  %v2902 = vsel %vm342, %v1947, %v2875
  %v2903 = vsel %vm342, %v1949, %v2877
  %v2904 = vsel %vm342, %v1951, %v2879
  %v2905 = vsel %vm342, %v1953, %v2881
  %v2906 = vsel %vm347, %v2902, %v2891
  %v2907 = vsel %vm347, %v2903, %v2893
  %v2908 = vsel %vm347, %v2904, %v2895
  %v2909 = vsel %vm347, %v2905, %v2897
  %v2910 = vpack.c.bf16 %v2907, %v2906
  %v2911 = vpack.c.bf16 %v2909, %v2908
  %v2913 = vsel %vm390, %v2910, 0
  %v2916 = vsel %vm390, %v2911, 0
  %2918 = vmatprep.subr.bf16.mxu0 0
  %2919 = vmatpush1.bf16.msra.mxu0 %v1448
  %2920 = vmatprep.subr.bf16.mxu0 0
  %2921 = vmatpush1.bf16.msra.mxu0 %v1449
  %2922 = vmatprep.subr.bf16.mxu0 0
  %2923 = vmatpush1.bf16.msra.mxu0 %v1450
  %2924 = vmatprep.subr.bf16.mxu0 0
  %2925 = vmatpush1.bf16.msra.mxu0 %v1451
  %2926 = vmatprep.subr.bf16.mxu0 0
  %2927 = vmatpush1.bf16.msra.mxu0 %v1452
  %2928 = vmatprep.subr.bf16.mxu0 0
  %2929 = vmatpush1.bf16.msra.mxu0 %v1453
  %2930 = vmatprep.subr.bf16.mxu0 0
  %2931 = vmatpush1.bf16.msra.mxu0 0
  %2932 = vmatprep.subr.bf16.mxu0 0
  %2933 = vmatpush1.bf16.msra.mxu0 0
  %2934 = vmatprep.subr.bf16.mxu0 0
  %2935 = vmatpush1.bf16.msra.mxu0 0
  %2936 = vmatprep.subr.bf16.mxu0 0
  %2937 = vmatpush1.bf16.msra.mxu0 0
  %2938 = vmatprep.subr.bf16.mxu0 0
  %2939 = vmatpush1.bf16.msra.mxu0 0
  %2940 = vmatprep.subr.bf16.mxu0 0
  %2941 = vmatpush1.bf16.msra.mxu0 0
  %2942 = vmatprep.subr.bf16.mxu0 0
  %2943 = vmatpush1.bf16.msra.mxu0 0
  %2944 = vmatprep.subr.bf16.mxu0 0
  %2945 = vmatpush1.bf16.msra.mxu0 0
  %2946 = vmatprep.subr.bf16.mxu0 0
  %2947 = vmatpush1.bf16.msra.mxu0 0
  %2948 = vmatprep.subr.bf16.mxu0 0
  %2949 = vmatpush1.bf16.msra.mxu0 0
  %2950 = vmatprep.mubr.bf16.mxu0 0
  %2951 = vmatmul.mubr.bf16.gmra.mrb[0].mxu0 %v2913
  %v2952 = vpop.f32.mrb[0].mxu0
  %v2953 = vadd.f32 0.0, %v2952
  %v2954 = vpop.f32.mrb[0].mxu0
  %v2955 = vpop.f32.mrb[0].mxu0
  %v2956 = vadd.f32 0.0, %v2955
  %v2957 = vpop.f32.mrb[0].mxu0
  %2958 = vmatprep.mubr.bf16.mxu0 0
  %2959 = vmatmul.mubr.bf16.gmra.mrb[0].mxu0 %v2916
  %v2960 = vpop.f32.mrb[0].mxu0
  %v2961 = vadd.f32 0.0, %v2960
  %v2962 = vpop.f32.mrb[0].mxu0
  %v2963 = vpop.f32.mrb[0].mxu0
  %v2964 = vadd.f32 0.0, %v2963
  %v2965 = vpop.f32.mrb[0].mxu0
  %2966 = vdwg.mxu0
  %v2967 = vadd.f32 %v2672, %v2953
  %v2968 = vadd.f32 %v2675, %v2956
  %v2969 = vadd.f32 %v2680, %v2961
  %v2970 = vadd.f32 %v2683, %v2964
  %v2971 = vadd.f32 %v2967, %v1523
  %v2972 = vadd.f32 %v2968, %v1523
  %v2973 = vadd.f32 %v2969, %v1523
  %v2974 = vadd.f32 %v2970, %v1523
  %v2975 = vxor.u32 %v2971, 2147483648
  %v2976 = vxor.u32 %v2972, 2147483648
  %v2977 = vxor.u32 %v2973, 2147483648
  %v2978 = vxor.u32 %v2974, 2147483648
  %v2979 = vmul.f32 %v2975, 1.442695
  %v2980 = vpow.pop %v2979
  %v2981 = vmul.f32 %v2976, 1.442695
  %v2982 = vpow.pop %v2981
  %v2983 = vmul.f32 %v2977, 1.442695
  %v2984 = vpow.pop %v2983
  %v2985 = vmul.f32 %v2978, 1.442695
  %v2986 = vpow.pop %v2985
  %v2987 = vadd.f32 %v2980, 1.0
  %v2988 = vadd.f32 %v2982, 1.0
  %v2989 = vadd.f32 %v2984, 1.0
  %v2990 = vadd.f32 %v2986, 1.0
  %v2991 = vrcp.pop %v2987
  %v2992 = vmul.f32 1.0, %v2991
  %v2993 = vrcp.pop %v2988
  %v2994 = vmul.f32 1.0, %v2993
  %v2995 = vrcp.pop %v2989
  %v2996 = vmul.f32 1.0, %v2995
  %v2997 = vrcp.pop %v2990
  %v2998 = vmul.f32 1.0, %v2997
  %v2999 = vmul.f32 %v2992, %v1947
  %v3000 = vmul.f32 %v2994, %v1949
  %v3001 = vmul.f32 %v2996, %v1951
  %v3002 = vmul.f32 %v2998, %v1953
  %v3003 = vpack.c.bf16 %v3000, %v2999
  %v3004 = vpack.c.bf16 %v3002, %v3001
  %3005 = vmatprep.subr.bf16.mxu0 0
  %3006 = vmatpush1.bf16.msra.mxu0 %v3003
  %3007 = vmatprep.subr.bf16.mxu0 0
  %3008 = vmatpush1.bf16.msra.mxu0 0
  %3009 = vmatprep.subr.bf16.mxu0 0
  %3010 = vmatpush1.bf16.msra.mxu0 0
  %3011 = vmatprep.subr.bf16.mxu0 0
  %3012 = vmatpush1.bf16.msra.mxu0 0
  %3013 = vmatprep.subr.bf16.mxu0 0
  %3014 = vmatpush1.bf16.msra.mxu0 0
  %3015 = vmatprep.subr.bf16.mxu0 0
  %3016 = vmatpush1.bf16.msra.mxu0 0
  %3017 = vmatprep.subr.bf16.mxu0 0
  %3018 = vmatpush1.bf16.msra.mxu0 0
  %3019 = vmatprep.subr.bf16.mxu0 0
  %3020 = vmatpush1.bf16.msra.mxu0 0
  %3021 = vmatprep.subr.bf16.mxu0 0
  %3022 = vmatpush1.bf16.msra.mxu0 0
  %3023 = vmatprep.subr.bf16.mxu0 0
  %3024 = vmatpush1.bf16.msra.mxu0 0
  %3025 = vmatprep.subr.bf16.mxu0 0
  %3026 = vmatpush1.bf16.msra.mxu0 0
  %3027 = vmatprep.subr.bf16.mxu0 0
  %3028 = vmatpush1.bf16.msra.mxu0 0
  %3029 = vmatprep.subr.bf16.mxu0 0
  %3030 = vmatpush1.bf16.msra.mxu0 0
  %3031 = vmatprep.subr.bf16.mxu0 0
  %3032 = vmatpush1.bf16.msra.mxu0 0
  %3033 = vmatprep.subr.bf16.mxu0 0
  %3034 = vmatpush1.bf16.msra.mxu0 0
  %3035 = vmatprep.subr.bf16.mxu0 0
  %3036 = vmatpush1.bf16.msra.mxu0 0
  %3037 = vmatprep.mubr.bf16.mxu0 0
  %3038 = vmatmul.mubr.bf16.gmra.mrb[0].mxu0 %v126
  %v3039 = vpop.f32.mrb[0].mxu0
  %v3040 = vadd.f32 0.0, %v3039
  %v3041 = vpop.f32.mrb[0].mxu0
  %v3042 = vpop.f32.mrb[0].mxu0
  %v3043 = vadd.f32 0.0, %v3042
  %v3044 = vpop.f32.mrb[0].mxu0
  %3045 = vdwg.mxu0
  %3046 = vmatprep.subr.bf16.mxu0 0
  %3047 = vmatpush1.bf16.msra.mxu0 %v3004
  %3048 = vmatprep.subr.bf16.mxu0 0
  %3049 = vmatpush1.bf16.msra.mxu0 0
  %3050 = vmatprep.subr.bf16.mxu0 0
  %3051 = vmatpush1.bf16.msra.mxu0 0
  %3052 = vmatprep.subr.bf16.mxu0 0
  %3053 = vmatpush1.bf16.msra.mxu0 0
  %3054 = vmatprep.subr.bf16.mxu0 0
  %3055 = vmatpush1.bf16.msra.mxu0 0
  %3056 = vmatprep.subr.bf16.mxu0 0
  %3057 = vmatpush1.bf16.msra.mxu0 0
  %3058 = vmatprep.subr.bf16.mxu0 0
  %3059 = vmatpush1.bf16.msra.mxu0 0
  %3060 = vmatprep.subr.bf16.mxu0 0
  %3061 = vmatpush1.bf16.msra.mxu0 0
  %3062 = vmatprep.subr.bf16.mxu0 0
  %3063 = vmatpush1.bf16.msra.mxu0 0
  %3064 = vmatprep.subr.bf16.mxu0 0
  %3065 = vmatpush1.bf16.msra.mxu0 0
  %3066 = vmatprep.subr.bf16.mxu0 0
  %3067 = vmatpush1.bf16.msra.mxu0 0
  %3068 = vmatprep.subr.bf16.mxu0 0
  %3069 = vmatpush1.bf16.msra.mxu0 0
  %3070 = vmatprep.subr.bf16.mxu0 0
  %3071 = vmatpush1.bf16.msra.mxu0 0
  %3072 = vmatprep.subr.bf16.mxu0 0
  %3073 = vmatpush1.bf16.msra.mxu0 0
  %3074 = vmatprep.subr.bf16.mxu0 0
  %3075 = vmatpush1.bf16.msra.mxu0 0
  %3076 = vmatprep.subr.bf16.mxu0 0
  %3077 = vmatpush1.bf16.msra.mxu0 0
  %3078 = vmatprep.mubr.bf16.mxu0 0
  %3079 = vmatmul.mubr.bf16.gmra.mrb[0].mxu0 %v175
  %v3080 = vpop.f32.mrb[0].mxu0
  %v3081 = vadd.f32 0.0, %v3080
  %v3082 = vpop.f32.mrb[0].mxu0
  %v3083 = vpop.f32.mrb[0].mxu0
  %v3084 = vadd.f32 0.0, %v3083
  %v3085 = vpop.f32.mrb[0].mxu0
  %3086 = vdwg.mxu0
  %v3087 = vpack.c.bf16 %v3043, %v3040
  %v3088 = vpack.c.bf16 %v3084, %v3081
  %3089 = vmatprep.subr.bf16.mxu0 0
  %3090 = vmatpush1.bf16.msra.mxu0 %v3087
  %3091 = vmatprep.subr.bf16.mxu0 0
  %3092 = vmatpush1.bf16.msra.mxu0 0
  %3093 = vmatprep.subr.bf16.mxu0 0
  %3094 = vmatpush1.bf16.msra.mxu0 0
  %3095 = vmatprep.subr.bf16.mxu0 0
  %3096 = vmatpush1.bf16.msra.mxu0 0
  %3097 = vmatprep.subr.bf16.mxu0 0
  %3098 = vmatpush1.bf16.msra.mxu0 0
  %3099 = vmatprep.subr.bf16.mxu0 0
  %3100 = vmatpush1.bf16.msra.mxu0 0
  %3101 = vmatprep.subr.bf16.mxu0 0
  %3102 = vmatpush1.bf16.msra.mxu0 0
  %3103 = vmatprep.subr.bf16.mxu0 0
  %3104 = vmatpush1.bf16.msra.mxu0 0
  %3105 = vmatprep.subr.bf16.mxu0 0
  %3106 = vmatpush1.bf16.msra.mxu0 0
  %3107 = vmatprep.subr.bf16.mxu0 0
  %3108 = vmatpush1.bf16.msra.mxu0 0
  %3109 = vmatprep.subr.bf16.mxu0 0
  %3110 = vmatpush1.bf16.msra.mxu0 0
  %3111 = vmatprep.subr.bf16.mxu0 0
  %3112 = vmatpush1.bf16.msra.mxu0 0
  %3113 = vmatprep.subr.bf16.mxu0 0
  %3114 = vmatpush1.bf16.msra.mxu0 0
  %3115 = vmatprep.subr.bf16.mxu0 0
  %3116 = vmatpush1.bf16.msra.mxu0 0
  %3117 = vmatprep.subr.bf16.mxu0 0
  %3118 = vmatpush1.bf16.msra.mxu0 0
  %3119 = vmatprep.subr.bf16.mxu0 0
  %3120 = vmatpush1.bf16.msra.mxu0 0
  %3121 = vmatprep.mubr.bf16.mxu0 0
  %3122 = vmatmul.mubr.bf16.gmra.mrb[0].mxu0 %v126
  %v3123 = vpop.f32.mrb[0].mxu0
  %v3124 = vadd.f32 0.0, %v3123
  %v3125 = vpop.f32.mrb[0].mxu0
  %v3126 = vpop.f32.mrb[0].mxu0
  %v3127 = vadd.f32 0.0, %v3126
  %v3128 = vpop.f32.mrb[0].mxu0
  %3129 = vdwg.mxu0
  %3130 = vmatprep.subr.bf16.mxu0 0
  %3131 = vmatpush1.bf16.msra.mxu0 %v3088
  %3132 = vmatprep.subr.bf16.mxu0 0
  %3133 = vmatpush1.bf16.msra.mxu0 0
  %3134 = vmatprep.subr.bf16.mxu0 0
  %3135 = vmatpush1.bf16.msra.mxu0 0
  %3136 = vmatprep.subr.bf16.mxu0 0
  %3137 = vmatpush1.bf16.msra.mxu0 0
  %3138 = vmatprep.subr.bf16.mxu0 0
  %3139 = vmatpush1.bf16.msra.mxu0 0
  %3140 = vmatprep.subr.bf16.mxu0 0
  %3141 = vmatpush1.bf16.msra.mxu0 0
  %3142 = vmatprep.subr.bf16.mxu0 0
  %3143 = vmatpush1.bf16.msra.mxu0 0
  %3144 = vmatprep.subr.bf16.mxu0 0
  %3145 = vmatpush1.bf16.msra.mxu0 0
  %3146 = vmatprep.subr.bf16.mxu0 0
  %3147 = vmatpush1.bf16.msra.mxu0 0
  %3148 = vmatprep.subr.bf16.mxu0 0
  %3149 = vmatpush1.bf16.msra.mxu0 0
  %3150 = vmatprep.subr.bf16.mxu0 0
  %3151 = vmatpush1.bf16.msra.mxu0 0
  %3152 = vmatprep.subr.bf16.mxu0 0
  %3153 = vmatpush1.bf16.msra.mxu0 0
  %3154 = vmatprep.subr.bf16.mxu0 0
  %3155 = vmatpush1.bf16.msra.mxu0 0
  %3156 = vmatprep.subr.bf16.mxu0 0
  %3157 = vmatpush1.bf16.msra.mxu0 0
  %3158 = vmatprep.subr.bf16.mxu0 0
  %3159 = vmatpush1.bf16.msra.mxu0 0
  %3160 = vmatprep.subr.bf16.mxu0 0
  %3161 = vmatpush1.bf16.msra.mxu0 0
  %3162 = vmatprep.mubr.bf16.mxu0 0
  %3163 = vmatmul.mubr.bf16.gmra.mrb[0].mxu0 %v175
  %v3164 = vpop.f32.mrb[0].mxu0
  %v3165 = vadd.f32 0.0, %v3164
  %v3166 = vpop.f32.mrb[0].mxu0
  %v3167 = vpop.f32.mrb[0].mxu0
  %v3168 = vadd.f32 0.0, %v3167
  %v3169 = vpop.f32.mrb[0].mxu0
  %3170 = vdwg.mxu0
  %v3171 = vmul.f32 %v3124, 2.0
  %v3172 = vmul.f32 %v3127, 2.0
  %v3173 = vmul.f32 %v3165, 2.0
  %v3174 = vmul.f32 %v3168, 2.0
  %v3175 = vsub.f32 %v3171, %v2999
  %v3176 = vsub.f32 %v3172, %v3000
  %v3177 = vsub.f32 %v3173, %v3001
  %v3178 = vsub.f32 %v3174, %v3002
  %3183 = vrot.lane.b32.xlu0 %v3040, 32
  %v3184 = vpop.permute.xlu0 %3183
  %3185 = vrot.lane.b32.xlu0 %v3043, 32
  %v3186 = vpop.permute.xlu0 %3185
  %3187 = vrot.lane.b32.xlu0 %v3081, 32
  %v3188 = vpop.permute.xlu0 %3187
  %3189 = vrot.lane.b32.xlu0 %v3084, 32
  %v3190 = vpop.permute.xlu0 %3189
  %3199 = vrot.lane.b32.xlu0 %v3175, 64
  %v3200 = vpop.permute.xlu0 %3199
  %3201 = vrot.lane.b32.xlu0 %v3176, 64
  %v3202 = vpop.permute.xlu0 %3201
  %3203 = vrot.lane.b32.xlu0 %v3177, 64
  %v3204 = vpop.permute.xlu0 %3203
  %3205 = vrot.lane.b32.xlu0 %v3178, 64
  %v3206 = vpop.permute.xlu0 %3205
  %v3211 = vsel %vm342, %v2999, %v3184
  %v3212 = vsel %vm342, %v3000, %v3186
  %v3213 = vsel %vm342, %v3001, %v3188
  %v3214 = vsel %vm342, %v3002, %v3190
  %v3215 = vsel %vm347, %v3211, %v3200
  %v3216 = vsel %vm347, %v3212, %v3202
  %v3217 = vsel %vm347, %v3213, %v3204
  %v3218 = vsel %vm347, %v3214, %v3206
  %v3219 = vpack.c.bf16 %v3216, %v3215
  %v3220 = vpack.c.bf16 %v3218, %v3217
  %v3222 = vsel %vm390, %v3219, 0
  %v3225 = vsel %vm390, %v3220, 0
  %3227 = vmatprep.subr.bf16.mxu0 0
  %3228 = vmatpush1.bf16.msra.mxu0 %v1799
  %3229 = vmatprep.subr.bf16.mxu0 0
  %3230 = vmatpush1.bf16.msra.mxu0 %v1800
  %3231 = vmatprep.subr.bf16.mxu0 0
  %3232 = vmatpush1.bf16.msra.mxu0 %v1801
  %3233 = vmatprep.subr.bf16.mxu0 0
  %3234 = vmatpush1.bf16.msra.mxu0 %v1802
  %3235 = vmatprep.subr.bf16.mxu0 0
  %3236 = vmatpush1.bf16.msra.mxu0 %v1803
  %3237 = vmatprep.subr.bf16.mxu0 0
  %3238 = vmatpush1.bf16.msra.mxu0 %v1804
  %3239 = vmatprep.subr.bf16.mxu0 0
  %3240 = vmatpush1.bf16.msra.mxu0 0
  %3241 = vmatprep.subr.bf16.mxu0 0
  %3242 = vmatpush1.bf16.msra.mxu0 0
  %3243 = vmatprep.subr.bf16.mxu0 0
  %3244 = vmatpush1.bf16.msra.mxu0 0
  %3245 = vmatprep.subr.bf16.mxu0 0
  %3246 = vmatpush1.bf16.msra.mxu0 0
  %3247 = vmatprep.subr.bf16.mxu0 0
  %3248 = vmatpush1.bf16.msra.mxu0 0
  %3249 = vmatprep.subr.bf16.mxu0 0
  %3250 = vmatpush1.bf16.msra.mxu0 0
  %3251 = vmatprep.subr.bf16.mxu0 0
  %3252 = vmatpush1.bf16.msra.mxu0 0
  %3253 = vmatprep.subr.bf16.mxu0 0
  %3254 = vmatpush1.bf16.msra.mxu0 0
  %3255 = vmatprep.subr.bf16.mxu0 0
  %3256 = vmatpush1.bf16.msra.mxu0 0
  %3257 = vmatprep.subr.bf16.mxu0 0
  %3258 = vmatpush1.bf16.msra.mxu0 0
  %3259 = vmatprep.mubr.bf16.mxu0 0
  %3260 = vmatmul.mubr.bf16.gmra.mrb[0].mxu0 %v3222
  %v3261 = vpop.f32.mrb[0].mxu0
  %v3262 = vadd.f32 0.0, %v3261
  %v3263 = vpop.f32.mrb[0].mxu0
  %v3264 = vpop.f32.mrb[0].mxu0
  %v3265 = vadd.f32 0.0, %v3264
  %v3266 = vpop.f32.mrb[0].mxu0
  %3267 = vmatprep.mubr.bf16.mxu0 0
  %3268 = vmatmul.mubr.bf16.gmra.mrb[0].mxu0 %v3225
  %v3269 = vpop.f32.mrb[0].mxu0
  %v3270 = vadd.f32 0.0, %v3269
  %v3271 = vpop.f32.mrb[0].mxu0
  %v3272 = vpop.f32.mrb[0].mxu0
  %v3273 = vadd.f32 0.0, %v3272
  %v3274 = vpop.f32.mrb[0].mxu0
  %3275 = vdwg.mxu0
  %3280 = vrot.lane.b32.xlu0 %v3262, 64
  %v3281 = vpop.permute.xlu0 %3280
  %3282 = vrot.lane.b32.xlu0 %v3265, 64
  %v3283 = vpop.permute.xlu0 %3282
  %3284 = vrot.lane.b32.xlu0 %v3270, 64
  %v3285 = vpop.permute.xlu0 %3284
  %3286 = vrot.lane.b32.xlu0 %v3273, 64
  %v3287 = vpop.permute.xlu0 %3286
  %v3292 = vadd.f32 %v2672, %v3281
  %v3293 = vadd.f32 %v2675, %v3283
  %v3294 = vadd.f32 %v2680, %v3285
  %v3295 = vadd.f32 %v2683, %v3287
  %v3296 = vadd.f32 %v3292, %v1523
  %v3297 = vadd.f32 %v3293, %v1523
  %v3298 = vadd.f32 %v3294, %v1523
  %v3299 = vadd.f32 %v3295, %v1523
  %v3300 = vtanh.pop %v3296
  %v3301 = vtanh.pop %v3297
  %v3302 = vtanh.pop %v3298
  %v3303 = vtanh.pop %v3299
  %v3304 = vmul.f32 %v2992, %v1938
  %v3305 = vmul.f32 %v2994, %v1939
  %v3306 = vmul.f32 %v2996, %v1940
  %v3307 = vmul.f32 %v2998, %v1941
  %v3308 = vsub.f32 1.0, %v2992
  %v3309 = vsub.f32 1.0, %v2994
  %v3310 = vsub.f32 1.0, %v2996
  %v3311 = vsub.f32 1.0, %v2998
  %3316 = vrot.lane.b32.xlu0 %v3300, 96
  %v3317 = vpop.permute.xlu0 %3316
  %3318 = vrot.lane.b32.xlu0 %v3301, 96
  %v3319 = vpop.permute.xlu0 %3318
  %3320 = vrot.lane.b32.xlu0 %v3302, 96
  %v3321 = vpop.permute.xlu0 %3320
  %3322 = vrot.lane.b32.xlu0 %v3303, 96
  %v3323 = vpop.permute.xlu0 %3322
  %v3328 = vmul.f32 %v3308, %v3317
  %v3329 = vmul.f32 %v3309, %v3319
  %v3330 = vmul.f32 %v3310, %v3321
  %v3331 = vmul.f32 %v3311, %v3323
  %v3332 = vadd.f32 %v3304, %v3328
  %v3333 = vadd.f32 %v3305, %v3329
  %v3334 = vadd.f32 %v3306, %v3330
  %v3335 = vadd.f32 %v3307, %v3331
  %3340 = vrot.lane.b32.xlu0 %v3332, 96
  %v3341 = vpop.permute.xlu0 %3340
  %3342 = vrot.lane.b32.xlu0 %v3333, 96
  %v3343 = vpop.permute.xlu0 %3342
  %3344 = vrot.lane.b32.xlu0 %v3334, 96
  %v3345 = vpop.permute.xlu0 %3344
  %3346 = vrot.lane.b32.xlu0 %v3335, 96
  %v3347 = vpop.permute.xlu0 %3346
  %s3352 = scalar_lea.vmem %s9, 32
  %3353 = vst.msk [vmem:[%s3352] sm:$0xff] %vm342, %v3341
  %3354 = vst.msk [vmem:[%s3352 + $0x8] sm:$0xff] %vm342, %v3343
  %3355 = vst.msk [vmem:[%s3352 + $0x10] sm:$0xff] %vm342, %v3345
  %3356 = vst.msk [vmem:[%s3352 + $0x18] sm:$0xff] %vm342, %v3347
  %s3357 = scalar_lea.vmem %s0, 32
  %v3358 = vld [vmem:[%s3357] sm:$0xf]
  %v3359 = vld [vmem:[%s3357 + $0x4] sm:$0xf]
  %v3360 = vld [vmem:[%s3357 + $0x8] sm:$0xf]
  %v3361 = vld [vmem:[%s3357 + $0xc] sm:$0xf]
  %v3362 = vunpack.c.l.bf16 %v3358
  %v3363 = vunpack.c.l.bf16 %v3359
  %v3364 = vunpack.c.l.bf16 %v3360
  %v3365 = vunpack.c.l.bf16 %v3361
  %3366 = vmatprep.subr.bf16.mxu0 0
  %3367 = vmatpush1.bf16.msra.mxu0 %v378
  %3368 = vmatprep.subr.bf16.mxu0 0
  %3369 = vmatpush1.bf16.msra.mxu0 %v379
  %3370 = vmatprep.subr.bf16.mxu0 0
  %3371 = vmatpush1.bf16.msra.mxu0 %v380
  %3372 = vmatprep.subr.bf16.mxu0 0
  %3373 = vmatpush1.bf16.msra.mxu0 %v381
  %3374 = vmatprep.subr.bf16.mxu0 0
  %3375 = vmatpush1.bf16.msra.mxu0 %v382
  %3376 = vmatprep.subr.bf16.mxu0 0
  %3377 = vmatpush1.bf16.msra.mxu0 %v383
  %3378 = vmatprep.subr.bf16.mxu0 0
  %3379 = vmatpush1.bf16.msra.mxu0 0
  %3380 = vmatprep.subr.bf16.mxu0 0
  %3381 = vmatpush1.bf16.msra.mxu0 0
  %3382 = vmatprep.subr.bf16.mxu0 0
  %3383 = vmatpush1.bf16.msra.mxu0 0
  %3384 = vmatprep.subr.bf16.mxu0 0
  %3385 = vmatpush1.bf16.msra.mxu0 0
  %3386 = vmatprep.subr.bf16.mxu0 0
  %3387 = vmatpush1.bf16.msra.mxu0 0
  %3388 = vmatprep.subr.bf16.mxu0 0
  %3389 = vmatpush1.bf16.msra.mxu0 0
  %3390 = vmatprep.subr.bf16.mxu0 0
  %3391 = vmatpush1.bf16.msra.mxu0 0
  %3392 = vmatprep.subr.bf16.mxu0 0
  %3393 = vmatpush1.bf16.msra.mxu0 0
  %3394 = vmatprep.subr.bf16.mxu0 0
  %3395 = vmatpush1.bf16.msra.mxu0 0
  %3396 = vmatprep.subr.bf16.mxu0 0
  %3397 = vmatpush1.bf16.msra.mxu0 0
  %3398 = vmatprep.mubr.bf16.mxu0 0
  %3399 = vmatmul.mubr.bf16.gmra.mrb[0].mxu0 %v2632
  %v3400 = vpop.f32.mrb[0].mxu0
  %v3401 = vadd.f32 0.0, %v3400
  %v3402 = vpop.f32.mrb[0].mxu0
  %v3403 = vpop.f32.mrb[0].mxu0
  %v3404 = vadd.f32 0.0, %v3403
  %v3405 = vpop.f32.mrb[0].mxu0
  %3406 = vmatprep.mubr.bf16.mxu0 0
  %3407 = vmatmul.mubr.bf16.gmra.mrb[0].mxu0 %v2635
  %v3408 = vpop.f32.mrb[0].mxu0
  %v3409 = vadd.f32 0.0, %v3408
  %v3410 = vpop.f32.mrb[0].mxu0
  %v3411 = vpop.f32.mrb[0].mxu0
  %v3412 = vadd.f32 0.0, %v3411
  %v3413 = vpop.f32.mrb[0].mxu0
  %3414 = vdwg.mxu0
  %v3415 = vadd.f32 %v3362, %v3401
  %v3416 = vadd.f32 %v3363, %v3404
  %v3417 = vadd.f32 %v3364, %v3409
  %v3418 = vadd.f32 %v3365, %v3412
  %v3419 = vadd.f32 %v3415, %v454
  %v3420 = vadd.f32 %v3416, %v454
  %v3421 = vadd.f32 %v3417, %v454
  %v3422 = vadd.f32 %v3418, %v454
  %v3423 = vxor.u32 %v3419, 2147483648
  %v3424 = vxor.u32 %v3420, 2147483648
  %v3425 = vxor.u32 %v3421, 2147483648
  %v3426 = vxor.u32 %v3422, 2147483648
  %v3427 = vmul.f32 %v3423, 1.442695
  %v3428 = vpow.pop %v3427
  %v3429 = vmul.f32 %v3424, 1.442695
  %v3430 = vpow.pop %v3429
  %v3431 = vmul.f32 %v3425, 1.442695
  %v3432 = vpow.pop %v3431
  %v3433 = vmul.f32 %v3426, 1.442695
  %v3434 = vpow.pop %v3433
  %v3435 = vadd.f32 %v3428, 1.0
  %v3436 = vadd.f32 %v3430, 1.0
  %v3437 = vadd.f32 %v3432, 1.0
  %v3438 = vadd.f32 %v3434, 1.0
  %v3439 = vrcp.pop %v3435
  %v3440 = vmul.f32 1.0, %v3439
  %v3441 = vrcp.pop %v3436
  %v3442 = vmul.f32 1.0, %v3441
  %v3443 = vrcp.pop %v3437
  %v3444 = vmul.f32 1.0, %v3443
  %v3445 = vrcp.pop %v3438
  %v3446 = vmul.f32 1.0, %v3445
  %v3447 = vmul.f32 %v3440, %v2574
  %v3448 = vmul.f32 %v3442, %v2576
  %v3449 = vmul.f32 %v3444, %v2578
  %v3450 = vmul.f32 %v3446, %v2580
  %v3451 = vpack.c.bf16 %v3448, %v3447
  %v3452 = vpack.c.bf16 %v3450, %v3449
  %3453 = vmatprep.subr.bf16.mxu0 0
  %3454 = vmatpush1.bf16.msra.mxu0 %v3451
  %3455 = vmatprep.subr.bf16.mxu0 0
  %3456 = vmatpush1.bf16.msra.mxu0 0
  %3457 = vmatprep.subr.bf16.mxu0 0
  %3458 = vmatpush1.bf16.msra.mxu0 0
  %3459 = vmatprep.subr.bf16.mxu0 0
  %3460 = vmatpush1.bf16.msra.mxu0 0
  %3461 = vmatprep.subr.bf16.mxu0 0
  %3462 = vmatpush1.bf16.msra.mxu0 0
  %3463 = vmatprep.subr.bf16.mxu0 0
  %3464 = vmatpush1.bf16.msra.mxu0 0
  %3465 = vmatprep.subr.bf16.mxu0 0
  %3466 = vmatpush1.bf16.msra.mxu0 0
  %3467 = vmatprep.subr.bf16.mxu0 0
  %3468 = vmatpush1.bf16.msra.mxu0 0
  %3469 = vmatprep.subr.bf16.mxu0 0
  %3470 = vmatpush1.bf16.msra.mxu0 0
  %3471 = vmatprep.subr.bf16.mxu0 0
  %3472 = vmatpush1.bf16.msra.mxu0 0
  %3473 = vmatprep.subr.bf16.mxu0 0
  %3474 = vmatpush1.bf16.msra.mxu0 0
  %3475 = vmatprep.subr.bf16.mxu0 0
  %3476 = vmatpush1.bf16.msra.mxu0 0
  %3477 = vmatprep.subr.bf16.mxu0 0
  %3478 = vmatpush1.bf16.msra.mxu0 0
  %3479 = vmatprep.subr.bf16.mxu0 0
  %3480 = vmatpush1.bf16.msra.mxu0 0
  %3481 = vmatprep.subr.bf16.mxu0 0
  %3482 = vmatpush1.bf16.msra.mxu0 0
  %3483 = vmatprep.subr.bf16.mxu0 0
  %3484 = vmatpush1.bf16.msra.mxu0 0
  %3485 = vmatprep.mubr.bf16.mxu0 0
  %3486 = vmatmul.mubr.bf16.gmra.mrb[0].mxu0 %v126
  %v3487 = vpop.f32.mrb[0].mxu0
  %v3488 = vadd.f32 0.0, %v3487
  %v3489 = vpop.f32.mrb[0].mxu0
  %v3490 = vpop.f32.mrb[0].mxu0
  %v3491 = vadd.f32 0.0, %v3490
  %v3492 = vpop.f32.mrb[0].mxu0
  %3493 = vdwg.mxu0
  %3494 = vmatprep.subr.bf16.mxu0 0
  %3495 = vmatpush1.bf16.msra.mxu0 %v3452
  %3496 = vmatprep.subr.bf16.mxu0 0
  %3497 = vmatpush1.bf16.msra.mxu0 0
  %3498 = vmatprep.subr.bf16.mxu0 0
  %3499 = vmatpush1.bf16.msra.mxu0 0
  %3500 = vmatprep.subr.bf16.mxu0 0
  %3501 = vmatpush1.bf16.msra.mxu0 0
  %3502 = vmatprep.subr.bf16.mxu0 0
  %3503 = vmatpush1.bf16.msra.mxu0 0
  %3504 = vmatprep.subr.bf16.mxu0 0
  %3505 = vmatpush1.bf16.msra.mxu0 0
  %3506 = vmatprep.subr.bf16.mxu0 0
  %3507 = vmatpush1.bf16.msra.mxu0 0
  %3508 = vmatprep.subr.bf16.mxu0 0
  %3509 = vmatpush1.bf16.msra.mxu0 0
  %3510 = vmatprep.subr.bf16.mxu0 0
  %3511 = vmatpush1.bf16.msra.mxu0 0
  %3512 = vmatprep.subr.bf16.mxu0 0
  %3513 = vmatpush1.bf16.msra.mxu0 0
  %3514 = vmatprep.subr.bf16.mxu0 0
  %3515 = vmatpush1.bf16.msra.mxu0 0
  %3516 = vmatprep.subr.bf16.mxu0 0
  %3517 = vmatpush1.bf16.msra.mxu0 0
  %3518 = vmatprep.subr.bf16.mxu0 0
  %3519 = vmatpush1.bf16.msra.mxu0 0
  %3520 = vmatprep.subr.bf16.mxu0 0
  %3521 = vmatpush1.bf16.msra.mxu0 0
  %3522 = vmatprep.subr.bf16.mxu0 0
  %3523 = vmatpush1.bf16.msra.mxu0 0
  %3524 = vmatprep.subr.bf16.mxu0 0
  %3525 = vmatpush1.bf16.msra.mxu0 0
  %3526 = vmatprep.mubr.bf16.mxu0 0
  %3527 = vmatmul.mubr.bf16.gmra.mrb[0].mxu0 %v175
  %v3528 = vpop.f32.mrb[0].mxu0
  %v3529 = vadd.f32 0.0, %v3528
  %v3530 = vpop.f32.mrb[0].mxu0
  %v3531 = vpop.f32.mrb[0].mxu0
  %v3532 = vadd.f32 0.0, %v3531
  %v3533 = vpop.f32.mrb[0].mxu0
  %3534 = vdwg.mxu0
  %v3535 = vpack.c.bf16 %v3491, %v3488
  %v3536 = vpack.c.bf16 %v3532, %v3529
  %3537 = vmatprep.subr.bf16.mxu0 0
  %3538 = vmatpush1.bf16.msra.mxu0 %v3535
  %3539 = vmatprep.subr.bf16.mxu0 0
  %3540 = vmatpush1.bf16.msra.mxu0 0
  %3541 = vmatprep.subr.bf16.mxu0 0
  %3542 = vmatpush1.bf16.msra.mxu0 0
  %3543 = vmatprep.subr.bf16.mxu0 0
  %3544 = vmatpush1.bf16.msra.mxu0 0
  %3545 = vmatprep.subr.bf16.mxu0 0
  %3546 = vmatpush1.bf16.msra.mxu0 0
  %3547 = vmatprep.subr.bf16.mxu0 0
  %3548 = vmatpush1.bf16.msra.mxu0 0
  %3549 = vmatprep.subr.bf16.mxu0 0
  %3550 = vmatpush1.bf16.msra.mxu0 0
  %3551 = vmatprep.subr.bf16.mxu0 0
  %3552 = vmatpush1.bf16.msra.mxu0 0
  %3553 = vmatprep.subr.bf16.mxu0 0
  %3554 = vmatpush1.bf16.msra.mxu0 0
  %3555 = vmatprep.subr.bf16.mxu0 0
  %3556 = vmatpush1.bf16.msra.mxu0 0
  %3557 = vmatprep.subr.bf16.mxu0 0
  %3558 = vmatpush1.bf16.msra.mxu0 0
  %3559 = vmatprep.subr.bf16.mxu0 0
  %3560 = vmatpush1.bf16.msra.mxu0 0
  %3561 = vmatprep.subr.bf16.mxu0 0
  %3562 = vmatpush1.bf16.msra.mxu0 0
  %3563 = vmatprep.subr.bf16.mxu0 0
  %3564 = vmatpush1.bf16.msra.mxu0 0
  %3565 = vmatprep.subr.bf16.mxu0 0
  %3566 = vmatpush1.bf16.msra.mxu0 0
  %3567 = vmatprep.subr.bf16.mxu0 0
  %3568 = vmatpush1.bf16.msra.mxu0 0
  %3569 = vmatprep.mubr.bf16.mxu0 0
  %3570 = vmatmul.mubr.bf16.gmra.mrb[0].mxu0 %v126
  %v3571 = vpop.f32.mrb[0].mxu0
  %v3572 = vadd.f32 0.0, %v3571
  %v3573 = vpop.f32.mrb[0].mxu0
  %v3574 = vpop.f32.mrb[0].mxu0
  %v3575 = vadd.f32 0.0, %v3574
  %v3576 = vpop.f32.mrb[0].mxu0
  %3577 = vdwg.mxu0
  %3578 = vmatprep.subr.bf16.mxu0 0
  %3579 = vmatpush1.bf16.msra.mxu0 %v3536
  %3580 = vmatprep.subr.bf16.mxu0 0
  %3581 = vmatpush1.bf16.msra.mxu0 0
  %3582 = vmatprep.subr.bf16.mxu0 0
  %3583 = vmatpush1.bf16.msra.mxu0 0
  %3584 = vmatprep.subr.bf16.mxu0 0
  %3585 = vmatpush1.bf16.msra.mxu0 0
  %3586 = vmatprep.subr.bf16.mxu0 0
  %3587 = vmatpush1.bf16.msra.mxu0 0
  %3588 = vmatprep.subr.bf16.mxu0 0
  %3589 = vmatpush1.bf16.msra.mxu0 0
  %3590 = vmatprep.subr.bf16.mxu0 0
  %3591 = vmatpush1.bf16.msra.mxu0 0
  %3592 = vmatprep.subr.bf16.mxu0 0
  %3593 = vmatpush1.bf16.msra.mxu0 0
  %3594 = vmatprep.subr.bf16.mxu0 0
  %3595 = vmatpush1.bf16.msra.mxu0 0
  %3596 = vmatprep.subr.bf16.mxu0 0
  %3597 = vmatpush1.bf16.msra.mxu0 0
  %3598 = vmatprep.subr.bf16.mxu0 0
  %3599 = vmatpush1.bf16.msra.mxu0 0
  %3600 = vmatprep.subr.bf16.mxu0 0
  %3601 = vmatpush1.bf16.msra.mxu0 0
  %3602 = vmatprep.subr.bf16.mxu0 0
  %3603 = vmatpush1.bf16.msra.mxu0 0
  %3604 = vmatprep.subr.bf16.mxu0 0
  %3605 = vmatpush1.bf16.msra.mxu0 0
  %3606 = vmatprep.subr.bf16.mxu0 0
  %3607 = vmatpush1.bf16.msra.mxu0 0
  %3608 = vmatprep.subr.bf16.mxu0 0
  %3609 = vmatpush1.bf16.msra.mxu0 0
  %3610 = vmatprep.mubr.bf16.mxu0 0
  %3611 = vmatmul.mubr.bf16.gmra.mrb[0].mxu0 %v175
  %v3612 = vpop.f32.mrb[0].mxu0
  %v3613 = vadd.f32 0.0, %v3612
  %v3614 = vpop.f32.mrb[0].mxu0
  %v3615 = vpop.f32.mrb[0].mxu0
  %v3616 = vadd.f32 0.0, %v3615
  %v3617 = vpop.f32.mrb[0].mxu0
  %3618 = vdwg.mxu0
  %v3619 = vmul.f32 %v3572, 2.0
  %v3620 = vmul.f32 %v3575, 2.0
  %v3621 = vmul.f32 %v3613, 2.0
  %v3622 = vmul.f32 %v3616, 2.0
  %v3623 = vsub.f32 %v3619, %v3447
  %v3624 = vsub.f32 %v3620, %v3448
  %v3625 = vsub.f32 %v3621, %v3449
  %v3626 = vsub.f32 %v3622, %v3450
  %3631 = vrot.lane.b32.xlu0 %v3488, 32
  %v3632 = vpop.permute.xlu0 %3631
  %3633 = vrot.lane.b32.xlu0 %v3491, 32
  %v3634 = vpop.permute.xlu0 %3633
  %3635 = vrot.lane.b32.xlu0 %v3529, 32
  %v3636 = vpop.permute.xlu0 %3635
  %3637 = vrot.lane.b32.xlu0 %v3532, 32
  %v3638 = vpop.permute.xlu0 %3637
  %3647 = vrot.lane.b32.xlu0 %v3623, 64
  %v3648 = vpop.permute.xlu0 %3647
  %3649 = vrot.lane.b32.xlu0 %v3624, 64
  %v3650 = vpop.permute.xlu0 %3649
  %3651 = vrot.lane.b32.xlu0 %v3625, 64
  %v3652 = vpop.permute.xlu0 %3651
  %3653 = vrot.lane.b32.xlu0 %v3626, 64
  %v3654 = vpop.permute.xlu0 %3653
  %v3659 = vsel %vm342, %v3447, %v3632
  %v3660 = vsel %vm342, %v3448, %v3634
  %v3661 = vsel %vm342, %v3449, %v3636
  %v3662 = vsel %vm342, %v3450, %v3638
  %v3663 = vsel %vm347, %v3659, %v3648
  %v3664 = vsel %vm347, %v3660, %v3650
  %v3665 = vsel %vm347, %v3661, %v3652
  %v3666 = vsel %vm347, %v3662, %v3654
  %v3667 = vpack.c.bf16 %v3664, %v3663
  %v3668 = vpack.c.bf16 %v3666, %v3665
  %v3670 = vsel %vm390, %v3667, 0
  %v3673 = vsel %vm390, %v3668, 0
  %3675 = vmatprep.subr.bf16.mxu0 0
  %3676 = vmatpush1.bf16.msra.mxu0 %v730
  %3677 = vmatprep.subr.bf16.mxu0 0
  %3678 = vmatpush1.bf16.msra.mxu0 %v731
  %3679 = vmatprep.subr.bf16.mxu0 0
  %3680 = vmatpush1.bf16.msra.mxu0 %v732
  %3681 = vmatprep.subr.bf16.mxu0 0
  %3682 = vmatpush1.bf16.msra.mxu0 %v733
  %3683 = vmatprep.subr.bf16.mxu0 0
  %3684 = vmatpush1.bf16.msra.mxu0 %v734
  %3685 = vmatprep.subr.bf16.mxu0 0
  %3686 = vmatpush1.bf16.msra.mxu0 %v735
  %3687 = vmatprep.subr.bf16.mxu0 0
  %3688 = vmatpush1.bf16.msra.mxu0 0
  %3689 = vmatprep.subr.bf16.mxu0 0
  %3690 = vmatpush1.bf16.msra.mxu0 0
  %3691 = vmatprep.subr.bf16.mxu0 0
  %3692 = vmatpush1.bf16.msra.mxu0 0
  %3693 = vmatprep.subr.bf16.mxu0 0
  %3694 = vmatpush1.bf16.msra.mxu0 0
  %3695 = vmatprep.subr.bf16.mxu0 0
  %3696 = vmatpush1.bf16.msra.mxu0 0
  %3697 = vmatprep.subr.bf16.mxu0 0
  %3698 = vmatpush1.bf16.msra.mxu0 0
  %3699 = vmatprep.subr.bf16.mxu0 0
  %3700 = vmatpush1.bf16.msra.mxu0 0
  %3701 = vmatprep.subr.bf16.mxu0 0
  %3702 = vmatpush1.bf16.msra.mxu0 0
  %3703 = vmatprep.subr.bf16.mxu0 0
  %3704 = vmatpush1.bf16.msra.mxu0 0
  %3705 = vmatprep.subr.bf16.mxu0 0
  %3706 = vmatpush1.bf16.msra.mxu0 0
  %3707 = vmatprep.mubr.bf16.mxu0 0
  %3708 = vmatmul.mubr.bf16.gmra.mrb[0].mxu0 %v3670
  %v3709 = vpop.f32.mrb[0].mxu0
  %v3710 = vadd.f32 0.0, %v3709
  %v3711 = vpop.f32.mrb[0].mxu0
  %v3712 = vpop.f32.mrb[0].mxu0
  %v3713 = vadd.f32 0.0, %v3712
  %v3714 = vpop.f32.mrb[0].mxu0
  %3715 = vmatprep.mubr.bf16.mxu0 0
  %3716 = vmatmul.mubr.bf16.gmra.mrb[0].mxu0 %v3673
  %v3717 = vpop.f32.mrb[0].mxu0
  %v3718 = vadd.f32 0.0, %v3717
  %v3719 = vpop.f32.mrb[0].mxu0
  %v3720 = vpop.f32.mrb[0].mxu0
  %v3721 = vadd.f32 0.0, %v3720
  %v3722 = vpop.f32.mrb[0].mxu0
  %3723 = vdwg.mxu0
  %3728 = vrot.lane.b32.xlu0 %v3710, 64
  %v3729 = vpop.permute.xlu0 %3728
  %3730 = vrot.lane.b32.xlu0 %v3713, 64
  %v3731 = vpop.permute.xlu0 %3730
  %3732 = vrot.lane.b32.xlu0 %v3718, 64
  %v3733 = vpop.permute.xlu0 %3732
  %3734 = vrot.lane.b32.xlu0 %v3721, 64
  %v3735 = vpop.permute.xlu0 %3734
  %v3740 = vadd.f32 %v3362, %v3729
  %v3741 = vadd.f32 %v3363, %v3731
  %v3742 = vadd.f32 %v3364, %v3733
  %v3743 = vadd.f32 %v3365, %v3735
  %v3744 = vadd.f32 %v3740, %v454
  %v3745 = vadd.f32 %v3741, %v454
  %v3746 = vadd.f32 %v3742, %v454
  %v3747 = vadd.f32 %v3743, %v454
  %v3748 = vtanh.pop %v3744
  %v3749 = vtanh.pop %v3745
  %v3750 = vtanh.pop %v3746
  %v3751 = vtanh.pop %v3747
  %v3752 = vmul.f32 %v3440, %v2385
  %v3753 = vmul.f32 %v3442, %v2386
  %v3754 = vmul.f32 %v3444, %v2387
  %v3755 = vmul.f32 %v3446, %v2388
  %v3756 = vsub.f32 1.0, %v3440
  %v3757 = vsub.f32 1.0, %v3442
  %v3758 = vsub.f32 1.0, %v3444
  %v3759 = vsub.f32 1.0, %v3446
  %3764 = vrot.lane.b32.xlu0 %v3748, 96
  %v3765 = vpop.permute.xlu0 %3764
  %3766 = vrot.lane.b32.xlu0 %v3749, 96
  %v3767 = vpop.permute.xlu0 %3766
  %3768 = vrot.lane.b32.xlu0 %v3750, 96
  %v3769 = vpop.permute.xlu0 %3768
  %3770 = vrot.lane.b32.xlu0 %v3751, 96
  %v3771 = vpop.permute.xlu0 %3770
  %v3776 = vmul.f32 %v3756, %v3765
  %v3777 = vmul.f32 %v3757, %v3767
  %v3778 = vmul.f32 %v3758, %v3769
  %v3779 = vmul.f32 %v3759, %v3771
  %v3780 = vadd.f32 %v3752, %v3776
  %v3781 = vadd.f32 %v3753, %v3777
  %v3782 = vadd.f32 %v3754, %v3778
  %v3783 = vadd.f32 %v3755, %v3779
  %v3784 = vpack.c.bf16 %v3781, %v3780
  %v3785 = vpack.c.bf16 %v3783, %v3782
  %3787 = vrot.lane.b32.xlu0 %v3784, 96
  %v3788 = vpop.permute.xlu0 %3787
  %3790 = vmatprep.subr.bf16.mxu0 0
  %3791 = vmatpush1.bf16.msra.mxu0 %v3788
  %3792 = vmatprep.subr.bf16.mxu0 0
  %3793 = vmatpush1.bf16.msra.mxu0 0
  %3794 = vmatprep.subr.bf16.mxu0 0
  %3795 = vmatpush1.bf16.msra.mxu0 0
  %3796 = vmatprep.subr.bf16.mxu0 0
  %3797 = vmatpush1.bf16.msra.mxu0 0
  %3798 = vmatprep.subr.bf16.mxu0 0
  %3799 = vmatpush1.bf16.msra.mxu0 0
  %3800 = vmatprep.subr.bf16.mxu0 0
  %3801 = vmatpush1.bf16.msra.mxu0 0
  %3802 = vmatprep.subr.bf16.mxu0 0
  %3803 = vmatpush1.bf16.msra.mxu0 0
  %3804 = vmatprep.subr.bf16.mxu0 0
  %3805 = vmatpush1.bf16.msra.mxu0 0
  %3806 = vmatprep.subr.bf16.mxu0 0
  %3807 = vmatpush1.bf16.msra.mxu0 0
  %3808 = vmatprep.subr.bf16.mxu0 0
  %3809 = vmatpush1.bf16.msra.mxu0 0
  %3810 = vmatprep.subr.bf16.mxu0 0
  %3811 = vmatpush1.bf16.msra.mxu0 0
  %3812 = vmatprep.subr.bf16.mxu0 0
  %3813 = vmatpush1.bf16.msra.mxu0 0
  %3814 = vmatprep.subr.bf16.mxu0 0
  %3815 = vmatpush1.bf16.msra.mxu0 0
  %3816 = vmatprep.subr.bf16.mxu0 0
  %3817 = vmatpush1.bf16.msra.mxu0 0
  %3818 = vmatprep.subr.bf16.mxu0 0
  %3819 = vmatpush1.bf16.msra.mxu0 0
  %3820 = vmatprep.subr.bf16.mxu0 0
  %3821 = vmatpush1.bf16.msra.mxu0 0
  %3822 = vmatprep.mubr.bf16.mxu0 0
  %3823 = vmatmul.mubr.bf16.gmra.mrb[0].mxu0 %v126
  %v3824 = vpop.f32.mrb[0].mxu0
  %v3825 = vadd.f32 0.0, %v3824
  %v3826 = vpop.f32.mrb[0].mxu0
  %v3827 = vpop.f32.mrb[0].mxu0
  %v3828 = vadd.f32 0.0, %v3827
  %v3829 = vpop.f32.mrb[0].mxu0
  %3830 = vdwg.mxu0
  %3832 = vrot.lane.b32.xlu0 %v3785, 96
  %v3833 = vpop.permute.xlu0 %3832
  %3835 = vmatprep.subr.bf16.mxu0 0
  %3836 = vmatpush1.bf16.msra.mxu0 %v3833
  %3837 = vmatprep.subr.bf16.mxu0 0
  %3838 = vmatpush1.bf16.msra.mxu0 0
  %3839 = vmatprep.subr.bf16.mxu0 0
  %3840 = vmatpush1.bf16.msra.mxu0 0
  %3841 = vmatprep.subr.bf16.mxu0 0
  %3842 = vmatpush1.bf16.msra.mxu0 0
  %3843 = vmatprep.subr.bf16.mxu0 0
  %3844 = vmatpush1.bf16.msra.mxu0 0
  %3845 = vmatprep.subr.bf16.mxu0 0
  %3846 = vmatpush1.bf16.msra.mxu0 0
  %3847 = vmatprep.subr.bf16.mxu0 0
  %3848 = vmatpush1.bf16.msra.mxu0 0
  %3849 = vmatprep.subr.bf16.mxu0 0
  %3850 = vmatpush1.bf16.msra.mxu0 0
  %3851 = vmatprep.subr.bf16.mxu0 0
  %3852 = vmatpush1.bf16.msra.mxu0 0
  %3853 = vmatprep.subr.bf16.mxu0 0
  %3854 = vmatpush1.bf16.msra.mxu0 0
  %3855 = vmatprep.subr.bf16.mxu0 0
  %3856 = vmatpush1.bf16.msra.mxu0 0
  %3857 = vmatprep.subr.bf16.mxu0 0
  %3858 = vmatpush1.bf16.msra.mxu0 0
  %3859 = vmatprep.subr.bf16.mxu0 0
  %3860 = vmatpush1.bf16.msra.mxu0 0
  %3861 = vmatprep.subr.bf16.mxu0 0
  %3862 = vmatpush1.bf16.msra.mxu0 0
  %3863 = vmatprep.subr.bf16.mxu0 0
  %3864 = vmatpush1.bf16.msra.mxu0 0
  %3865 = vmatprep.subr.bf16.mxu0 0
  %3866 = vmatpush1.bf16.msra.mxu0 0
  %3867 = vmatprep.mubr.bf16.mxu0 0
  %3868 = vmatmul.mubr.bf16.gmra.mrb[0].mxu0 %v175
  %v3869 = vpop.f32.mrb[0].mxu0
  %v3870 = vadd.f32 0.0, %v3869
  %v3871 = vpop.f32.mrb[0].mxu0
  %v3872 = vpop.f32.mrb[0].mxu0
  %v3873 = vadd.f32 0.0, %v3872
  %v3874 = vpop.f32.mrb[0].mxu0
  %3875 = vdwg.mxu0
  %v3876 = vpack.c.bf16 %v3828, %v3825
  %v3877 = vpack.c.bf16 %v3873, %v3870
  %3878 = vmatprep.subr.bf16.mxu0 0
  %3879 = vmatpush1.bf16.msra.mxu0 %v3876
  %3880 = vmatprep.subr.bf16.mxu0 0
  %3881 = vmatpush1.bf16.msra.mxu0 0
  %3882 = vmatprep.subr.bf16.mxu0 0
  %3883 = vmatpush1.bf16.msra.mxu0 0
  %3884 = vmatprep.subr.bf16.mxu0 0
  %3885 = vmatpush1.bf16.msra.mxu0 0
  %3886 = vmatprep.subr.bf16.mxu0 0
  %3887 = vmatpush1.bf16.msra.mxu0 0
  %3888 = vmatprep.subr.bf16.mxu0 0
  %3889 = vmatpush1.bf16.msra.mxu0 0
  %3890 = vmatprep.subr.bf16.mxu0 0
  %3891 = vmatpush1.bf16.msra.mxu0 0
  %3892 = vmatprep.subr.bf16.mxu0 0
  %3893 = vmatpush1.bf16.msra.mxu0 0
  %3894 = vmatprep.subr.bf16.mxu0 0
  %3895 = vmatpush1.bf16.msra.mxu0 0
  %3896 = vmatprep.subr.bf16.mxu0 0
  %3897 = vmatpush1.bf16.msra.mxu0 0
  %3898 = vmatprep.subr.bf16.mxu0 0
  %3899 = vmatpush1.bf16.msra.mxu0 0
  %3900 = vmatprep.subr.bf16.mxu0 0
  %3901 = vmatpush1.bf16.msra.mxu0 0
  %3902 = vmatprep.subr.bf16.mxu0 0
  %3903 = vmatpush1.bf16.msra.mxu0 0
  %3904 = vmatprep.subr.bf16.mxu0 0
  %3905 = vmatpush1.bf16.msra.mxu0 0
  %3906 = vmatprep.subr.bf16.mxu0 0
  %3907 = vmatpush1.bf16.msra.mxu0 0
  %3908 = vmatprep.subr.bf16.mxu0 0
  %3909 = vmatpush1.bf16.msra.mxu0 0
  %3910 = vmatprep.mubr.bf16.mxu0 0
  %3911 = vmatmul.mubr.bf16.gmra.mrb[0].mxu0 %v126
  %v3912 = vpop.f32.mrb[0].mxu0
  %v3913 = vadd.f32 0.0, %v3912
  %v3914 = vpop.f32.mrb[0].mxu0
  %v3915 = vpop.f32.mrb[0].mxu0
  %v3916 = vadd.f32 0.0, %v3915
  %v3917 = vpop.f32.mrb[0].mxu0
  %3918 = vdwg.mxu0
  %3919 = vmatprep.subr.bf16.mxu0 0
  %3920 = vmatpush1.bf16.msra.mxu0 %v3877
  %3921 = vmatprep.subr.bf16.mxu0 0
  %3922 = vmatpush1.bf16.msra.mxu0 0
  %3923 = vmatprep.subr.bf16.mxu0 0
  %3924 = vmatpush1.bf16.msra.mxu0 0
  %3925 = vmatprep.subr.bf16.mxu0 0
  %3926 = vmatpush1.bf16.msra.mxu0 0
  %3927 = vmatprep.subr.bf16.mxu0 0
  %3928 = vmatpush1.bf16.msra.mxu0 0
  %3929 = vmatprep.subr.bf16.mxu0 0
  %3930 = vmatpush1.bf16.msra.mxu0 0
  %3931 = vmatprep.subr.bf16.mxu0 0
  %3932 = vmatpush1.bf16.msra.mxu0 0
  %3933 = vmatprep.subr.bf16.mxu0 0
  %3934 = vmatpush1.bf16.msra.mxu0 0
  %3935 = vmatprep.subr.bf16.mxu0 0
  %3936 = vmatpush1.bf16.msra.mxu0 0
  %3937 = vmatprep.subr.bf16.mxu0 0
  %3938 = vmatpush1.bf16.msra.mxu0 0
  %3939 = vmatprep.subr.bf16.mxu0 0
  %3940 = vmatpush1.bf16.msra.mxu0 0
  %3941 = vmatprep.subr.bf16.mxu0 0
  %3942 = vmatpush1.bf16.msra.mxu0 0
  %3943 = vmatprep.subr.bf16.mxu0 0
  %3944 = vmatpush1.bf16.msra.mxu0 0
  %3945 = vmatprep.subr.bf16.mxu0 0
  %3946 = vmatpush1.bf16.msra.mxu0 0
  %3947 = vmatprep.subr.bf16.mxu0 0
  %3948 = vmatpush1.bf16.msra.mxu0 0
  %3949 = vmatprep.subr.bf16.mxu0 0
  %3950 = vmatpush1.bf16.msra.mxu0 0
  %3951 = vmatprep.mubr.bf16.mxu0 0
  %3952 = vmatmul.mubr.bf16.gmra.mrb[0].mxu0 %v175
  %v3953 = vpop.f32.mrb[0].mxu0
  %v3954 = vadd.f32 0.0, %v3953
  %v3955 = vpop.f32.mrb[0].mxu0
  %v3956 = vpop.f32.mrb[0].mxu0
  %v3957 = vadd.f32 0.0, %v3956
  %v3958 = vpop.f32.mrb[0].mxu0
  %3959 = vdwg.mxu0
  %v3960 = vmul.f32 %v3913, 2.0
  %v3961 = vmul.f32 %v3916, 2.0
  %v3962 = vmul.f32 %v3954, 2.0
  %v3963 = vmul.f32 %v3957, 2.0
  %3968 = vrot.lane.b32.xlu0 %v3780, 96
  %v3969 = vpop.permute.xlu0 %3968
  %3970 = vrot.lane.b32.xlu0 %v3781, 96
  %v3971 = vpop.permute.xlu0 %3970
  %3972 = vrot.lane.b32.xlu0 %v3782, 96
  %v3973 = vpop.permute.xlu0 %3972
  %3974 = vrot.lane.b32.xlu0 %v3783, 96
  %v3975 = vpop.permute.xlu0 %3974
  %v3980 = vsub.f32 %v3960, %v3969
  %v3981 = vsub.f32 %v3961, %v3971
  %v3982 = vsub.f32 %v3962, %v3973
  %v3983 = vsub.f32 %v3963, %v3975
  %3988 = vrot.lane.b32.xlu0 %v3825, 32
  %v3989 = vpop.permute.xlu0 %3988
  %3990 = vrot.lane.b32.xlu0 %v3828, 32
  %v3991 = vpop.permute.xlu0 %3990
  %3992 = vrot.lane.b32.xlu0 %v3870, 32
  %v3993 = vpop.permute.xlu0 %3992
  %3994 = vrot.lane.b32.xlu0 %v3873, 32
  %v3995 = vpop.permute.xlu0 %3994
  %4004 = vrot.lane.b32.xlu0 %v3980, 64
  %v4005 = vpop.permute.xlu0 %4004
  %4006 = vrot.lane.b32.xlu0 %v3981, 64
  %v4007 = vpop.permute.xlu0 %4006
  %4008 = vrot.lane.b32.xlu0 %v3982, 64
  %v4009 = vpop.permute.xlu0 %4008
  %4010 = vrot.lane.b32.xlu0 %v3983, 64
  %v4011 = vpop.permute.xlu0 %4010
  %v4016 = vsel %vm342, %v3969, %v3989
  %v4017 = vsel %vm342, %v3971, %v3991
  %v4018 = vsel %vm342, %v3973, %v3993
  %v4019 = vsel %vm342, %v3975, %v3995
  %v4020 = vsel %vm347, %v4016, %v4005
  %v4021 = vsel %vm347, %v4017, %v4007
  %v4022 = vsel %vm347, %v4018, %v4009
  %v4023 = vsel %vm347, %v4019, %v4011
  %v4024 = vpack.c.bf16 %v4021, %v4020
  %v4025 = vpack.c.bf16 %v4023, %v4022
  %v4027 = vsel %vm390, %v4024, 0
  %v4030 = vsel %vm390, %v4025, 0
  %4032 = vmatprep.subr.bf16.mxu0 0
  %4033 = vmatpush1.bf16.msra.mxu0 %v1139
  %4034 = vmatprep.subr.bf16.mxu0 0
  %4035 = vmatpush1.bf16.msra.mxu0 %v1140
  %4036 = vmatprep.subr.bf16.mxu0 0
  %4037 = vmatpush1.bf16.msra.mxu0 %v1141
  %4038 = vmatprep.subr.bf16.mxu0 0
  %4039 = vmatpush1.bf16.msra.mxu0 %v1142
  %4040 = vmatprep.subr.bf16.mxu0 0
  %4041 = vmatpush1.bf16.msra.mxu0 %v1143
  %4042 = vmatprep.subr.bf16.mxu0 0
  %4043 = vmatpush1.bf16.msra.mxu0 %v1144
  %4044 = vmatprep.subr.bf16.mxu0 0
  %4045 = vmatpush1.bf16.msra.mxu0 0
  %4046 = vmatprep.subr.bf16.mxu0 0
  %4047 = vmatpush1.bf16.msra.mxu0 0
  %4048 = vmatprep.subr.bf16.mxu0 0
  %4049 = vmatpush1.bf16.msra.mxu0 0
  %4050 = vmatprep.subr.bf16.mxu0 0
  %4051 = vmatpush1.bf16.msra.mxu0 0
  %4052 = vmatprep.subr.bf16.mxu0 0
  %4053 = vmatpush1.bf16.msra.mxu0 0
  %4054 = vmatprep.subr.bf16.mxu0 0
  %4055 = vmatpush1.bf16.msra.mxu0 0
  %4056 = vmatprep.subr.bf16.mxu0 0
  %4057 = vmatpush1.bf16.msra.mxu0 0
  %4058 = vmatprep.subr.bf16.mxu0 0
  %4059 = vmatpush1.bf16.msra.mxu0 0
  %4060 = vmatprep.subr.bf16.mxu0 0
  %4061 = vmatpush1.bf16.msra.mxu0 0
  %4062 = vmatprep.subr.bf16.mxu0 0
  %4063 = vmatpush1.bf16.msra.mxu0 0
  %4064 = vmatprep.mubr.bf16.mxu0 0
  %4065 = vmatmul.mubr.bf16.gmra.mrb[0].mxu0 %v4027
  %v4066 = vpop.f32.mrb[0].mxu0
  %v4067 = vadd.f32 0.0, %v4066
  %v4068 = vpop.f32.mrb[0].mxu0
  %v4069 = vpop.f32.mrb[0].mxu0
  %v4070 = vadd.f32 0.0, %v4069
  %v4071 = vpop.f32.mrb[0].mxu0
  %4072 = vmatprep.mubr.bf16.mxu0 0
  %4073 = vmatmul.mubr.bf16.gmra.mrb[0].mxu0 %v4030
  %v4074 = vpop.f32.mrb[0].mxu0
  %v4075 = vadd.f32 0.0, %v4074
  %v4076 = vpop.f32.mrb[0].mxu0
  %v4077 = vpop.f32.mrb[0].mxu0
  %v4078 = vadd.f32 0.0, %v4077
  %v4079 = vpop.f32.mrb[0].mxu0
  %4080 = vdwg.mxu0
  %v4081 = vpack.c.bf16 %v3333, %v3332
  %v4082 = vpack.c.bf16 %v3335, %v3334
  %4084 = vrot.lane.b32.xlu0 %v4081, 96
  %v4085 = vpop.permute.xlu0 %4084
  %4087 = vmatprep.subr.bf16.mxu0 0
  %4088 = vmatpush1.bf16.msra.mxu0 %v4085
  %4089 = vmatprep.subr.bf16.mxu0 0
  %4090 = vmatpush1.bf16.msra.mxu0 0
  %4091 = vmatprep.subr.bf16.mxu0 0
  %4092 = vmatpush1.bf16.msra.mxu0 0
  %4093 = vmatprep.subr.bf16.mxu0 0
  %4094 = vmatpush1.bf16.msra.mxu0 0
  %4095 = vmatprep.subr.bf16.mxu0 0
  %4096 = vmatpush1.bf16.msra.mxu0 0
  %4097 = vmatprep.subr.bf16.mxu0 0
  %4098 = vmatpush1.bf16.msra.mxu0 0
  %4099 = vmatprep.subr.bf16.mxu0 0
  %4100 = vmatpush1.bf16.msra.mxu0 0
  %4101 = vmatprep.subr.bf16.mxu0 0
  %4102 = vmatpush1.bf16.msra.mxu0 0
  %4103 = vmatprep.subr.bf16.mxu0 0
  %4104 = vmatpush1.bf16.msra.mxu0 0
  %4105 = vmatprep.subr.bf16.mxu0 0
  %4106 = vmatpush1.bf16.msra.mxu0 0
  %4107 = vmatprep.subr.bf16.mxu0 0
  %4108 = vmatpush1.bf16.msra.mxu0 0
  %4109 = vmatprep.subr.bf16.mxu0 0
  %4110 = vmatpush1.bf16.msra.mxu0 0
  %4111 = vmatprep.subr.bf16.mxu0 0
  %4112 = vmatpush1.bf16.msra.mxu0 0
  %4113 = vmatprep.subr.bf16.mxu0 0
  %4114 = vmatpush1.bf16.msra.mxu0 0
  %4115 = vmatprep.subr.bf16.mxu0 0
  %4116 = vmatpush1.bf16.msra.mxu0 0
  %4117 = vmatprep.subr.bf16.mxu0 0
  %4118 = vmatpush1.bf16.msra.mxu0 0
  %4119 = vmatprep.mubr.bf16.mxu0 0
  %4120 = vmatmul.mubr.bf16.gmra.mrb[0].mxu0 %v126
  %v4121 = vpop.f32.mrb[0].mxu0
  %v4122 = vadd.f32 0.0, %v4121
  %v4123 = vpop.f32.mrb[0].mxu0
  %v4124 = vpop.f32.mrb[0].mxu0
  %v4125 = vadd.f32 0.0, %v4124
  %v4126 = vpop.f32.mrb[0].mxu0
  %4127 = vdwg.mxu0
  %4129 = vrot.lane.b32.xlu0 %v4082, 96
  %v4130 = vpop.permute.xlu0 %4129
  %4132 = vmatprep.subr.bf16.mxu0 0
  %4133 = vmatpush1.bf16.msra.mxu0 %v4130
  %4134 = vmatprep.subr.bf16.mxu0 0
  %4135 = vmatpush1.bf16.msra.mxu0 0
  %4136 = vmatprep.subr.bf16.mxu0 0
  %4137 = vmatpush1.bf16.msra.mxu0 0
  %4138 = vmatprep.subr.bf16.mxu0 0
  %4139 = vmatpush1.bf16.msra.mxu0 0
  %4140 = vmatprep.subr.bf16.mxu0 0
  %4141 = vmatpush1.bf16.msra.mxu0 0
  %4142 = vmatprep.subr.bf16.mxu0 0
  %4143 = vmatpush1.bf16.msra.mxu0 0
  %4144 = vmatprep.subr.bf16.mxu0 0
  %4145 = vmatpush1.bf16.msra.mxu0 0
  %4146 = vmatprep.subr.bf16.mxu0 0
  %4147 = vmatpush1.bf16.msra.mxu0 0
  %4148 = vmatprep.subr.bf16.mxu0 0
  %4149 = vmatpush1.bf16.msra.mxu0 0
  %4150 = vmatprep.subr.bf16.mxu0 0
  %4151 = vmatpush1.bf16.msra.mxu0 0
  %4152 = vmatprep.subr.bf16.mxu0 0
  %4153 = vmatpush1.bf16.msra.mxu0 0
  %4154 = vmatprep.subr.bf16.mxu0 0
  %4155 = vmatpush1.bf16.msra.mxu0 0
  %4156 = vmatprep.subr.bf16.mxu0 0
  %4157 = vmatpush1.bf16.msra.mxu0 0
  %4158 = vmatprep.subr.bf16.mxu0 0
  %4159 = vmatpush1.bf16.msra.mxu0 0
  %4160 = vmatprep.subr.bf16.mxu0 0
  %4161 = vmatpush1.bf16.msra.mxu0 0
  %4162 = vmatprep.subr.bf16.mxu0 0
  %4163 = vmatpush1.bf16.msra.mxu0 0
  %4164 = vmatprep.mubr.bf16.mxu0 0
  %4165 = vmatmul.mubr.bf16.gmra.mrb[0].mxu0 %v175
  %v4166 = vpop.f32.mrb[0].mxu0
  %v4167 = vadd.f32 0.0, %v4166
  %v4168 = vpop.f32.mrb[0].mxu0
  %v4169 = vpop.f32.mrb[0].mxu0
  %v4170 = vadd.f32 0.0, %v4169
  %v4171 = vpop.f32.mrb[0].mxu0
  %4172 = vdwg.mxu0
  %v4173 = vpack.c.bf16 %v4125, %v4122
  %v4174 = vpack.c.bf16 %v4170, %v4167
  %4175 = vmatprep.subr.bf16.mxu0 0
  %4176 = vmatpush1.bf16.msra.mxu0 %v4173
  %4177 = vmatprep.subr.bf16.mxu0 0
  %4178 = vmatpush1.bf16.msra.mxu0 0
  %4179 = vmatprep.subr.bf16.mxu0 0
  %4180 = vmatpush1.bf16.msra.mxu0 0
  %4181 = vmatprep.subr.bf16.mxu0 0
  %4182 = vmatpush1.bf16.msra.mxu0 0
  %4183 = vmatprep.subr.bf16.mxu0 0
  %4184 = vmatpush1.bf16.msra.mxu0 0
  %4185 = vmatprep.subr.bf16.mxu0 0
  %4186 = vmatpush1.bf16.msra.mxu0 0
  %4187 = vmatprep.subr.bf16.mxu0 0
  %4188 = vmatpush1.bf16.msra.mxu0 0
  %4189 = vmatprep.subr.bf16.mxu0 0
  %4190 = vmatpush1.bf16.msra.mxu0 0
  %4191 = vmatprep.subr.bf16.mxu0 0
  %4192 = vmatpush1.bf16.msra.mxu0 0
  %4193 = vmatprep.subr.bf16.mxu0 0
  %4194 = vmatpush1.bf16.msra.mxu0 0
  %4195 = vmatprep.subr.bf16.mxu0 0
  %4196 = vmatpush1.bf16.msra.mxu0 0
  %4197 = vmatprep.subr.bf16.mxu0 0
  %4198 = vmatpush1.bf16.msra.mxu0 0
  %4199 = vmatprep.subr.bf16.mxu0 0
  %4200 = vmatpush1.bf16.msra.mxu0 0
  %4201 = vmatprep.subr.bf16.mxu0 0
  %4202 = vmatpush1.bf16.msra.mxu0 0
  %4203 = vmatprep.subr.bf16.mxu0 0
  %4204 = vmatpush1.bf16.msra.mxu0 0
  %4205 = vmatprep.subr.bf16.mxu0 0
  %4206 = vmatpush1.bf16.msra.mxu0 0
  %4207 = vmatprep.mubr.bf16.mxu0 0
  %4208 = vmatmul.mubr.bf16.gmra.mrb[0].mxu0 %v126
  %v4209 = vpop.f32.mrb[0].mxu0
  %v4210 = vadd.f32 0.0, %v4209
  %v4211 = vpop.f32.mrb[0].mxu0
  %v4212 = vpop.f32.mrb[0].mxu0
  %v4213 = vadd.f32 0.0, %v4212
  %v4214 = vpop.f32.mrb[0].mxu0
  %4215 = vdwg.mxu0
  %4216 = vmatprep.subr.bf16.mxu0 0
  %4217 = vmatpush1.bf16.msra.mxu0 %v4174
  %4218 = vmatprep.subr.bf16.mxu0 0
  %4219 = vmatpush1.bf16.msra.mxu0 0
  %4220 = vmatprep.subr.bf16.mxu0 0
  %4221 = vmatpush1.bf16.msra.mxu0 0
  %4222 = vmatprep.subr.bf16.mxu0 0
  %4223 = vmatpush1.bf16.msra.mxu0 0
  %4224 = vmatprep.subr.bf16.mxu0 0
  %4225 = vmatpush1.bf16.msra.mxu0 0
  %4226 = vmatprep.subr.bf16.mxu0 0
  %4227 = vmatpush1.bf16.msra.mxu0 0
  %4228 = vmatprep.subr.bf16.mxu0 0
  %4229 = vmatpush1.bf16.msra.mxu0 0
  %4230 = vmatprep.subr.bf16.mxu0 0
  %4231 = vmatpush1.bf16.msra.mxu0 0
  %4232 = vmatprep.subr.bf16.mxu0 0
  %4233 = vmatpush1.bf16.msra.mxu0 0
  %4234 = vmatprep.subr.bf16.mxu0 0
  %4235 = vmatpush1.bf16.msra.mxu0 0
  %4236 = vmatprep.subr.bf16.mxu0 0
  %4237 = vmatpush1.bf16.msra.mxu0 0
  %4238 = vmatprep.subr.bf16.mxu0 0
  %4239 = vmatpush1.bf16.msra.mxu0 0
  %4240 = vmatprep.subr.bf16.mxu0 0
  %4241 = vmatpush1.bf16.msra.mxu0 0
  %4242 = vmatprep.subr.bf16.mxu0 0
  %4243 = vmatpush1.bf16.msra.mxu0 0
  %4244 = vmatprep.subr.bf16.mxu0 0
  %4245 = vmatpush1.bf16.msra.mxu0 0
  %4246 = vmatprep.subr.bf16.mxu0 0
  %4247 = vmatpush1.bf16.msra.mxu0 0
  %4248 = vmatprep.mubr.bf16.mxu0 0
  %4249 = vmatmul.mubr.bf16.gmra.mrb[0].mxu0 %v175
  %v4250 = vpop.f32.mrb[0].mxu0
  %v4251 = vadd.f32 0.0, %v4250
  %v4252 = vpop.f32.mrb[0].mxu0
  %v4253 = vpop.f32.mrb[0].mxu0
  %v4254 = vadd.f32 0.0, %v4253
  %v4255 = vpop.f32.mrb[0].mxu0
  %4256 = vdwg.mxu0
  %v4257 = vmul.f32 %v4210, 2.0
  %v4258 = vmul.f32 %v4213, 2.0
  %v4259 = vmul.f32 %v4251, 2.0
  %v4260 = vmul.f32 %v4254, 2.0
  %v4261 = vsub.f32 %v4257, %v3341
  %v4262 = vsub.f32 %v4258, %v3343
  %v4263 = vsub.f32 %v4259, %v3345
  %v4264 = vsub.f32 %v4260, %v3347
  %4269 = vrot.lane.b32.xlu0 %v4122, 32
  %v4270 = vpop.permute.xlu0 %4269
  %4271 = vrot.lane.b32.xlu0 %v4125, 32
  %v4272 = vpop.permute.xlu0 %4271
  %4273 = vrot.lane.b32.xlu0 %v4167, 32
  %v4274 = vpop.permute.xlu0 %4273
  %4275 = vrot.lane.b32.xlu0 %v4170, 32
  %v4276 = vpop.permute.xlu0 %4275
  %4285 = vrot.lane.b32.xlu0 %v4261, 64
  %v4286 = vpop.permute.xlu0 %4285
  %4287 = vrot.lane.b32.xlu0 %v4262, 64
  %v4288 = vpop.permute.xlu0 %4287
  %4289 = vrot.lane.b32.xlu0 %v4263, 64
  %v4290 = vpop.permute.xlu0 %4289
  %4291 = vrot.lane.b32.xlu0 %v4264, 64
  %v4292 = vpop.permute.xlu0 %4291
  %v4297 = vsel %vm342, %v3341, %v4270
  %v4298 = vsel %vm342, %v3343, %v4272
  %v4299 = vsel %vm342, %v3345, %v4274
  %v4300 = vsel %vm342, %v3347, %v4276
  %v4301 = vsel %vm347, %v4297, %v4286
  %v4302 = vsel %vm347, %v4298, %v4288
  %v4303 = vsel %vm347, %v4299, %v4290
  %v4304 = vsel %vm347, %v4300, %v4292
  %v4305 = vpack.c.bf16 %v4302, %v4301
  %v4306 = vpack.c.bf16 %v4304, %v4303
  %v4308 = vsel %vm390, %v4305, 0
  %v4311 = vsel %vm390, %v4306, 0
  %4313 = vmatprep.subr.bf16.mxu0 0
  %4314 = vmatpush1.bf16.msra.mxu0 %v1448
  %4315 = vmatprep.subr.bf16.mxu0 0
  %4316 = vmatpush1.bf16.msra.mxu0 %v1449
  %4317 = vmatprep.subr.bf16.mxu0 0
  %4318 = vmatpush1.bf16.msra.mxu0 %v1450
  %4319 = vmatprep.subr.bf16.mxu0 0
  %4320 = vmatpush1.bf16.msra.mxu0 %v1451
  %4321 = vmatprep.subr.bf16.mxu0 0
  %4322 = vmatpush1.bf16.msra.mxu0 %v1452
  %4323 = vmatprep.subr.bf16.mxu0 0
  %4324 = vmatpush1.bf16.msra.mxu0 %v1453
  %4325 = vmatprep.subr.bf16.mxu0 0
  %4326 = vmatpush1.bf16.msra.mxu0 0
  %4327 = vmatprep.subr.bf16.mxu0 0
  %4328 = vmatpush1.bf16.msra.mxu0 0
  %4329 = vmatprep.subr.bf16.mxu0 0
  %4330 = vmatpush1.bf16.msra.mxu0 0
  %4331 = vmatprep.subr.bf16.mxu0 0
  %4332 = vmatpush1.bf16.msra.mxu0 0
  %4333 = vmatprep.subr.bf16.mxu0 0
  %4334 = vmatpush1.bf16.msra.mxu0 0
  %4335 = vmatprep.subr.bf16.mxu0 0
  %4336 = vmatpush1.bf16.msra.mxu0 0
  %4337 = vmatprep.subr.bf16.mxu0 0
  %4338 = vmatpush1.bf16.msra.mxu0 0
  %4339 = vmatprep.subr.bf16.mxu0 0
  %4340 = vmatpush1.bf16.msra.mxu0 0
  %4341 = vmatprep.subr.bf16.mxu0 0
  %4342 = vmatpush1.bf16.msra.mxu0 0
  %4343 = vmatprep.subr.bf16.mxu0 0
  %4344 = vmatpush1.bf16.msra.mxu0 0
  %4345 = vmatprep.mubr.bf16.mxu0 0
  %4346 = vmatmul.mubr.bf16.gmra.mrb[0].mxu0 %v4308
  %v4347 = vpop.f32.mrb[0].mxu0
  %v4348 = vadd.f32 0.0, %v4347
  %v4349 = vpop.f32.mrb[0].mxu0
  %v4350 = vpop.f32.mrb[0].mxu0
  %v4351 = vadd.f32 0.0, %v4350
  %v4352 = vpop.f32.mrb[0].mxu0
  %4353 = vmatprep.mubr.bf16.mxu0 0
  %4354 = vmatmul.mubr.bf16.gmra.mrb[0].mxu0 %v4311
  %v4355 = vpop.f32.mrb[0].mxu0
  %v4356 = vadd.f32 0.0, %v4355
  %v4357 = vpop.f32.mrb[0].mxu0
  %v4358 = vpop.f32.mrb[0].mxu0
  %v4359 = vadd.f32 0.0, %v4358
  %v4360 = vpop.f32.mrb[0].mxu0
  %4361 = vdwg.mxu0
  %v4362 = vadd.f32 %v4067, %v4348
  %v4363 = vadd.f32 %v4070, %v4351
  %v4364 = vadd.f32 %v4075, %v4356
  %v4365 = vadd.f32 %v4078, %v4359
  %v4366 = vadd.f32 %v4362, %v1523
  %v4367 = vadd.f32 %v4363, %v1523
  %v4368 = vadd.f32 %v4364, %v1523
  %v4369 = vadd.f32 %v4365, %v1523
  %v4370 = vxor.u32 %v4366, 2147483648
  %v4371 = vxor.u32 %v4367, 2147483648
  %v4372 = vxor.u32 %v4368, 2147483648
  %v4373 = vxor.u32 %v4369, 2147483648
  %v4374 = vmul.f32 %v4370, 1.442695
  %v4375 = vpow.pop %v4374
  %v4376 = vmul.f32 %v4371, 1.442695
  %v4377 = vpow.pop %v4376
  %v4378 = vmul.f32 %v4372, 1.442695
  %v4379 = vpow.pop %v4378
  %v4380 = vmul.f32 %v4373, 1.442695
  %v4381 = vpow.pop %v4380
  %v4382 = vadd.f32 %v4375, 1.0
  %v4383 = vadd.f32 %v4377, 1.0
  %v4384 = vadd.f32 %v4379, 1.0
  %v4385 = vadd.f32 %v4381, 1.0
  %v4386 = vrcp.pop %v4382
  %v4387 = vmul.f32 1.0, %v4386
  %v4388 = vrcp.pop %v4383
  %v4389 = vmul.f32 1.0, %v4388
  %v4390 = vrcp.pop %v4384
  %v4391 = vmul.f32 1.0, %v4390
  %v4392 = vrcp.pop %v4385
  %v4393 = vmul.f32 1.0, %v4392
  %v4394 = vmul.f32 %v4387, %v3341
  %v4395 = vmul.f32 %v4389, %v3343
  %v4396 = vmul.f32 %v4391, %v3345
  %v4397 = vmul.f32 %v4393, %v3347
  %v4398 = vpack.c.bf16 %v4395, %v4394
  %v4399 = vpack.c.bf16 %v4397, %v4396
  %4400 = vmatprep.subr.bf16.mxu0 0
  %4401 = vmatpush1.bf16.msra.mxu0 %v4398
  %4402 = vmatprep.subr.bf16.mxu0 0
  %4403 = vmatpush1.bf16.msra.mxu0 0
  %4404 = vmatprep.subr.bf16.mxu0 0
  %4405 = vmatpush1.bf16.msra.mxu0 0
  %4406 = vmatprep.subr.bf16.mxu0 0
  %4407 = vmatpush1.bf16.msra.mxu0 0
  %4408 = vmatprep.subr.bf16.mxu0 0
  %4409 = vmatpush1.bf16.msra.mxu0 0
  %4410 = vmatprep.subr.bf16.mxu0 0
  %4411 = vmatpush1.bf16.msra.mxu0 0
  %4412 = vmatprep.subr.bf16.mxu0 0
  %4413 = vmatpush1.bf16.msra.mxu0 0
  %4414 = vmatprep.subr.bf16.mxu0 0
  %4415 = vmatpush1.bf16.msra.mxu0 0
  %4416 = vmatprep.subr.bf16.mxu0 0
  %4417 = vmatpush1.bf16.msra.mxu0 0
  %4418 = vmatprep.subr.bf16.mxu0 0
  %4419 = vmatpush1.bf16.msra.mxu0 0
  %4420 = vmatprep.subr.bf16.mxu0 0
  %4421 = vmatpush1.bf16.msra.mxu0 0
  %4422 = vmatprep.subr.bf16.mxu0 0
  %4423 = vmatpush1.bf16.msra.mxu0 0
  %4424 = vmatprep.subr.bf16.mxu0 0
  %4425 = vmatpush1.bf16.msra.mxu0 0
  %4426 = vmatprep.subr.bf16.mxu0 0
  %4427 = vmatpush1.bf16.msra.mxu0 0
  %4428 = vmatprep.subr.bf16.mxu0 0
  %4429 = vmatpush1.bf16.msra.mxu0 0
  %4430 = vmatprep.subr.bf16.mxu0 0
  %4431 = vmatpush1.bf16.msra.mxu0 0
  %4432 = vmatprep.mubr.bf16.mxu0 0
  %4433 = vmatmul.mubr.bf16.gmra.mrb[0].mxu0 %v126
  %v4434 = vpop.f32.mrb[0].mxu0
  %v4435 = vadd.f32 0.0, %v4434
  %v4436 = vpop.f32.mrb[0].mxu0
  %v4437 = vpop.f32.mrb[0].mxu0
  %v4438 = vadd.f32 0.0, %v4437
  %v4439 = vpop.f32.mrb[0].mxu0
  %4440 = vdwg.mxu0
  %4441 = vmatprep.subr.bf16.mxu0 0
  %4442 = vmatpush1.bf16.msra.mxu0 %v4399
  %4443 = vmatprep.subr.bf16.mxu0 0
  %4444 = vmatpush1.bf16.msra.mxu0 0
  %4445 = vmatprep.subr.bf16.mxu0 0
  %4446 = vmatpush1.bf16.msra.mxu0 0
  %4447 = vmatprep.subr.bf16.mxu0 0
  %4448 = vmatpush1.bf16.msra.mxu0 0
  %4449 = vmatprep.subr.bf16.mxu0 0
  %4450 = vmatpush1.bf16.msra.mxu0 0
  %4451 = vmatprep.subr.bf16.mxu0 0
  %4452 = vmatpush1.bf16.msra.mxu0 0
  %4453 = vmatprep.subr.bf16.mxu0 0
  %4454 = vmatpush1.bf16.msra.mxu0 0
  %4455 = vmatprep.subr.bf16.mxu0 0
  %4456 = vmatpush1.bf16.msra.mxu0 0
  %4457 = vmatprep.subr.bf16.mxu0 0
  %4458 = vmatpush1.bf16.msra.mxu0 0
  %4459 = vmatprep.subr.bf16.mxu0 0
  %4460 = vmatpush1.bf16.msra.mxu0 0
  %4461 = vmatprep.subr.bf16.mxu0 0
  %4462 = vmatpush1.bf16.msra.mxu0 0
  %4463 = vmatprep.subr.bf16.mxu0 0
  %4464 = vmatpush1.bf16.msra.mxu0 0
  %4465 = vmatprep.subr.bf16.mxu0 0
  %4466 = vmatpush1.bf16.msra.mxu0 0
  %4467 = vmatprep.subr.bf16.mxu0 0
  %4468 = vmatpush1.bf16.msra.mxu0 0
  %4469 = vmatprep.subr.bf16.mxu0 0
  %4470 = vmatpush1.bf16.msra.mxu0 0
  %4471 = vmatprep.subr.bf16.mxu0 0
  %4472 = vmatpush1.bf16.msra.mxu0 0
  %4473 = vmatprep.mubr.bf16.mxu0 0
  %4474 = vmatmul.mubr.bf16.gmra.mrb[0].mxu0 %v175
  %v4475 = vpop.f32.mrb[0].mxu0
  %v4476 = vadd.f32 0.0, %v4475
  %v4477 = vpop.f32.mrb[0].mxu0
  %v4478 = vpop.f32.mrb[0].mxu0
  %v4479 = vadd.f32 0.0, %v4478
  %v4480 = vpop.f32.mrb[0].mxu0
  %4481 = vdwg.mxu0
  %v4482 = vpack.c.bf16 %v4438, %v4435
  %v4483 = vpack.c.bf16 %v4479, %v4476
  %4484 = vmatprep.subr.bf16.mxu0 0
  %4485 = vmatpush1.bf16.msra.mxu0 %v4482
  %4486 = vmatprep.subr.bf16.mxu0 0
  %4487 = vmatpush1.bf16.msra.mxu0 0
  %4488 = vmatprep.subr.bf16.mxu0 0
  %4489 = vmatpush1.bf16.msra.mxu0 0
  %4490 = vmatprep.subr.bf16.mxu0 0
  %4491 = vmatpush1.bf16.msra.mxu0 0
  %4492 = vmatprep.subr.bf16.mxu0 0
  %4493 = vmatpush1.bf16.msra.mxu0 0
  %4494 = vmatprep.subr.bf16.mxu0 0
  %4495 = vmatpush1.bf16.msra.mxu0 0
  %4496 = vmatprep.subr.bf16.mxu0 0
  %4497 = vmatpush1.bf16.msra.mxu0 0
  %4498 = vmatprep.subr.bf16.mxu0 0
  %4499 = vmatpush1.bf16.msra.mxu0 0
  %4500 = vmatprep.subr.bf16.mxu0 0
  %4501 = vmatpush1.bf16.msra.mxu0 0
  %4502 = vmatprep.subr.bf16.mxu0 0
  %4503 = vmatpush1.bf16.msra.mxu0 0
  %4504 = vmatprep.subr.bf16.mxu0 0
  %4505 = vmatpush1.bf16.msra.mxu0 0
  %4506 = vmatprep.subr.bf16.mxu0 0
  %4507 = vmatpush1.bf16.msra.mxu0 0
  %4508 = vmatprep.subr.bf16.mxu0 0
  %4509 = vmatpush1.bf16.msra.mxu0 0
  %4510 = vmatprep.subr.bf16.mxu0 0
  %4511 = vmatpush1.bf16.msra.mxu0 0
  %4512 = vmatprep.subr.bf16.mxu0 0
  %4513 = vmatpush1.bf16.msra.mxu0 0
  %4514 = vmatprep.subr.bf16.mxu0 0
  %4515 = vmatpush1.bf16.msra.mxu0 0
  %4516 = vmatprep.mubr.bf16.mxu0 0
  %4517 = vmatmul.mubr.bf16.gmra.mrb[0].mxu0 %v126
  %v4518 = vpop.f32.mrb[0].mxu0
  %v4519 = vadd.f32 0.0, %v4518
  %v4520 = vpop.f32.mrb[0].mxu0
  %v4521 = vpop.f32.mrb[0].mxu0
  %v4522 = vadd.f32 0.0, %v4521
  %v4523 = vpop.f32.mrb[0].mxu0
  %4524 = vdwg.mxu0
  %4525 = vmatprep.subr.bf16.mxu0 0
  %4526 = vmatpush1.bf16.msra.mxu0 %v4483
  %4527 = vmatprep.subr.bf16.mxu0 0
  %4528 = vmatpush1.bf16.msra.mxu0 0
  %4529 = vmatprep.subr.bf16.mxu0 0
  %4530 = vmatpush1.bf16.msra.mxu0 0
  %4531 = vmatprep.subr.bf16.mxu0 0
  %4532 = vmatpush1.bf16.msra.mxu0 0
  %4533 = vmatprep.subr.bf16.mxu0 0
  %4534 = vmatpush1.bf16.msra.mxu0 0
  %4535 = vmatprep.subr.bf16.mxu0 0
  %4536 = vmatpush1.bf16.msra.mxu0 0
  %4537 = vmatprep.subr.bf16.mxu0 0
  %4538 = vmatpush1.bf16.msra.mxu0 0
  %4539 = vmatprep.subr.bf16.mxu0 0
  %4540 = vmatpush1.bf16.msra.mxu0 0
  %4541 = vmatprep.subr.bf16.mxu0 0
  %4542 = vmatpush1.bf16.msra.mxu0 0
  %4543 = vmatprep.subr.bf16.mxu0 0
  %4544 = vmatpush1.bf16.msra.mxu0 0
  %4545 = vmatprep.subr.bf16.mxu0 0
  %4546 = vmatpush1.bf16.msra.mxu0 0
  %4547 = vmatprep.subr.bf16.mxu0 0
  %4548 = vmatpush1.bf16.msra.mxu0 0
  %4549 = vmatprep.subr.bf16.mxu0 0
  %4550 = vmatpush1.bf16.msra.mxu0 0
  %4551 = vmatprep.subr.bf16.mxu0 0
  %4552 = vmatpush1.bf16.msra.mxu0 0
  %4553 = vmatprep.subr.bf16.mxu0 0
  %4554 = vmatpush1.bf16.msra.mxu0 0
  %4555 = vmatprep.subr.bf16.mxu0 0
  %4556 = vmatpush1.bf16.msra.mxu0 0
  %4557 = vmatprep.mubr.bf16.mxu0 0
  %4558 = vmatmul.mubr.bf16.gmra.mrb[0].mxu0 %v175
  %v4559 = vpop.f32.mrb[0].mxu0
  %v4560 = vadd.f32 0.0, %v4559
  %v4561 = vpop.f32.mrb[0].mxu0
  %v4562 = vpop.f32.mrb[0].mxu0
  %v4563 = vadd.f32 0.0, %v4562
  %v4564 = vpop.f32.mrb[0].mxu0
  %4565 = vdwg.mxu0
  %v4566 = vmul.f32 %v4519, 2.0
  %v4567 = vmul.f32 %v4522, 2.0
  %v4568 = vmul.f32 %v4560, 2.0
  %v4569 = vmul.f32 %v4563, 2.0
  %v4570 = vsub.f32 %v4566, %v4394
  %v4571 = vsub.f32 %v4567, %v4395
  %v4572 = vsub.f32 %v4568, %v4396
  %v4573 = vsub.f32 %v4569, %v4397
  %4578 = vrot.lane.b32.xlu0 %v4435, 32
  %v4579 = vpop.permute.xlu0 %4578
  %4580 = vrot.lane.b32.xlu0 %v4438, 32
  %v4581 = vpop.permute.xlu0 %4580
  %4582 = vrot.lane.b32.xlu0 %v4476, 32
  %v4583 = vpop.permute.xlu0 %4582
  %4584 = vrot.lane.b32.xlu0 %v4479, 32
  %v4585 = vpop.permute.xlu0 %4584
  %4594 = vrot.lane.b32.xlu0 %v4570, 64
  %v4595 = vpop.permute.xlu0 %4594
  %4596 = vrot.lane.b32.xlu0 %v4571, 64
  %v4597 = vpop.permute.xlu0 %4596
  %4598 = vrot.lane.b32.xlu0 %v4572, 64
  %v4599 = vpop.permute.xlu0 %4598
  %4600 = vrot.lane.b32.xlu0 %v4573, 64
  %v4601 = vpop.permute.xlu0 %4600
  %v4606 = vsel %vm342, %v4394, %v4579
  %v4607 = vsel %vm342, %v4395, %v4581
  %v4608 = vsel %vm342, %v4396, %v4583
  %v4609 = vsel %vm342, %v4397, %v4585
  %v4610 = vsel %vm347, %v4606, %v4595
  %v4611 = vsel %vm347, %v4607, %v4597
  %v4612 = vsel %vm347, %v4608, %v4599
  %v4613 = vsel %vm347, %v4609, %v4601
  %v4614 = vpack.c.bf16 %v4611, %v4610
  %v4615 = vpack.c.bf16 %v4613, %v4612
  %v4617 = vsel %vm390, %v4614, 0
  %v4620 = vsel %vm390, %v4615, 0
  %4622 = vmatprep.subr.bf16.mxu0 0
  %4623 = vmatpush1.bf16.msra.mxu0 %v1799
  %4624 = vmatprep.subr.bf16.mxu0 0
  %4625 = vmatpush1.bf16.msra.mxu0 %v1800
  %4626 = vmatprep.subr.bf16.mxu0 0
  %4627 = vmatpush1.bf16.msra.mxu0 %v1801
  %4628 = vmatprep.subr.bf16.mxu0 0
  %4629 = vmatpush1.bf16.msra.mxu0 %v1802
  %4630 = vmatprep.subr.bf16.mxu0 0
  %4631 = vmatpush1.bf16.msra.mxu0 %v1803
  %4632 = vmatprep.subr.bf16.mxu0 0
  %4633 = vmatpush1.bf16.msra.mxu0 %v1804
  %4634 = vmatprep.subr.bf16.mxu0 0
  %4635 = vmatpush1.bf16.msra.mxu0 0
  %4636 = vmatprep.subr.bf16.mxu0 0
  %4637 = vmatpush1.bf16.msra.mxu0 0
  %4638 = vmatprep.subr.bf16.mxu0 0
  %4639 = vmatpush1.bf16.msra.mxu0 0
  %4640 = vmatprep.subr.bf16.mxu0 0
  %4641 = vmatpush1.bf16.msra.mxu0 0
  %4642 = vmatprep.subr.bf16.mxu0 0
  %4643 = vmatpush1.bf16.msra.mxu0 0
  %4644 = vmatprep.subr.bf16.mxu0 0
  %4645 = vmatpush1.bf16.msra.mxu0 0
  %4646 = vmatprep.subr.bf16.mxu0 0
  %4647 = vmatpush1.bf16.msra.mxu0 0
  %4648 = vmatprep.subr.bf16.mxu0 0
  %4649 = vmatpush1.bf16.msra.mxu0 0
  %4650 = vmatprep.subr.bf16.mxu0 0
  %4651 = vmatpush1.bf16.msra.mxu0 0
  %4652 = vmatprep.subr.bf16.mxu0 0
  %4653 = vmatpush1.bf16.msra.mxu0 0
  %4654 = vmatprep.mubr.bf16.mxu0 0
  %4655 = vmatmul.mubr.bf16.gmra.mrb[0].mxu0 %v4617
  %v4656 = vpop.f32.mrb[0].mxu0
  %v4657 = vadd.f32 0.0, %v4656
  %v4658 = vpop.f32.mrb[0].mxu0
  %v4659 = vpop.f32.mrb[0].mxu0
  %v4660 = vadd.f32 0.0, %v4659
  %v4661 = vpop.f32.mrb[0].mxu0
  %4662 = vmatprep.mubr.bf16.mxu0 0
  %4663 = vmatmul.mubr.bf16.gmra.mrb[0].mxu0 %v4620
  %v4664 = vpop.f32.mrb[0].mxu0
  %v4665 = vadd.f32 0.0, %v4664
  %v4666 = vpop.f32.mrb[0].mxu0
  %v4667 = vpop.f32.mrb[0].mxu0
  %v4668 = vadd.f32 0.0, %v4667
  %v4669 = vpop.f32.mrb[0].mxu0
  %4670 = vdwg.mxu0
  %4675 = vrot.lane.b32.xlu0 %v4657, 64
  %v4676 = vpop.permute.xlu0 %4675
  %4677 = vrot.lane.b32.xlu0 %v4660, 64
  %v4678 = vpop.permute.xlu0 %4677
  %4679 = vrot.lane.b32.xlu0 %v4665, 64
  %v4680 = vpop.permute.xlu0 %4679
  %4681 = vrot.lane.b32.xlu0 %v4668, 64
  %v4682 = vpop.permute.xlu0 %4681
  %v4687 = vadd.f32 %v4067, %v4676
  %v4688 = vadd.f32 %v4070, %v4678
  %v4689 = vadd.f32 %v4075, %v4680
  %v4690 = vadd.f32 %v4078, %v4682
  %v4691 = vadd.f32 %v4687, %v1523
  %v4692 = vadd.f32 %v4688, %v1523
  %v4693 = vadd.f32 %v4689, %v1523
  %v4694 = vadd.f32 %v4690, %v1523
  %v4695 = vtanh.pop %v4691
  %v4696 = vtanh.pop %v4692
  %v4697 = vtanh.pop %v4693
  %v4698 = vtanh.pop %v4694
  %v4699 = vmul.f32 %v4387, %v3332
  %v4700 = vmul.f32 %v4389, %v3333
  %v4701 = vmul.f32 %v4391, %v3334
  %v4702 = vmul.f32 %v4393, %v3335
  %v4703 = vsub.f32 1.0, %v4387
  %v4704 = vsub.f32 1.0, %v4389
  %v4705 = vsub.f32 1.0, %v4391
  %v4706 = vsub.f32 1.0, %v4393
  %4711 = vrot.lane.b32.xlu0 %v4695, 96
  %v4712 = vpop.permute.xlu0 %4711
  %4713 = vrot.lane.b32.xlu0 %v4696, 96
  %v4714 = vpop.permute.xlu0 %4713
  %4715 = vrot.lane.b32.xlu0 %v4697, 96
  %v4716 = vpop.permute.xlu0 %4715
  %4717 = vrot.lane.b32.xlu0 %v4698, 96
  %v4718 = vpop.permute.xlu0 %4717
  %v4723 = vmul.f32 %v4703, %v4712
  %v4724 = vmul.f32 %v4704, %v4714
  %v4725 = vmul.f32 %v4705, %v4716
  %v4726 = vmul.f32 %v4706, %v4718
  %v4727 = vadd.f32 %v4699, %v4723
  %v4728 = vadd.f32 %v4700, %v4724
  %v4729 = vadd.f32 %v4701, %v4725
  %v4730 = vadd.f32 %v4702, %v4726
  %4735 = vrot.lane.b32.xlu0 %v4727, 96
  %v4736 = vpop.permute.xlu0 %4735
  %4737 = vrot.lane.b32.xlu0 %v4728, 96
  %v4738 = vpop.permute.xlu0 %4737
  %4739 = vrot.lane.b32.xlu0 %v4729, 96
  %v4740 = vpop.permute.xlu0 %4739
  %4741 = vrot.lane.b32.xlu0 %v4730, 96
  %v4742 = vpop.permute.xlu0 %4741
  %s4747 = scalar_lea.vmem %s9, 64
  %4748 = vst.msk [vmem:[%s4747] sm:$0xff] %vm342, %v4736
  %4749 = vst.msk [vmem:[%s4747 + $0x8] sm:$0xff] %vm342, %v4738
  %4750 = vst.msk [vmem:[%s4747 + $0x10] sm:$0xff] %vm342, %v4740
  %4751 = vst.msk [vmem:[%s4747 + $0x18] sm:$0xff] %vm342, %v4742
  %s4752 = scalar_lea.vmem %s0, 48
  %v4753 = vld [vmem:[%s4752] sm:$0xf]
  %v4754 = vld [vmem:[%s4752 + $0x4] sm:$0xf]
  %v4755 = vld [vmem:[%s4752 + $0x8] sm:$0xf]
  %v4756 = vld [vmem:[%s4752 + $0xc] sm:$0xf]
  %v4757 = vunpack.c.l.bf16 %v4753
  %v4758 = vunpack.c.l.bf16 %v4754
  %v4759 = vunpack.c.l.bf16 %v4755
  %v4760 = vunpack.c.l.bf16 %v4756
  %4761 = vmatprep.subr.bf16.mxu0 0
  %4762 = vmatpush1.bf16.msra.mxu0 %v378
  %4763 = vmatprep.subr.bf16.mxu0 0
  %4764 = vmatpush1.bf16.msra.mxu0 %v379
  %4765 = vmatprep.subr.bf16.mxu0 0
  %4766 = vmatpush1.bf16.msra.mxu0 %v380
  %4767 = vmatprep.subr.bf16.mxu0 0
  %4768 = vmatpush1.bf16.msra.mxu0 %v381
  %4769 = vmatprep.subr.bf16.mxu0 0
  %4770 = vmatpush1.bf16.msra.mxu0 %v382
  %4771 = vmatprep.subr.bf16.mxu0 0
  %4772 = vmatpush1.bf16.msra.mxu0 %v383
  %4773 = vmatprep.subr.bf16.mxu0 0
  %4774 = vmatpush1.bf16.msra.mxu0 0
  %4775 = vmatprep.subr.bf16.mxu0 0
  %4776 = vmatpush1.bf16.msra.mxu0 0
  %4777 = vmatprep.subr.bf16.mxu0 0
  %4778 = vmatpush1.bf16.msra.mxu0 0
  %4779 = vmatprep.subr.bf16.mxu0 0
  %4780 = vmatpush1.bf16.msra.mxu0 0
  %4781 = vmatprep.subr.bf16.mxu0 0
  %4782 = vmatpush1.bf16.msra.mxu0 0
  %4783 = vmatprep.subr.bf16.mxu0 0
  %4784 = vmatpush1.bf16.msra.mxu0 0
  %4785 = vmatprep.subr.bf16.mxu0 0
  %4786 = vmatpush1.bf16.msra.mxu0 0
  %4787 = vmatprep.subr.bf16.mxu0 0
  %4788 = vmatpush1.bf16.msra.mxu0 0
  %4789 = vmatprep.subr.bf16.mxu0 0
  %4790 = vmatpush1.bf16.msra.mxu0 0
  %4791 = vmatprep.subr.bf16.mxu0 0
  %4792 = vmatpush1.bf16.msra.mxu0 0
  %4793 = vmatprep.mubr.bf16.mxu0 0
  %4794 = vmatmul.mubr.bf16.gmra.mrb[0].mxu0 %v4027
  %v4795 = vpop.f32.mrb[0].mxu0
  %v4796 = vadd.f32 0.0, %v4795
  %v4797 = vpop.f32.mrb[0].mxu0
  %v4798 = vpop.f32.mrb[0].mxu0
  %v4799 = vadd.f32 0.0, %v4798
  %v4800 = vpop.f32.mrb[0].mxu0
  %4801 = vmatprep.mubr.bf16.mxu0 0
  %4802 = vmatmul.mubr.bf16.gmra.mrb[0].mxu0 %v4030
  %v4803 = vpop.f32.mrb[0].mxu0
  %v4804 = vadd.f32 0.0, %v4803
  %v4805 = vpop.f32.mrb[0].mxu0
  %v4806 = vpop.f32.mrb[0].mxu0
  %v4807 = vadd.f32 0.0, %v4806
  %v4808 = vpop.f32.mrb[0].mxu0
  %4809 = vdwg.mxu0
  %v4810 = vadd.f32 %v4757, %v4796
  %v4811 = vadd.f32 %v4758, %v4799
  %v4812 = vadd.f32 %v4759, %v4804
  %v4813 = vadd.f32 %v4760, %v4807
  %v4814 = vadd.f32 %v4810, %v454
  %v4815 = vadd.f32 %v4811, %v454
  %v4816 = vadd.f32 %v4812, %v454
  %v4817 = vadd.f32 %v4813, %v454
  %v4818 = vxor.u32 %v4814, 2147483648
  %v4819 = vxor.u32 %v4815, 2147483648
  %v4820 = vxor.u32 %v4816, 2147483648
  %v4821 = vxor.u32 %v4817, 2147483648
  %v4822 = vmul.f32 %v4818, 1.442695
  %v4823 = vpow.pop %v4822
  %v4824 = vmul.f32 %v4819, 1.442695
  %v4825 = vpow.pop %v4824
  %v4826 = vmul.f32 %v4820, 1.442695
  %v4827 = vpow.pop %v4826
  %v4828 = vmul.f32 %v4821, 1.442695
  %v4829 = vpow.pop %v4828
  %v4830 = vadd.f32 %v4823, 1.0
  %v4831 = vadd.f32 %v4825, 1.0
  %v4832 = vadd.f32 %v4827, 1.0
  %v4833 = vadd.f32 %v4829, 1.0
  %v4834 = vrcp.pop %v4830
  %v4835 = vmul.f32 1.0, %v4834
  %v4836 = vrcp.pop %v4831
  %v4837 = vmul.f32 1.0, %v4836
  %v4838 = vrcp.pop %v4832
  %v4839 = vmul.f32 1.0, %v4838
  %v4840 = vrcp.pop %v4833
  %v4841 = vmul.f32 1.0, %v4840
  %v4842 = vmul.f32 %v4835, %v3969
  %v4843 = vmul.f32 %v4837, %v3971
  %v4844 = vmul.f32 %v4839, %v3973
  %v4845 = vmul.f32 %v4841, %v3975
  %v4846 = vpack.c.bf16 %v4843, %v4842
  %v4847 = vpack.c.bf16 %v4845, %v4844
  %4848 = vmatprep.subr.bf16.mxu0 0
  %4849 = vmatpush1.bf16.msra.mxu0 %v4846
  %4850 = vmatprep.subr.bf16.mxu0 0
  %4851 = vmatpush1.bf16.msra.mxu0 0
  %4852 = vmatprep.subr.bf16.mxu0 0
  %4853 = vmatpush1.bf16.msra.mxu0 0
  %4854 = vmatprep.subr.bf16.mxu0 0
  %4855 = vmatpush1.bf16.msra.mxu0 0
  %4856 = vmatprep.subr.bf16.mxu0 0
  %4857 = vmatpush1.bf16.msra.mxu0 0
  %4858 = vmatprep.subr.bf16.mxu0 0
  %4859 = vmatpush1.bf16.msra.mxu0 0
  %4860 = vmatprep.subr.bf16.mxu0 0
  %4861 = vmatpush1.bf16.msra.mxu0 0
  %4862 = vmatprep.subr.bf16.mxu0 0
  %4863 = vmatpush1.bf16.msra.mxu0 0
  %4864 = vmatprep.subr.bf16.mxu0 0
  %4865 = vmatpush1.bf16.msra.mxu0 0
  %4866 = vmatprep.subr.bf16.mxu0 0
  %4867 = vmatpush1.bf16.msra.mxu0 0
  %4868 = vmatprep.subr.bf16.mxu0 0
  %4869 = vmatpush1.bf16.msra.mxu0 0
  %4870 = vmatprep.subr.bf16.mxu0 0
  %4871 = vmatpush1.bf16.msra.mxu0 0
  %4872 = vmatprep.subr.bf16.mxu0 0
  %4873 = vmatpush1.bf16.msra.mxu0 0
  %4874 = vmatprep.subr.bf16.mxu0 0
  %4875 = vmatpush1.bf16.msra.mxu0 0
  %4876 = vmatprep.subr.bf16.mxu0 0
  %4877 = vmatpush1.bf16.msra.mxu0 0
  %4878 = vmatprep.subr.bf16.mxu0 0
  %4879 = vmatpush1.bf16.msra.mxu0 0
  %4880 = vmatprep.mubr.bf16.mxu0 0
  %4881 = vmatmul.mubr.bf16.gmra.mrb[0].mxu0 %v126
  %v4882 = vpop.f32.mrb[0].mxu0
  %v4883 = vadd.f32 0.0, %v4882
  %v4884 = vpop.f32.mrb[0].mxu0
  %v4885 = vpop.f32.mrb[0].mxu0
  %v4886 = vadd.f32 0.0, %v4885
  %v4887 = vpop.f32.mrb[0].mxu0
  %4888 = vdwg.mxu0
  %4889 = vmatprep.subr.bf16.mxu0 0
  %4890 = vmatpush1.bf16.msra.mxu0 %v4847
  %4891 = vmatprep.subr.bf16.mxu0 0
  %4892 = vmatpush1.bf16.msra.mxu0 0
  %4893 = vmatprep.subr.bf16.mxu0 0
  %4894 = vmatpush1.bf16.msra.mxu0 0
  %4895 = vmatprep.subr.bf16.mxu0 0
  %4896 = vmatpush1.bf16.msra.mxu0 0
  %4897 = vmatprep.subr.bf16.mxu0 0
  %4898 = vmatpush1.bf16.msra.mxu0 0
  %4899 = vmatprep.subr.bf16.mxu0 0
  %4900 = vmatpush1.bf16.msra.mxu0 0
  %4901 = vmatprep.subr.bf16.mxu0 0
  %4902 = vmatpush1.bf16.msra.mxu0 0
  %4903 = vmatprep.subr.bf16.mxu0 0
  %4904 = vmatpush1.bf16.msra.mxu0 0
  %4905 = vmatprep.subr.bf16.mxu0 0
  %4906 = vmatpush1.bf16.msra.mxu0 0
  %4907 = vmatprep.subr.bf16.mxu0 0
  %4908 = vmatpush1.bf16.msra.mxu0 0
  %4909 = vmatprep.subr.bf16.mxu0 0
  %4910 = vmatpush1.bf16.msra.mxu0 0
  %4911 = vmatprep.subr.bf16.mxu0 0
  %4912 = vmatpush1.bf16.msra.mxu0 0
  %4913 = vmatprep.subr.bf16.mxu0 0
  %4914 = vmatpush1.bf16.msra.mxu0 0
  %4915 = vmatprep.subr.bf16.mxu0 0
  %4916 = vmatpush1.bf16.msra.mxu0 0
  %4917 = vmatprep.subr.bf16.mxu0 0
  %4918 = vmatpush1.bf16.msra.mxu0 0
  %4919 = vmatprep.subr.bf16.mxu0 0
  %4920 = vmatpush1.bf16.msra.mxu0 0
  %4921 = vmatprep.mubr.bf16.mxu0 0
  %4922 = vmatmul.mubr.bf16.gmra.mrb[0].mxu0 %v175
  %v4923 = vpop.f32.mrb[0].mxu0
  %v4924 = vadd.f32 0.0, %v4923
  %v4925 = vpop.f32.mrb[0].mxu0
  %v4926 = vpop.f32.mrb[0].mxu0
  %v4927 = vadd.f32 0.0, %v4926
  %v4928 = vpop.f32.mrb[0].mxu0
  %4929 = vdwg.mxu0
  %v4930 = vpack.c.bf16 %v4886, %v4883
  %v4931 = vpack.c.bf16 %v4927, %v4924
  %4932 = vmatprep.subr.bf16.mxu0 0
  %4933 = vmatpush1.bf16.msra.mxu0 %v4930
  %4934 = vmatprep.subr.bf16.mxu0 0
  %4935 = vmatpush1.bf16.msra.mxu0 0
  %4936 = vmatprep.subr.bf16.mxu0 0
  %4937 = vmatpush1.bf16.msra.mxu0 0
  %4938 = vmatprep.subr.bf16.mxu0 0
  %4939 = vmatpush1.bf16.msra.mxu0 0
  %4940 = vmatprep.subr.bf16.mxu0 0
  %4941 = vmatpush1.bf16.msra.mxu0 0
  %4942 = vmatprep.subr.bf16.mxu0 0
  %4943 = vmatpush1.bf16.msra.mxu0 0
  %4944 = vmatprep.subr.bf16.mxu0 0
  %4945 = vmatpush1.bf16.msra.mxu0 0
  %4946 = vmatprep.subr.bf16.mxu0 0
  %4947 = vmatpush1.bf16.msra.mxu0 0
  %4948 = vmatprep.subr.bf16.mxu0 0
  %4949 = vmatpush1.bf16.msra.mxu0 0
  %4950 = vmatprep.subr.bf16.mxu0 0
  %4951 = vmatpush1.bf16.msra.mxu0 0
  %4952 = vmatprep.subr.bf16.mxu0 0
  %4953 = vmatpush1.bf16.msra.mxu0 0
  %4954 = vmatprep.subr.bf16.mxu0 0
  %4955 = vmatpush1.bf16.msra.mxu0 0
  %4956 = vmatprep.subr.bf16.mxu0 0
  %4957 = vmatpush1.bf16.msra.mxu0 0
  %4958 = vmatprep.subr.bf16.mxu0 0
  %4959 = vmatpush1.bf16.msra.mxu0 0
  %4960 = vmatprep.subr.bf16.mxu0 0
  %4961 = vmatpush1.bf16.msra.mxu0 0
  %4962 = vmatprep.subr.bf16.mxu0 0
  %4963 = vmatpush1.bf16.msra.mxu0 0
  %4964 = vmatprep.mubr.bf16.mxu0 0
  %4965 = vmatmul.mubr.bf16.gmra.mrb[0].mxu0 %v126
  %v4966 = vpop.f32.mrb[0].mxu0
  %v4967 = vadd.f32 0.0, %v4966
  %v4968 = vpop.f32.mrb[0].mxu0
  %v4969 = vpop.f32.mrb[0].mxu0
  %v4970 = vadd.f32 0.0, %v4969
  %v4971 = vpop.f32.mrb[0].mxu0
  %4972 = vdwg.mxu0
  %4973 = vmatprep.subr.bf16.mxu0 0
  %4974 = vmatpush1.bf16.msra.mxu0 %v4931
  %4975 = vmatprep.subr.bf16.mxu0 0
  %4976 = vmatpush1.bf16.msra.mxu0 0
  %4977 = vmatprep.subr.bf16.mxu0 0
  %4978 = vmatpush1.bf16.msra.mxu0 0
  %4979 = vmatprep.subr.bf16.mxu0 0
  %4980 = vmatpush1.bf16.msra.mxu0 0
  %4981 = vmatprep.subr.bf16.mxu0 0
  %4982 = vmatpush1.bf16.msra.mxu0 0
  %4983 = vmatprep.subr.bf16.mxu0 0
  %4984 = vmatpush1.bf16.msra.mxu0 0
  %4985 = vmatprep.subr.bf16.mxu0 0
  %4986 = vmatpush1.bf16.msra.mxu0 0
  %4987 = vmatprep.subr.bf16.mxu0 0
  %4988 = vmatpush1.bf16.msra.mxu0 0
  %4989 = vmatprep.subr.bf16.mxu0 0
  %4990 = vmatpush1.bf16.msra.mxu0 0
  %4991 = vmatprep.subr.bf16.mxu0 0
  %4992 = vmatpush1.bf16.msra.mxu0 0
  %4993 = vmatprep.subr.bf16.mxu0 0
  %4994 = vmatpush1.bf16.msra.mxu0 0
  %4995 = vmatprep.subr.bf16.mxu0 0
  %4996 = vmatpush1.bf16.msra.mxu0 0
  %4997 = vmatprep.subr.bf16.mxu0 0
  %4998 = vmatpush1.bf16.msra.mxu0 0
  %4999 = vmatprep.subr.bf16.mxu0 0
  %5000 = vmatpush1.bf16.msra.mxu0 0
  %5001 = vmatprep.subr.bf16.mxu0 0
  %5002 = vmatpush1.bf16.msra.mxu0 0
  %5003 = vmatprep.subr.bf16.mxu0 0
  %5004 = vmatpush1.bf16.msra.mxu0 0
  %5005 = vmatprep.mubr.bf16.mxu0 0
  %5006 = vmatmul.mubr.bf16.gmra.mrb[0].mxu0 %v175
  %v5007 = vpop.f32.mrb[0].mxu0
  %v5008 = vadd.f32 0.0, %v5007
  %v5009 = vpop.f32.mrb[0].mxu0
  %v5010 = vpop.f32.mrb[0].mxu0
  %v5011 = vadd.f32 0.0, %v5010
  %v5012 = vpop.f32.mrb[0].mxu0
  %5013 = vdwg.mxu0
  %v5014 = vmul.f32 %v4967, 2.0
  %v5015 = vmul.f32 %v4970, 2.0
  %v5016 = vmul.f32 %v5008, 2.0
  %v5017 = vmul.f32 %v5011, 2.0
  %v5018 = vsub.f32 %v5014, %v4842
  %v5019 = vsub.f32 %v5015, %v4843
  %v5020 = vsub.f32 %v5016, %v4844
  %v5021 = vsub.f32 %v5017, %v4845
  %5026 = vrot.lane.b32.xlu0 %v4883, 32
  %v5027 = vpop.permute.xlu0 %5026
  %5028 = vrot.lane.b32.xlu0 %v4886, 32
  %v5029 = vpop.permute.xlu0 %5028
  %5030 = vrot.lane.b32.xlu0 %v4924, 32
  %v5031 = vpop.permute.xlu0 %5030
  %5032 = vrot.lane.b32.xlu0 %v4927, 32
  %v5033 = vpop.permute.xlu0 %5032
  %5042 = vrot.lane.b32.xlu0 %v5018, 64
  %v5043 = vpop.permute.xlu0 %5042
  %5044 = vrot.lane.b32.xlu0 %v5019, 64
  %v5045 = vpop.permute.xlu0 %5044
  %5046 = vrot.lane.b32.xlu0 %v5020, 64
  %v5047 = vpop.permute.xlu0 %5046
  %5048 = vrot.lane.b32.xlu0 %v5021, 64
  %v5049 = vpop.permute.xlu0 %5048
  %v5054 = vsel %vm342, %v4842, %v5027
  %v5055 = vsel %vm342, %v4843, %v5029
  %v5056 = vsel %vm342, %v4844, %v5031
  %v5057 = vsel %vm342, %v4845, %v5033
  %v5058 = vsel %vm347, %v5054, %v5043
  %v5059 = vsel %vm347, %v5055, %v5045
  %v5060 = vsel %vm347, %v5056, %v5047
  %v5061 = vsel %vm347, %v5057, %v5049
  %v5062 = vpack.c.bf16 %v5059, %v5058
  %v5063 = vpack.c.bf16 %v5061, %v5060
  %v5065 = vsel %vm390, %v5062, 0
  %v5068 = vsel %vm390, %v5063, 0
  %5070 = vmatprep.subr.bf16.mxu0 0
  %5071 = vmatpush1.bf16.msra.mxu0 %v730
  %5072 = vmatprep.subr.bf16.mxu0 0
  %5073 = vmatpush1.bf16.msra.mxu0 %v731
  %5074 = vmatprep.subr.bf16.mxu0 0
  %5075 = vmatpush1.bf16.msra.mxu0 %v732
  %5076 = vmatprep.subr.bf16.mxu0 0
  %5077 = vmatpush1.bf16.msra.mxu0 %v733
  %5078 = vmatprep.subr.bf16.mxu0 0
  %5079 = vmatpush1.bf16.msra.mxu0 %v734
  %5080 = vmatprep.subr.bf16.mxu0 0
  %5081 = vmatpush1.bf16.msra.mxu0 %v735
  %5082 = vmatprep.subr.bf16.mxu0 0
  %5083 = vmatpush1.bf16.msra.mxu0 0
  %5084 = vmatprep.subr.bf16.mxu0 0
  %5085 = vmatpush1.bf16.msra.mxu0 0
  %5086 = vmatprep.subr.bf16.mxu0 0
  %5087 = vmatpush1.bf16.msra.mxu0 0
  %5088 = vmatprep.subr.bf16.mxu0 0
  %5089 = vmatpush1.bf16.msra.mxu0 0
  %5090 = vmatprep.subr.bf16.mxu0 0
  %5091 = vmatpush1.bf16.msra.mxu0 0
  %5092 = vmatprep.subr.bf16.mxu0 0
  %5093 = vmatpush1.bf16.msra.mxu0 0
  %5094 = vmatprep.subr.bf16.mxu0 0
  %5095 = vmatpush1.bf16.msra.mxu0 0
  %5096 = vmatprep.subr.bf16.mxu0 0
  %5097 = vmatpush1.bf16.msra.mxu0 0
  %5098 = vmatprep.subr.bf16.mxu0 0
  %5099 = vmatpush1.bf16.msra.mxu0 0
  %5100 = vmatprep.subr.bf16.mxu0 0
  %5101 = vmatpush1.bf16.msra.mxu0 0
  %5102 = vmatprep.mubr.bf16.mxu0 0
  %5103 = vmatmul.mubr.bf16.gmra.mrb[0].mxu0 %v5065
  %v5104 = vpop.f32.mrb[0].mxu0
  %v5105 = vadd.f32 0.0, %v5104
  %v5106 = vpop.f32.mrb[0].mxu0
  %v5107 = vpop.f32.mrb[0].mxu0
  %v5108 = vadd.f32 0.0, %v5107
  %v5109 = vpop.f32.mrb[0].mxu0
  %5110 = vmatprep.mubr.bf16.mxu0 0
  %5111 = vmatmul.mubr.bf16.gmra.mrb[0].mxu0 %v5068
  %v5112 = vpop.f32.mrb[0].mxu0
  %v5113 = vadd.f32 0.0, %v5112
  %v5114 = vpop.f32.mrb[0].mxu0
  %v5115 = vpop.f32.mrb[0].mxu0
  %v5116 = vadd.f32 0.0, %v5115
  %v5117 = vpop.f32.mrb[0].mxu0
  %5118 = vdwg.mxu0
  %5123 = vrot.lane.b32.xlu0 %v5105, 64
  %v5124 = vpop.permute.xlu0 %5123
  %5125 = vrot.lane.b32.xlu0 %v5108, 64
  %v5126 = vpop.permute.xlu0 %5125
  %5127 = vrot.lane.b32.xlu0 %v5113, 64
  %v5128 = vpop.permute.xlu0 %5127
  %5129 = vrot.lane.b32.xlu0 %v5116, 64
  %v5130 = vpop.permute.xlu0 %5129
  %v5135 = vadd.f32 %v4757, %v5124
  %v5136 = vadd.f32 %v4758, %v5126
  %v5137 = vadd.f32 %v4759, %v5128
  %v5138 = vadd.f32 %v4760, %v5130
  %v5139 = vadd.f32 %v5135, %v454
  %v5140 = vadd.f32 %v5136, %v454
  %v5141 = vadd.f32 %v5137, %v454
  %v5142 = vadd.f32 %v5138, %v454
  %v5143 = vtanh.pop %v5139
  %v5144 = vtanh.pop %v5140
  %v5145 = vtanh.pop %v5141
  %v5146 = vtanh.pop %v5142
  %v5147 = vmul.f32 %v4835, %v3780
  %v5148 = vmul.f32 %v4837, %v3781
  %v5149 = vmul.f32 %v4839, %v3782
  %v5150 = vmul.f32 %v4841, %v3783
  %v5151 = vsub.f32 1.0, %v4835
  %v5152 = vsub.f32 1.0, %v4837
  %v5153 = vsub.f32 1.0, %v4839
  %v5154 = vsub.f32 1.0, %v4841
  %5159 = vrot.lane.b32.xlu0 %v5143, 96
  %v5160 = vpop.permute.xlu0 %5159
  %5161 = vrot.lane.b32.xlu0 %v5144, 96
  %v5162 = vpop.permute.xlu0 %5161
  %5163 = vrot.lane.b32.xlu0 %v5145, 96
  %v5164 = vpop.permute.xlu0 %5163
  %5165 = vrot.lane.b32.xlu0 %v5146, 96
  %v5166 = vpop.permute.xlu0 %5165
  %v5171 = vmul.f32 %v5151, %v5160
  %v5172 = vmul.f32 %v5152, %v5162
  %v5173 = vmul.f32 %v5153, %v5164
  %v5174 = vmul.f32 %v5154, %v5166
  %v5175 = vadd.f32 %v5147, %v5171
  %v5176 = vadd.f32 %v5148, %v5172
  %v5177 = vadd.f32 %v5149, %v5173
  %v5178 = vadd.f32 %v5150, %v5174
  %v5179 = vpack.c.bf16 %v5176, %v5175
  %v5180 = vpack.c.bf16 %v5178, %v5177
  %5182 = vrot.lane.b32.xlu0 %v5179, 96
  %v5183 = vpop.permute.xlu0 %5182
  %5185 = vmatprep.subr.bf16.mxu0 0
  %5186 = vmatpush1.bf16.msra.mxu0 %v5183
  %5187 = vmatprep.subr.bf16.mxu0 0
  %5188 = vmatpush1.bf16.msra.mxu0 0
  %5189 = vmatprep.subr.bf16.mxu0 0
  %5190 = vmatpush1.bf16.msra.mxu0 0
  %5191 = vmatprep.subr.bf16.mxu0 0
  %5192 = vmatpush1.bf16.msra.mxu0 0
  %5193 = vmatprep.subr.bf16.mxu0 0
  %5194 = vmatpush1.bf16.msra.mxu0 0
  %5195 = vmatprep.subr.bf16.mxu0 0
  %5196 = vmatpush1.bf16.msra.mxu0 0
  %5197 = vmatprep.subr.bf16.mxu0 0
  %5198 = vmatpush1.bf16.msra.mxu0 0
  %5199 = vmatprep.subr.bf16.mxu0 0
  %5200 = vmatpush1.bf16.msra.mxu0 0
  %5201 = vmatprep.subr.bf16.mxu0 0
  %5202 = vmatpush1.bf16.msra.mxu0 0
  %5203 = vmatprep.subr.bf16.mxu0 0
  %5204 = vmatpush1.bf16.msra.mxu0 0
  %5205 = vmatprep.subr.bf16.mxu0 0
  %5206 = vmatpush1.bf16.msra.mxu0 0
  %5207 = vmatprep.subr.bf16.mxu0 0
  %5208 = vmatpush1.bf16.msra.mxu0 0
  %5209 = vmatprep.subr.bf16.mxu0 0
  %5210 = vmatpush1.bf16.msra.mxu0 0
  %5211 = vmatprep.subr.bf16.mxu0 0
  %5212 = vmatpush1.bf16.msra.mxu0 0
  %5213 = vmatprep.subr.bf16.mxu0 0
  %5214 = vmatpush1.bf16.msra.mxu0 0
  %5215 = vmatprep.subr.bf16.mxu0 0
  %5216 = vmatpush1.bf16.msra.mxu0 0
  %5217 = vmatprep.mubr.bf16.mxu0 0
  %5218 = vmatmul.mubr.bf16.gmra.mrb[0].mxu0 %v126
  %v5219 = vpop.f32.mrb[0].mxu0
  %v5220 = vadd.f32 0.0, %v5219
  %v5221 = vpop.f32.mrb[0].mxu0
  %v5222 = vpop.f32.mrb[0].mxu0
  %v5223 = vadd.f32 0.0, %v5222
  %v5224 = vpop.f32.mrb[0].mxu0
  %5225 = vdwg.mxu0
  %5227 = vrot.lane.b32.xlu0 %v5180, 96
  %v5228 = vpop.permute.xlu0 %5227
  %5230 = vmatprep.subr.bf16.mxu0 0
  %5231 = vmatpush1.bf16.msra.mxu0 %v5228
  %5232 = vmatprep.subr.bf16.mxu0 0
  %5233 = vmatpush1.bf16.msra.mxu0 0
  %5234 = vmatprep.subr.bf16.mxu0 0
  %5235 = vmatpush1.bf16.msra.mxu0 0
  %5236 = vmatprep.subr.bf16.mxu0 0
  %5237 = vmatpush1.bf16.msra.mxu0 0
  %5238 = vmatprep.subr.bf16.mxu0 0
  %5239 = vmatpush1.bf16.msra.mxu0 0
  %5240 = vmatprep.subr.bf16.mxu0 0
  %5241 = vmatpush1.bf16.msra.mxu0 0
  %5242 = vmatprep.subr.bf16.mxu0 0
  %5243 = vmatpush1.bf16.msra.mxu0 0
  %5244 = vmatprep.subr.bf16.mxu0 0
  %5245 = vmatpush1.bf16.msra.mxu0 0
  %5246 = vmatprep.subr.bf16.mxu0 0
  %5247 = vmatpush1.bf16.msra.mxu0 0
  %5248 = vmatprep.subr.bf16.mxu0 0
  %5249 = vmatpush1.bf16.msra.mxu0 0
  %5250 = vmatprep.subr.bf16.mxu0 0
  %5251 = vmatpush1.bf16.msra.mxu0 0
  %5252 = vmatprep.subr.bf16.mxu0 0
  %5253 = vmatpush1.bf16.msra.mxu0 0
  %5254 = vmatprep.subr.bf16.mxu0 0
  %5255 = vmatpush1.bf16.msra.mxu0 0
  %5256 = vmatprep.subr.bf16.mxu0 0
  %5257 = vmatpush1.bf16.msra.mxu0 0
  %5258 = vmatprep.subr.bf16.mxu0 0
  %5259 = vmatpush1.bf16.msra.mxu0 0
  %5260 = vmatprep.subr.bf16.mxu0 0
  %5261 = vmatpush1.bf16.msra.mxu0 0
  %5262 = vmatprep.mubr.bf16.mxu0 0
  %5263 = vmatmul.mubr.bf16.gmra.mrb[0].mxu0 %v175
  %v5264 = vpop.f32.mrb[0].mxu0
  %v5265 = vadd.f32 0.0, %v5264
  %v5266 = vpop.f32.mrb[0].mxu0
  %v5267 = vpop.f32.mrb[0].mxu0
  %v5268 = vadd.f32 0.0, %v5267
  %v5269 = vpop.f32.mrb[0].mxu0
  %5270 = vdwg.mxu0
  %v5271 = vpack.c.bf16 %v5223, %v5220
  %v5272 = vpack.c.bf16 %v5268, %v5265
  %5273 = vmatprep.subr.bf16.mxu0 0
  %5274 = vmatpush1.bf16.msra.mxu0 %v5271
  %5275 = vmatprep.subr.bf16.mxu0 0
  %5276 = vmatpush1.bf16.msra.mxu0 0
  %5277 = vmatprep.subr.bf16.mxu0 0
  %5278 = vmatpush1.bf16.msra.mxu0 0
  %5279 = vmatprep.subr.bf16.mxu0 0
  %5280 = vmatpush1.bf16.msra.mxu0 0
  %5281 = vmatprep.subr.bf16.mxu0 0
  %5282 = vmatpush1.bf16.msra.mxu0 0
  %5283 = vmatprep.subr.bf16.mxu0 0
  %5284 = vmatpush1.bf16.msra.mxu0 0
  %5285 = vmatprep.subr.bf16.mxu0 0
  %5286 = vmatpush1.bf16.msra.mxu0 0
  %5287 = vmatprep.subr.bf16.mxu0 0
  %5288 = vmatpush1.bf16.msra.mxu0 0
  %5289 = vmatprep.subr.bf16.mxu0 0
  %5290 = vmatpush1.bf16.msra.mxu0 0
  %5291 = vmatprep.subr.bf16.mxu0 0
  %5292 = vmatpush1.bf16.msra.mxu0 0
  %5293 = vmatprep.subr.bf16.mxu0 0
  %5294 = vmatpush1.bf16.msra.mxu0 0
  %5295 = vmatprep.subr.bf16.mxu0 0
  %5296 = vmatpush1.bf16.msra.mxu0 0
  %5297 = vmatprep.subr.bf16.mxu0 0
  %5298 = vmatpush1.bf16.msra.mxu0 0
  %5299 = vmatprep.subr.bf16.mxu0 0
  %5300 = vmatpush1.bf16.msra.mxu0 0
  %5301 = vmatprep.subr.bf16.mxu0 0
  %5302 = vmatpush1.bf16.msra.mxu0 0
  %5303 = vmatprep.subr.bf16.mxu0 0
  %5304 = vmatpush1.bf16.msra.mxu0 0
  %5305 = vmatprep.mubr.bf16.mxu0 0
  %5306 = vmatmul.mubr.bf16.gmra.mrb[0].mxu0 %v126
  %v5307 = vpop.f32.mrb[0].mxu0
  %v5308 = vadd.f32 0.0, %v5307
  %v5309 = vpop.f32.mrb[0].mxu0
  %v5310 = vpop.f32.mrb[0].mxu0
  %v5311 = vadd.f32 0.0, %v5310
  %v5312 = vpop.f32.mrb[0].mxu0
  %5313 = vdwg.mxu0
  %5314 = vmatprep.subr.bf16.mxu0 0
  %5315 = vmatpush1.bf16.msra.mxu0 %v5272
  %5316 = vmatprep.subr.bf16.mxu0 0
  %5317 = vmatpush1.bf16.msra.mxu0 0
  %5318 = vmatprep.subr.bf16.mxu0 0
  %5319 = vmatpush1.bf16.msra.mxu0 0
  %5320 = vmatprep.subr.bf16.mxu0 0
  %5321 = vmatpush1.bf16.msra.mxu0 0
  %5322 = vmatprep.subr.bf16.mxu0 0
  %5323 = vmatpush1.bf16.msra.mxu0 0
  %5324 = vmatprep.subr.bf16.mxu0 0
  %5325 = vmatpush1.bf16.msra.mxu0 0
  %5326 = vmatprep.subr.bf16.mxu0 0
  %5327 = vmatpush1.bf16.msra.mxu0 0
  %5328 = vmatprep.subr.bf16.mxu0 0
  %5329 = vmatpush1.bf16.msra.mxu0 0
  %5330 = vmatprep.subr.bf16.mxu0 0
  %5331 = vmatpush1.bf16.msra.mxu0 0
  %5332 = vmatprep.subr.bf16.mxu0 0
  %5333 = vmatpush1.bf16.msra.mxu0 0
  %5334 = vmatprep.subr.bf16.mxu0 0
  %5335 = vmatpush1.bf16.msra.mxu0 0
  %5336 = vmatprep.subr.bf16.mxu0 0
  %5337 = vmatpush1.bf16.msra.mxu0 0
  %5338 = vmatprep.subr.bf16.mxu0 0
  %5339 = vmatpush1.bf16.msra.mxu0 0
  %5340 = vmatprep.subr.bf16.mxu0 0
  %5341 = vmatpush1.bf16.msra.mxu0 0
  %5342 = vmatprep.subr.bf16.mxu0 0
  %5343 = vmatpush1.bf16.msra.mxu0 0
  %5344 = vmatprep.subr.bf16.mxu0 0
  %5345 = vmatpush1.bf16.msra.mxu0 0
  %5346 = vmatprep.mubr.bf16.mxu0 0
  %5347 = vmatmul.mubr.bf16.gmra.mrb[0].mxu0 %v175
  %v5348 = vpop.f32.mrb[0].mxu0
  %v5349 = vadd.f32 0.0, %v5348
  %v5350 = vpop.f32.mrb[0].mxu0
  %v5351 = vpop.f32.mrb[0].mxu0
  %v5352 = vadd.f32 0.0, %v5351
  %v5353 = vpop.f32.mrb[0].mxu0
  %5354 = vdwg.mxu0
  %v5355 = vmul.f32 %v5308, 2.0
  %v5356 = vmul.f32 %v5311, 2.0
  %v5357 = vmul.f32 %v5349, 2.0
  %v5358 = vmul.f32 %v5352, 2.0
  %5363 = vrot.lane.b32.xlu0 %v5175, 96
  %v5364 = vpop.permute.xlu0 %5363
  %5365 = vrot.lane.b32.xlu0 %v5176, 96
  %v5366 = vpop.permute.xlu0 %5365
  %5367 = vrot.lane.b32.xlu0 %v5177, 96
  %v5368 = vpop.permute.xlu0 %5367
  %5369 = vrot.lane.b32.xlu0 %v5178, 96
  %v5370 = vpop.permute.xlu0 %5369
  %v5375 = vsub.f32 %v5355, %v5364
  %v5376 = vsub.f32 %v5356, %v5366
  %v5377 = vsub.f32 %v5357, %v5368
  %v5378 = vsub.f32 %v5358, %v5370
  %5383 = vrot.lane.b32.xlu0 %v5220, 32
  %v5384 = vpop.permute.xlu0 %5383
  %5385 = vrot.lane.b32.xlu0 %v5223, 32
  %v5386 = vpop.permute.xlu0 %5385
  %5387 = vrot.lane.b32.xlu0 %v5265, 32
  %v5388 = vpop.permute.xlu0 %5387
  %5389 = vrot.lane.b32.xlu0 %v5268, 32
  %v5390 = vpop.permute.xlu0 %5389
  %5399 = vrot.lane.b32.xlu0 %v5375, 64
  %v5400 = vpop.permute.xlu0 %5399
  %5401 = vrot.lane.b32.xlu0 %v5376, 64
  %v5402 = vpop.permute.xlu0 %5401
  %5403 = vrot.lane.b32.xlu0 %v5377, 64
  %v5404 = vpop.permute.xlu0 %5403
  %5405 = vrot.lane.b32.xlu0 %v5378, 64
  %v5406 = vpop.permute.xlu0 %5405
  %v5411 = vsel %vm342, %v5364, %v5384
  %v5412 = vsel %vm342, %v5366, %v5386
  %v5413 = vsel %vm342, %v5368, %v5388
  %v5414 = vsel %vm342, %v5370, %v5390
  %v5415 = vsel %vm347, %v5411, %v5400
  %v5416 = vsel %vm347, %v5412, %v5402
  %v5417 = vsel %vm347, %v5413, %v5404
  %v5418 = vsel %vm347, %v5414, %v5406
  %v5419 = vpack.c.bf16 %v5416, %v5415
  %v5420 = vpack.c.bf16 %v5418, %v5417
  %v5422 = vsel %vm390, %v5419, 0
  %v5425 = vsel %vm390, %v5420, 0
  %5427 = vmatprep.subr.bf16.mxu0 0
  %5428 = vmatpush1.bf16.msra.mxu0 %v1139
  %5429 = vmatprep.subr.bf16.mxu0 0
  %5430 = vmatpush1.bf16.msra.mxu0 %v1140
  %5431 = vmatprep.subr.bf16.mxu0 0
  %5432 = vmatpush1.bf16.msra.mxu0 %v1141
  %5433 = vmatprep.subr.bf16.mxu0 0
  %5434 = vmatpush1.bf16.msra.mxu0 %v1142
  %5435 = vmatprep.subr.bf16.mxu0 0
  %5436 = vmatpush1.bf16.msra.mxu0 %v1143
  %5437 = vmatprep.subr.bf16.mxu0 0
  %5438 = vmatpush1.bf16.msra.mxu0 %v1144
  %5439 = vmatprep.subr.bf16.mxu0 0
  %5440 = vmatpush1.bf16.msra.mxu0 0
  %5441 = vmatprep.subr.bf16.mxu0 0
  %5442 = vmatpush1.bf16.msra.mxu0 0
  %5443 = vmatprep.subr.bf16.mxu0 0
  %5444 = vmatpush1.bf16.msra.mxu0 0
  %5445 = vmatprep.subr.bf16.mxu0 0
  %5446 = vmatpush1.bf16.msra.mxu0 0
  %5447 = vmatprep.subr.bf16.mxu0 0
  %5448 = vmatpush1.bf16.msra.mxu0 0
  %5449 = vmatprep.subr.bf16.mxu0 0
  %5450 = vmatpush1.bf16.msra.mxu0 0
  %5451 = vmatprep.subr.bf16.mxu0 0
  %5452 = vmatpush1.bf16.msra.mxu0 0
  %5453 = vmatprep.subr.bf16.mxu0 0
  %5454 = vmatpush1.bf16.msra.mxu0 0
  %5455 = vmatprep.subr.bf16.mxu0 0
  %5456 = vmatpush1.bf16.msra.mxu0 0
  %5457 = vmatprep.subr.bf16.mxu0 0
  %5458 = vmatpush1.bf16.msra.mxu0 0
  %5459 = vmatprep.mubr.bf16.mxu0 0
  %5460 = vmatmul.mubr.bf16.gmra.mrb[0].mxu0 %v5422
  %v5461 = vpop.f32.mrb[0].mxu0
  %v5462 = vadd.f32 0.0, %v5461
  %v5463 = vpop.f32.mrb[0].mxu0
  %v5464 = vpop.f32.mrb[0].mxu0
  %v5465 = vadd.f32 0.0, %v5464
  %v5466 = vpop.f32.mrb[0].mxu0
  %5467 = vmatprep.mubr.bf16.mxu0 0
  %5468 = vmatmul.mubr.bf16.gmra.mrb[0].mxu0 %v5425
  %v5469 = vpop.f32.mrb[0].mxu0
  %v5470 = vadd.f32 0.0, %v5469
  %v5471 = vpop.f32.mrb[0].mxu0
  %v5472 = vpop.f32.mrb[0].mxu0
  %v5473 = vadd.f32 0.0, %v5472
  %v5474 = vpop.f32.mrb[0].mxu0
  %5475 = vdwg.mxu0
  %v5476 = vpack.c.bf16 %v4728, %v4727
  %v5477 = vpack.c.bf16 %v4730, %v4729
  %5479 = vrot.lane.b32.xlu0 %v5476, 96
  %v5480 = vpop.permute.xlu0 %5479
  %5482 = vmatprep.subr.bf16.mxu0 0
  %5483 = vmatpush1.bf16.msra.mxu0 %v5480
  %5484 = vmatprep.subr.bf16.mxu0 0
  %5485 = vmatpush1.bf16.msra.mxu0 0
  %5486 = vmatprep.subr.bf16.mxu0 0
  %5487 = vmatpush1.bf16.msra.mxu0 0
  %5488 = vmatprep.subr.bf16.mxu0 0
  %5489 = vmatpush1.bf16.msra.mxu0 0
  %5490 = vmatprep.subr.bf16.mxu0 0
  %5491 = vmatpush1.bf16.msra.mxu0 0
  %5492 = vmatprep.subr.bf16.mxu0 0
  %5493 = vmatpush1.bf16.msra.mxu0 0
  %5494 = vmatprep.subr.bf16.mxu0 0
  %5495 = vmatpush1.bf16.msra.mxu0 0
  %5496 = vmatprep.subr.bf16.mxu0 0
  %5497 = vmatpush1.bf16.msra.mxu0 0
  %5498 = vmatprep.subr.bf16.mxu0 0
  %5499 = vmatpush1.bf16.msra.mxu0 0
  %5500 = vmatprep.subr.bf16.mxu0 0
  %5501 = vmatpush1.bf16.msra.mxu0 0
  %5502 = vmatprep.subr.bf16.mxu0 0
  %5503 = vmatpush1.bf16.msra.mxu0 0
  %5504 = vmatprep.subr.bf16.mxu0 0
  %5505 = vmatpush1.bf16.msra.mxu0 0
  %5506 = vmatprep.subr.bf16.mxu0 0
  %5507 = vmatpush1.bf16.msra.mxu0 0
  %5508 = vmatprep.subr.bf16.mxu0 0
  %5509 = vmatpush1.bf16.msra.mxu0 0
  %5510 = vmatprep.subr.bf16.mxu0 0
  %5511 = vmatpush1.bf16.msra.mxu0 0
  %5512 = vmatprep.subr.bf16.mxu0 0
  %5513 = vmatpush1.bf16.msra.mxu0 0
  %5514 = vmatprep.mubr.bf16.mxu0 0
  %5515 = vmatmul.mubr.bf16.gmra.mrb[0].mxu0 %v126
  %v5516 = vpop.f32.mrb[0].mxu0
  %v5517 = vadd.f32 0.0, %v5516
  %v5518 = vpop.f32.mrb[0].mxu0
  %v5519 = vpop.f32.mrb[0].mxu0
  %v5520 = vadd.f32 0.0, %v5519
  %v5521 = vpop.f32.mrb[0].mxu0
  %5522 = vdwg.mxu0
  %5524 = vrot.lane.b32.xlu0 %v5477, 96
  %v5525 = vpop.permute.xlu0 %5524
  %5527 = vmatprep.subr.bf16.mxu0 0
  %5528 = vmatpush1.bf16.msra.mxu0 %v5525
  %5529 = vmatprep.subr.bf16.mxu0 0
  %5530 = vmatpush1.bf16.msra.mxu0 0
  %5531 = vmatprep.subr.bf16.mxu0 0
  %5532 = vmatpush1.bf16.msra.mxu0 0
  %5533 = vmatprep.subr.bf16.mxu0 0
  %5534 = vmatpush1.bf16.msra.mxu0 0
  %5535 = vmatprep.subr.bf16.mxu0 0
  %5536 = vmatpush1.bf16.msra.mxu0 0
  %5537 = vmatprep.subr.bf16.mxu0 0
  %5538 = vmatpush1.bf16.msra.mxu0 0
  %5539 = vmatprep.subr.bf16.mxu0 0
  %5540 = vmatpush1.bf16.msra.mxu0 0
  %5541 = vmatprep.subr.bf16.mxu0 0
  %5542 = vmatpush1.bf16.msra.mxu0 0
  %5543 = vmatprep.subr.bf16.mxu0 0
  %5544 = vmatpush1.bf16.msra.mxu0 0
  %5545 = vmatprep.subr.bf16.mxu0 0
  %5546 = vmatpush1.bf16.msra.mxu0 0
  %5547 = vmatprep.subr.bf16.mxu0 0
  %5548 = vmatpush1.bf16.msra.mxu0 0
  %5549 = vmatprep.subr.bf16.mxu0 0
  %5550 = vmatpush1.bf16.msra.mxu0 0
  %5551 = vmatprep.subr.bf16.mxu0 0
  %5552 = vmatpush1.bf16.msra.mxu0 0
  %5553 = vmatprep.subr.bf16.mxu0 0
  %5554 = vmatpush1.bf16.msra.mxu0 0
  %5555 = vmatprep.subr.bf16.mxu0 0
  %5556 = vmatpush1.bf16.msra.mxu0 0
  %5557 = vmatprep.subr.bf16.mxu0 0
  %5558 = vmatpush1.bf16.msra.mxu0 0
  %5559 = vmatprep.mubr.bf16.mxu0 0
  %5560 = vmatmul.mubr.bf16.gmra.mrb[0].mxu0 %v175
  %v5561 = vpop.f32.mrb[0].mxu0
  %v5562 = vadd.f32 0.0, %v5561
  %v5563 = vpop.f32.mrb[0].mxu0
  %v5564 = vpop.f32.mrb[0].mxu0
  %v5565 = vadd.f32 0.0, %v5564
  %v5566 = vpop.f32.mrb[0].mxu0
  %5567 = vdwg.mxu0
  %v5568 = vpack.c.bf16 %v5520, %v5517
  %v5569 = vpack.c.bf16 %v5565, %v5562
  %5570 = vmatprep.subr.bf16.mxu0 0
  %5571 = vmatpush1.bf16.msra.mxu0 %v5568
  %5572 = vmatprep.subr.bf16.mxu0 0
  %5573 = vmatpush1.bf16.msra.mxu0 0
  %5574 = vmatprep.subr.bf16.mxu0 0
  %5575 = vmatpush1.bf16.msra.mxu0 0
  %5576 = vmatprep.subr.bf16.mxu0 0
  %5577 = vmatpush1.bf16.msra.mxu0 0
  %5578 = vmatprep.subr.bf16.mxu0 0
  %5579 = vmatpush1.bf16.msra.mxu0 0
  %5580 = vmatprep.subr.bf16.mxu0 0
  %5581 = vmatpush1.bf16.msra.mxu0 0
  %5582 = vmatprep.subr.bf16.mxu0 0
  %5583 = vmatpush1.bf16.msra.mxu0 0
  %5584 = vmatprep.subr.bf16.mxu0 0
  %5585 = vmatpush1.bf16.msra.mxu0 0
  %5586 = vmatprep.subr.bf16.mxu0 0
  %5587 = vmatpush1.bf16.msra.mxu0 0
  %5588 = vmatprep.subr.bf16.mxu0 0
  %5589 = vmatpush1.bf16.msra.mxu0 0
  %5590 = vmatprep.subr.bf16.mxu0 0
  %5591 = vmatpush1.bf16.msra.mxu0 0
  %5592 = vmatprep.subr.bf16.mxu0 0
  %5593 = vmatpush1.bf16.msra.mxu0 0
  %5594 = vmatprep.subr.bf16.mxu0 0
  %5595 = vmatpush1.bf16.msra.mxu0 0
  %5596 = vmatprep.subr.bf16.mxu0 0
  %5597 = vmatpush1.bf16.msra.mxu0 0
  %5598 = vmatprep.subr.bf16.mxu0 0
  %5599 = vmatpush1.bf16.msra.mxu0 0
  %5600 = vmatprep.subr.bf16.mxu0 0
  %5601 = vmatpush1.bf16.msra.mxu0 0
  %5602 = vmatprep.mubr.bf16.mxu0 0
  %5603 = vmatmul.mubr.bf16.gmra.mrb[0].mxu0 %v126
  %v5604 = vpop.f32.mrb[0].mxu0
  %v5605 = vadd.f32 0.0, %v5604
  %v5606 = vpop.f32.mrb[0].mxu0
  %v5607 = vpop.f32.mrb[0].mxu0
  %v5608 = vadd.f32 0.0, %v5607
  %v5609 = vpop.f32.mrb[0].mxu0
  %5610 = vdwg.mxu0
  %5611 = vmatprep.subr.bf16.mxu0 0
  %5612 = vmatpush1.bf16.msra.mxu0 %v5569
  %5613 = vmatprep.subr.bf16.mxu0 0
  %5614 = vmatpush1.bf16.msra.mxu0 0
  %5615 = vmatprep.subr.bf16.mxu0 0
  %5616 = vmatpush1.bf16.msra.mxu0 0
  %5617 = vmatprep.subr.bf16.mxu0 0
  %5618 = vmatpush1.bf16.msra.mxu0 0
  %5619 = vmatprep.subr.bf16.mxu0 0
  %5620 = vmatpush1.bf16.msra.mxu0 0
  %5621 = vmatprep.subr.bf16.mxu0 0
  %5622 = vmatpush1.bf16.msra.mxu0 0
  %5623 = vmatprep.subr.bf16.mxu0 0
  %5624 = vmatpush1.bf16.msra.mxu0 0
  %5625 = vmatprep.subr.bf16.mxu0 0
  %5626 = vmatpush1.bf16.msra.mxu0 0
  %5627 = vmatprep.subr.bf16.mxu0 0
  %5628 = vmatpush1.bf16.msra.mxu0 0
  %5629 = vmatprep.subr.bf16.mxu0 0
  %5630 = vmatpush1.bf16.msra.mxu0 0
  %5631 = vmatprep.subr.bf16.mxu0 0
  %5632 = vmatpush1.bf16.msra.mxu0 0
  %5633 = vmatprep.subr.bf16.mxu0 0
  %5634 = vmatpush1.bf16.msra.mxu0 0
  %5635 = vmatprep.subr.bf16.mxu0 0
  %5636 = vmatpush1.bf16.msra.mxu0 0
  %5637 = vmatprep.subr.bf16.mxu0 0
  %5638 = vmatpush1.bf16.msra.mxu0 0
  %5639 = vmatprep.subr.bf16.mxu0 0
  %5640 = vmatpush1.bf16.msra.mxu0 0
  %5641 = vmatprep.subr.bf16.mxu0 0
  %5642 = vmatpush1.bf16.msra.mxu0 0
  %5643 = vmatprep.mubr.bf16.mxu0 0
  %5644 = vmatmul.mubr.bf16.gmra.mrb[0].mxu0 %v175
  %v5645 = vpop.f32.mrb[0].mxu0
  %v5646 = vadd.f32 0.0, %v5645
  %v5647 = vpop.f32.mrb[0].mxu0
  %v5648 = vpop.f32.mrb[0].mxu0
  %v5649 = vadd.f32 0.0, %v5648
  %v5650 = vpop.f32.mrb[0].mxu0
  %5651 = vdwg.mxu0
  %v5652 = vmul.f32 %v5605, 2.0
  %v5653 = vmul.f32 %v5608, 2.0
  %v5654 = vmul.f32 %v5646, 2.0
  %v5655 = vmul.f32 %v5649, 2.0
  %v5656 = vsub.f32 %v5652, %v4736
  %v5657 = vsub.f32 %v5653, %v4738
  %v5658 = vsub.f32 %v5654, %v4740
  %v5659 = vsub.f32 %v5655, %v4742
  %5664 = vrot.lane.b32.xlu0 %v5517, 32
  %v5665 = vpop.permute.xlu0 %5664
  %5666 = vrot.lane.b32.xlu0 %v5520, 32
  %v5667 = vpop.permute.xlu0 %5666
  %5668 = vrot.lane.b32.xlu0 %v5562, 32
  %v5669 = vpop.permute.xlu0 %5668
  %5670 = vrot.lane.b32.xlu0 %v5565, 32
  %v5671 = vpop.permute.xlu0 %5670
  %5680 = vrot.lane.b32.xlu0 %v5656, 64
  %v5681 = vpop.permute.xlu0 %5680
  %5682 = vrot.lane.b32.xlu0 %v5657, 64
  %v5683 = vpop.permute.xlu0 %5682
  %5684 = vrot.lane.b32.xlu0 %v5658, 64
  %v5685 = vpop.permute.xlu0 %5684
  %5686 = vrot.lane.b32.xlu0 %v5659, 64
  %v5687 = vpop.permute.xlu0 %5686
  %v5692 = vsel %vm342, %v4736, %v5665
  %v5693 = vsel %vm342, %v4738, %v5667
  %v5694 = vsel %vm342, %v4740, %v5669
  %v5695 = vsel %vm342, %v4742, %v5671
  %v5696 = vsel %vm347, %v5692, %v5681
  %v5697 = vsel %vm347, %v5693, %v5683
  %v5698 = vsel %vm347, %v5694, %v5685
  %v5699 = vsel %vm347, %v5695, %v5687
  %v5700 = vpack.c.bf16 %v5697, %v5696
  %v5701 = vpack.c.bf16 %v5699, %v5698
  %v5703 = vsel %vm390, %v5700, 0
  %v5706 = vsel %vm390, %v5701, 0
  %5708 = vmatprep.subr.bf16.mxu0 0
  %5709 = vmatpush1.bf16.msra.mxu0 %v1448
  %5710 = vmatprep.subr.bf16.mxu0 0
  %5711 = vmatpush1.bf16.msra.mxu0 %v1449
  %5712 = vmatprep.subr.bf16.mxu0 0
  %5713 = vmatpush1.bf16.msra.mxu0 %v1450
  %5714 = vmatprep.subr.bf16.mxu0 0
  %5715 = vmatpush1.bf16.msra.mxu0 %v1451
  %5716 = vmatprep.subr.bf16.mxu0 0
  %5717 = vmatpush1.bf16.msra.mxu0 %v1452
  %5718 = vmatprep.subr.bf16.mxu0 0
  %5719 = vmatpush1.bf16.msra.mxu0 %v1453
  %5720 = vmatprep.subr.bf16.mxu0 0
  %5721 = vmatpush1.bf16.msra.mxu0 0
  %5722 = vmatprep.subr.bf16.mxu0 0
  %5723 = vmatpush1.bf16.msra.mxu0 0
  %5724 = vmatprep.subr.bf16.mxu0 0
  %5725 = vmatpush1.bf16.msra.mxu0 0
  %5726 = vmatprep.subr.bf16.mxu0 0
  %5727 = vmatpush1.bf16.msra.mxu0 0
  %5728 = vmatprep.subr.bf16.mxu0 0
  %5729 = vmatpush1.bf16.msra.mxu0 0
  %5730 = vmatprep.subr.bf16.mxu0 0
  %5731 = vmatpush1.bf16.msra.mxu0 0
  %5732 = vmatprep.subr.bf16.mxu0 0
  %5733 = vmatpush1.bf16.msra.mxu0 0
  %5734 = vmatprep.subr.bf16.mxu0 0
  %5735 = vmatpush1.bf16.msra.mxu0 0
  %5736 = vmatprep.subr.bf16.mxu0 0
  %5737 = vmatpush1.bf16.msra.mxu0 0
  %5738 = vmatprep.subr.bf16.mxu0 0
  %5739 = vmatpush1.bf16.msra.mxu0 0
  %5740 = vmatprep.mubr.bf16.mxu0 0
  %5741 = vmatmul.mubr.bf16.gmra.mrb[0].mxu0 %v5703
  %v5742 = vpop.f32.mrb[0].mxu0
  %v5743 = vadd.f32 0.0, %v5742
  %v5744 = vpop.f32.mrb[0].mxu0
  %v5745 = vpop.f32.mrb[0].mxu0
  %v5746 = vadd.f32 0.0, %v5745
  %v5747 = vpop.f32.mrb[0].mxu0
  %5748 = vmatprep.mubr.bf16.mxu0 0
  %5749 = vmatmul.mubr.bf16.gmra.mrb[0].mxu0 %v5706
  %v5750 = vpop.f32.mrb[0].mxu0
  %v5751 = vadd.f32 0.0, %v5750
  %v5752 = vpop.f32.mrb[0].mxu0
  %v5753 = vpop.f32.mrb[0].mxu0
  %v5754 = vadd.f32 0.0, %v5753
  %v5755 = vpop.f32.mrb[0].mxu0
  %5756 = vdwg.mxu0
  %v5757 = vadd.f32 %v5462, %v5743
  %v5758 = vadd.f32 %v5465, %v5746
  %v5759 = vadd.f32 %v5470, %v5751
  %v5760 = vadd.f32 %v5473, %v5754
  %v5761 = vadd.f32 %v5757, %v1523
  %v5762 = vadd.f32 %v5758, %v1523
  %v5763 = vadd.f32 %v5759, %v1523
  %v5764 = vadd.f32 %v5760, %v1523
  %v5765 = vxor.u32 %v5761, 2147483648
  %v5766 = vxor.u32 %v5762, 2147483648
  %v5767 = vxor.u32 %v5763, 2147483648
  %v5768 = vxor.u32 %v5764, 2147483648
  %v5769 = vmul.f32 %v5765, 1.442695
  %v5770 = vpow.pop %v5769
  %v5771 = vmul.f32 %v5766, 1.442695
  %v5772 = vpow.pop %v5771
  %v5773 = vmul.f32 %v5767, 1.442695
  %v5774 = vpow.pop %v5773
  %v5775 = vmul.f32 %v5768, 1.442695
  %v5776 = vpow.pop %v5775
  %v5777 = vadd.f32 %v5770, 1.0
  %v5778 = vadd.f32 %v5772, 1.0
  %v5779 = vadd.f32 %v5774, 1.0
  %v5780 = vadd.f32 %v5776, 1.0
  %v5781 = vrcp.pop %v5777
  %v5782 = vmul.f32 1.0, %v5781
  %v5783 = vrcp.pop %v5778
  %v5784 = vmul.f32 1.0, %v5783
  %v5785 = vrcp.pop %v5779
  %v5786 = vmul.f32 1.0, %v5785
  %v5787 = vrcp.pop %v5780
  %v5788 = vmul.f32 1.0, %v5787
  %v5789 = vmul.f32 %v5782, %v4736
  %v5790 = vmul.f32 %v5784, %v4738
  %v5791 = vmul.f32 %v5786, %v4740
  %v5792 = vmul.f32 %v5788, %v4742
  %v5793 = vpack.c.bf16 %v5790, %v5789
  %v5794 = vpack.c.bf16 %v5792, %v5791
  %5795 = vmatprep.subr.bf16.mxu0 0
  %5796 = vmatpush1.bf16.msra.mxu0 %v5793
  %5797 = vmatprep.subr.bf16.mxu0 0
  %5798 = vmatpush1.bf16.msra.mxu0 0
  %5799 = vmatprep.subr.bf16.mxu0 0
  %5800 = vmatpush1.bf16.msra.mxu0 0
  %5801 = vmatprep.subr.bf16.mxu0 0
  %5802 = vmatpush1.bf16.msra.mxu0 0
  %5803 = vmatprep.subr.bf16.mxu0 0
  %5804 = vmatpush1.bf16.msra.mxu0 0
  %5805 = vmatprep.subr.bf16.mxu0 0
  %5806 = vmatpush1.bf16.msra.mxu0 0
  %5807 = vmatprep.subr.bf16.mxu0 0
  %5808 = vmatpush1.bf16.msra.mxu0 0
  %5809 = vmatprep.subr.bf16.mxu0 0
  %5810 = vmatpush1.bf16.msra.mxu0 0
  %5811 = vmatprep.subr.bf16.mxu0 0
  %5812 = vmatpush1.bf16.msra.mxu0 0
  %5813 = vmatprep.subr.bf16.mxu0 0
  %5814 = vmatpush1.bf16.msra.mxu0 0
  %5815 = vmatprep.subr.bf16.mxu0 0
  %5816 = vmatpush1.bf16.msra.mxu0 0
  %5817 = vmatprep.subr.bf16.mxu0 0
  %5818 = vmatpush1.bf16.msra.mxu0 0
  %5819 = vmatprep.subr.bf16.mxu0 0
  %5820 = vmatpush1.bf16.msra.mxu0 0
  %5821 = vmatprep.subr.bf16.mxu0 0
  %5822 = vmatpush1.bf16.msra.mxu0 0
  %5823 = vmatprep.subr.bf16.mxu0 0
  %5824 = vmatpush1.bf16.msra.mxu0 0
  %5825 = vmatprep.subr.bf16.mxu0 0
  %5826 = vmatpush1.bf16.msra.mxu0 0
  %5827 = vmatprep.mubr.bf16.mxu0 0
  %5828 = vmatmul.mubr.bf16.gmra.mrb[0].mxu0 %v126
  %v5829 = vpop.f32.mrb[0].mxu0
  %v5830 = vadd.f32 0.0, %v5829
  %v5831 = vpop.f32.mrb[0].mxu0
  %v5832 = vpop.f32.mrb[0].mxu0
  %v5833 = vadd.f32 0.0, %v5832
  %v5834 = vpop.f32.mrb[0].mxu0
  %5835 = vdwg.mxu0
  %5836 = vmatprep.subr.bf16.mxu0 0
  %5837 = vmatpush1.bf16.msra.mxu0 %v5794
  %5838 = vmatprep.subr.bf16.mxu0 0
  %5839 = vmatpush1.bf16.msra.mxu0 0
  %5840 = vmatprep.subr.bf16.mxu0 0
  %5841 = vmatpush1.bf16.msra.mxu0 0
  %5842 = vmatprep.subr.bf16.mxu0 0
  %5843 = vmatpush1.bf16.msra.mxu0 0
  %5844 = vmatprep.subr.bf16.mxu0 0
  %5845 = vmatpush1.bf16.msra.mxu0 0
  %5846 = vmatprep.subr.bf16.mxu0 0
  %5847 = vmatpush1.bf16.msra.mxu0 0
  %5848 = vmatprep.subr.bf16.mxu0 0
  %5849 = vmatpush1.bf16.msra.mxu0 0
  %5850 = vmatprep.subr.bf16.mxu0 0
  %5851 = vmatpush1.bf16.msra.mxu0 0
  %5852 = vmatprep.subr.bf16.mxu0 0
  %5853 = vmatpush1.bf16.msra.mxu0 0
  %5854 = vmatprep.subr.bf16.mxu0 0
  %5855 = vmatpush1.bf16.msra.mxu0 0
  %5856 = vmatprep.subr.bf16.mxu0 0
  %5857 = vmatpush1.bf16.msra.mxu0 0
  %5858 = vmatprep.subr.bf16.mxu0 0
  %5859 = vmatpush1.bf16.msra.mxu0 0
  %5860 = vmatprep.subr.bf16.mxu0 0
  %5861 = vmatpush1.bf16.msra.mxu0 0
  %5862 = vmatprep.subr.bf16.mxu0 0
  %5863 = vmatpush1.bf16.msra.mxu0 0
  %5864 = vmatprep.subr.bf16.mxu0 0
  %5865 = vmatpush1.bf16.msra.mxu0 0
  %5866 = vmatprep.subr.bf16.mxu0 0
  %5867 = vmatpush1.bf16.msra.mxu0 0
  %5868 = vmatprep.mubr.bf16.mxu0 0
  %5869 = vmatmul.mubr.bf16.gmra.mrb[0].mxu0 %v175
  %v5870 = vpop.f32.mrb[0].mxu0
  %v5871 = vadd.f32 0.0, %v5870
  %v5872 = vpop.f32.mrb[0].mxu0
  %v5873 = vpop.f32.mrb[0].mxu0
  %v5874 = vadd.f32 0.0, %v5873
  %v5875 = vpop.f32.mrb[0].mxu0
  %5876 = vdwg.mxu0
  %v5877 = vpack.c.bf16 %v5833, %v5830
  %v5878 = vpack.c.bf16 %v5874, %v5871
  %5879 = vmatprep.subr.bf16.mxu0 0
  %5880 = vmatpush1.bf16.msra.mxu0 %v5877
  %5881 = vmatprep.subr.bf16.mxu0 0
  %5882 = vmatpush1.bf16.msra.mxu0 0
  %5883 = vmatprep.subr.bf16.mxu0 0
  %5884 = vmatpush1.bf16.msra.mxu0 0
  %5885 = vmatprep.subr.bf16.mxu0 0
  %5886 = vmatpush1.bf16.msra.mxu0 0
  %5887 = vmatprep.subr.bf16.mxu0 0
  %5888 = vmatpush1.bf16.msra.mxu0 0
  %5889 = vmatprep.subr.bf16.mxu0 0
  %5890 = vmatpush1.bf16.msra.mxu0 0
  %5891 = vmatprep.subr.bf16.mxu0 0
  %5892 = vmatpush1.bf16.msra.mxu0 0
  %5893 = vmatprep.subr.bf16.mxu0 0
  %5894 = vmatpush1.bf16.msra.mxu0 0
  %5895 = vmatprep.subr.bf16.mxu0 0
  %5896 = vmatpush1.bf16.msra.mxu0 0
  %5897 = vmatprep.subr.bf16.mxu0 0
  %5898 = vmatpush1.bf16.msra.mxu0 0
  %5899 = vmatprep.subr.bf16.mxu0 0
  %5900 = vmatpush1.bf16.msra.mxu0 0
  %5901 = vmatprep.subr.bf16.mxu0 0
  %5902 = vmatpush1.bf16.msra.mxu0 0
  %5903 = vmatprep.subr.bf16.mxu0 0
  %5904 = vmatpush1.bf16.msra.mxu0 0
  %5905 = vmatprep.subr.bf16.mxu0 0
  %5906 = vmatpush1.bf16.msra.mxu0 0
  %5907 = vmatprep.subr.bf16.mxu0 0
  %5908 = vmatpush1.bf16.msra.mxu0 0
  %5909 = vmatprep.subr.bf16.mxu0 0
  %5910 = vmatpush1.bf16.msra.mxu0 0
  %5911 = vmatprep.mubr.bf16.mxu0 0
  %5912 = vmatmul.mubr.bf16.gmra.mrb[0].mxu0 %v126
  %v5913 = vpop.f32.mrb[0].mxu0
  %v5914 = vadd.f32 0.0, %v5913
  %v5915 = vpop.f32.mrb[0].mxu0
  %v5916 = vpop.f32.mrb[0].mxu0
  %v5917 = vadd.f32 0.0, %v5916
  %v5918 = vpop.f32.mrb[0].mxu0
  %5919 = vdwg.mxu0
  %5920 = vmatprep.subr.bf16.mxu0 0
  %5921 = vmatpush1.bf16.msra.mxu0 %v5878
  %5922 = vmatprep.subr.bf16.mxu0 0
  %5923 = vmatpush1.bf16.msra.mxu0 0
  %5924 = vmatprep.subr.bf16.mxu0 0
  %5925 = vmatpush1.bf16.msra.mxu0 0
  %5926 = vmatprep.subr.bf16.mxu0 0
  %5927 = vmatpush1.bf16.msra.mxu0 0
  %5928 = vmatprep.subr.bf16.mxu0 0
  %5929 = vmatpush1.bf16.msra.mxu0 0
  %5930 = vmatprep.subr.bf16.mxu0 0
  %5931 = vmatpush1.bf16.msra.mxu0 0
  %5932 = vmatprep.subr.bf16.mxu0 0
  %5933 = vmatpush1.bf16.msra.mxu0 0
  %5934 = vmatprep.subr.bf16.mxu0 0
  %5935 = vmatpush1.bf16.msra.mxu0 0
  %5936 = vmatprep.subr.bf16.mxu0 0
  %5937 = vmatpush1.bf16.msra.mxu0 0
  %5938 = vmatprep.subr.bf16.mxu0 0
  %5939 = vmatpush1.bf16.msra.mxu0 0
  %5940 = vmatprep.subr.bf16.mxu0 0
  %5941 = vmatpush1.bf16.msra.mxu0 0
  %5942 = vmatprep.subr.bf16.mxu0 0
  %5943 = vmatpush1.bf16.msra.mxu0 0
  %5944 = vmatprep.subr.bf16.mxu0 0
  %5945 = vmatpush1.bf16.msra.mxu0 0
  %5946 = vmatprep.subr.bf16.mxu0 0
  %5947 = vmatpush1.bf16.msra.mxu0 0
  %5948 = vmatprep.subr.bf16.mxu0 0
  %5949 = vmatpush1.bf16.msra.mxu0 0
  %5950 = vmatprep.subr.bf16.mxu0 0
  %5951 = vmatpush1.bf16.msra.mxu0 0
  %5952 = vmatprep.mubr.bf16.mxu0 0
  %5953 = vmatmul.mubr.bf16.gmra.mrb[0].mxu0 %v175
  %v5954 = vpop.f32.mrb[0].mxu0
  %v5955 = vadd.f32 0.0, %v5954
  %v5956 = vpop.f32.mrb[0].mxu0
  %v5957 = vpop.f32.mrb[0].mxu0
  %v5958 = vadd.f32 0.0, %v5957
  %v5959 = vpop.f32.mrb[0].mxu0
  %5960 = vdwg.mxu0
  %v5961 = vmul.f32 %v5914, 2.0
  %v5962 = vmul.f32 %v5917, 2.0
  %v5963 = vmul.f32 %v5955, 2.0
  %v5964 = vmul.f32 %v5958, 2.0
  %v5965 = vsub.f32 %v5961, %v5789
  %v5966 = vsub.f32 %v5962, %v5790
  %v5967 = vsub.f32 %v5963, %v5791
  %v5968 = vsub.f32 %v5964, %v5792
  %5973 = vrot.lane.b32.xlu0 %v5830, 32
  %v5974 = vpop.permute.xlu0 %5973
  %5975 = vrot.lane.b32.xlu0 %v5833, 32
  %v5976 = vpop.permute.xlu0 %5975
  %5977 = vrot.lane.b32.xlu0 %v5871, 32
  %v5978 = vpop.permute.xlu0 %5977
  %5979 = vrot.lane.b32.xlu0 %v5874, 32
  %v5980 = vpop.permute.xlu0 %5979
  %5989 = vrot.lane.b32.xlu0 %v5965, 64
  %v5990 = vpop.permute.xlu0 %5989
  %5991 = vrot.lane.b32.xlu0 %v5966, 64
  %v5992 = vpop.permute.xlu0 %5991
  %5993 = vrot.lane.b32.xlu0 %v5967, 64
  %v5994 = vpop.permute.xlu0 %5993
  %5995 = vrot.lane.b32.xlu0 %v5968, 64
  %v5996 = vpop.permute.xlu0 %5995
  %v6001 = vsel %vm342, %v5789, %v5974
  %v6002 = vsel %vm342, %v5790, %v5976
  %v6003 = vsel %vm342, %v5791, %v5978
  %v6004 = vsel %vm342, %v5792, %v5980
  %v6005 = vsel %vm347, %v6001, %v5990
  %v6006 = vsel %vm347, %v6002, %v5992
  %v6007 = vsel %vm347, %v6003, %v5994
  %v6008 = vsel %vm347, %v6004, %v5996
  %v6009 = vpack.c.bf16 %v6006, %v6005
  %v6010 = vpack.c.bf16 %v6008, %v6007
  %v6012 = vsel %vm390, %v6009, 0
  %v6015 = vsel %vm390, %v6010, 0
  %6017 = vmatprep.subr.bf16.mxu0 0
  %6018 = vmatpush1.bf16.msra.mxu0 %v1799
  %6019 = vmatprep.subr.bf16.mxu0 0
  %6020 = vmatpush1.bf16.msra.mxu0 %v1800
  %6021 = vmatprep.subr.bf16.mxu0 0
  %6022 = vmatpush1.bf16.msra.mxu0 %v1801
  %6023 = vmatprep.subr.bf16.mxu0 0
  %6024 = vmatpush1.bf16.msra.mxu0 %v1802
  %6025 = vmatprep.subr.bf16.mxu0 0
  %6026 = vmatpush1.bf16.msra.mxu0 %v1803
  %6027 = vmatprep.subr.bf16.mxu0 0
  %6028 = vmatpush1.bf16.msra.mxu0 %v1804
  %6029 = vmatprep.subr.bf16.mxu0 0
  %6030 = vmatpush1.bf16.msra.mxu0 0
  %6031 = vmatprep.subr.bf16.mxu0 0
  %6032 = vmatpush1.bf16.msra.mxu0 0
  %6033 = vmatprep.subr.bf16.mxu0 0
  %6034 = vmatpush1.bf16.msra.mxu0 0
  %6035 = vmatprep.subr.bf16.mxu0 0
  %6036 = vmatpush1.bf16.msra.mxu0 0
  %6037 = vmatprep.subr.bf16.mxu0 0
  %6038 = vmatpush1.bf16.msra.mxu0 0
  %6039 = vmatprep.subr.bf16.mxu0 0
  %6040 = vmatpush1.bf16.msra.mxu0 0
  %6041 = vmatprep.subr.bf16.mxu0 0
  %6042 = vmatpush1.bf16.msra.mxu0 0
  %6043 = vmatprep.subr.bf16.mxu0 0
  %6044 = vmatpush1.bf16.msra.mxu0 0
  %6045 = vmatprep.subr.bf16.mxu0 0
  %6046 = vmatpush1.bf16.msra.mxu0 0
  %6047 = vmatprep.subr.bf16.mxu0 0
  %6048 = vmatpush1.bf16.msra.mxu0 0
  %6049 = vmatprep.mubr.bf16.mxu0 0
  %6050 = vmatmul.mubr.bf16.gmra.mrb[0].mxu0 %v6012
  %v6051 = vpop.f32.mrb[0].mxu0
  %v6052 = vadd.f32 0.0, %v6051
  %v6053 = vpop.f32.mrb[0].mxu0
  %v6054 = vpop.f32.mrb[0].mxu0
  %v6055 = vadd.f32 0.0, %v6054
  %v6056 = vpop.f32.mrb[0].mxu0
  %6057 = vmatprep.mubr.bf16.mxu0 0
  %6058 = vmatmul.mubr.bf16.gmra.mrb[0].mxu0 %v6015
  %v6059 = vpop.f32.mrb[0].mxu0
  %v6060 = vadd.f32 0.0, %v6059
  %v6061 = vpop.f32.mrb[0].mxu0
  %v6062 = vpop.f32.mrb[0].mxu0
  %v6063 = vadd.f32 0.0, %v6062
  %v6064 = vpop.f32.mrb[0].mxu0
  %6065 = vdwg.mxu0
  %6070 = vrot.lane.b32.xlu0 %v6052, 64
  %v6071 = vpop.permute.xlu0 %6070
  %6072 = vrot.lane.b32.xlu0 %v6055, 64
  %v6073 = vpop.permute.xlu0 %6072
  %6074 = vrot.lane.b32.xlu0 %v6060, 64
  %v6075 = vpop.permute.xlu0 %6074
  %6076 = vrot.lane.b32.xlu0 %v6063, 64
  %v6077 = vpop.permute.xlu0 %6076
  %v6082 = vadd.f32 %v5462, %v6071
  %v6083 = vadd.f32 %v5465, %v6073
  %v6084 = vadd.f32 %v5470, %v6075
  %v6085 = vadd.f32 %v5473, %v6077
  %v6086 = vadd.f32 %v6082, %v1523
  %v6087 = vadd.f32 %v6083, %v1523
  %v6088 = vadd.f32 %v6084, %v1523
  %v6089 = vadd.f32 %v6085, %v1523
  %v6090 = vtanh.pop %v6086
  %v6091 = vtanh.pop %v6087
  %v6092 = vtanh.pop %v6088
  %v6093 = vtanh.pop %v6089
  %v6094 = vmul.f32 %v5782, %v4727
  %v6095 = vmul.f32 %v5784, %v4728
  %v6096 = vmul.f32 %v5786, %v4729
  %v6097 = vmul.f32 %v5788, %v4730
  %v6098 = vsub.f32 1.0, %v5782
  %v6099 = vsub.f32 1.0, %v5784
  %v6100 = vsub.f32 1.0, %v5786
  %v6101 = vsub.f32 1.0, %v5788
  %6106 = vrot.lane.b32.xlu0 %v6090, 96
  %v6107 = vpop.permute.xlu0 %6106
  %6108 = vrot.lane.b32.xlu0 %v6091, 96
  %v6109 = vpop.permute.xlu0 %6108
  %6110 = vrot.lane.b32.xlu0 %v6092, 96
  %v6111 = vpop.permute.xlu0 %6110
  %6112 = vrot.lane.b32.xlu0 %v6093, 96
  %v6113 = vpop.permute.xlu0 %6112
  %v6118 = vmul.f32 %v6098, %v6107
  %v6119 = vmul.f32 %v6099, %v6109
  %v6120 = vmul.f32 %v6100, %v6111
  %v6121 = vmul.f32 %v6101, %v6113
  %v6122 = vadd.f32 %v6094, %v6118
  %v6123 = vadd.f32 %v6095, %v6119
  %v6124 = vadd.f32 %v6096, %v6120
  %v6125 = vadd.f32 %v6097, %v6121
  %6130 = vrot.lane.b32.xlu0 %v6122, 96
  %v6131 = vpop.permute.xlu0 %6130
  %6132 = vrot.lane.b32.xlu0 %v6123, 96
  %v6133 = vpop.permute.xlu0 %6132
  %6134 = vrot.lane.b32.xlu0 %v6124, 96
  %v6135 = vpop.permute.xlu0 %6134
  %6136 = vrot.lane.b32.xlu0 %v6125, 96
  %v6137 = vpop.permute.xlu0 %6136
  %s6142 = scalar_lea.vmem %s9, 96
  %6143 = vst.msk [vmem:[%s6142] sm:$0xff] %vm342, %v6131
  %6144 = vst.msk [vmem:[%s6142 + $0x8] sm:$0xff] %vm342, %v6133
  %6145 = vst.msk [vmem:[%s6142 + $0x10] sm:$0xff] %vm342, %v6135
  %6146 = vst.msk [vmem:[%s6142 + $0x18] sm:$0xff] %vm342, %v6137
  %s6147 = scalar_lea.vmem %s0, 64
  %v6148 = vld [vmem:[%s6147] sm:$0xf]
  %v6149 = vld [vmem:[%s6147 + $0x4] sm:$0xf]
  %v6150 = vld [vmem:[%s6147 + $0x8] sm:$0xf]
  %v6151 = vld [vmem:[%s6147 + $0xc] sm:$0xf]
  %v6152 = vunpack.c.l.bf16 %v6148
  %v6153 = vunpack.c.l.bf16 %v6149
  %v6154 = vunpack.c.l.bf16 %v6150
  %v6155 = vunpack.c.l.bf16 %v6151
  %6156 = vmatprep.subr.bf16.mxu0 0
  %6157 = vmatpush1.bf16.msra.mxu0 %v378
  %6158 = vmatprep.subr.bf16.mxu0 0
  %6159 = vmatpush1.bf16.msra.mxu0 %v379
  %6160 = vmatprep.subr.bf16.mxu0 0
  %6161 = vmatpush1.bf16.msra.mxu0 %v380
  %6162 = vmatprep.subr.bf16.mxu0 0
  %6163 = vmatpush1.bf16.msra.mxu0 %v381
  %6164 = vmatprep.subr.bf16.mxu0 0
  %6165 = vmatpush1.bf16.msra.mxu0 %v382
  %6166 = vmatprep.subr.bf16.mxu0 0
  %6167 = vmatpush1.bf16.msra.mxu0 %v383
  %6168 = vmatprep.subr.bf16.mxu0 0
  %6169 = vmatpush1.bf16.msra.mxu0 0
  %6170 = vmatprep.subr.bf16.mxu0 0
  %6171 = vmatpush1.bf16.msra.mxu0 0
  %6172 = vmatprep.subr.bf16.mxu0 0
  %6173 = vmatpush1.bf16.msra.mxu0 0
  %6174 = vmatprep.subr.bf16.mxu0 0
  %6175 = vmatpush1.bf16.msra.mxu0 0
  %6176 = vmatprep.subr.bf16.mxu0 0
  %6177 = vmatpush1.bf16.msra.mxu0 0
  %6178 = vmatprep.subr.bf16.mxu0 0
  %6179 = vmatpush1.bf16.msra.mxu0 0
  %6180 = vmatprep.subr.bf16.mxu0 0
  %6181 = vmatpush1.bf16.msra.mxu0 0
  %6182 = vmatprep.subr.bf16.mxu0 0
  %6183 = vmatpush1.bf16.msra.mxu0 0
  %6184 = vmatprep.subr.bf16.mxu0 0
  %6185 = vmatpush1.bf16.msra.mxu0 0
  %6186 = vmatprep.subr.bf16.mxu0 0
  %6187 = vmatpush1.bf16.msra.mxu0 0
  %6188 = vmatprep.mubr.bf16.mxu0 0
  %6189 = vmatmul.mubr.bf16.gmra.mrb[0].mxu0 %v5422
  %v6190 = vpop.f32.mrb[0].mxu0
  %v6191 = vadd.f32 0.0, %v6190
  %v6192 = vpop.f32.mrb[0].mxu0
  %v6193 = vpop.f32.mrb[0].mxu0
  %v6194 = vadd.f32 0.0, %v6193
  %v6195 = vpop.f32.mrb[0].mxu0
  %6196 = vmatprep.mubr.bf16.mxu0 0
  %6197 = vmatmul.mubr.bf16.gmra.mrb[0].mxu0 %v5425
  %v6198 = vpop.f32.mrb[0].mxu0
  %v6199 = vadd.f32 0.0, %v6198
  %v6200 = vpop.f32.mrb[0].mxu0
  %v6201 = vpop.f32.mrb[0].mxu0
  %v6202 = vadd.f32 0.0, %v6201
  %v6203 = vpop.f32.mrb[0].mxu0
  %6204 = vdwg.mxu0
  %v6205 = vadd.f32 %v6152, %v6191
  %v6206 = vadd.f32 %v6153, %v6194
  %v6207 = vadd.f32 %v6154, %v6199
  %v6208 = vadd.f32 %v6155, %v6202
  %v6209 = vadd.f32 %v6205, %v454
  %v6210 = vadd.f32 %v6206, %v454
  %v6211 = vadd.f32 %v6207, %v454
  %v6212 = vadd.f32 %v6208, %v454
  %v6213 = vxor.u32 %v6209, 2147483648
  %v6214 = vxor.u32 %v6210, 2147483648
  %v6215 = vxor.u32 %v6211, 2147483648
  %v6216 = vxor.u32 %v6212, 2147483648
  %v6217 = vmul.f32 %v6213, 1.442695
  %v6218 = vpow.pop %v6217
  %v6219 = vmul.f32 %v6214, 1.442695
  %v6220 = vpow.pop %v6219
  %v6221 = vmul.f32 %v6215, 1.442695
  %v6222 = vpow.pop %v6221
  %v6223 = vmul.f32 %v6216, 1.442695
  %v6224 = vpow.pop %v6223
  %v6225 = vadd.f32 %v6218, 1.0
  %v6226 = vadd.f32 %v6220, 1.0
  %v6227 = vadd.f32 %v6222, 1.0
  %v6228 = vadd.f32 %v6224, 1.0
  %v6229 = vrcp.pop %v6225
  %v6230 = vmul.f32 1.0, %v6229
  %v6231 = vrcp.pop %v6226
  %v6232 = vmul.f32 1.0, %v6231
  %v6233 = vrcp.pop %v6227
  %v6234 = vmul.f32 1.0, %v6233
  %v6235 = vrcp.pop %v6228
  %v6236 = vmul.f32 1.0, %v6235
  %v6237 = vmul.f32 %v6230, %v5364
  %v6238 = vmul.f32 %v6232, %v5366
  %v6239 = vmul.f32 %v6234, %v5368
  %v6240 = vmul.f32 %v6236, %v5370
  %v6241 = vpack.c.bf16 %v6238, %v6237
  %v6242 = vpack.c.bf16 %v6240, %v6239
  %6243 = vmatprep.subr.bf16.mxu0 0
  %6244 = vmatpush1.bf16.msra.mxu0 %v6241
  %6245 = vmatprep.subr.bf16.mxu0 0
  %6246 = vmatpush1.bf16.msra.mxu0 0
  %6247 = vmatprep.subr.bf16.mxu0 0
  %6248 = vmatpush1.bf16.msra.mxu0 0
  %6249 = vmatprep.subr.bf16.mxu0 0
  %6250 = vmatpush1.bf16.msra.mxu0 0
  %6251 = vmatprep.subr.bf16.mxu0 0
  %6252 = vmatpush1.bf16.msra.mxu0 0
  %6253 = vmatprep.subr.bf16.mxu0 0
  %6254 = vmatpush1.bf16.msra.mxu0 0
  %6255 = vmatprep.subr.bf16.mxu0 0
  %6256 = vmatpush1.bf16.msra.mxu0 0
  %6257 = vmatprep.subr.bf16.mxu0 0
  %6258 = vmatpush1.bf16.msra.mxu0 0
  %6259 = vmatprep.subr.bf16.mxu0 0
  %6260 = vmatpush1.bf16.msra.mxu0 0
  %6261 = vmatprep.subr.bf16.mxu0 0
  %6262 = vmatpush1.bf16.msra.mxu0 0
  %6263 = vmatprep.subr.bf16.mxu0 0
  %6264 = vmatpush1.bf16.msra.mxu0 0
  %6265 = vmatprep.subr.bf16.mxu0 0
  %6266 = vmatpush1.bf16.msra.mxu0 0
  %6267 = vmatprep.subr.bf16.mxu0 0
  %6268 = vmatpush1.bf16.msra.mxu0 0
  %6269 = vmatprep.subr.bf16.mxu0 0
  %6270 = vmatpush1.bf16.msra.mxu0 0
  %6271 = vmatprep.subr.bf16.mxu0 0
  %6272 = vmatpush1.bf16.msra.mxu0 0
  %6273 = vmatprep.subr.bf16.mxu0 0
  %6274 = vmatpush1.bf16.msra.mxu0 0
  %6275 = vmatprep.mubr.bf16.mxu0 0
  %6276 = vmatmul.mubr.bf16.gmra.mrb[0].mxu0 %v126
  %v6277 = vpop.f32.mrb[0].mxu0
  %v6278 = vadd.f32 0.0, %v6277
  %v6279 = vpop.f32.mrb[0].mxu0
  %v6280 = vpop.f32.mrb[0].mxu0
  %v6281 = vadd.f32 0.0, %v6280
  %v6282 = vpop.f32.mrb[0].mxu0
  %6283 = vdwg.mxu0
  %6284 = vmatprep.subr.bf16.mxu0 0
  %6285 = vmatpush1.bf16.msra.mxu0 %v6242
  %6286 = vmatprep.subr.bf16.mxu0 0
  %6287 = vmatpush1.bf16.msra.mxu0 0
  %6288 = vmatprep.subr.bf16.mxu0 0
  %6289 = vmatpush1.bf16.msra.mxu0 0
  %6290 = vmatprep.subr.bf16.mxu0 0
  %6291 = vmatpush1.bf16.msra.mxu0 0
  %6292 = vmatprep.subr.bf16.mxu0 0
  %6293 = vmatpush1.bf16.msra.mxu0 0
  %6294 = vmatprep.subr.bf16.mxu0 0
  %6295 = vmatpush1.bf16.msra.mxu0 0
  %6296 = vmatprep.subr.bf16.mxu0 0
  %6297 = vmatpush1.bf16.msra.mxu0 0
  %6298 = vmatprep.subr.bf16.mxu0 0
  %6299 = vmatpush1.bf16.msra.mxu0 0
  %6300 = vmatprep.subr.bf16.mxu0 0
  %6301 = vmatpush1.bf16.msra.mxu0 0
  %6302 = vmatprep.subr.bf16.mxu0 0
  %6303 = vmatpush1.bf16.msra.mxu0 0
  %6304 = vmatprep.subr.bf16.mxu0 0
  %6305 = vmatpush1.bf16.msra.mxu0 0
  %6306 = vmatprep.subr.bf16.mxu0 0
  %6307 = vmatpush1.bf16.msra.mxu0 0
  %6308 = vmatprep.subr.bf16.mxu0 0
  %6309 = vmatpush1.bf16.msra.mxu0 0
  %6310 = vmatprep.subr.bf16.mxu0 0
  %6311 = vmatpush1.bf16.msra.mxu0 0
  %6312 = vmatprep.subr.bf16.mxu0 0
  %6313 = vmatpush1.bf16.msra.mxu0 0
  %6314 = vmatprep.subr.bf16.mxu0 0
  %6315 = vmatpush1.bf16.msra.mxu0 0
  %6316 = vmatprep.mubr.bf16.mxu0 0
  %6317 = vmatmul.mubr.bf16.gmra.mrb[0].mxu0 %v175
  %v6318 = vpop.f32.mrb[0].mxu0
  %v6319 = vadd.f32 0.0, %v6318
  %v6320 = vpop.f32.mrb[0].mxu0
  %v6321 = vpop.f32.mrb[0].mxu0
  %v6322 = vadd.f32 0.0, %v6321
  %v6323 = vpop.f32.mrb[0].mxu0
  %6324 = vdwg.mxu0
  %v6325 = vpack.c.bf16 %v6281, %v6278
  %v6326 = vpack.c.bf16 %v6322, %v6319
  %6327 = vmatprep.subr.bf16.mxu0 0
  %6328 = vmatpush1.bf16.msra.mxu0 %v6325
  %6329 = vmatprep.subr.bf16.mxu0 0
  %6330 = vmatpush1.bf16.msra.mxu0 0
  %6331 = vmatprep.subr.bf16.mxu0 0
  %6332 = vmatpush1.bf16.msra.mxu0 0
  %6333 = vmatprep.subr.bf16.mxu0 0
  %6334 = vmatpush1.bf16.msra.mxu0 0
  %6335 = vmatprep.subr.bf16.mxu0 0
  %6336 = vmatpush1.bf16.msra.mxu0 0
  %6337 = vmatprep.subr.bf16.mxu0 0
  %6338 = vmatpush1.bf16.msra.mxu0 0
  %6339 = vmatprep.subr.bf16.mxu0 0
  %6340 = vmatpush1.bf16.msra.mxu0 0
  %6341 = vmatprep.subr.bf16.mxu0 0
  %6342 = vmatpush1.bf16.msra.mxu0 0
  %6343 = vmatprep.subr.bf16.mxu0 0
  %6344 = vmatpush1.bf16.msra.mxu0 0
  %6345 = vmatprep.subr.bf16.mxu0 0
  %6346 = vmatpush1.bf16.msra.mxu0 0
  %6347 = vmatprep.subr.bf16.mxu0 0
  %6348 = vmatpush1.bf16.msra.mxu0 0
  %6349 = vmatprep.subr.bf16.mxu0 0
  %6350 = vmatpush1.bf16.msra.mxu0 0
  %6351 = vmatprep.subr.bf16.mxu0 0
  %6352 = vmatpush1.bf16.msra.mxu0 0
  %6353 = vmatprep.subr.bf16.mxu0 0
  %6354 = vmatpush1.bf16.msra.mxu0 0
  %6355 = vmatprep.subr.bf16.mxu0 0
  %6356 = vmatpush1.bf16.msra.mxu0 0
  %6357 = vmatprep.subr.bf16.mxu0 0
  %6358 = vmatpush1.bf16.msra.mxu0 0
  %6359 = vmatprep.mubr.bf16.mxu0 0
  %6360 = vmatmul.mubr.bf16.gmra.mrb[0].mxu0 %v126
  %v6361 = vpop.f32.mrb[0].mxu0
  %v6362 = vadd.f32 0.0, %v6361
  %v6363 = vpop.f32.mrb[0].mxu0
  %v6364 = vpop.f32.mrb[0].mxu0
  %v6365 = vadd.f32 0.0, %v6364
  %v6366 = vpop.f32.mrb[0].mxu0
  %6367 = vdwg.mxu0
  %6368 = vmatprep.subr.bf16.mxu0 0
  %6369 = vmatpush1.bf16.msra.mxu0 %v6326
  %6370 = vmatprep.subr.bf16.mxu0 0
  %6371 = vmatpush1.bf16.msra.mxu0 0
  %6372 = vmatprep.subr.bf16.mxu0 0
  %6373 = vmatpush1.bf16.msra.mxu0 0
  %6374 = vmatprep.subr.bf16.mxu0 0
  %6375 = vmatpush1.bf16.msra.mxu0 0
  %6376 = vmatprep.subr.bf16.mxu0 0
  %6377 = vmatpush1.bf16.msra.mxu0 0
  %6378 = vmatprep.subr.bf16.mxu0 0
  %6379 = vmatpush1.bf16.msra.mxu0 0
  %6380 = vmatprep.subr.bf16.mxu0 0
  %6381 = vmatpush1.bf16.msra.mxu0 0
  %6382 = vmatprep.subr.bf16.mxu0 0
  %6383 = vmatpush1.bf16.msra.mxu0 0
  %6384 = vmatprep.subr.bf16.mxu0 0
  %6385 = vmatpush1.bf16.msra.mxu0 0
  %6386 = vmatprep.subr.bf16.mxu0 0
  %6387 = vmatpush1.bf16.msra.mxu0 0
  %6388 = vmatprep.subr.bf16.mxu0 0
  %6389 = vmatpush1.bf16.msra.mxu0 0
  %6390 = vmatprep.subr.bf16.mxu0 0
  %6391 = vmatpush1.bf16.msra.mxu0 0
  %6392 = vmatprep.subr.bf16.mxu0 0
  %6393 = vmatpush1.bf16.msra.mxu0 0
  %6394 = vmatprep.subr.bf16.mxu0 0
  %6395 = vmatpush1.bf16.msra.mxu0 0
  %6396 = vmatprep.subr.bf16.mxu0 0
  %6397 = vmatpush1.bf16.msra.mxu0 0
  %6398 = vmatprep.subr.bf16.mxu0 0
  %6399 = vmatpush1.bf16.msra.mxu0 0
  %6400 = vmatprep.mubr.bf16.mxu0 0
  %6401 = vmatmul.mubr.bf16.gmra.mrb[0].mxu0 %v175
  %v6402 = vpop.f32.mrb[0].mxu0
  %v6403 = vadd.f32 0.0, %v6402
  %v6404 = vpop.f32.mrb[0].mxu0
  %v6405 = vpop.f32.mrb[0].mxu0
  %v6406 = vadd.f32 0.0, %v6405
  %v6407 = vpop.f32.mrb[0].mxu0
  %6408 = vdwg.mxu0
  %v6409 = vmul.f32 %v6362, 2.0
  %v6410 = vmul.f32 %v6365, 2.0
  %v6411 = vmul.f32 %v6403, 2.0
  %v6412 = vmul.f32 %v6406, 2.0
  %v6413 = vsub.f32 %v6409, %v6237
  %v6414 = vsub.f32 %v6410, %v6238
  %v6415 = vsub.f32 %v6411, %v6239
  %v6416 = vsub.f32 %v6412, %v6240
  %6421 = vrot.lane.b32.xlu0 %v6278, 32
  %v6422 = vpop.permute.xlu0 %6421
  %6423 = vrot.lane.b32.xlu0 %v6281, 32
  %v6424 = vpop.permute.xlu0 %6423
  %6425 = vrot.lane.b32.xlu0 %v6319, 32
  %v6426 = vpop.permute.xlu0 %6425
  %6427 = vrot.lane.b32.xlu0 %v6322, 32
  %v6428 = vpop.permute.xlu0 %6427
  %6437 = vrot.lane.b32.xlu0 %v6413, 64
  %v6438 = vpop.permute.xlu0 %6437
  %6439 = vrot.lane.b32.xlu0 %v6414, 64
  %v6440 = vpop.permute.xlu0 %6439
  %6441 = vrot.lane.b32.xlu0 %v6415, 64
  %v6442 = vpop.permute.xlu0 %6441
  %6443 = vrot.lane.b32.xlu0 %v6416, 64
  %v6444 = vpop.permute.xlu0 %6443
  %v6449 = vsel %vm342, %v6237, %v6422
  %v6450 = vsel %vm342, %v6238, %v6424
  %v6451 = vsel %vm342, %v6239, %v6426
  %v6452 = vsel %vm342, %v6240, %v6428
  %v6453 = vsel %vm347, %v6449, %v6438
  %v6454 = vsel %vm347, %v6450, %v6440
  %v6455 = vsel %vm347, %v6451, %v6442
  %v6456 = vsel %vm347, %v6452, %v6444
  %v6457 = vpack.c.bf16 %v6454, %v6453
  %v6458 = vpack.c.bf16 %v6456, %v6455
  %v6460 = vsel %vm390, %v6457, 0
  %v6463 = vsel %vm390, %v6458, 0
  %6465 = vmatprep.subr.bf16.mxu0 0
  %6466 = vmatpush1.bf16.msra.mxu0 %v730
  %6467 = vmatprep.subr.bf16.mxu0 0
  %6468 = vmatpush1.bf16.msra.mxu0 %v731
  %6469 = vmatprep.subr.bf16.mxu0 0
  %6470 = vmatpush1.bf16.msra.mxu0 %v732
  %6471 = vmatprep.subr.bf16.mxu0 0
  %6472 = vmatpush1.bf16.msra.mxu0 %v733
  %6473 = vmatprep.subr.bf16.mxu0 0
  %6474 = vmatpush1.bf16.msra.mxu0 %v734
  %6475 = vmatprep.subr.bf16.mxu0 0
  %6476 = vmatpush1.bf16.msra.mxu0 %v735
  %6477 = vmatprep.subr.bf16.mxu0 0
  %6478 = vmatpush1.bf16.msra.mxu0 0
  %6479 = vmatprep.subr.bf16.mxu0 0
  %6480 = vmatpush1.bf16.msra.mxu0 0
  %6481 = vmatprep.subr.bf16.mxu0 0
  %6482 = vmatpush1.bf16.msra.mxu0 0
  %6483 = vmatprep.subr.bf16.mxu0 0
  %6484 = vmatpush1.bf16.msra.mxu0 0
  %6485 = vmatprep.subr.bf16.mxu0 0
  %6486 = vmatpush1.bf16.msra.mxu0 0
  %6487 = vmatprep.subr.bf16.mxu0 0
  %6488 = vmatpush1.bf16.msra.mxu0 0
  %6489 = vmatprep.subr.bf16.mxu0 0
  %6490 = vmatpush1.bf16.msra.mxu0 0
  %6491 = vmatprep.subr.bf16.mxu0 0
  %6492 = vmatpush1.bf16.msra.mxu0 0
  %6493 = vmatprep.subr.bf16.mxu0 0
  %6494 = vmatpush1.bf16.msra.mxu0 0
  %6495 = vmatprep.subr.bf16.mxu0 0
  %6496 = vmatpush1.bf16.msra.mxu0 0
  %6497 = vmatprep.mubr.bf16.mxu0 0
  %6498 = vmatmul.mubr.bf16.gmra.mrb[0].mxu0 %v6460
  %v6499 = vpop.f32.mrb[0].mxu0
  %v6500 = vadd.f32 0.0, %v6499
  %v6501 = vpop.f32.mrb[0].mxu0
  %v6502 = vpop.f32.mrb[0].mxu0
  %v6503 = vadd.f32 0.0, %v6502
  %v6504 = vpop.f32.mrb[0].mxu0
  %6505 = vmatprep.mubr.bf16.mxu0 0
  %6506 = vmatmul.mubr.bf16.gmra.mrb[0].mxu0 %v6463
  %v6507 = vpop.f32.mrb[0].mxu0
  %v6508 = vadd.f32 0.0, %v6507
  %v6509 = vpop.f32.mrb[0].mxu0
  %v6510 = vpop.f32.mrb[0].mxu0
  %v6511 = vadd.f32 0.0, %v6510
  %v6512 = vpop.f32.mrb[0].mxu0
  %6513 = vdwg.mxu0
  %6518 = vrot.lane.b32.xlu0 %v6500, 64
  %v6519 = vpop.permute.xlu0 %6518
  %6520 = vrot.lane.b32.xlu0 %v6503, 64
  %v6521 = vpop.permute.xlu0 %6520
  %6522 = vrot.lane.b32.xlu0 %v6508, 64
  %v6523 = vpop.permute.xlu0 %6522
  %6524 = vrot.lane.b32.xlu0 %v6511, 64
  %v6525 = vpop.permute.xlu0 %6524
  %v6530 = vadd.f32 %v6152, %v6519
  %v6531 = vadd.f32 %v6153, %v6521
  %v6532 = vadd.f32 %v6154, %v6523
  %v6533 = vadd.f32 %v6155, %v6525
  %v6534 = vadd.f32 %v6530, %v454
  %v6535 = vadd.f32 %v6531, %v454
  %v6536 = vadd.f32 %v6532, %v454
  %v6537 = vadd.f32 %v6533, %v454
  %v6538 = vtanh.pop %v6534
  %v6539 = vtanh.pop %v6535
  %v6540 = vtanh.pop %v6536
  %v6541 = vtanh.pop %v6537
  %v6542 = vmul.f32 %v6230, %v5175
  %v6543 = vmul.f32 %v6232, %v5176
  %v6544 = vmul.f32 %v6234, %v5177
  %v6545 = vmul.f32 %v6236, %v5178
  %v6546 = vsub.f32 1.0, %v6230
  %v6547 = vsub.f32 1.0, %v6232
  %v6548 = vsub.f32 1.0, %v6234
  %v6549 = vsub.f32 1.0, %v6236
  %6554 = vrot.lane.b32.xlu0 %v6538, 96
  %v6555 = vpop.permute.xlu0 %6554
  %6556 = vrot.lane.b32.xlu0 %v6539, 96
  %v6557 = vpop.permute.xlu0 %6556
  %6558 = vrot.lane.b32.xlu0 %v6540, 96
  %v6559 = vpop.permute.xlu0 %6558
  %6560 = vrot.lane.b32.xlu0 %v6541, 96
  %v6561 = vpop.permute.xlu0 %6560
  %v6566 = vmul.f32 %v6546, %v6555
  %v6567 = vmul.f32 %v6547, %v6557
  %v6568 = vmul.f32 %v6548, %v6559
  %v6569 = vmul.f32 %v6549, %v6561
  %v6570 = vadd.f32 %v6542, %v6566
  %v6571 = vadd.f32 %v6543, %v6567
  %v6572 = vadd.f32 %v6544, %v6568
  %v6573 = vadd.f32 %v6545, %v6569
  %v6574 = vpack.c.bf16 %v6571, %v6570
  %v6575 = vpack.c.bf16 %v6573, %v6572
  %6577 = vrot.lane.b32.xlu0 %v6574, 96
  %v6578 = vpop.permute.xlu0 %6577
  %6580 = vmatprep.subr.bf16.mxu0 0
  %6581 = vmatpush1.bf16.msra.mxu0 %v6578
  %6582 = vmatprep.subr.bf16.mxu0 0
  %6583 = vmatpush1.bf16.msra.mxu0 0
  %6584 = vmatprep.subr.bf16.mxu0 0
  %6585 = vmatpush1.bf16.msra.mxu0 0
  %6586 = vmatprep.subr.bf16.mxu0 0
  %6587 = vmatpush1.bf16.msra.mxu0 0
  %6588 = vmatprep.subr.bf16.mxu0 0
  %6589 = vmatpush1.bf16.msra.mxu0 0
  %6590 = vmatprep.subr.bf16.mxu0 0
  %6591 = vmatpush1.bf16.msra.mxu0 0
  %6592 = vmatprep.subr.bf16.mxu0 0
  %6593 = vmatpush1.bf16.msra.mxu0 0
  %6594 = vmatprep.subr.bf16.mxu0 0
  %6595 = vmatpush1.bf16.msra.mxu0 0
  %6596 = vmatprep.subr.bf16.mxu0 0
  %6597 = vmatpush1.bf16.msra.mxu0 0
  %6598 = vmatprep.subr.bf16.mxu0 0
  %6599 = vmatpush1.bf16.msra.mxu0 0
  %6600 = vmatprep.subr.bf16.mxu0 0
  %6601 = vmatpush1.bf16.msra.mxu0 0
  %6602 = vmatprep.subr.bf16.mxu0 0
  %6603 = vmatpush1.bf16.msra.mxu0 0
  %6604 = vmatprep.subr.bf16.mxu0 0
  %6605 = vmatpush1.bf16.msra.mxu0 0
  %6606 = vmatprep.subr.bf16.mxu0 0
  %6607 = vmatpush1.bf16.msra.mxu0 0
  %6608 = vmatprep.subr.bf16.mxu0 0
  %6609 = vmatpush1.bf16.msra.mxu0 0
  %6610 = vmatprep.subr.bf16.mxu0 0
  %6611 = vmatpush1.bf16.msra.mxu0 0
  %6612 = vmatprep.mubr.bf16.mxu0 0
  %6613 = vmatmul.mubr.bf16.gmra.mrb[0].mxu0 %v126
  %v6614 = vpop.f32.mrb[0].mxu0
  %v6615 = vadd.f32 0.0, %v6614
  %v6616 = vpop.f32.mrb[0].mxu0
  %v6617 = vpop.f32.mrb[0].mxu0
  %v6618 = vadd.f32 0.0, %v6617
  %v6619 = vpop.f32.mrb[0].mxu0
  %6620 = vdwg.mxu0
  %6622 = vrot.lane.b32.xlu0 %v6575, 96
  %v6623 = vpop.permute.xlu0 %6622
  %6625 = vmatprep.subr.bf16.mxu0 0
  %6626 = vmatpush1.bf16.msra.mxu0 %v6623
  %6627 = vmatprep.subr.bf16.mxu0 0
  %6628 = vmatpush1.bf16.msra.mxu0 0
  %6629 = vmatprep.subr.bf16.mxu0 0
  %6630 = vmatpush1.bf16.msra.mxu0 0
  %6631 = vmatprep.subr.bf16.mxu0 0
  %6632 = vmatpush1.bf16.msra.mxu0 0
  %6633 = vmatprep.subr.bf16.mxu0 0
  %6634 = vmatpush1.bf16.msra.mxu0 0
  %6635 = vmatprep.subr.bf16.mxu0 0
  %6636 = vmatpush1.bf16.msra.mxu0 0
  %6637 = vmatprep.subr.bf16.mxu0 0
  %6638 = vmatpush1.bf16.msra.mxu0 0
  %6639 = vmatprep.subr.bf16.mxu0 0
  %6640 = vmatpush1.bf16.msra.mxu0 0
  %6641 = vmatprep.subr.bf16.mxu0 0
  %6642 = vmatpush1.bf16.msra.mxu0 0
  %6643 = vmatprep.subr.bf16.mxu0 0
  %6644 = vmatpush1.bf16.msra.mxu0 0
  %6645 = vmatprep.subr.bf16.mxu0 0
  %6646 = vmatpush1.bf16.msra.mxu0 0
  %6647 = vmatprep.subr.bf16.mxu0 0
  %6648 = vmatpush1.bf16.msra.mxu0 0
  %6649 = vmatprep.subr.bf16.mxu0 0
  %6650 = vmatpush1.bf16.msra.mxu0 0
  %6651 = vmatprep.subr.bf16.mxu0 0
  %6652 = vmatpush1.bf16.msra.mxu0 0
  %6653 = vmatprep.subr.bf16.mxu0 0
  %6654 = vmatpush1.bf16.msra.mxu0 0
  %6655 = vmatprep.subr.bf16.mxu0 0
  %6656 = vmatpush1.bf16.msra.mxu0 0
  %6657 = vmatprep.mubr.bf16.mxu0 0
  %6658 = vmatmul.mubr.bf16.gmra.mrb[0].mxu0 %v175
  %v6659 = vpop.f32.mrb[0].mxu0
  %v6660 = vadd.f32 0.0, %v6659
  %v6661 = vpop.f32.mrb[0].mxu0
  %v6662 = vpop.f32.mrb[0].mxu0
  %v6663 = vadd.f32 0.0, %v6662
  %v6664 = vpop.f32.mrb[0].mxu0
  %6665 = vdwg.mxu0
  %v6666 = vpack.c.bf16 %v6618, %v6615
  %v6667 = vpack.c.bf16 %v6663, %v6660
  %6668 = vmatprep.subr.bf16.mxu0 0
  %6669 = vmatpush1.bf16.msra.mxu0 %v6666
  %6670 = vmatprep.subr.bf16.mxu0 0
  %6671 = vmatpush1.bf16.msra.mxu0 0
  %6672 = vmatprep.subr.bf16.mxu0 0
  %6673 = vmatpush1.bf16.msra.mxu0 0
  %6674 = vmatprep.subr.bf16.mxu0 0
  %6675 = vmatpush1.bf16.msra.mxu0 0
  %6676 = vmatprep.subr.bf16.mxu0 0
  %6677 = vmatpush1.bf16.msra.mxu0 0
  %6678 = vmatprep.subr.bf16.mxu0 0
  %6679 = vmatpush1.bf16.msra.mxu0 0
  %6680 = vmatprep.subr.bf16.mxu0 0
  %6681 = vmatpush1.bf16.msra.mxu0 0
  %6682 = vmatprep.subr.bf16.mxu0 0
  %6683 = vmatpush1.bf16.msra.mxu0 0
  %6684 = vmatprep.subr.bf16.mxu0 0
  %6685 = vmatpush1.bf16.msra.mxu0 0
  %6686 = vmatprep.subr.bf16.mxu0 0
  %6687 = vmatpush1.bf16.msra.mxu0 0
  %6688 = vmatprep.subr.bf16.mxu0 0
  %6689 = vmatpush1.bf16.msra.mxu0 0
  %6690 = vmatprep.subr.bf16.mxu0 0
  %6691 = vmatpush1.bf16.msra.mxu0 0
  %6692 = vmatprep.subr.bf16.mxu0 0
  %6693 = vmatpush1.bf16.msra.mxu0 0
  %6694 = vmatprep.subr.bf16.mxu0 0
  %6695 = vmatpush1.bf16.msra.mxu0 0
  %6696 = vmatprep.subr.bf16.mxu0 0
  %6697 = vmatpush1.bf16.msra.mxu0 0
  %6698 = vmatprep.subr.bf16.mxu0 0
  %6699 = vmatpush1.bf16.msra.mxu0 0
  %6700 = vmatprep.mubr.bf16.mxu0 0
  %6701 = vmatmul.mubr.bf16.gmra.mrb[0].mxu0 %v126
  %v6702 = vpop.f32.mrb[0].mxu0
  %v6703 = vadd.f32 0.0, %v6702
  %v6704 = vpop.f32.mrb[0].mxu0
  %v6705 = vpop.f32.mrb[0].mxu0
  %v6706 = vadd.f32 0.0, %v6705
  %v6707 = vpop.f32.mrb[0].mxu0
  %6708 = vdwg.mxu0
  %6709 = vmatprep.subr.bf16.mxu0 0
  %6710 = vmatpush1.bf16.msra.mxu0 %v6667
  %6711 = vmatprep.subr.bf16.mxu0 0
  %6712 = vmatpush1.bf16.msra.mxu0 0
  %6713 = vmatprep.subr.bf16.mxu0 0
  %6714 = vmatpush1.bf16.msra.mxu0 0
  %6715 = vmatprep.subr.bf16.mxu0 0
  %6716 = vmatpush1.bf16.msra.mxu0 0
  %6717 = vmatprep.subr.bf16.mxu0 0
  %6718 = vmatpush1.bf16.msra.mxu0 0
  %6719 = vmatprep.subr.bf16.mxu0 0
  %6720 = vmatpush1.bf16.msra.mxu0 0
  %6721 = vmatprep.subr.bf16.mxu0 0
  %6722 = vmatpush1.bf16.msra.mxu0 0
  %6723 = vmatprep.subr.bf16.mxu0 0
  %6724 = vmatpush1.bf16.msra.mxu0 0
  %6725 = vmatprep.subr.bf16.mxu0 0
  %6726 = vmatpush1.bf16.msra.mxu0 0
  %6727 = vmatprep.subr.bf16.mxu0 0
  %6728 = vmatpush1.bf16.msra.mxu0 0
  %6729 = vmatprep.subr.bf16.mxu0 0
  %6730 = vmatpush1.bf16.msra.mxu0 0
  %6731 = vmatprep.subr.bf16.mxu0 0
  %6732 = vmatpush1.bf16.msra.mxu0 0
  %6733 = vmatprep.subr.bf16.mxu0 0
  %6734 = vmatpush1.bf16.msra.mxu0 0
  %6735 = vmatprep.subr.bf16.mxu0 0
  %6736 = vmatpush1.bf16.msra.mxu0 0
  %6737 = vmatprep.subr.bf16.mxu0 0
  %6738 = vmatpush1.bf16.msra.mxu0 0
  %6739 = vmatprep.subr.bf16.mxu0 0
  %6740 = vmatpush1.bf16.msra.mxu0 0
  %6741 = vmatprep.mubr.bf16.mxu0 0
  %6742 = vmatmul.mubr.bf16.gmra.mrb[0].mxu0 %v175
  %v6743 = vpop.f32.mrb[0].mxu0
  %v6744 = vadd.f32 0.0, %v6743
  %v6745 = vpop.f32.mrb[0].mxu0
  %v6746 = vpop.f32.mrb[0].mxu0
  %v6747 = vadd.f32 0.0, %v6746
  %v6748 = vpop.f32.mrb[0].mxu0
  %6749 = vdwg.mxu0
  %v6750 = vmul.f32 %v6703, 2.0
  %v6751 = vmul.f32 %v6706, 2.0
  %v6752 = vmul.f32 %v6744, 2.0
  %v6753 = vmul.f32 %v6747, 2.0
  %6758 = vrot.lane.b32.xlu0 %v6570, 96
  %v6759 = vpop.permute.xlu0 %6758
  %6760 = vrot.lane.b32.xlu0 %v6571, 96
  %v6761 = vpop.permute.xlu0 %6760
  %6762 = vrot.lane.b32.xlu0 %v6572, 96
  %v6763 = vpop.permute.xlu0 %6762
  %6764 = vrot.lane.b32.xlu0 %v6573, 96
  %v6765 = vpop.permute.xlu0 %6764
  %v6770 = vsub.f32 %v6750, %v6759
  %v6771 = vsub.f32 %v6751, %v6761
  %v6772 = vsub.f32 %v6752, %v6763
  %v6773 = vsub.f32 %v6753, %v6765
  %6778 = vrot.lane.b32.xlu0 %v6615, 32
  %v6779 = vpop.permute.xlu0 %6778
  %6780 = vrot.lane.b32.xlu0 %v6618, 32
  %v6781 = vpop.permute.xlu0 %6780
  %6782 = vrot.lane.b32.xlu0 %v6660, 32
  %v6783 = vpop.permute.xlu0 %6782
  %6784 = vrot.lane.b32.xlu0 %v6663, 32
  %v6785 = vpop.permute.xlu0 %6784
  %6794 = vrot.lane.b32.xlu0 %v6770, 64
  %v6795 = vpop.permute.xlu0 %6794
  %6796 = vrot.lane.b32.xlu0 %v6771, 64
  %v6797 = vpop.permute.xlu0 %6796
  %6798 = vrot.lane.b32.xlu0 %v6772, 64
  %v6799 = vpop.permute.xlu0 %6798
  %6800 = vrot.lane.b32.xlu0 %v6773, 64
  %v6801 = vpop.permute.xlu0 %6800
  %v6806 = vsel %vm342, %v6759, %v6779
  %v6807 = vsel %vm342, %v6761, %v6781
  %v6808 = vsel %vm342, %v6763, %v6783
  %v6809 = vsel %vm342, %v6765, %v6785
  %v6810 = vsel %vm347, %v6806, %v6795
  %v6811 = vsel %vm347, %v6807, %v6797
  %v6812 = vsel %vm347, %v6808, %v6799
  %v6813 = vsel %vm347, %v6809, %v6801
  %v6814 = vpack.c.bf16 %v6811, %v6810
  %v6815 = vpack.c.bf16 %v6813, %v6812
  %v6817 = vsel %vm390, %v6814, 0
  %v6820 = vsel %vm390, %v6815, 0
  %6822 = vmatprep.subr.bf16.mxu0 0
  %6823 = vmatpush1.bf16.msra.mxu0 %v1139
  %6824 = vmatprep.subr.bf16.mxu0 0
  %6825 = vmatpush1.bf16.msra.mxu0 %v1140
  %6826 = vmatprep.subr.bf16.mxu0 0
  %6827 = vmatpush1.bf16.msra.mxu0 %v1141
  %6828 = vmatprep.subr.bf16.mxu0 0
  %6829 = vmatpush1.bf16.msra.mxu0 %v1142
  %6830 = vmatprep.subr.bf16.mxu0 0
  %6831 = vmatpush1.bf16.msra.mxu0 %v1143
  %6832 = vmatprep.subr.bf16.mxu0 0
  %6833 = vmatpush1.bf16.msra.mxu0 %v1144
  %6834 = vmatprep.subr.bf16.mxu0 0
  %6835 = vmatpush1.bf16.msra.mxu0 0
  %6836 = vmatprep.subr.bf16.mxu0 0
  %6837 = vmatpush1.bf16.msra.mxu0 0
  %6838 = vmatprep.subr.bf16.mxu0 0
  %6839 = vmatpush1.bf16.msra.mxu0 0
  %6840 = vmatprep.subr.bf16.mxu0 0
  %6841 = vmatpush1.bf16.msra.mxu0 0
  %6842 = vmatprep.subr.bf16.mxu0 0
  %6843 = vmatpush1.bf16.msra.mxu0 0
  %6844 = vmatprep.subr.bf16.mxu0 0
  %6845 = vmatpush1.bf16.msra.mxu0 0
  %6846 = vmatprep.subr.bf16.mxu0 0
  %6847 = vmatpush1.bf16.msra.mxu0 0
  %6848 = vmatprep.subr.bf16.mxu0 0
  %6849 = vmatpush1.bf16.msra.mxu0 0
  %6850 = vmatprep.subr.bf16.mxu0 0
  %6851 = vmatpush1.bf16.msra.mxu0 0
  %6852 = vmatprep.subr.bf16.mxu0 0
  %6853 = vmatpush1.bf16.msra.mxu0 0
  %6854 = vmatprep.mubr.bf16.mxu0 0
  %6855 = vmatmul.mubr.bf16.gmra.mrb[0].mxu0 %v6817
  %v6856 = vpop.f32.mrb[0].mxu0
  %v6857 = vadd.f32 0.0, %v6856
  %v6858 = vpop.f32.mrb[0].mxu0
  %v6859 = vpop.f32.mrb[0].mxu0
  %v6860 = vadd.f32 0.0, %v6859
  %v6861 = vpop.f32.mrb[0].mxu0
  %6862 = vmatprep.mubr.bf16.mxu0 0
  %6863 = vmatmul.mubr.bf16.gmra.mrb[0].mxu0 %v6820
  %v6864 = vpop.f32.mrb[0].mxu0
  %v6865 = vadd.f32 0.0, %v6864
  %v6866 = vpop.f32.mrb[0].mxu0
  %v6867 = vpop.f32.mrb[0].mxu0
  %v6868 = vadd.f32 0.0, %v6867
  %v6869 = vpop.f32.mrb[0].mxu0
  %6870 = vdwg.mxu0
  %v6871 = vpack.c.bf16 %v6123, %v6122
  %v6872 = vpack.c.bf16 %v6125, %v6124
  %6874 = vrot.lane.b32.xlu0 %v6871, 96
  %v6875 = vpop.permute.xlu0 %6874
  %6877 = vmatprep.subr.bf16.mxu0 0
  %6878 = vmatpush1.bf16.msra.mxu0 %v6875
  %6879 = vmatprep.subr.bf16.mxu0 0
  %6880 = vmatpush1.bf16.msra.mxu0 0
  %6881 = vmatprep.subr.bf16.mxu0 0
  %6882 = vmatpush1.bf16.msra.mxu0 0
  %6883 = vmatprep.subr.bf16.mxu0 0
  %6884 = vmatpush1.bf16.msra.mxu0 0
  %6885 = vmatprep.subr.bf16.mxu0 0
  %6886 = vmatpush1.bf16.msra.mxu0 0
  %6887 = vmatprep.subr.bf16.mxu0 0
  %6888 = vmatpush1.bf16.msra.mxu0 0
  %6889 = vmatprep.subr.bf16.mxu0 0
  %6890 = vmatpush1.bf16.msra.mxu0 0
  %6891 = vmatprep.subr.bf16.mxu0 0
  %6892 = vmatpush1.bf16.msra.mxu0 0
  %6893 = vmatprep.subr.bf16.mxu0 0
  %6894 = vmatpush1.bf16.msra.mxu0 0
  %6895 = vmatprep.subr.bf16.mxu0 0
  %6896 = vmatpush1.bf16.msra.mxu0 0
  %6897 = vmatprep.subr.bf16.mxu0 0
  %6898 = vmatpush1.bf16.msra.mxu0 0
  %6899 = vmatprep.subr.bf16.mxu0 0
  %6900 = vmatpush1.bf16.msra.mxu0 0
  %6901 = vmatprep.subr.bf16.mxu0 0
  %6902 = vmatpush1.bf16.msra.mxu0 0
  %6903 = vmatprep.subr.bf16.mxu0 0
  %6904 = vmatpush1.bf16.msra.mxu0 0
  %6905 = vmatprep.subr.bf16.mxu0 0
  %6906 = vmatpush1.bf16.msra.mxu0 0
  %6907 = vmatprep.subr.bf16.mxu0 0
  %6908 = vmatpush1.bf16.msra.mxu0 0
  %6909 = vmatprep.mubr.bf16.mxu0 0
  %6910 = vmatmul.mubr.bf16.gmra.mrb[0].mxu0 %v126
  %v6911 = vpop.f32.mrb[0].mxu0
  %v6912 = vadd.f32 0.0, %v6911
  %v6913 = vpop.f32.mrb[0].mxu0
  %v6914 = vpop.f32.mrb[0].mxu0
  %v6915 = vadd.f32 0.0, %v6914
  %v6916 = vpop.f32.mrb[0].mxu0
  %6917 = vdwg.mxu0
  %6919 = vrot.lane.b32.xlu0 %v6872, 96
  %v6920 = vpop.permute.xlu0 %6919
  %6922 = vmatprep.subr.bf16.mxu0 0
  %6923 = vmatpush1.bf16.msra.mxu0 %v6920
  %6924 = vmatprep.subr.bf16.mxu0 0
  %6925 = vmatpush1.bf16.msra.mxu0 0
  %6926 = vmatprep.subr.bf16.mxu0 0
  %6927 = vmatpush1.bf16.msra.mxu0 0
  %6928 = vmatprep.subr.bf16.mxu0 0
  %6929 = vmatpush1.bf16.msra.mxu0 0
  %6930 = vmatprep.subr.bf16.mxu0 0
  %6931 = vmatpush1.bf16.msra.mxu0 0
  %6932 = vmatprep.subr.bf16.mxu0 0
  %6933 = vmatpush1.bf16.msra.mxu0 0
  %6934 = vmatprep.subr.bf16.mxu0 0
  %6935 = vmatpush1.bf16.msra.mxu0 0
  %6936 = vmatprep.subr.bf16.mxu0 0
  %6937 = vmatpush1.bf16.msra.mxu0 0
  %6938 = vmatprep.subr.bf16.mxu0 0
  %6939 = vmatpush1.bf16.msra.mxu0 0
  %6940 = vmatprep.subr.bf16.mxu0 0
  %6941 = vmatpush1.bf16.msra.mxu0 0
  %6942 = vmatprep.subr.bf16.mxu0 0
  %6943 = vmatpush1.bf16.msra.mxu0 0
  %6944 = vmatprep.subr.bf16.mxu0 0
  %6945 = vmatpush1.bf16.msra.mxu0 0
  %6946 = vmatprep.subr.bf16.mxu0 0
  %6947 = vmatpush1.bf16.msra.mxu0 0
  %6948 = vmatprep.subr.bf16.mxu0 0
  %6949 = vmatpush1.bf16.msra.mxu0 0
  %6950 = vmatprep.subr.bf16.mxu0 0
  %6951 = vmatpush1.bf16.msra.mxu0 0
  %6952 = vmatprep.subr.bf16.mxu0 0
  %6953 = vmatpush1.bf16.msra.mxu0 0
  %6954 = vmatprep.mubr.bf16.mxu0 0
  %6955 = vmatmul.mubr.bf16.gmra.mrb[0].mxu0 %v175
  %v6956 = vpop.f32.mrb[0].mxu0
  %v6957 = vadd.f32 0.0, %v6956
  %v6958 = vpop.f32.mrb[0].mxu0
  %v6959 = vpop.f32.mrb[0].mxu0
  %v6960 = vadd.f32 0.0, %v6959
  %v6961 = vpop.f32.mrb[0].mxu0
  %6962 = vdwg.mxu0
  %v6963 = vpack.c.bf16 %v6915, %v6912
  %v6964 = vpack.c.bf16 %v6960, %v6957
  %6965 = vmatprep.subr.bf16.mxu0 0
  %6966 = vmatpush1.bf16.msra.mxu0 %v6963
  %6967 = vmatprep.subr.bf16.mxu0 0
  %6968 = vmatpush1.bf16.msra.mxu0 0
  %6969 = vmatprep.subr.bf16.mxu0 0
  %6970 = vmatpush1.bf16.msra.mxu0 0
  %6971 = vmatprep.subr.bf16.mxu0 0
  %6972 = vmatpush1.bf16.msra.mxu0 0
  %6973 = vmatprep.subr.bf16.mxu0 0
  %6974 = vmatpush1.bf16.msra.mxu0 0
  %6975 = vmatprep.subr.bf16.mxu0 0
  %6976 = vmatpush1.bf16.msra.mxu0 0
  %6977 = vmatprep.subr.bf16.mxu0 0
  %6978 = vmatpush1.bf16.msra.mxu0 0
  %6979 = vmatprep.subr.bf16.mxu0 0
  %6980 = vmatpush1.bf16.msra.mxu0 0
  %6981 = vmatprep.subr.bf16.mxu0 0
  %6982 = vmatpush1.bf16.msra.mxu0 0
  %6983 = vmatprep.subr.bf16.mxu0 0
  %6984 = vmatpush1.bf16.msra.mxu0 0
  %6985 = vmatprep.subr.bf16.mxu0 0
  %6986 = vmatpush1.bf16.msra.mxu0 0
  %6987 = vmatprep.subr.bf16.mxu0 0
  %6988 = vmatpush1.bf16.msra.mxu0 0
  %6989 = vmatprep.subr.bf16.mxu0 0
  %6990 = vmatpush1.bf16.msra.mxu0 0
  %6991 = vmatprep.subr.bf16.mxu0 0
  %6992 = vmatpush1.bf16.msra.mxu0 0
  %6993 = vmatprep.subr.bf16.mxu0 0
  %6994 = vmatpush1.bf16.msra.mxu0 0
  %6995 = vmatprep.subr.bf16.mxu0 0
  %6996 = vmatpush1.bf16.msra.mxu0 0
  %6997 = vmatprep.mubr.bf16.mxu0 0
  %6998 = vmatmul.mubr.bf16.gmra.mrb[0].mxu0 %v126
  %v6999 = vpop.f32.mrb[0].mxu0
  %v7000 = vadd.f32 0.0, %v6999
  %v7001 = vpop.f32.mrb[0].mxu0
  %v7002 = vpop.f32.mrb[0].mxu0
  %v7003 = vadd.f32 0.0, %v7002
  %v7004 = vpop.f32.mrb[0].mxu0
  %7005 = vdwg.mxu0
  %7006 = vmatprep.subr.bf16.mxu0 0
  %7007 = vmatpush1.bf16.msra.mxu0 %v6964
  %7008 = vmatprep.subr.bf16.mxu0 0
  %7009 = vmatpush1.bf16.msra.mxu0 0
  %7010 = vmatprep.subr.bf16.mxu0 0
  %7011 = vmatpush1.bf16.msra.mxu0 0
  %7012 = vmatprep.subr.bf16.mxu0 0
  %7013 = vmatpush1.bf16.msra.mxu0 0
  %7014 = vmatprep.subr.bf16.mxu0 0
  %7015 = vmatpush1.bf16.msra.mxu0 0
  %7016 = vmatprep.subr.bf16.mxu0 0
  %7017 = vmatpush1.bf16.msra.mxu0 0
  %7018 = vmatprep.subr.bf16.mxu0 0
  %7019 = vmatpush1.bf16.msra.mxu0 0
  %7020 = vmatprep.subr.bf16.mxu0 0
  %7021 = vmatpush1.bf16.msra.mxu0 0
  %7022 = vmatprep.subr.bf16.mxu0 0
  %7023 = vmatpush1.bf16.msra.mxu0 0
  %7024 = vmatprep.subr.bf16.mxu0 0
  %7025 = vmatpush1.bf16.msra.mxu0 0
  %7026 = vmatprep.subr.bf16.mxu0 0
  %7027 = vmatpush1.bf16.msra.mxu0 0
  %7028 = vmatprep.subr.bf16.mxu0 0
  %7029 = vmatpush1.bf16.msra.mxu0 0
  %7030 = vmatprep.subr.bf16.mxu0 0
  %7031 = vmatpush1.bf16.msra.mxu0 0
  %7032 = vmatprep.subr.bf16.mxu0 0
  %7033 = vmatpush1.bf16.msra.mxu0 0
  %7034 = vmatprep.subr.bf16.mxu0 0
  %7035 = vmatpush1.bf16.msra.mxu0 0
  %7036 = vmatprep.subr.bf16.mxu0 0
  %7037 = vmatpush1.bf16.msra.mxu0 0
  %7038 = vmatprep.mubr.bf16.mxu0 0
  %7039 = vmatmul.mubr.bf16.gmra.mrb[0].mxu0 %v175
  %v7040 = vpop.f32.mrb[0].mxu0
  %v7041 = vadd.f32 0.0, %v7040
  %v7042 = vpop.f32.mrb[0].mxu0
  %v7043 = vpop.f32.mrb[0].mxu0
  %v7044 = vadd.f32 0.0, %v7043
  %v7045 = vpop.f32.mrb[0].mxu0
  %7046 = vdwg.mxu0
  %v7047 = vmul.f32 %v7000, 2.0
  %v7048 = vmul.f32 %v7003, 2.0
  %v7049 = vmul.f32 %v7041, 2.0
  %v7050 = vmul.f32 %v7044, 2.0
  %v7051 = vsub.f32 %v7047, %v6131
  %v7052 = vsub.f32 %v7048, %v6133
  %v7053 = vsub.f32 %v7049, %v6135
  %v7054 = vsub.f32 %v7050, %v6137
  %7059 = vrot.lane.b32.xlu0 %v6912, 32
  %v7060 = vpop.permute.xlu0 %7059
  %7061 = vrot.lane.b32.xlu0 %v6915, 32
  %v7062 = vpop.permute.xlu0 %7061
  %7063 = vrot.lane.b32.xlu0 %v6957, 32
  %v7064 = vpop.permute.xlu0 %7063
  %7065 = vrot.lane.b32.xlu0 %v6960, 32
  %v7066 = vpop.permute.xlu0 %7065
  %7075 = vrot.lane.b32.xlu0 %v7051, 64
  %v7076 = vpop.permute.xlu0 %7075
  %7077 = vrot.lane.b32.xlu0 %v7052, 64
  %v7078 = vpop.permute.xlu0 %7077
  %7079 = vrot.lane.b32.xlu0 %v7053, 64
  %v7080 = vpop.permute.xlu0 %7079
  %7081 = vrot.lane.b32.xlu0 %v7054, 64
  %v7082 = vpop.permute.xlu0 %7081
  %v7087 = vsel %vm342, %v6131, %v7060
  %v7088 = vsel %vm342, %v6133, %v7062
  %v7089 = vsel %vm342, %v6135, %v7064
  %v7090 = vsel %vm342, %v6137, %v7066
  %v7091 = vsel %vm347, %v7087, %v7076
  %v7092 = vsel %vm347, %v7088, %v7078
  %v7093 = vsel %vm347, %v7089, %v7080
  %v7094 = vsel %vm347, %v7090, %v7082
  %v7095 = vpack.c.bf16 %v7092, %v7091
  %v7096 = vpack.c.bf16 %v7094, %v7093
  %v7098 = vsel %vm390, %v7095, 0
  %v7101 = vsel %vm390, %v7096, 0
  %7103 = vmatprep.subr.bf16.mxu0 0
  %7104 = vmatpush1.bf16.msra.mxu0 %v1448
  %7105 = vmatprep.subr.bf16.mxu0 0
  %7106 = vmatpush1.bf16.msra.mxu0 %v1449
  %7107 = vmatprep.subr.bf16.mxu0 0
  %7108 = vmatpush1.bf16.msra.mxu0 %v1450
  %7109 = vmatprep.subr.bf16.mxu0 0
  %7110 = vmatpush1.bf16.msra.mxu0 %v1451
  %7111 = vmatprep.subr.bf16.mxu0 0
  %7112 = vmatpush1.bf16.msra.mxu0 %v1452
  %7113 = vmatprep.subr.bf16.mxu0 0
  %7114 = vmatpush1.bf16.msra.mxu0 %v1453
  %7115 = vmatprep.subr.bf16.mxu0 0
  %7116 = vmatpush1.bf16.msra.mxu0 0
  %7117 = vmatprep.subr.bf16.mxu0 0
  %7118 = vmatpush1.bf16.msra.mxu0 0
  %7119 = vmatprep.subr.bf16.mxu0 0
  %7120 = vmatpush1.bf16.msra.mxu0 0
  %7121 = vmatprep.subr.bf16.mxu0 0
  %7122 = vmatpush1.bf16.msra.mxu0 0
  %7123 = vmatprep.subr.bf16.mxu0 0
  %7124 = vmatpush1.bf16.msra.mxu0 0
  %7125 = vmatprep.subr.bf16.mxu0 0
  %7126 = vmatpush1.bf16.msra.mxu0 0
  %7127 = vmatprep.subr.bf16.mxu0 0
  %7128 = vmatpush1.bf16.msra.mxu0 0
  %7129 = vmatprep.subr.bf16.mxu0 0
  %7130 = vmatpush1.bf16.msra.mxu0 0
  %7131 = vmatprep.subr.bf16.mxu0 0
  %7132 = vmatpush1.bf16.msra.mxu0 0
  %7133 = vmatprep.subr.bf16.mxu0 0
  %7134 = vmatpush1.bf16.msra.mxu0 0
  %7135 = vmatprep.mubr.bf16.mxu0 0
  %7136 = vmatmul.mubr.bf16.gmra.mrb[0].mxu0 %v7098
  %v7137 = vpop.f32.mrb[0].mxu0
  %v7138 = vadd.f32 0.0, %v7137
  %v7139 = vpop.f32.mrb[0].mxu0
  %v7140 = vpop.f32.mrb[0].mxu0
  %v7141 = vadd.f32 0.0, %v7140
  %v7142 = vpop.f32.mrb[0].mxu0
  %7143 = vmatprep.mubr.bf16.mxu0 0
  %7144 = vmatmul.mubr.bf16.gmra.mrb[0].mxu0 %v7101
  %v7145 = vpop.f32.mrb[0].mxu0
  %v7146 = vadd.f32 0.0, %v7145
  %v7147 = vpop.f32.mrb[0].mxu0
  %v7148 = vpop.f32.mrb[0].mxu0
  %v7149 = vadd.f32 0.0, %v7148
  %v7150 = vpop.f32.mrb[0].mxu0
  %7151 = vdwg.mxu0
  %v7152 = vadd.f32 %v6857, %v7138
  %v7153 = vadd.f32 %v6860, %v7141
  %v7154 = vadd.f32 %v6865, %v7146
  %v7155 = vadd.f32 %v6868, %v7149
  %v7156 = vadd.f32 %v7152, %v1523
  %v7157 = vadd.f32 %v7153, %v1523
  %v7158 = vadd.f32 %v7154, %v1523
  %v7159 = vadd.f32 %v7155, %v1523
  %v7160 = vxor.u32 %v7156, 2147483648
  %v7161 = vxor.u32 %v7157, 2147483648
  %v7162 = vxor.u32 %v7158, 2147483648
  %v7163 = vxor.u32 %v7159, 2147483648
  %v7164 = vmul.f32 %v7160, 1.442695
  %v7165 = vpow.pop %v7164
  %v7166 = vmul.f32 %v7161, 1.442695
  %v7167 = vpow.pop %v7166
  %v7168 = vmul.f32 %v7162, 1.442695
  %v7169 = vpow.pop %v7168
  %v7170 = vmul.f32 %v7163, 1.442695
  %v7171 = vpow.pop %v7170
  %v7172 = vadd.f32 %v7165, 1.0
  %v7173 = vadd.f32 %v7167, 1.0
  %v7174 = vadd.f32 %v7169, 1.0
  %v7175 = vadd.f32 %v7171, 1.0
  %v7176 = vrcp.pop %v7172
  %v7177 = vmul.f32 1.0, %v7176
  %v7178 = vrcp.pop %v7173
  %v7179 = vmul.f32 1.0, %v7178
  %v7180 = vrcp.pop %v7174
  %v7181 = vmul.f32 1.0, %v7180
  %v7182 = vrcp.pop %v7175
  %v7183 = vmul.f32 1.0, %v7182
  %v7184 = vmul.f32 %v7177, %v6131
  %v7185 = vmul.f32 %v7179, %v6133
  %v7186 = vmul.f32 %v7181, %v6135
  %v7187 = vmul.f32 %v7183, %v6137
  %v7188 = vpack.c.bf16 %v7185, %v7184
  %v7189 = vpack.c.bf16 %v7187, %v7186
  %7190 = vmatprep.subr.bf16.mxu0 0
  %7191 = vmatpush1.bf16.msra.mxu0 %v7188
  %7192 = vmatprep.subr.bf16.mxu0 0
  %7193 = vmatpush1.bf16.msra.mxu0 0
  %7194 = vmatprep.subr.bf16.mxu0 0
  %7195 = vmatpush1.bf16.msra.mxu0 0
  %7196 = vmatprep.subr.bf16.mxu0 0
  %7197 = vmatpush1.bf16.msra.mxu0 0
  %7198 = vmatprep.subr.bf16.mxu0 0
  %7199 = vmatpush1.bf16.msra.mxu0 0
  %7200 = vmatprep.subr.bf16.mxu0 0
  %7201 = vmatpush1.bf16.msra.mxu0 0
  %7202 = vmatprep.subr.bf16.mxu0 0
  %7203 = vmatpush1.bf16.msra.mxu0 0
  %7204 = vmatprep.subr.bf16.mxu0 0
  %7205 = vmatpush1.bf16.msra.mxu0 0
  %7206 = vmatprep.subr.bf16.mxu0 0
  %7207 = vmatpush1.bf16.msra.mxu0 0
  %7208 = vmatprep.subr.bf16.mxu0 0
  %7209 = vmatpush1.bf16.msra.mxu0 0
  %7210 = vmatprep.subr.bf16.mxu0 0
  %7211 = vmatpush1.bf16.msra.mxu0 0
  %7212 = vmatprep.subr.bf16.mxu0 0
  %7213 = vmatpush1.bf16.msra.mxu0 0
  %7214 = vmatprep.subr.bf16.mxu0 0
  %7215 = vmatpush1.bf16.msra.mxu0 0
  %7216 = vmatprep.subr.bf16.mxu0 0
  %7217 = vmatpush1.bf16.msra.mxu0 0
  %7218 = vmatprep.subr.bf16.mxu0 0
  %7219 = vmatpush1.bf16.msra.mxu0 0
  %7220 = vmatprep.subr.bf16.mxu0 0
  %7221 = vmatpush1.bf16.msra.mxu0 0
  %7222 = vmatprep.mubr.bf16.mxu0 0
  %7223 = vmatmul.mubr.bf16.gmra.mrb[0].mxu0 %v126
  %v7224 = vpop.f32.mrb[0].mxu0
  %v7225 = vadd.f32 0.0, %v7224
  %v7226 = vpop.f32.mrb[0].mxu0
  %v7227 = vpop.f32.mrb[0].mxu0
  %v7228 = vadd.f32 0.0, %v7227
  %v7229 = vpop.f32.mrb[0].mxu0
  %7230 = vdwg.mxu0
  %7231 = vmatprep.subr.bf16.mxu0 0
  %7232 = vmatpush1.bf16.msra.mxu0 %v7189
  %7233 = vmatprep.subr.bf16.mxu0 0
  %7234 = vmatpush1.bf16.msra.mxu0 0
  %7235 = vmatprep.subr.bf16.mxu0 0
  %7236 = vmatpush1.bf16.msra.mxu0 0
  %7237 = vmatprep.subr.bf16.mxu0 0
  %7238 = vmatpush1.bf16.msra.mxu0 0
  %7239 = vmatprep.subr.bf16.mxu0 0
  %7240 = vmatpush1.bf16.msra.mxu0 0
  %7241 = vmatprep.subr.bf16.mxu0 0
  %7242 = vmatpush1.bf16.msra.mxu0 0
  %7243 = vmatprep.subr.bf16.mxu0 0
  %7244 = vmatpush1.bf16.msra.mxu0 0
  %7245 = vmatprep.subr.bf16.mxu0 0
  %7246 = vmatpush1.bf16.msra.mxu0 0
  %7247 = vmatprep.subr.bf16.mxu0 0
  %7248 = vmatpush1.bf16.msra.mxu0 0
  %7249 = vmatprep.subr.bf16.mxu0 0
  %7250 = vmatpush1.bf16.msra.mxu0 0
  %7251 = vmatprep.subr.bf16.mxu0 0
  %7252 = vmatpush1.bf16.msra.mxu0 0
  %7253 = vmatprep.subr.bf16.mxu0 0
  %7254 = vmatpush1.bf16.msra.mxu0 0
  %7255 = vmatprep.subr.bf16.mxu0 0
  %7256 = vmatpush1.bf16.msra.mxu0 0
  %7257 = vmatprep.subr.bf16.mxu0 0
  %7258 = vmatpush1.bf16.msra.mxu0 0
  %7259 = vmatprep.subr.bf16.mxu0 0
  %7260 = vmatpush1.bf16.msra.mxu0 0
  %7261 = vmatprep.subr.bf16.mxu0 0
  %7262 = vmatpush1.bf16.msra.mxu0 0
  %7263 = vmatprep.mubr.bf16.mxu0 0
  %7264 = vmatmul.mubr.bf16.gmra.mrb[0].mxu0 %v175
  %v7265 = vpop.f32.mrb[0].mxu0
  %v7266 = vadd.f32 0.0, %v7265
  %v7267 = vpop.f32.mrb[0].mxu0
  %v7268 = vpop.f32.mrb[0].mxu0
  %v7269 = vadd.f32 0.0, %v7268
  %v7270 = vpop.f32.mrb[0].mxu0
  %7271 = vdwg.mxu0
  %v7272 = vpack.c.bf16 %v7228, %v7225
  %v7273 = vpack.c.bf16 %v7269, %v7266
  %7274 = vmatprep.subr.bf16.mxu0 0
  %7275 = vmatpush1.bf16.msra.mxu0 %v7272
  %7276 = vmatprep.subr.bf16.mxu0 0
  %7277 = vmatpush1.bf16.msra.mxu0 0
  %7278 = vmatprep.subr.bf16.mxu0 0
  %7279 = vmatpush1.bf16.msra.mxu0 0
  %7280 = vmatprep.subr.bf16.mxu0 0
  %7281 = vmatpush1.bf16.msra.mxu0 0
  %7282 = vmatprep.subr.bf16.mxu0 0
  %7283 = vmatpush1.bf16.msra.mxu0 0
  %7284 = vmatprep.subr.bf16.mxu0 0
  %7285 = vmatpush1.bf16.msra.mxu0 0
  %7286 = vmatprep.subr.bf16.mxu0 0
  %7287 = vmatpush1.bf16.msra.mxu0 0
  %7288 = vmatprep.subr.bf16.mxu0 0
  %7289 = vmatpush1.bf16.msra.mxu0 0
  %7290 = vmatprep.subr.bf16.mxu0 0
  %7291 = vmatpush1.bf16.msra.mxu0 0
  %7292 = vmatprep.subr.bf16.mxu0 0
  %7293 = vmatpush1.bf16.msra.mxu0 0
  %7294 = vmatprep.subr.bf16.mxu0 0
  %7295 = vmatpush1.bf16.msra.mxu0 0
  %7296 = vmatprep.subr.bf16.mxu0 0
  %7297 = vmatpush1.bf16.msra.mxu0 0
  %7298 = vmatprep.subr.bf16.mxu0 0
  %7299 = vmatpush1.bf16.msra.mxu0 0
  %7300 = vmatprep.subr.bf16.mxu0 0
  %7301 = vmatpush1.bf16.msra.mxu0 0
  %7302 = vmatprep.subr.bf16.mxu0 0
  %7303 = vmatpush1.bf16.msra.mxu0 0
  %7304 = vmatprep.subr.bf16.mxu0 0
  %7305 = vmatpush1.bf16.msra.mxu0 0
  %7306 = vmatprep.mubr.bf16.mxu0 0
  %7307 = vmatmul.mubr.bf16.gmra.mrb[0].mxu0 %v126
  %v7308 = vpop.f32.mrb[0].mxu0
  %v7309 = vadd.f32 0.0, %v7308
  %v7310 = vpop.f32.mrb[0].mxu0
  %v7311 = vpop.f32.mrb[0].mxu0
  %v7312 = vadd.f32 0.0, %v7311
  %v7313 = vpop.f32.mrb[0].mxu0
  %7314 = vdwg.mxu0
  %7315 = vmatprep.subr.bf16.mxu0 0
  %7316 = vmatpush1.bf16.msra.mxu0 %v7273
  %7317 = vmatprep.subr.bf16.mxu0 0
  %7318 = vmatpush1.bf16.msra.mxu0 0
  %7319 = vmatprep.subr.bf16.mxu0 0
  %7320 = vmatpush1.bf16.msra.mxu0 0
  %7321 = vmatprep.subr.bf16.mxu0 0
  %7322 = vmatpush1.bf16.msra.mxu0 0
  %7323 = vmatprep.subr.bf16.mxu0 0
  %7324 = vmatpush1.bf16.msra.mxu0 0
  %7325 = vmatprep.subr.bf16.mxu0 0
  %7326 = vmatpush1.bf16.msra.mxu0 0
  %7327 = vmatprep.subr.bf16.mxu0 0
  %7328 = vmatpush1.bf16.msra.mxu0 0
  %7329 = vmatprep.subr.bf16.mxu0 0
  %7330 = vmatpush1.bf16.msra.mxu0 0
  %7331 = vmatprep.subr.bf16.mxu0 0
  %7332 = vmatpush1.bf16.msra.mxu0 0
  %7333 = vmatprep.subr.bf16.mxu0 0
  %7334 = vmatpush1.bf16.msra.mxu0 0
  %7335 = vmatprep.subr.bf16.mxu0 0
  %7336 = vmatpush1.bf16.msra.mxu0 0
  %7337 = vmatprep.subr.bf16.mxu0 0
  %7338 = vmatpush1.bf16.msra.mxu0 0
  %7339 = vmatprep.subr.bf16.mxu0 0
  %7340 = vmatpush1.bf16.msra.mxu0 0
  %7341 = vmatprep.subr.bf16.mxu0 0
  %7342 = vmatpush1.bf16.msra.mxu0 0
  %7343 = vmatprep.subr.bf16.mxu0 0
  %7344 = vmatpush1.bf16.msra.mxu0 0
  %7345 = vmatprep.subr.bf16.mxu0 0
  %7346 = vmatpush1.bf16.msra.mxu0 0
  %7347 = vmatprep.mubr.bf16.mxu0 0
  %7348 = vmatmul.mubr.bf16.gmra.mrb[0].mxu0 %v175
  %v7349 = vpop.f32.mrb[0].mxu0
  %v7350 = vadd.f32 0.0, %v7349
  %v7351 = vpop.f32.mrb[0].mxu0
  %v7352 = vpop.f32.mrb[0].mxu0
  %v7353 = vadd.f32 0.0, %v7352
  %v7354 = vpop.f32.mrb[0].mxu0
  %7355 = vdwg.mxu0
  %v7356 = vmul.f32 %v7309, 2.0
  %v7357 = vmul.f32 %v7312, 2.0
  %v7358 = vmul.f32 %v7350, 2.0
  %v7359 = vmul.f32 %v7353, 2.0
  %v7360 = vsub.f32 %v7356, %v7184
  %v7361 = vsub.f32 %v7357, %v7185
  %v7362 = vsub.f32 %v7358, %v7186
  %v7363 = vsub.f32 %v7359, %v7187
  %7368 = vrot.lane.b32.xlu0 %v7225, 32
  %v7369 = vpop.permute.xlu0 %7368
  %7370 = vrot.lane.b32.xlu0 %v7228, 32
  %v7371 = vpop.permute.xlu0 %7370
  %7372 = vrot.lane.b32.xlu0 %v7266, 32
  %v7373 = vpop.permute.xlu0 %7372
  %7374 = vrot.lane.b32.xlu0 %v7269, 32
  %v7375 = vpop.permute.xlu0 %7374
  %7384 = vrot.lane.b32.xlu0 %v7360, 64
  %v7385 = vpop.permute.xlu0 %7384
  %7386 = vrot.lane.b32.xlu0 %v7361, 64
  %v7387 = vpop.permute.xlu0 %7386
  %7388 = vrot.lane.b32.xlu0 %v7362, 64
  %v7389 = vpop.permute.xlu0 %7388
  %7390 = vrot.lane.b32.xlu0 %v7363, 64
  %v7391 = vpop.permute.xlu0 %7390
  %v7396 = vsel %vm342, %v7184, %v7369
  %v7397 = vsel %vm342, %v7185, %v7371
  %v7398 = vsel %vm342, %v7186, %v7373
  %v7399 = vsel %vm342, %v7187, %v7375
  %v7400 = vsel %vm347, %v7396, %v7385
  %v7401 = vsel %vm347, %v7397, %v7387
  %v7402 = vsel %vm347, %v7398, %v7389
  %v7403 = vsel %vm347, %v7399, %v7391
  %v7404 = vpack.c.bf16 %v7401, %v7400
  %v7405 = vpack.c.bf16 %v7403, %v7402
  %v7407 = vsel %vm390, %v7404, 0
  %v7410 = vsel %vm390, %v7405, 0
  %7412 = vmatprep.subr.bf16.mxu0 0
  %7413 = vmatpush1.bf16.msra.mxu0 %v1799
  %7414 = vmatprep.subr.bf16.mxu0 0
  %7415 = vmatpush1.bf16.msra.mxu0 %v1800
  %7416 = vmatprep.subr.bf16.mxu0 0
  %7417 = vmatpush1.bf16.msra.mxu0 %v1801
  %7418 = vmatprep.subr.bf16.mxu0 0
  %7419 = vmatpush1.bf16.msra.mxu0 %v1802
  %7420 = vmatprep.subr.bf16.mxu0 0
  %7421 = vmatpush1.bf16.msra.mxu0 %v1803
  %7422 = vmatprep.subr.bf16.mxu0 0
  %7423 = vmatpush1.bf16.msra.mxu0 %v1804
  %7424 = vmatprep.subr.bf16.mxu0 0
  %7425 = vmatpush1.bf16.msra.mxu0 0
  %7426 = vmatprep.subr.bf16.mxu0 0
  %7427 = vmatpush1.bf16.msra.mxu0 0
  %7428 = vmatprep.subr.bf16.mxu0 0
  %7429 = vmatpush1.bf16.msra.mxu0 0
  %7430 = vmatprep.subr.bf16.mxu0 0
  %7431 = vmatpush1.bf16.msra.mxu0 0
  %7432 = vmatprep.subr.bf16.mxu0 0
  %7433 = vmatpush1.bf16.msra.mxu0 0
  %7434 = vmatprep.subr.bf16.mxu0 0
  %7435 = vmatpush1.bf16.msra.mxu0 0
  %7436 = vmatprep.subr.bf16.mxu0 0
  %7437 = vmatpush1.bf16.msra.mxu0 0
  %7438 = vmatprep.subr.bf16.mxu0 0
  %7439 = vmatpush1.bf16.msra.mxu0 0
  %7440 = vmatprep.subr.bf16.mxu0 0
  %7441 = vmatpush1.bf16.msra.mxu0 0
  %7442 = vmatprep.subr.bf16.mxu0 0
  %7443 = vmatpush1.bf16.msra.mxu0 0
  %7444 = vmatprep.mubr.bf16.mxu0 0
  %7445 = vmatmul.mubr.bf16.gmra.mrb[0].mxu0 %v7407
  %v7446 = vpop.f32.mrb[0].mxu0
  %v7447 = vadd.f32 0.0, %v7446
  %v7448 = vpop.f32.mrb[0].mxu0
  %v7449 = vpop.f32.mrb[0].mxu0
  %v7450 = vadd.f32 0.0, %v7449
  %v7451 = vpop.f32.mrb[0].mxu0
  %7452 = vmatprep.mubr.bf16.mxu0 0
  %7453 = vmatmul.mubr.bf16.gmra.mrb[0].mxu0 %v7410
  %v7454 = vpop.f32.mrb[0].mxu0
  %v7455 = vadd.f32 0.0, %v7454
  %v7456 = vpop.f32.mrb[0].mxu0
  %v7457 = vpop.f32.mrb[0].mxu0
  %v7458 = vadd.f32 0.0, %v7457
  %v7459 = vpop.f32.mrb[0].mxu0
  %7460 = vdwg.mxu0
  %7465 = vrot.lane.b32.xlu0 %v7447, 64
  %v7466 = vpop.permute.xlu0 %7465
  %7467 = vrot.lane.b32.xlu0 %v7450, 64
  %v7468 = vpop.permute.xlu0 %7467
  %7469 = vrot.lane.b32.xlu0 %v7455, 64
  %v7470 = vpop.permute.xlu0 %7469
  %7471 = vrot.lane.b32.xlu0 %v7458, 64
  %v7472 = vpop.permute.xlu0 %7471
  %v7477 = vadd.f32 %v6857, %v7466
  %v7478 = vadd.f32 %v6860, %v7468
  %v7479 = vadd.f32 %v6865, %v7470
  %v7480 = vadd.f32 %v6868, %v7472
  %v7481 = vadd.f32 %v7477, %v1523
  %v7482 = vadd.f32 %v7478, %v1523
  %v7483 = vadd.f32 %v7479, %v1523
  %v7484 = vadd.f32 %v7480, %v1523
  %v7485 = vtanh.pop %v7481
  %v7486 = vtanh.pop %v7482
  %v7487 = vtanh.pop %v7483
  %v7488 = vtanh.pop %v7484
  %v7489 = vmul.f32 %v7177, %v6122
  %v7490 = vmul.f32 %v7179, %v6123
  %v7491 = vmul.f32 %v7181, %v6124
  %v7492 = vmul.f32 %v7183, %v6125
  %v7493 = vsub.f32 1.0, %v7177
  %v7494 = vsub.f32 1.0, %v7179
  %v7495 = vsub.f32 1.0, %v7181
  %v7496 = vsub.f32 1.0, %v7183
  %7501 = vrot.lane.b32.xlu0 %v7485, 96
  %v7502 = vpop.permute.xlu0 %7501
  %7503 = vrot.lane.b32.xlu0 %v7486, 96
  %v7504 = vpop.permute.xlu0 %7503
  %7505 = vrot.lane.b32.xlu0 %v7487, 96
  %v7506 = vpop.permute.xlu0 %7505
  %7507 = vrot.lane.b32.xlu0 %v7488, 96
  %v7508 = vpop.permute.xlu0 %7507
  %v7513 = vmul.f32 %v7493, %v7502
  %v7514 = vmul.f32 %v7494, %v7504
  %v7515 = vmul.f32 %v7495, %v7506
  %v7516 = vmul.f32 %v7496, %v7508
  %v7517 = vadd.f32 %v7489, %v7513
  %v7518 = vadd.f32 %v7490, %v7514
  %v7519 = vadd.f32 %v7491, %v7515
  %v7520 = vadd.f32 %v7492, %v7516
  %7525 = vrot.lane.b32.xlu0 %v7517, 96
  %v7526 = vpop.permute.xlu0 %7525
  %7527 = vrot.lane.b32.xlu0 %v7518, 96
  %v7528 = vpop.permute.xlu0 %7527
  %7529 = vrot.lane.b32.xlu0 %v7519, 96
  %v7530 = vpop.permute.xlu0 %7529
  %7531 = vrot.lane.b32.xlu0 %v7520, 96
  %v7532 = vpop.permute.xlu0 %7531
  %s7537 = scalar_lea.vmem %s9, 128
  %7538 = vst.msk [vmem:[%s7537] sm:$0xff] %vm342, %v7526
  %7539 = vst.msk [vmem:[%s7537 + $0x8] sm:$0xff] %vm342, %v7528
  %7540 = vst.msk [vmem:[%s7537 + $0x10] sm:$0xff] %vm342, %v7530
  %7541 = vst.msk [vmem:[%s7537 + $0x18] sm:$0xff] %vm342, %v7532
  %s7542 = scalar_lea.vmem %s0, 80
  %v7543 = vld [vmem:[%s7542] sm:$0xf]
  %v7544 = vld [vmem:[%s7542 + $0x4] sm:$0xf]
  %v7545 = vld [vmem:[%s7542 + $0x8] sm:$0xf]
  %v7546 = vld [vmem:[%s7542 + $0xc] sm:$0xf]
  %v7547 = vunpack.c.l.bf16 %v7543
  %v7548 = vunpack.c.l.bf16 %v7544
  %v7549 = vunpack.c.l.bf16 %v7545
  %v7550 = vunpack.c.l.bf16 %v7546
  %7551 = vmatprep.subr.bf16.mxu0 0
  %7552 = vmatpush1.bf16.msra.mxu0 %v378
  %7553 = vmatprep.subr.bf16.mxu0 0
  %7554 = vmatpush1.bf16.msra.mxu0 %v379
  %7555 = vmatprep.subr.bf16.mxu0 0
  %7556 = vmatpush1.bf16.msra.mxu0 %v380
  %7557 = vmatprep.subr.bf16.mxu0 0
  %7558 = vmatpush1.bf16.msra.mxu0 %v381
  %7559 = vmatprep.subr.bf16.mxu0 0
  %7560 = vmatpush1.bf16.msra.mxu0 %v382
  %7561 = vmatprep.subr.bf16.mxu0 0
  %7562 = vmatpush1.bf16.msra.mxu0 %v383
  %7563 = vmatprep.subr.bf16.mxu0 0
  %7564 = vmatpush1.bf16.msra.mxu0 0
  %7565 = vmatprep.subr.bf16.mxu0 0
  %7566 = vmatpush1.bf16.msra.mxu0 0
  %7567 = vmatprep.subr.bf16.mxu0 0
  %7568 = vmatpush1.bf16.msra.mxu0 0
  %7569 = vmatprep.subr.bf16.mxu0 0
  %7570 = vmatpush1.bf16.msra.mxu0 0
  %7571 = vmatprep.subr.bf16.mxu0 0
  %7572 = vmatpush1.bf16.msra.mxu0 0
  %7573 = vmatprep.subr.bf16.mxu0 0
  %7574 = vmatpush1.bf16.msra.mxu0 0
  %7575 = vmatprep.subr.bf16.mxu0 0
  %7576 = vmatpush1.bf16.msra.mxu0 0
  %7577 = vmatprep.subr.bf16.mxu0 0
  %7578 = vmatpush1.bf16.msra.mxu0 0
  %7579 = vmatprep.subr.bf16.mxu0 0
  %7580 = vmatpush1.bf16.msra.mxu0 0
  %7581 = vmatprep.subr.bf16.mxu0 0
  %7582 = vmatpush1.bf16.msra.mxu0 0
  %7583 = vmatprep.mubr.bf16.mxu0 0
  %7584 = vmatmul.mubr.bf16.gmra.mrb[0].mxu0 %v6817
  %v7585 = vpop.f32.mrb[0].mxu0
  %v7586 = vadd.f32 0.0, %v7585
  %v7587 = vpop.f32.mrb[0].mxu0
  %v7588 = vpop.f32.mrb[0].mxu0
  %v7589 = vadd.f32 0.0, %v7588
  %v7590 = vpop.f32.mrb[0].mxu0
  %7591 = vmatprep.mubr.bf16.mxu0 0
  %7592 = vmatmul.mubr.bf16.gmra.mrb[0].mxu0 %v6820
  %v7593 = vpop.f32.mrb[0].mxu0
  %v7594 = vadd.f32 0.0, %v7593
  %v7595 = vpop.f32.mrb[0].mxu0
  %v7596 = vpop.f32.mrb[0].mxu0
  %v7597 = vadd.f32 0.0, %v7596
  %v7598 = vpop.f32.mrb[0].mxu0
  %7599 = vdwg.mxu0
  %v7600 = vadd.f32 %v7547, %v7586
  %v7601 = vadd.f32 %v7548, %v7589
  %v7602 = vadd.f32 %v7549, %v7594
  %v7603 = vadd.f32 %v7550, %v7597
  %v7604 = vadd.f32 %v7600, %v454
  %v7605 = vadd.f32 %v7601, %v454
  %v7606 = vadd.f32 %v7602, %v454
  %v7607 = vadd.f32 %v7603, %v454
  %v7608 = vxor.u32 %v7604, 2147483648
  %v7609 = vxor.u32 %v7605, 2147483648
  %v7610 = vxor.u32 %v7606, 2147483648
  %v7611 = vxor.u32 %v7607, 2147483648
  %v7612 = vmul.f32 %v7608, 1.442695
  %v7613 = vpow.pop %v7612
  %v7614 = vmul.f32 %v7609, 1.442695
  %v7615 = vpow.pop %v7614
  %v7616 = vmul.f32 %v7610, 1.442695
  %v7617 = vpow.pop %v7616
  %v7618 = vmul.f32 %v7611, 1.442695
  %v7619 = vpow.pop %v7618
  %v7620 = vadd.f32 %v7613, 1.0
  %v7621 = vadd.f32 %v7615, 1.0
  %v7622 = vadd.f32 %v7617, 1.0
  %v7623 = vadd.f32 %v7619, 1.0
  %v7624 = vrcp.pop %v7620
  %v7625 = vmul.f32 1.0, %v7624
  %v7626 = vrcp.pop %v7621
  %v7627 = vmul.f32 1.0, %v7626
  %v7628 = vrcp.pop %v7622
  %v7629 = vmul.f32 1.0, %v7628
  %v7630 = vrcp.pop %v7623
  %v7631 = vmul.f32 1.0, %v7630
  %v7632 = vmul.f32 %v7625, %v6759
  %v7633 = vmul.f32 %v7627, %v6761
  %v7634 = vmul.f32 %v7629, %v6763
  %v7635 = vmul.f32 %v7631, %v6765
  %v7636 = vpack.c.bf16 %v7633, %v7632
  %v7637 = vpack.c.bf16 %v7635, %v7634
  %7638 = vmatprep.subr.bf16.mxu0 0
  %7639 = vmatpush1.bf16.msra.mxu0 %v7636
  %7640 = vmatprep.subr.bf16.mxu0 0
  %7641 = vmatpush1.bf16.msra.mxu0 0
  %7642 = vmatprep.subr.bf16.mxu0 0
  %7643 = vmatpush1.bf16.msra.mxu0 0
  %7644 = vmatprep.subr.bf16.mxu0 0
  %7645 = vmatpush1.bf16.msra.mxu0 0
  %7646 = vmatprep.subr.bf16.mxu0 0
  %7647 = vmatpush1.bf16.msra.mxu0 0
  %7648 = vmatprep.subr.bf16.mxu0 0
  %7649 = vmatpush1.bf16.msra.mxu0 0
  %7650 = vmatprep.subr.bf16.mxu0 0
  %7651 = vmatpush1.bf16.msra.mxu0 0
  %7652 = vmatprep.subr.bf16.mxu0 0
  %7653 = vmatpush1.bf16.msra.mxu0 0
  %7654 = vmatprep.subr.bf16.mxu0 0
  %7655 = vmatpush1.bf16.msra.mxu0 0
  %7656 = vmatprep.subr.bf16.mxu0 0
  %7657 = vmatpush1.bf16.msra.mxu0 0
  %7658 = vmatprep.subr.bf16.mxu0 0
  %7659 = vmatpush1.bf16.msra.mxu0 0
  %7660 = vmatprep.subr.bf16.mxu0 0
  %7661 = vmatpush1.bf16.msra.mxu0 0
  %7662 = vmatprep.subr.bf16.mxu0 0
  %7663 = vmatpush1.bf16.msra.mxu0 0
  %7664 = vmatprep.subr.bf16.mxu0 0
  %7665 = vmatpush1.bf16.msra.mxu0 0
  %7666 = vmatprep.subr.bf16.mxu0 0
  %7667 = vmatpush1.bf16.msra.mxu0 0
  %7668 = vmatprep.subr.bf16.mxu0 0
  %7669 = vmatpush1.bf16.msra.mxu0 0
  %7670 = vmatprep.mubr.bf16.mxu0 0
  %7671 = vmatmul.mubr.bf16.gmra.mrb[0].mxu0 %v126
  %v7672 = vpop.f32.mrb[0].mxu0
  %v7673 = vadd.f32 0.0, %v7672
  %v7674 = vpop.f32.mrb[0].mxu0
  %v7675 = vpop.f32.mrb[0].mxu0
  %v7676 = vadd.f32 0.0, %v7675
  %v7677 = vpop.f32.mrb[0].mxu0
  %7678 = vdwg.mxu0
  %7679 = vmatprep.subr.bf16.mxu0 0
  %7680 = vmatpush1.bf16.msra.mxu0 %v7637
  %7681 = vmatprep.subr.bf16.mxu0 0
  %7682 = vmatpush1.bf16.msra.mxu0 0
  %7683 = vmatprep.subr.bf16.mxu0 0
  %7684 = vmatpush1.bf16.msra.mxu0 0
  %7685 = vmatprep.subr.bf16.mxu0 0
  %7686 = vmatpush1.bf16.msra.mxu0 0
  %7687 = vmatprep.subr.bf16.mxu0 0
  %7688 = vmatpush1.bf16.msra.mxu0 0
  %7689 = vmatprep.subr.bf16.mxu0 0
  %7690 = vmatpush1.bf16.msra.mxu0 0
  %7691 = vmatprep.subr.bf16.mxu0 0
  %7692 = vmatpush1.bf16.msra.mxu0 0
  %7693 = vmatprep.subr.bf16.mxu0 0
  %7694 = vmatpush1.bf16.msra.mxu0 0
  %7695 = vmatprep.subr.bf16.mxu0 0
  %7696 = vmatpush1.bf16.msra.mxu0 0
  %7697 = vmatprep.subr.bf16.mxu0 0
  %7698 = vmatpush1.bf16.msra.mxu0 0
  %7699 = vmatprep.subr.bf16.mxu0 0
  %7700 = vmatpush1.bf16.msra.mxu0 0
  %7701 = vmatprep.subr.bf16.mxu0 0
  %7702 = vmatpush1.bf16.msra.mxu0 0
  %7703 = vmatprep.subr.bf16.mxu0 0
  %7704 = vmatpush1.bf16.msra.mxu0 0
  %7705 = vmatprep.subr.bf16.mxu0 0
  %7706 = vmatpush1.bf16.msra.mxu0 0
  %7707 = vmatprep.subr.bf16.mxu0 0
  %7708 = vmatpush1.bf16.msra.mxu0 0
  %7709 = vmatprep.subr.bf16.mxu0 0
  %7710 = vmatpush1.bf16.msra.mxu0 0
  %7711 = vmatprep.mubr.bf16.mxu0 0
  %7712 = vmatmul.mubr.bf16.gmra.mrb[0].mxu0 %v175
  %v7713 = vpop.f32.mrb[0].mxu0
  %v7714 = vadd.f32 0.0, %v7713
  %v7715 = vpop.f32.mrb[0].mxu0
  %v7716 = vpop.f32.mrb[0].mxu0
  %v7717 = vadd.f32 0.0, %v7716
  %v7718 = vpop.f32.mrb[0].mxu0
  %7719 = vdwg.mxu0
  %v7720 = vpack.c.bf16 %v7676, %v7673
  %v7721 = vpack.c.bf16 %v7717, %v7714
  %7722 = vmatprep.subr.bf16.mxu0 0
  %7723 = vmatpush1.bf16.msra.mxu0 %v7720
  %7724 = vmatprep.subr.bf16.mxu0 0
  %7725 = vmatpush1.bf16.msra.mxu0 0
  %7726 = vmatprep.subr.bf16.mxu0 0
  %7727 = vmatpush1.bf16.msra.mxu0 0
  %7728 = vmatprep.subr.bf16.mxu0 0
  %7729 = vmatpush1.bf16.msra.mxu0 0
  %7730 = vmatprep.subr.bf16.mxu0 0
  %7731 = vmatpush1.bf16.msra.mxu0 0
  %7732 = vmatprep.subr.bf16.mxu0 0
  %7733 = vmatpush1.bf16.msra.mxu0 0
  %7734 = vmatprep.subr.bf16.mxu0 0
  %7735 = vmatpush1.bf16.msra.mxu0 0
  %7736 = vmatprep.subr.bf16.mxu0 0
  %7737 = vmatpush1.bf16.msra.mxu0 0
  %7738 = vmatprep.subr.bf16.mxu0 0
  %7739 = vmatpush1.bf16.msra.mxu0 0
  %7740 = vmatprep.subr.bf16.mxu0 0
  %7741 = vmatpush1.bf16.msra.mxu0 0
  %7742 = vmatprep.subr.bf16.mxu0 0
  %7743 = vmatpush1.bf16.msra.mxu0 0
  %7744 = vmatprep.subr.bf16.mxu0 0
  %7745 = vmatpush1.bf16.msra.mxu0 0
  %7746 = vmatprep.subr.bf16.mxu0 0
  %7747 = vmatpush1.bf16.msra.mxu0 0
  %7748 = vmatprep.subr.bf16.mxu0 0
  %7749 = vmatpush1.bf16.msra.mxu0 0
  %7750 = vmatprep.subr.bf16.mxu0 0
  %7751 = vmatpush1.bf16.msra.mxu0 0
  %7752 = vmatprep.subr.bf16.mxu0 0
  %7753 = vmatpush1.bf16.msra.mxu0 0
  %7754 = vmatprep.mubr.bf16.mxu0 0
  %7755 = vmatmul.mubr.bf16.gmra.mrb[0].mxu0 %v126
  %v7756 = vpop.f32.mrb[0].mxu0
  %v7757 = vadd.f32 0.0, %v7756
  %v7758 = vpop.f32.mrb[0].mxu0
  %v7759 = vpop.f32.mrb[0].mxu0
  %v7760 = vadd.f32 0.0, %v7759
  %v7761 = vpop.f32.mrb[0].mxu0
  %7762 = vdwg.mxu0
  %7763 = vmatprep.subr.bf16.mxu0 0
  %7764 = vmatpush1.bf16.msra.mxu0 %v7721
  %7765 = vmatprep.subr.bf16.mxu0 0
  %7766 = vmatpush1.bf16.msra.mxu0 0
  %7767 = vmatprep.subr.bf16.mxu0 0
  %7768 = vmatpush1.bf16.msra.mxu0 0
  %7769 = vmatprep.subr.bf16.mxu0 0
  %7770 = vmatpush1.bf16.msra.mxu0 0
  %7771 = vmatprep.subr.bf16.mxu0 0
  %7772 = vmatpush1.bf16.msra.mxu0 0
  %7773 = vmatprep.subr.bf16.mxu0 0
  %7774 = vmatpush1.bf16.msra.mxu0 0
  %7775 = vmatprep.subr.bf16.mxu0 0
  %7776 = vmatpush1.bf16.msra.mxu0 0
  %7777 = vmatprep.subr.bf16.mxu0 0
  %7778 = vmatpush1.bf16.msra.mxu0 0
  %7779 = vmatprep.subr.bf16.mxu0 0
  %7780 = vmatpush1.bf16.msra.mxu0 0
  %7781 = vmatprep.subr.bf16.mxu0 0
  %7782 = vmatpush1.bf16.msra.mxu0 0
  %7783 = vmatprep.subr.bf16.mxu0 0
  %7784 = vmatpush1.bf16.msra.mxu0 0
  %7785 = vmatprep.subr.bf16.mxu0 0
  %7786 = vmatpush1.bf16.msra.mxu0 0
  %7787 = vmatprep.subr.bf16.mxu0 0
  %7788 = vmatpush1.bf16.msra.mxu0 0
  %7789 = vmatprep.subr.bf16.mxu0 0
  %7790 = vmatpush1.bf16.msra.mxu0 0
  %7791 = vmatprep.subr.bf16.mxu0 0
  %7792 = vmatpush1.bf16.msra.mxu0 0
  %7793 = vmatprep.subr.bf16.mxu0 0
  %7794 = vmatpush1.bf16.msra.mxu0 0
  %7795 = vmatprep.mubr.bf16.mxu0 0
  %7796 = vmatmul.mubr.bf16.gmra.mrb[0].mxu0 %v175
  %v7797 = vpop.f32.mrb[0].mxu0
  %v7798 = vadd.f32 0.0, %v7797
  %v7799 = vpop.f32.mrb[0].mxu0
  %v7800 = vpop.f32.mrb[0].mxu0
  %v7801 = vadd.f32 0.0, %v7800
  %v7802 = vpop.f32.mrb[0].mxu0
  %7803 = vdwg.mxu0
  %v7804 = vmul.f32 %v7757, 2.0
  %v7805 = vmul.f32 %v7760, 2.0
  %v7806 = vmul.f32 %v7798, 2.0
  %v7807 = vmul.f32 %v7801, 2.0
  %v7808 = vsub.f32 %v7804, %v7632
  %v7809 = vsub.f32 %v7805, %v7633
  %v7810 = vsub.f32 %v7806, %v7634
  %v7811 = vsub.f32 %v7807, %v7635
  %7816 = vrot.lane.b32.xlu0 %v7673, 32
  %v7817 = vpop.permute.xlu0 %7816
  %7818 = vrot.lane.b32.xlu0 %v7676, 32
  %v7819 = vpop.permute.xlu0 %7818
  %7820 = vrot.lane.b32.xlu0 %v7714, 32
  %v7821 = vpop.permute.xlu0 %7820
  %7822 = vrot.lane.b32.xlu0 %v7717, 32
  %v7823 = vpop.permute.xlu0 %7822
  %7832 = vrot.lane.b32.xlu0 %v7808, 64
  %v7833 = vpop.permute.xlu0 %7832
  %7834 = vrot.lane.b32.xlu0 %v7809, 64
  %v7835 = vpop.permute.xlu0 %7834
  %7836 = vrot.lane.b32.xlu0 %v7810, 64
  %v7837 = vpop.permute.xlu0 %7836
  %7838 = vrot.lane.b32.xlu0 %v7811, 64
  %v7839 = vpop.permute.xlu0 %7838
  %v7844 = vsel %vm342, %v7632, %v7817
  %v7845 = vsel %vm342, %v7633, %v7819
  %v7846 = vsel %vm342, %v7634, %v7821
  %v7847 = vsel %vm342, %v7635, %v7823
  %v7848 = vsel %vm347, %v7844, %v7833
  %v7849 = vsel %vm347, %v7845, %v7835
  %v7850 = vsel %vm347, %v7846, %v7837
  %v7851 = vsel %vm347, %v7847, %v7839
  %v7852 = vpack.c.bf16 %v7849, %v7848
  %v7853 = vpack.c.bf16 %v7851, %v7850
  %v7855 = vsel %vm390, %v7852, 0
  %v7858 = vsel %vm390, %v7853, 0
  %7860 = vmatprep.subr.bf16.mxu0 0
  %7861 = vmatpush1.bf16.msra.mxu0 %v730
  %7862 = vmatprep.subr.bf16.mxu0 0
  %7863 = vmatpush1.bf16.msra.mxu0 %v731
  %7864 = vmatprep.subr.bf16.mxu0 0
  %7865 = vmatpush1.bf16.msra.mxu0 %v732
  %7866 = vmatprep.subr.bf16.mxu0 0
  %7867 = vmatpush1.bf16.msra.mxu0 %v733
  %7868 = vmatprep.subr.bf16.mxu0 0
  %7869 = vmatpush1.bf16.msra.mxu0 %v734
  %7870 = vmatprep.subr.bf16.mxu0 0
  %7871 = vmatpush1.bf16.msra.mxu0 %v735
  %7872 = vmatprep.subr.bf16.mxu0 0
  %7873 = vmatpush1.bf16.msra.mxu0 0
  %7874 = vmatprep.subr.bf16.mxu0 0
  %7875 = vmatpush1.bf16.msra.mxu0 0
  %7876 = vmatprep.subr.bf16.mxu0 0
  %7877 = vmatpush1.bf16.msra.mxu0 0
  %7878 = vmatprep.subr.bf16.mxu0 0
  %7879 = vmatpush1.bf16.msra.mxu0 0
  %7880 = vmatprep.subr.bf16.mxu0 0
  %7881 = vmatpush1.bf16.msra.mxu0 0
  %7882 = vmatprep.subr.bf16.mxu0 0
  %7883 = vmatpush1.bf16.msra.mxu0 0
  %7884 = vmatprep.subr.bf16.mxu0 0
  %7885 = vmatpush1.bf16.msra.mxu0 0
  %7886 = vmatprep.subr.bf16.mxu0 0
  %7887 = vmatpush1.bf16.msra.mxu0 0
  %7888 = vmatprep.subr.bf16.mxu0 0
  %7889 = vmatpush1.bf16.msra.mxu0 0
  %7890 = vmatprep.subr.bf16.mxu0 0
  %7891 = vmatpush1.bf16.msra.mxu0 0
  %7892 = vmatprep.mubr.bf16.mxu0 0
  %7893 = vmatmul.mubr.bf16.gmra.mrb[0].mxu0 %v7855
  %v7894 = vpop.f32.mrb[0].mxu0
  %v7895 = vadd.f32 0.0, %v7894
  %v7896 = vpop.f32.mrb[0].mxu0
  %v7897 = vpop.f32.mrb[0].mxu0
  %v7898 = vadd.f32 0.0, %v7897
  %v7899 = vpop.f32.mrb[0].mxu0
  %7900 = vmatprep.mubr.bf16.mxu0 0
  %7901 = vmatmul.mubr.bf16.gmra.mrb[0].mxu0 %v7858
  %v7902 = vpop.f32.mrb[0].mxu0
  %v7903 = vadd.f32 0.0, %v7902
  %v7904 = vpop.f32.mrb[0].mxu0
  %v7905 = vpop.f32.mrb[0].mxu0
  %v7906 = vadd.f32 0.0, %v7905
  %v7907 = vpop.f32.mrb[0].mxu0
  %7908 = vdwg.mxu0
  %7913 = vrot.lane.b32.xlu0 %v7895, 64
  %v7914 = vpop.permute.xlu0 %7913
  %7915 = vrot.lane.b32.xlu0 %v7898, 64
  %v7916 = vpop.permute.xlu0 %7915
  %7917 = vrot.lane.b32.xlu0 %v7903, 64
  %v7918 = vpop.permute.xlu0 %7917
  %7919 = vrot.lane.b32.xlu0 %v7906, 64
  %v7920 = vpop.permute.xlu0 %7919
  %v7925 = vadd.f32 %v7547, %v7914
  %v7926 = vadd.f32 %v7548, %v7916
  %v7927 = vadd.f32 %v7549, %v7918
  %v7928 = vadd.f32 %v7550, %v7920
  %v7929 = vadd.f32 %v7925, %v454
  %v7930 = vadd.f32 %v7926, %v454
  %v7931 = vadd.f32 %v7927, %v454
  %v7932 = vadd.f32 %v7928, %v454
  %v7933 = vtanh.pop %v7929
  %v7934 = vtanh.pop %v7930
  %v7935 = vtanh.pop %v7931
  %v7936 = vtanh.pop %v7932
  %v7937 = vmul.f32 %v7625, %v6570
  %v7938 = vmul.f32 %v7627, %v6571
  %v7939 = vmul.f32 %v7629, %v6572
  %v7940 = vmul.f32 %v7631, %v6573
  %v7941 = vsub.f32 1.0, %v7625
  %v7942 = vsub.f32 1.0, %v7627
  %v7943 = vsub.f32 1.0, %v7629
  %v7944 = vsub.f32 1.0, %v7631
  %7949 = vrot.lane.b32.xlu0 %v7933, 96
  %v7950 = vpop.permute.xlu0 %7949
  %7951 = vrot.lane.b32.xlu0 %v7934, 96
  %v7952 = vpop.permute.xlu0 %7951
  %7953 = vrot.lane.b32.xlu0 %v7935, 96
  %v7954 = vpop.permute.xlu0 %7953
  %7955 = vrot.lane.b32.xlu0 %v7936, 96
  %v7956 = vpop.permute.xlu0 %7955
  %v7961 = vmul.f32 %v7941, %v7950
  %v7962 = vmul.f32 %v7942, %v7952
  %v7963 = vmul.f32 %v7943, %v7954
  %v7964 = vmul.f32 %v7944, %v7956
  %v7965 = vadd.f32 %v7937, %v7961
  %v7966 = vadd.f32 %v7938, %v7962
  %v7967 = vadd.f32 %v7939, %v7963
  %v7968 = vadd.f32 %v7940, %v7964
  %v7969 = vpack.c.bf16 %v7966, %v7965
  %v7970 = vpack.c.bf16 %v7968, %v7967
  %7972 = vrot.lane.b32.xlu0 %v7969, 96
  %v7973 = vpop.permute.xlu0 %7972
  %7975 = vmatprep.subr.bf16.mxu0 0
  %7976 = vmatpush1.bf16.msra.mxu0 %v7973
  %7977 = vmatprep.subr.bf16.mxu0 0
  %7978 = vmatpush1.bf16.msra.mxu0 0
  %7979 = vmatprep.subr.bf16.mxu0 0
  %7980 = vmatpush1.bf16.msra.mxu0 0
  %7981 = vmatprep.subr.bf16.mxu0 0
  %7982 = vmatpush1.bf16.msra.mxu0 0
  %7983 = vmatprep.subr.bf16.mxu0 0
  %7984 = vmatpush1.bf16.msra.mxu0 0
  %7985 = vmatprep.subr.bf16.mxu0 0
  %7986 = vmatpush1.bf16.msra.mxu0 0
  %7987 = vmatprep.subr.bf16.mxu0 0
  %7988 = vmatpush1.bf16.msra.mxu0 0
  %7989 = vmatprep.subr.bf16.mxu0 0
  %7990 = vmatpush1.bf16.msra.mxu0 0
  %7991 = vmatprep.subr.bf16.mxu0 0
  %7992 = vmatpush1.bf16.msra.mxu0 0
  %7993 = vmatprep.subr.bf16.mxu0 0
  %7994 = vmatpush1.bf16.msra.mxu0 0
  %7995 = vmatprep.subr.bf16.mxu0 0
  %7996 = vmatpush1.bf16.msra.mxu0 0
  %7997 = vmatprep.subr.bf16.mxu0 0
  %7998 = vmatpush1.bf16.msra.mxu0 0
  %7999 = vmatprep.subr.bf16.mxu0 0
  %8000 = vmatpush1.bf16.msra.mxu0 0
  %8001 = vmatprep.subr.bf16.mxu0 0
  %8002 = vmatpush1.bf16.msra.mxu0 0
  %8003 = vmatprep.subr.bf16.mxu0 0
  %8004 = vmatpush1.bf16.msra.mxu0 0
  %8005 = vmatprep.subr.bf16.mxu0 0
  %8006 = vmatpush1.bf16.msra.mxu0 0
  %8007 = vmatprep.mubr.bf16.mxu0 0
  %8008 = vmatmul.mubr.bf16.gmra.mrb[0].mxu0 %v126
  %v8009 = vpop.f32.mrb[0].mxu0
  %v8010 = vadd.f32 0.0, %v8009
  %v8011 = vpop.f32.mrb[0].mxu0
  %v8012 = vpop.f32.mrb[0].mxu0
  %v8013 = vadd.f32 0.0, %v8012
  %v8014 = vpop.f32.mrb[0].mxu0
  %8015 = vdwg.mxu0
  %8017 = vrot.lane.b32.xlu0 %v7970, 96
  %v8018 = vpop.permute.xlu0 %8017
  %8020 = vmatprep.subr.bf16.mxu0 0
  %8021 = vmatpush1.bf16.msra.mxu0 %v8018
  %8022 = vmatprep.subr.bf16.mxu0 0
  %8023 = vmatpush1.bf16.msra.mxu0 0
  %8024 = vmatprep.subr.bf16.mxu0 0
  %8025 = vmatpush1.bf16.msra.mxu0 0
  %8026 = vmatprep.subr.bf16.mxu0 0
  %8027 = vmatpush1.bf16.msra.mxu0 0
  %8028 = vmatprep.subr.bf16.mxu0 0
  %8029 = vmatpush1.bf16.msra.mxu0 0
  %8030 = vmatprep.subr.bf16.mxu0 0
  %8031 = vmatpush1.bf16.msra.mxu0 0
  %8032 = vmatprep.subr.bf16.mxu0 0
  %8033 = vmatpush1.bf16.msra.mxu0 0
  %8034 = vmatprep.subr.bf16.mxu0 0
  %8035 = vmatpush1.bf16.msra.mxu0 0
  %8036 = vmatprep.subr.bf16.mxu0 0
  %8037 = vmatpush1.bf16.msra.mxu0 0
  %8038 = vmatprep.subr.bf16.mxu0 0
  %8039 = vmatpush1.bf16.msra.mxu0 0
  %8040 = vmatprep.subr.bf16.mxu0 0
  %8041 = vmatpush1.bf16.msra.mxu0 0
  %8042 = vmatprep.subr.bf16.mxu0 0
  %8043 = vmatpush1.bf16.msra.mxu0 0
  %8044 = vmatprep.subr.bf16.mxu0 0
  %8045 = vmatpush1.bf16.msra.mxu0 0
  %8046 = vmatprep.subr.bf16.mxu0 0
  %8047 = vmatpush1.bf16.msra.mxu0 0
  %8048 = vmatprep.subr.bf16.mxu0 0
  %8049 = vmatpush1.bf16.msra.mxu0 0
  %8050 = vmatprep.subr.bf16.mxu0 0
  %8051 = vmatpush1.bf16.msra.mxu0 0
  %8052 = vmatprep.mubr.bf16.mxu0 0
  %8053 = vmatmul.mubr.bf16.gmra.mrb[0].mxu0 %v175
  %v8054 = vpop.f32.mrb[0].mxu0
  %v8055 = vadd.f32 0.0, %v8054
  %v8056 = vpop.f32.mrb[0].mxu0
  %v8057 = vpop.f32.mrb[0].mxu0
  %v8058 = vadd.f32 0.0, %v8057
  %v8059 = vpop.f32.mrb[0].mxu0
  %8060 = vdwg.mxu0
  %v8061 = vpack.c.bf16 %v8013, %v8010
  %v8062 = vpack.c.bf16 %v8058, %v8055
  %8063 = vmatprep.subr.bf16.mxu0 0
  %8064 = vmatpush1.bf16.msra.mxu0 %v8061
  %8065 = vmatprep.subr.bf16.mxu0 0
  %8066 = vmatpush1.bf16.msra.mxu0 0
  %8067 = vmatprep.subr.bf16.mxu0 0
  %8068 = vmatpush1.bf16.msra.mxu0 0
  %8069 = vmatprep.subr.bf16.mxu0 0
  %8070 = vmatpush1.bf16.msra.mxu0 0
  %8071 = vmatprep.subr.bf16.mxu0 0
  %8072 = vmatpush1.bf16.msra.mxu0 0
  %8073 = vmatprep.subr.bf16.mxu0 0
  %8074 = vmatpush1.bf16.msra.mxu0 0
  %8075 = vmatprep.subr.bf16.mxu0 0
  %8076 = vmatpush1.bf16.msra.mxu0 0
  %8077 = vmatprep.subr.bf16.mxu0 0
  %8078 = vmatpush1.bf16.msra.mxu0 0
  %8079 = vmatprep.subr.bf16.mxu0 0
  %8080 = vmatpush1.bf16.msra.mxu0 0
  %8081 = vmatprep.subr.bf16.mxu0 0
  %8082 = vmatpush1.bf16.msra.mxu0 0
  %8083 = vmatprep.subr.bf16.mxu0 0
  %8084 = vmatpush1.bf16.msra.mxu0 0
  %8085 = vmatprep.subr.bf16.mxu0 0
  %8086 = vmatpush1.bf16.msra.mxu0 0
  %8087 = vmatprep.subr.bf16.mxu0 0
  %8088 = vmatpush1.bf16.msra.mxu0 0
  %8089 = vmatprep.subr.bf16.mxu0 0
  %8090 = vmatpush1.bf16.msra.mxu0 0
  %8091 = vmatprep.subr.bf16.mxu0 0
  %8092 = vmatpush1.bf16.msra.mxu0 0
  %8093 = vmatprep.subr.bf16.mxu0 0
  %8094 = vmatpush1.bf16.msra.mxu0 0
  %8095 = vmatprep.mubr.bf16.mxu0 0
  %8096 = vmatmul.mubr.bf16.gmra.mrb[0].mxu0 %v126
  %v8097 = vpop.f32.mrb[0].mxu0
  %v8098 = vadd.f32 0.0, %v8097
  %v8099 = vpop.f32.mrb[0].mxu0
  %v8100 = vpop.f32.mrb[0].mxu0
  %v8101 = vadd.f32 0.0, %v8100
  %v8102 = vpop.f32.mrb[0].mxu0
  %8103 = vdwg.mxu0
  %8104 = vmatprep.subr.bf16.mxu0 0
  %8105 = vmatpush1.bf16.msra.mxu0 %v8062
  %8106 = vmatprep.subr.bf16.mxu0 0
  %8107 = vmatpush1.bf16.msra.mxu0 0
  %8108 = vmatprep.subr.bf16.mxu0 0
  %8109 = vmatpush1.bf16.msra.mxu0 0
  %8110 = vmatprep.subr.bf16.mxu0 0
  %8111 = vmatpush1.bf16.msra.mxu0 0
  %8112 = vmatprep.subr.bf16.mxu0 0
  %8113 = vmatpush1.bf16.msra.mxu0 0
  %8114 = vmatprep.subr.bf16.mxu0 0
  %8115 = vmatpush1.bf16.msra.mxu0 0
  %8116 = vmatprep.subr.bf16.mxu0 0
  %8117 = vmatpush1.bf16.msra.mxu0 0
  %8118 = vmatprep.subr.bf16.mxu0 0
  %8119 = vmatpush1.bf16.msra.mxu0 0
  %8120 = vmatprep.subr.bf16.mxu0 0
  %8121 = vmatpush1.bf16.msra.mxu0 0
  %8122 = vmatprep.subr.bf16.mxu0 0
  %8123 = vmatpush1.bf16.msra.mxu0 0
  %8124 = vmatprep.subr.bf16.mxu0 0
  %8125 = vmatpush1.bf16.msra.mxu0 0
  %8126 = vmatprep.subr.bf16.mxu0 0
  %8127 = vmatpush1.bf16.msra.mxu0 0
  %8128 = vmatprep.subr.bf16.mxu0 0
  %8129 = vmatpush1.bf16.msra.mxu0 0
  %8130 = vmatprep.subr.bf16.mxu0 0
  %8131 = vmatpush1.bf16.msra.mxu0 0
  %8132 = vmatprep.subr.bf16.mxu0 0
  %8133 = vmatpush1.bf16.msra.mxu0 0
  %8134 = vmatprep.subr.bf16.mxu0 0
  %8135 = vmatpush1.bf16.msra.mxu0 0
  %8136 = vmatprep.mubr.bf16.mxu0 0
  %8137 = vmatmul.mubr.bf16.gmra.mrb[0].mxu0 %v175
  %v8138 = vpop.f32.mrb[0].mxu0
  %v8139 = vadd.f32 0.0, %v8138
  %v8140 = vpop.f32.mrb[0].mxu0
  %v8141 = vpop.f32.mrb[0].mxu0
  %v8142 = vadd.f32 0.0, %v8141
  %v8143 = vpop.f32.mrb[0].mxu0
  %8144 = vdwg.mxu0
  %v8145 = vmul.f32 %v8098, 2.0
  %v8146 = vmul.f32 %v8101, 2.0
  %v8147 = vmul.f32 %v8139, 2.0
  %v8148 = vmul.f32 %v8142, 2.0
  %8153 = vrot.lane.b32.xlu0 %v7965, 96
  %v8154 = vpop.permute.xlu0 %8153
  %8155 = vrot.lane.b32.xlu0 %v7966, 96
  %v8156 = vpop.permute.xlu0 %8155
  %8157 = vrot.lane.b32.xlu0 %v7967, 96
  %v8158 = vpop.permute.xlu0 %8157
  %8159 = vrot.lane.b32.xlu0 %v7968, 96
  %v8160 = vpop.permute.xlu0 %8159
  %v8165 = vsub.f32 %v8145, %v8154
  %v8166 = vsub.f32 %v8146, %v8156
  %v8167 = vsub.f32 %v8147, %v8158
  %v8168 = vsub.f32 %v8148, %v8160
  %8173 = vrot.lane.b32.xlu0 %v8010, 32
  %v8174 = vpop.permute.xlu0 %8173
  %8175 = vrot.lane.b32.xlu0 %v8013, 32
  %v8176 = vpop.permute.xlu0 %8175
  %8177 = vrot.lane.b32.xlu0 %v8055, 32
  %v8178 = vpop.permute.xlu0 %8177
  %8179 = vrot.lane.b32.xlu0 %v8058, 32
  %v8180 = vpop.permute.xlu0 %8179
  %8189 = vrot.lane.b32.xlu0 %v8165, 64
  %v8190 = vpop.permute.xlu0 %8189
  %8191 = vrot.lane.b32.xlu0 %v8166, 64
  %v8192 = vpop.permute.xlu0 %8191
  %8193 = vrot.lane.b32.xlu0 %v8167, 64
  %v8194 = vpop.permute.xlu0 %8193
  %8195 = vrot.lane.b32.xlu0 %v8168, 64
  %v8196 = vpop.permute.xlu0 %8195
  %v8201 = vsel %vm342, %v8154, %v8174
  %v8202 = vsel %vm342, %v8156, %v8176
  %v8203 = vsel %vm342, %v8158, %v8178
  %v8204 = vsel %vm342, %v8160, %v8180
  %v8205 = vsel %vm347, %v8201, %v8190
  %v8206 = vsel %vm347, %v8202, %v8192
  %v8207 = vsel %vm347, %v8203, %v8194
  %v8208 = vsel %vm347, %v8204, %v8196
  %v8209 = vpack.c.bf16 %v8206, %v8205
  %v8210 = vpack.c.bf16 %v8208, %v8207
  %v8212 = vsel %vm390, %v8209, 0
  %v8215 = vsel %vm390, %v8210, 0
  %8217 = vmatprep.subr.bf16.mxu0 0
  %8218 = vmatpush1.bf16.msra.mxu0 %v1139
  %8219 = vmatprep.subr.bf16.mxu0 0
  %8220 = vmatpush1.bf16.msra.mxu0 %v1140
  %8221 = vmatprep.subr.bf16.mxu0 0
  %8222 = vmatpush1.bf16.msra.mxu0 %v1141
  %8223 = vmatprep.subr.bf16.mxu0 0
  %8224 = vmatpush1.bf16.msra.mxu0 %v1142
  %8225 = vmatprep.subr.bf16.mxu0 0
  %8226 = vmatpush1.bf16.msra.mxu0 %v1143
  %8227 = vmatprep.subr.bf16.mxu0 0
  %8228 = vmatpush1.bf16.msra.mxu0 %v1144
  %8229 = vmatprep.subr.bf16.mxu0 0
  %8230 = vmatpush1.bf16.msra.mxu0 0
  %8231 = vmatprep.subr.bf16.mxu0 0
  %8232 = vmatpush1.bf16.msra.mxu0 0
  %8233 = vmatprep.subr.bf16.mxu0 0
  %8234 = vmatpush1.bf16.msra.mxu0 0
  %8235 = vmatprep.subr.bf16.mxu0 0
  %8236 = vmatpush1.bf16.msra.mxu0 0
  %8237 = vmatprep.subr.bf16.mxu0 0
  %8238 = vmatpush1.bf16.msra.mxu0 0
  %8239 = vmatprep.subr.bf16.mxu0 0
  %8240 = vmatpush1.bf16.msra.mxu0 0
  %8241 = vmatprep.subr.bf16.mxu0 0
  %8242 = vmatpush1.bf16.msra.mxu0 0
  %8243 = vmatprep.subr.bf16.mxu0 0
  %8244 = vmatpush1.bf16.msra.mxu0 0
  %8245 = vmatprep.subr.bf16.mxu0 0
  %8246 = vmatpush1.bf16.msra.mxu0 0
  %8247 = vmatprep.subr.bf16.mxu0 0
  %8248 = vmatpush1.bf16.msra.mxu0 0
  %8249 = vmatprep.mubr.bf16.mxu0 0
  %8250 = vmatmul.mubr.bf16.gmra.mrb[0].mxu0 %v8212
  %v8251 = vpop.f32.mrb[0].mxu0
  %v8252 = vadd.f32 0.0, %v8251
  %v8253 = vpop.f32.mrb[0].mxu0
  %v8254 = vpop.f32.mrb[0].mxu0
  %v8255 = vadd.f32 0.0, %v8254
  %v8256 = vpop.f32.mrb[0].mxu0
  %8257 = vmatprep.mubr.bf16.mxu0 0
  %8258 = vmatmul.mubr.bf16.gmra.mrb[0].mxu0 %v8215
  %v8259 = vpop.f32.mrb[0].mxu0
  %v8260 = vadd.f32 0.0, %v8259
  %v8261 = vpop.f32.mrb[0].mxu0
  %v8262 = vpop.f32.mrb[0].mxu0
  %v8263 = vadd.f32 0.0, %v8262
  %v8264 = vpop.f32.mrb[0].mxu0
  %8265 = vdwg.mxu0
  %v8266 = vpack.c.bf16 %v7518, %v7517
  %v8267 = vpack.c.bf16 %v7520, %v7519
  %8269 = vrot.lane.b32.xlu0 %v8266, 96
  %v8270 = vpop.permute.xlu0 %8269
  %8272 = vmatprep.subr.bf16.mxu0 0
  %8273 = vmatpush1.bf16.msra.mxu0 %v8270
  %8274 = vmatprep.subr.bf16.mxu0 0
  %8275 = vmatpush1.bf16.msra.mxu0 0
  %8276 = vmatprep.subr.bf16.mxu0 0
  %8277 = vmatpush1.bf16.msra.mxu0 0
  %8278 = vmatprep.subr.bf16.mxu0 0
  %8279 = vmatpush1.bf16.msra.mxu0 0
  %8280 = vmatprep.subr.bf16.mxu0 0
  %8281 = vmatpush1.bf16.msra.mxu0 0
  %8282 = vmatprep.subr.bf16.mxu0 0
  %8283 = vmatpush1.bf16.msra.mxu0 0
  %8284 = vmatprep.subr.bf16.mxu0 0
  %8285 = vmatpush1.bf16.msra.mxu0 0
  %8286 = vmatprep.subr.bf16.mxu0 0
  %8287 = vmatpush1.bf16.msra.mxu0 0
  %8288 = vmatprep.subr.bf16.mxu0 0
  %8289 = vmatpush1.bf16.msra.mxu0 0
  %8290 = vmatprep.subr.bf16.mxu0 0
  %8291 = vmatpush1.bf16.msra.mxu0 0
  %8292 = vmatprep.subr.bf16.mxu0 0
  %8293 = vmatpush1.bf16.msra.mxu0 0
  %8294 = vmatprep.subr.bf16.mxu0 0
  %8295 = vmatpush1.bf16.msra.mxu0 0
  %8296 = vmatprep.subr.bf16.mxu0 0
  %8297 = vmatpush1.bf16.msra.mxu0 0
  %8298 = vmatprep.subr.bf16.mxu0 0
  %8299 = vmatpush1.bf16.msra.mxu0 0
  %8300 = vmatprep.subr.bf16.mxu0 0
  %8301 = vmatpush1.bf16.msra.mxu0 0
  %8302 = vmatprep.subr.bf16.mxu0 0
  %8303 = vmatpush1.bf16.msra.mxu0 0
  %8304 = vmatprep.mubr.bf16.mxu0 0
  %8305 = vmatmul.mubr.bf16.gmra.mrb[0].mxu0 %v126
  %v8306 = vpop.f32.mrb[0].mxu0
  %v8307 = vadd.f32 0.0, %v8306
  %v8308 = vpop.f32.mrb[0].mxu0
  %v8309 = vpop.f32.mrb[0].mxu0
  %v8310 = vadd.f32 0.0, %v8309
  %v8311 = vpop.f32.mrb[0].mxu0
  %8312 = vdwg.mxu0
  %8314 = vrot.lane.b32.xlu0 %v8267, 96
  %v8315 = vpop.permute.xlu0 %8314
  %8317 = vmatprep.subr.bf16.mxu0 0
  %8318 = vmatpush1.bf16.msra.mxu0 %v8315
  %8319 = vmatprep.subr.bf16.mxu0 0
  %8320 = vmatpush1.bf16.msra.mxu0 0
  %8321 = vmatprep.subr.bf16.mxu0 0
  %8322 = vmatpush1.bf16.msra.mxu0 0
  %8323 = vmatprep.subr.bf16.mxu0 0
  %8324 = vmatpush1.bf16.msra.mxu0 0
  %8325 = vmatprep.subr.bf16.mxu0 0
  %8326 = vmatpush1.bf16.msra.mxu0 0
  %8327 = vmatprep.subr.bf16.mxu0 0
  %8328 = vmatpush1.bf16.msra.mxu0 0
  %8329 = vmatprep.subr.bf16.mxu0 0
  %8330 = vmatpush1.bf16.msra.mxu0 0
  %8331 = vmatprep.subr.bf16.mxu0 0
  %8332 = vmatpush1.bf16.msra.mxu0 0
  %8333 = vmatprep.subr.bf16.mxu0 0
  %8334 = vmatpush1.bf16.msra.mxu0 0
  %8335 = vmatprep.subr.bf16.mxu0 0
  %8336 = vmatpush1.bf16.msra.mxu0 0
  %8337 = vmatprep.subr.bf16.mxu0 0
  %8338 = vmatpush1.bf16.msra.mxu0 0
  %8339 = vmatprep.subr.bf16.mxu0 0
  %8340 = vmatpush1.bf16.msra.mxu0 0
  %8341 = vmatprep.subr.bf16.mxu0 0
  %8342 = vmatpush1.bf16.msra.mxu0 0
  %8343 = vmatprep.subr.bf16.mxu0 0
  %8344 = vmatpush1.bf16.msra.mxu0 0
  %8345 = vmatprep.subr.bf16.mxu0 0
  %8346 = vmatpush1.bf16.msra.mxu0 0
  %8347 = vmatprep.subr.bf16.mxu0 0
  %8348 = vmatpush1.bf16.msra.mxu0 0
  %8349 = vmatprep.mubr.bf16.mxu0 0
  %8350 = vmatmul.mubr.bf16.gmra.mrb[0].mxu0 %v175
  %v8351 = vpop.f32.mrb[0].mxu0
  %v8352 = vadd.f32 0.0, %v8351
  %v8353 = vpop.f32.mrb[0].mxu0
  %v8354 = vpop.f32.mrb[0].mxu0
  %v8355 = vadd.f32 0.0, %v8354
  %v8356 = vpop.f32.mrb[0].mxu0
  %8357 = vdwg.mxu0
  %v8358 = vpack.c.bf16 %v8310, %v8307
  %v8359 = vpack.c.bf16 %v8355, %v8352
  %8360 = vmatprep.subr.bf16.mxu0 0
  %8361 = vmatpush1.bf16.msra.mxu0 %v8358
  %8362 = vmatprep.subr.bf16.mxu0 0
  %8363 = vmatpush1.bf16.msra.mxu0 0
  %8364 = vmatprep.subr.bf16.mxu0 0
  %8365 = vmatpush1.bf16.msra.mxu0 0
  %8366 = vmatprep.subr.bf16.mxu0 0
  %8367 = vmatpush1.bf16.msra.mxu0 0
  %8368 = vmatprep.subr.bf16.mxu0 0
  %8369 = vmatpush1.bf16.msra.mxu0 0
  %8370 = vmatprep.subr.bf16.mxu0 0
  %8371 = vmatpush1.bf16.msra.mxu0 0
  %8372 = vmatprep.subr.bf16.mxu0 0
  %8373 = vmatpush1.bf16.msra.mxu0 0
  %8374 = vmatprep.subr.bf16.mxu0 0
  %8375 = vmatpush1.bf16.msra.mxu0 0
  %8376 = vmatprep.subr.bf16.mxu0 0
  %8377 = vmatpush1.bf16.msra.mxu0 0
  %8378 = vmatprep.subr.bf16.mxu0 0
  %8379 = vmatpush1.bf16.msra.mxu0 0
  %8380 = vmatprep.subr.bf16.mxu0 0
  %8381 = vmatpush1.bf16.msra.mxu0 0
  %8382 = vmatprep.subr.bf16.mxu0 0
  %8383 = vmatpush1.bf16.msra.mxu0 0
  %8384 = vmatprep.subr.bf16.mxu0 0
  %8385 = vmatpush1.bf16.msra.mxu0 0
  %8386 = vmatprep.subr.bf16.mxu0 0
  %8387 = vmatpush1.bf16.msra.mxu0 0
  %8388 = vmatprep.subr.bf16.mxu0 0
  %8389 = vmatpush1.bf16.msra.mxu0 0
  %8390 = vmatprep.subr.bf16.mxu0 0
  %8391 = vmatpush1.bf16.msra.mxu0 0
  %8392 = vmatprep.mubr.bf16.mxu0 0
  %8393 = vmatmul.mubr.bf16.gmra.mrb[0].mxu0 %v126
  %v8394 = vpop.f32.mrb[0].mxu0
  %v8395 = vadd.f32 0.0, %v8394
  %v8396 = vpop.f32.mrb[0].mxu0
  %v8397 = vpop.f32.mrb[0].mxu0
  %v8398 = vadd.f32 0.0, %v8397
  %v8399 = vpop.f32.mrb[0].mxu0
  %8400 = vdwg.mxu0
  %8401 = vmatprep.subr.bf16.mxu0 0
  %8402 = vmatpush1.bf16.msra.mxu0 %v8359
  %8403 = vmatprep.subr.bf16.mxu0 0
  %8404 = vmatpush1.bf16.msra.mxu0 0
  %8405 = vmatprep.subr.bf16.mxu0 0
  %8406 = vmatpush1.bf16.msra.mxu0 0
  %8407 = vmatprep.subr.bf16.mxu0 0
  %8408 = vmatpush1.bf16.msra.mxu0 0
  %8409 = vmatprep.subr.bf16.mxu0 0
  %8410 = vmatpush1.bf16.msra.mxu0 0
  %8411 = vmatprep.subr.bf16.mxu0 0
  %8412 = vmatpush1.bf16.msra.mxu0 0
  %8413 = vmatprep.subr.bf16.mxu0 0
  %8414 = vmatpush1.bf16.msra.mxu0 0
  %8415 = vmatprep.subr.bf16.mxu0 0
  %8416 = vmatpush1.bf16.msra.mxu0 0
  %8417 = vmatprep.subr.bf16.mxu0 0
  %8418 = vmatpush1.bf16.msra.mxu0 0
  %8419 = vmatprep.subr.bf16.mxu0 0
  %8420 = vmatpush1.bf16.msra.mxu0 0
  %8421 = vmatprep.subr.bf16.mxu0 0
  %8422 = vmatpush1.bf16.msra.mxu0 0
  %8423 = vmatprep.subr.bf16.mxu0 0
  %8424 = vmatpush1.bf16.msra.mxu0 0
  %8425 = vmatprep.subr.bf16.mxu0 0
  %8426 = vmatpush1.bf16.msra.mxu0 0
  %8427 = vmatprep.subr.bf16.mxu0 0
  %8428 = vmatpush1.bf16.msra.mxu0 0
  %8429 = vmatprep.subr.bf16.mxu0 0
  %8430 = vmatpush1.bf16.msra.mxu0 0
  %8431 = vmatprep.subr.bf16.mxu0 0
  %8432 = vmatpush1.bf16.msra.mxu0 0
  %8433 = vmatprep.mubr.bf16.mxu0 0
  %8434 = vmatmul.mubr.bf16.gmra.mrb[0].mxu0 %v175
  %v8435 = vpop.f32.mrb[0].mxu0
  %v8436 = vadd.f32 0.0, %v8435
  %v8437 = vpop.f32.mrb[0].mxu0
  %v8438 = vpop.f32.mrb[0].mxu0
  %v8439 = vadd.f32 0.0, %v8438
  %v8440 = vpop.f32.mrb[0].mxu0
  %8441 = vdwg.mxu0
  %v8442 = vmul.f32 %v8395, 2.0
  %v8443 = vmul.f32 %v8398, 2.0
  %v8444 = vmul.f32 %v8436, 2.0
  %v8445 = vmul.f32 %v8439, 2.0
  %v8446 = vsub.f32 %v8442, %v7526
  %v8447 = vsub.f32 %v8443, %v7528
  %v8448 = vsub.f32 %v8444, %v7530
  %v8449 = vsub.f32 %v8445, %v7532
  %8454 = vrot.lane.b32.xlu0 %v8307, 32
  %v8455 = vpop.permute.xlu0 %8454
  %8456 = vrot.lane.b32.xlu0 %v8310, 32
  %v8457 = vpop.permute.xlu0 %8456
  %8458 = vrot.lane.b32.xlu0 %v8352, 32
  %v8459 = vpop.permute.xlu0 %8458
  %8460 = vrot.lane.b32.xlu0 %v8355, 32
  %v8461 = vpop.permute.xlu0 %8460
  %8470 = vrot.lane.b32.xlu0 %v8446, 64
  %v8471 = vpop.permute.xlu0 %8470
  %8472 = vrot.lane.b32.xlu0 %v8447, 64
  %v8473 = vpop.permute.xlu0 %8472
  %8474 = vrot.lane.b32.xlu0 %v8448, 64
  %v8475 = vpop.permute.xlu0 %8474
  %8476 = vrot.lane.b32.xlu0 %v8449, 64
  %v8477 = vpop.permute.xlu0 %8476
  %v8482 = vsel %vm342, %v7526, %v8455
  %v8483 = vsel %vm342, %v7528, %v8457
  %v8484 = vsel %vm342, %v7530, %v8459
  %v8485 = vsel %vm342, %v7532, %v8461
  %v8486 = vsel %vm347, %v8482, %v8471
  %v8487 = vsel %vm347, %v8483, %v8473
  %v8488 = vsel %vm347, %v8484, %v8475
  %v8489 = vsel %vm347, %v8485, %v8477
  %v8490 = vpack.c.bf16 %v8487, %v8486
  %v8491 = vpack.c.bf16 %v8489, %v8488
  %v8493 = vsel %vm390, %v8490, 0
  %v8496 = vsel %vm390, %v8491, 0
  %8498 = vmatprep.subr.bf16.mxu0 0
  %8499 = vmatpush1.bf16.msra.mxu0 %v1448
  %8500 = vmatprep.subr.bf16.mxu0 0
  %8501 = vmatpush1.bf16.msra.mxu0 %v1449
  %8502 = vmatprep.subr.bf16.mxu0 0
  %8503 = vmatpush1.bf16.msra.mxu0 %v1450
  %8504 = vmatprep.subr.bf16.mxu0 0
  %8505 = vmatpush1.bf16.msra.mxu0 %v1451
  %8506 = vmatprep.subr.bf16.mxu0 0
  %8507 = vmatpush1.bf16.msra.mxu0 %v1452
  %8508 = vmatprep.subr.bf16.mxu0 0
  %8509 = vmatpush1.bf16.msra.mxu0 %v1453
  %8510 = vmatprep.subr.bf16.mxu0 0
  %8511 = vmatpush1.bf16.msra.mxu0 0
  %8512 = vmatprep.subr.bf16.mxu0 0
  %8513 = vmatpush1.bf16.msra.mxu0 0
  %8514 = vmatprep.subr.bf16.mxu0 0
  %8515 = vmatpush1.bf16.msra.mxu0 0
  %8516 = vmatprep.subr.bf16.mxu0 0
  %8517 = vmatpush1.bf16.msra.mxu0 0
  %8518 = vmatprep.subr.bf16.mxu0 0
  %8519 = vmatpush1.bf16.msra.mxu0 0
  %8520 = vmatprep.subr.bf16.mxu0 0
  %8521 = vmatpush1.bf16.msra.mxu0 0
  %8522 = vmatprep.subr.bf16.mxu0 0
  %8523 = vmatpush1.bf16.msra.mxu0 0
  %8524 = vmatprep.subr.bf16.mxu0 0
  %8525 = vmatpush1.bf16.msra.mxu0 0
  %8526 = vmatprep.subr.bf16.mxu0 0
  %8527 = vmatpush1.bf16.msra.mxu0 0
  %8528 = vmatprep.subr.bf16.mxu0 0
  %8529 = vmatpush1.bf16.msra.mxu0 0
  %8530 = vmatprep.mubr.bf16.mxu0 0
  %8531 = vmatmul.mubr.bf16.gmra.mrb[0].mxu0 %v8493
  %v8532 = vpop.f32.mrb[0].mxu0
  %v8533 = vadd.f32 0.0, %v8532
  %v8534 = vpop.f32.mrb[0].mxu0
  %v8535 = vpop.f32.mrb[0].mxu0
  %v8536 = vadd.f32 0.0, %v8535
  %v8537 = vpop.f32.mrb[0].mxu0
  %8538 = vmatprep.mubr.bf16.mxu0 0
  %8539 = vmatmul.mubr.bf16.gmra.mrb[0].mxu0 %v8496
  %v8540 = vpop.f32.mrb[0].mxu0
  %v8541 = vadd.f32 0.0, %v8540
  %v8542 = vpop.f32.mrb[0].mxu0
  %v8543 = vpop.f32.mrb[0].mxu0
  %v8544 = vadd.f32 0.0, %v8543
  %v8545 = vpop.f32.mrb[0].mxu0
  %8546 = vdwg.mxu0
  %v8547 = vadd.f32 %v8252, %v8533
  %v8548 = vadd.f32 %v8255, %v8536
  %v8549 = vadd.f32 %v8260, %v8541
  %v8550 = vadd.f32 %v8263, %v8544
  %v8551 = vadd.f32 %v8547, %v1523
  %v8552 = vadd.f32 %v8548, %v1523
  %v8553 = vadd.f32 %v8549, %v1523
  %v8554 = vadd.f32 %v8550, %v1523
  %v8555 = vxor.u32 %v8551, 2147483648
  %v8556 = vxor.u32 %v8552, 2147483648
  %v8557 = vxor.u32 %v8553, 2147483648
  %v8558 = vxor.u32 %v8554, 2147483648
  %v8559 = vmul.f32 %v8555, 1.442695
  %v8560 = vpow.pop %v8559
  %v8561 = vmul.f32 %v8556, 1.442695
  %v8562 = vpow.pop %v8561
  %v8563 = vmul.f32 %v8557, 1.442695
  %v8564 = vpow.pop %v8563
  %v8565 = vmul.f32 %v8558, 1.442695
  %v8566 = vpow.pop %v8565
  %v8567 = vadd.f32 %v8560, 1.0
  %v8568 = vadd.f32 %v8562, 1.0
  %v8569 = vadd.f32 %v8564, 1.0
  %v8570 = vadd.f32 %v8566, 1.0
  %v8571 = vrcp.pop %v8567
  %v8572 = vmul.f32 1.0, %v8571
  %v8573 = vrcp.pop %v8568
  %v8574 = vmul.f32 1.0, %v8573
  %v8575 = vrcp.pop %v8569
  %v8576 = vmul.f32 1.0, %v8575
  %v8577 = vrcp.pop %v8570
  %v8578 = vmul.f32 1.0, %v8577
  %v8579 = vmul.f32 %v8572, %v7526
  %v8580 = vmul.f32 %v8574, %v7528
  %v8581 = vmul.f32 %v8576, %v7530
  %v8582 = vmul.f32 %v8578, %v7532
  %v8583 = vpack.c.bf16 %v8580, %v8579
  %v8584 = vpack.c.bf16 %v8582, %v8581
  %8585 = vmatprep.subr.bf16.mxu0 0
  %8586 = vmatpush1.bf16.msra.mxu0 %v8583
  %8587 = vmatprep.subr.bf16.mxu0 0
  %8588 = vmatpush1.bf16.msra.mxu0 0
  %8589 = vmatprep.subr.bf16.mxu0 0
  %8590 = vmatpush1.bf16.msra.mxu0 0
  %8591 = vmatprep.subr.bf16.mxu0 0
  %8592 = vmatpush1.bf16.msra.mxu0 0
  %8593 = vmatprep.subr.bf16.mxu0 0
  %8594 = vmatpush1.bf16.msra.mxu0 0
  %8595 = vmatprep.subr.bf16.mxu0 0
  %8596 = vmatpush1.bf16.msra.mxu0 0
  %8597 = vmatprep.subr.bf16.mxu0 0
  %8598 = vmatpush1.bf16.msra.mxu0 0
  %8599 = vmatprep.subr.bf16.mxu0 0
  %8600 = vmatpush1.bf16.msra.mxu0 0
  %8601 = vmatprep.subr.bf16.mxu0 0
  %8602 = vmatpush1.bf16.msra.mxu0 0
  %8603 = vmatprep.subr.bf16.mxu0 0
  %8604 = vmatpush1.bf16.msra.mxu0 0
  %8605 = vmatprep.subr.bf16.mxu0 0
  %8606 = vmatpush1.bf16.msra.mxu0 0
  %8607 = vmatprep.subr.bf16.mxu0 0
  %8608 = vmatpush1.bf16.msra.mxu0 0
  %8609 = vmatprep.subr.bf16.mxu0 0
  %8610 = vmatpush1.bf16.msra.mxu0 0
  %8611 = vmatprep.subr.bf16.mxu0 0
  %8612 = vmatpush1.bf16.msra.mxu0 0
  %8613 = vmatprep.subr.bf16.mxu0 0
  %8614 = vmatpush1.bf16.msra.mxu0 0
  %8615 = vmatprep.subr.bf16.mxu0 0
  %8616 = vmatpush1.bf16.msra.mxu0 0
  %8617 = vmatprep.mubr.bf16.mxu0 0
  %8618 = vmatmul.mubr.bf16.gmra.mrb[0].mxu0 %v126
  %v8619 = vpop.f32.mrb[0].mxu0
  %v8620 = vadd.f32 0.0, %v8619
  %v8621 = vpop.f32.mrb[0].mxu0
  %v8622 = vpop.f32.mrb[0].mxu0
  %v8623 = vadd.f32 0.0, %v8622
  %v8624 = vpop.f32.mrb[0].mxu0
  %8625 = vdwg.mxu0
  %8626 = vmatprep.subr.bf16.mxu0 0
  %8627 = vmatpush1.bf16.msra.mxu0 %v8584
  %8628 = vmatprep.subr.bf16.mxu0 0
  %8629 = vmatpush1.bf16.msra.mxu0 0
  %8630 = vmatprep.subr.bf16.mxu0 0
  %8631 = vmatpush1.bf16.msra.mxu0 0
  %8632 = vmatprep.subr.bf16.mxu0 0
  %8633 = vmatpush1.bf16.msra.mxu0 0
  %8634 = vmatprep.subr.bf16.mxu0 0
  %8635 = vmatpush1.bf16.msra.mxu0 0
  %8636 = vmatprep.subr.bf16.mxu0 0
  %8637 = vmatpush1.bf16.msra.mxu0 0
  %8638 = vmatprep.subr.bf16.mxu0 0
  %8639 = vmatpush1.bf16.msra.mxu0 0
  %8640 = vmatprep.subr.bf16.mxu0 0
  %8641 = vmatpush1.bf16.msra.mxu0 0
  %8642 = vmatprep.subr.bf16.mxu0 0
  %8643 = vmatpush1.bf16.msra.mxu0 0
  %8644 = vmatprep.subr.bf16.mxu0 0
  %8645 = vmatpush1.bf16.msra.mxu0 0
  %8646 = vmatprep.subr.bf16.mxu0 0
  %8647 = vmatpush1.bf16.msra.mxu0 0
  %8648 = vmatprep.subr.bf16.mxu0 0
  %8649 = vmatpush1.bf16.msra.mxu0 0
  %8650 = vmatprep.subr.bf16.mxu0 0
  %8651 = vmatpush1.bf16.msra.mxu0 0
  %8652 = vmatprep.subr.bf16.mxu0 0
  %8653 = vmatpush1.bf16.msra.mxu0 0
  %8654 = vmatprep.subr.bf16.mxu0 0
  %8655 = vmatpush1.bf16.msra.mxu0 0
  %8656 = vmatprep.subr.bf16.mxu0 0
  %8657 = vmatpush1.bf16.msra.mxu0 0
  %8658 = vmatprep.mubr.bf16.mxu0 0
  %8659 = vmatmul.mubr.bf16.gmra.mrb[0].mxu0 %v175
  %v8660 = vpop.f32.mrb[0].mxu0
  %v8661 = vadd.f32 0.0, %v8660
  %v8662 = vpop.f32.mrb[0].mxu0
  %v8663 = vpop.f32.mrb[0].mxu0
  %v8664 = vadd.f32 0.0, %v8663
  %v8665 = vpop.f32.mrb[0].mxu0
  %8666 = vdwg.mxu0
  %v8667 = vpack.c.bf16 %v8623, %v8620
  %v8668 = vpack.c.bf16 %v8664, %v8661
  %8669 = vmatprep.subr.bf16.mxu0 0
  %8670 = vmatpush1.bf16.msra.mxu0 %v8667
  %8671 = vmatprep.subr.bf16.mxu0 0
  %8672 = vmatpush1.bf16.msra.mxu0 0
  %8673 = vmatprep.subr.bf16.mxu0 0
  %8674 = vmatpush1.bf16.msra.mxu0 0
  %8675 = vmatprep.subr.bf16.mxu0 0
  %8676 = vmatpush1.bf16.msra.mxu0 0
  %8677 = vmatprep.subr.bf16.mxu0 0
  %8678 = vmatpush1.bf16.msra.mxu0 0
  %8679 = vmatprep.subr.bf16.mxu0 0
  %8680 = vmatpush1.bf16.msra.mxu0 0
  %8681 = vmatprep.subr.bf16.mxu0 0
  %8682 = vmatpush1.bf16.msra.mxu0 0
  %8683 = vmatprep.subr.bf16.mxu0 0
  %8684 = vmatpush1.bf16.msra.mxu0 0
  %8685 = vmatprep.subr.bf16.mxu0 0
  %8686 = vmatpush1.bf16.msra.mxu0 0
  %8687 = vmatprep.subr.bf16.mxu0 0
  %8688 = vmatpush1.bf16.msra.mxu0 0
  %8689 = vmatprep.subr.bf16.mxu0 0
  %8690 = vmatpush1.bf16.msra.mxu0 0
  %8691 = vmatprep.subr.bf16.mxu0 0
  %8692 = vmatpush1.bf16.msra.mxu0 0
  %8693 = vmatprep.subr.bf16.mxu0 0
  %8694 = vmatpush1.bf16.msra.mxu0 0
  %8695 = vmatprep.subr.bf16.mxu0 0
  %8696 = vmatpush1.bf16.msra.mxu0 0
  %8697 = vmatprep.subr.bf16.mxu0 0
  %8698 = vmatpush1.bf16.msra.mxu0 0
  %8699 = vmatprep.subr.bf16.mxu0 0
  %8700 = vmatpush1.bf16.msra.mxu0 0
  %8701 = vmatprep.mubr.bf16.mxu0 0
  %8702 = vmatmul.mubr.bf16.gmra.mrb[0].mxu0 %v126
  %v8703 = vpop.f32.mrb[0].mxu0
  %v8704 = vadd.f32 0.0, %v8703
  %v8705 = vpop.f32.mrb[0].mxu0
  %v8706 = vpop.f32.mrb[0].mxu0
  %v8707 = vadd.f32 0.0, %v8706
  %v8708 = vpop.f32.mrb[0].mxu0
  %8709 = vdwg.mxu0
  %8710 = vmatprep.subr.bf16.mxu0 0
  %8711 = vmatpush1.bf16.msra.mxu0 %v8668
  %8712 = vmatprep.subr.bf16.mxu0 0
  %8713 = vmatpush1.bf16.msra.mxu0 0
  %8714 = vmatprep.subr.bf16.mxu0 0
  %8715 = vmatpush1.bf16.msra.mxu0 0
  %8716 = vmatprep.subr.bf16.mxu0 0
  %8717 = vmatpush1.bf16.msra.mxu0 0
  %8718 = vmatprep.subr.bf16.mxu0 0
  %8719 = vmatpush1.bf16.msra.mxu0 0
  %8720 = vmatprep.subr.bf16.mxu0 0
  %8721 = vmatpush1.bf16.msra.mxu0 0
  %8722 = vmatprep.subr.bf16.mxu0 0
  %8723 = vmatpush1.bf16.msra.mxu0 0
  %8724 = vmatprep.subr.bf16.mxu0 0
  %8725 = vmatpush1.bf16.msra.mxu0 0
  %8726 = vmatprep.subr.bf16.mxu0 0
  %8727 = vmatpush1.bf16.msra.mxu0 0
  %8728 = vmatprep.subr.bf16.mxu0 0
  %8729 = vmatpush1.bf16.msra.mxu0 0
  %8730 = vmatprep.subr.bf16.mxu0 0
  %8731 = vmatpush1.bf16.msra.mxu0 0
  %8732 = vmatprep.subr.bf16.mxu0 0
  %8733 = vmatpush1.bf16.msra.mxu0 0
  %8734 = vmatprep.subr.bf16.mxu0 0
  %8735 = vmatpush1.bf16.msra.mxu0 0
  %8736 = vmatprep.subr.bf16.mxu0 0
  %8737 = vmatpush1.bf16.msra.mxu0 0
  %8738 = vmatprep.subr.bf16.mxu0 0
  %8739 = vmatpush1.bf16.msra.mxu0 0
  %8740 = vmatprep.subr.bf16.mxu0 0
  %8741 = vmatpush1.bf16.msra.mxu0 0
  %8742 = vmatprep.mubr.bf16.mxu0 0
  %8743 = vmatmul.mubr.bf16.gmra.mrb[0].mxu0 %v175
  %v8744 = vpop.f32.mrb[0].mxu0
  %v8745 = vadd.f32 0.0, %v8744
  %v8746 = vpop.f32.mrb[0].mxu0
  %v8747 = vpop.f32.mrb[0].mxu0
  %v8748 = vadd.f32 0.0, %v8747
  %v8749 = vpop.f32.mrb[0].mxu0
  %8750 = vdwg.mxu0
  %v8751 = vmul.f32 %v8704, 2.0
  %v8752 = vmul.f32 %v8707, 2.0
  %v8753 = vmul.f32 %v8745, 2.0
  %v8754 = vmul.f32 %v8748, 2.0
  %v8755 = vsub.f32 %v8751, %v8579
  %v8756 = vsub.f32 %v8752, %v8580
  %v8757 = vsub.f32 %v8753, %v8581
  %v8758 = vsub.f32 %v8754, %v8582
  %8763 = vrot.lane.b32.xlu0 %v8620, 32
  %v8764 = vpop.permute.xlu0 %8763
  %8765 = vrot.lane.b32.xlu0 %v8623, 32
  %v8766 = vpop.permute.xlu0 %8765
  %8767 = vrot.lane.b32.xlu0 %v8661, 32
  %v8768 = vpop.permute.xlu0 %8767
  %8769 = vrot.lane.b32.xlu0 %v8664, 32
  %v8770 = vpop.permute.xlu0 %8769
  %8779 = vrot.lane.b32.xlu0 %v8755, 64
  %v8780 = vpop.permute.xlu0 %8779
  %8781 = vrot.lane.b32.xlu0 %v8756, 64
  %v8782 = vpop.permute.xlu0 %8781
  %8783 = vrot.lane.b32.xlu0 %v8757, 64
  %v8784 = vpop.permute.xlu0 %8783
  %8785 = vrot.lane.b32.xlu0 %v8758, 64
  %v8786 = vpop.permute.xlu0 %8785
  %v8791 = vsel %vm342, %v8579, %v8764
  %v8792 = vsel %vm342, %v8580, %v8766
  %v8793 = vsel %vm342, %v8581, %v8768
  %v8794 = vsel %vm342, %v8582, %v8770
  %v8795 = vsel %vm347, %v8791, %v8780
  %v8796 = vsel %vm347, %v8792, %v8782
  %v8797 = vsel %vm347, %v8793, %v8784
  %v8798 = vsel %vm347, %v8794, %v8786
  %v8799 = vpack.c.bf16 %v8796, %v8795
  %v8800 = vpack.c.bf16 %v8798, %v8797
  %v8802 = vsel %vm390, %v8799, 0
  %v8805 = vsel %vm390, %v8800, 0
  %8807 = vmatprep.subr.bf16.mxu0 0
  %8808 = vmatpush1.bf16.msra.mxu0 %v1799
  %8809 = vmatprep.subr.bf16.mxu0 0
  %8810 = vmatpush1.bf16.msra.mxu0 %v1800
  %8811 = vmatprep.subr.bf16.mxu0 0
  %8812 = vmatpush1.bf16.msra.mxu0 %v1801
  %8813 = vmatprep.subr.bf16.mxu0 0
  %8814 = vmatpush1.bf16.msra.mxu0 %v1802
  %8815 = vmatprep.subr.bf16.mxu0 0
  %8816 = vmatpush1.bf16.msra.mxu0 %v1803
  %8817 = vmatprep.subr.bf16.mxu0 0
  %8818 = vmatpush1.bf16.msra.mxu0 %v1804
  %8819 = vmatprep.subr.bf16.mxu0 0
  %8820 = vmatpush1.bf16.msra.mxu0 0
  %8821 = vmatprep.subr.bf16.mxu0 0
  %8822 = vmatpush1.bf16.msra.mxu0 0
  %8823 = vmatprep.subr.bf16.mxu0 0
  %8824 = vmatpush1.bf16.msra.mxu0 0
  %8825 = vmatprep.subr.bf16.mxu0 0
  %8826 = vmatpush1.bf16.msra.mxu0 0
  %8827 = vmatprep.subr.bf16.mxu0 0
  %8828 = vmatpush1.bf16.msra.mxu0 0
  %8829 = vmatprep.subr.bf16.mxu0 0
  %8830 = vmatpush1.bf16.msra.mxu0 0
  %8831 = vmatprep.subr.bf16.mxu0 0
  %8832 = vmatpush1.bf16.msra.mxu0 0
  %8833 = vmatprep.subr.bf16.mxu0 0
  %8834 = vmatpush1.bf16.msra.mxu0 0
  %8835 = vmatprep.subr.bf16.mxu0 0
  %8836 = vmatpush1.bf16.msra.mxu0 0
  %8837 = vmatprep.subr.bf16.mxu0 0
  %8838 = vmatpush1.bf16.msra.mxu0 0
  %8839 = vmatprep.mubr.bf16.mxu0 0
  %8840 = vmatmul.mubr.bf16.gmra.mrb[0].mxu0 %v8802
  %v8841 = vpop.f32.mrb[0].mxu0
  %v8842 = vadd.f32 0.0, %v8841
  %v8843 = vpop.f32.mrb[0].mxu0
  %v8844 = vpop.f32.mrb[0].mxu0
  %v8845 = vadd.f32 0.0, %v8844
  %v8846 = vpop.f32.mrb[0].mxu0
  %8847 = vmatprep.mubr.bf16.mxu0 0
  %8848 = vmatmul.mubr.bf16.gmra.mrb[0].mxu0 %v8805
  %v8849 = vpop.f32.mrb[0].mxu0
  %v8850 = vadd.f32 0.0, %v8849
  %v8851 = vpop.f32.mrb[0].mxu0
  %v8852 = vpop.f32.mrb[0].mxu0
  %v8853 = vadd.f32 0.0, %v8852
  %v8854 = vpop.f32.mrb[0].mxu0
  %8855 = vdwg.mxu0
  %8860 = vrot.lane.b32.xlu0 %v8842, 64
  %v8861 = vpop.permute.xlu0 %8860
  %8862 = vrot.lane.b32.xlu0 %v8845, 64
  %v8863 = vpop.permute.xlu0 %8862
  %8864 = vrot.lane.b32.xlu0 %v8850, 64
  %v8865 = vpop.permute.xlu0 %8864
  %8866 = vrot.lane.b32.xlu0 %v8853, 64
  %v8867 = vpop.permute.xlu0 %8866
  %v8872 = vadd.f32 %v8252, %v8861
  %v8873 = vadd.f32 %v8255, %v8863
  %v8874 = vadd.f32 %v8260, %v8865
  %v8875 = vadd.f32 %v8263, %v8867
  %v8876 = vadd.f32 %v8872, %v1523
  %v8877 = vadd.f32 %v8873, %v1523
  %v8878 = vadd.f32 %v8874, %v1523
  %v8879 = vadd.f32 %v8875, %v1523
  %v8880 = vtanh.pop %v8876
  %v8881 = vtanh.pop %v8877
  %v8882 = vtanh.pop %v8878
  %v8883 = vtanh.pop %v8879
  %v8884 = vmul.f32 %v8572, %v7517
  %v8885 = vmul.f32 %v8574, %v7518
  %v8886 = vmul.f32 %v8576, %v7519
  %v8887 = vmul.f32 %v8578, %v7520
  %v8888 = vsub.f32 1.0, %v8572
  %v8889 = vsub.f32 1.0, %v8574
  %v8890 = vsub.f32 1.0, %v8576
  %v8891 = vsub.f32 1.0, %v8578
  %8896 = vrot.lane.b32.xlu0 %v8880, 96
  %v8897 = vpop.permute.xlu0 %8896
  %8898 = vrot.lane.b32.xlu0 %v8881, 96
  %v8899 = vpop.permute.xlu0 %8898
  %8900 = vrot.lane.b32.xlu0 %v8882, 96
  %v8901 = vpop.permute.xlu0 %8900
  %8902 = vrot.lane.b32.xlu0 %v8883, 96
  %v8903 = vpop.permute.xlu0 %8902
  %v8908 = vmul.f32 %v8888, %v8897
  %v8909 = vmul.f32 %v8889, %v8899
  %v8910 = vmul.f32 %v8890, %v8901
  %v8911 = vmul.f32 %v8891, %v8903
  %v8912 = vadd.f32 %v8884, %v8908
  %v8913 = vadd.f32 %v8885, %v8909
  %v8914 = vadd.f32 %v8886, %v8910
  %v8915 = vadd.f32 %v8887, %v8911
  %8920 = vrot.lane.b32.xlu0 %v8912, 96
  %v8921 = vpop.permute.xlu0 %8920
  %8922 = vrot.lane.b32.xlu0 %v8913, 96
  %v8923 = vpop.permute.xlu0 %8922
  %8924 = vrot.lane.b32.xlu0 %v8914, 96
  %v8925 = vpop.permute.xlu0 %8924
  %8926 = vrot.lane.b32.xlu0 %v8915, 96
  %v8927 = vpop.permute.xlu0 %8926
  %s8932 = scalar_lea.vmem %s9, 160
  %8933 = vst.msk [vmem:[%s8932] sm:$0xff] %vm342, %v8921
  %8934 = vst.msk [vmem:[%s8932 + $0x8] sm:$0xff] %vm342, %v8923
  %8935 = vst.msk [vmem:[%s8932 + $0x10] sm:$0xff] %vm342, %v8925
  %8936 = vst.msk [vmem:[%s8932 + $0x18] sm:$0xff] %vm342, %v8927
  %s8937 = scalar_lea.vmem %s0, 96
  %v8938 = vld [vmem:[%s8937] sm:$0xf]
  %v8939 = vld [vmem:[%s8937 + $0x4] sm:$0xf]
  %v8940 = vld [vmem:[%s8937 + $0x8] sm:$0xf]
  %v8941 = vld [vmem:[%s8937 + $0xc] sm:$0xf]
  %v8942 = vunpack.c.l.bf16 %v8938
  %v8943 = vunpack.c.l.bf16 %v8939
  %v8944 = vunpack.c.l.bf16 %v8940
  %v8945 = vunpack.c.l.bf16 %v8941
  %8946 = vmatprep.subr.bf16.mxu0 0
  %8947 = vmatpush1.bf16.msra.mxu0 %v378
  %8948 = vmatprep.subr.bf16.mxu0 0
  %8949 = vmatpush1.bf16.msra.mxu0 %v379
  %8950 = vmatprep.subr.bf16.mxu0 0
  %8951 = vmatpush1.bf16.msra.mxu0 %v380
  %8952 = vmatprep.subr.bf16.mxu0 0
  %8953 = vmatpush1.bf16.msra.mxu0 %v381
  %8954 = vmatprep.subr.bf16.mxu0 0
  %8955 = vmatpush1.bf16.msra.mxu0 %v382
  %8956 = vmatprep.subr.bf16.mxu0 0
  %8957 = vmatpush1.bf16.msra.mxu0 %v383
  %8958 = vmatprep.subr.bf16.mxu0 0
  %8959 = vmatpush1.bf16.msra.mxu0 0
  %8960 = vmatprep.subr.bf16.mxu0 0
  %8961 = vmatpush1.bf16.msra.mxu0 0
  %8962 = vmatprep.subr.bf16.mxu0 0
  %8963 = vmatpush1.bf16.msra.mxu0 0
  %8964 = vmatprep.subr.bf16.mxu0 0
  %8965 = vmatpush1.bf16.msra.mxu0 0
  %8966 = vmatprep.subr.bf16.mxu0 0
  %8967 = vmatpush1.bf16.msra.mxu0 0
  %8968 = vmatprep.subr.bf16.mxu0 0
  %8969 = vmatpush1.bf16.msra.mxu0 0
  %8970 = vmatprep.subr.bf16.mxu0 0
  %8971 = vmatpush1.bf16.msra.mxu0 0
  %8972 = vmatprep.subr.bf16.mxu0 0
  %8973 = vmatpush1.bf16.msra.mxu0 0
  %8974 = vmatprep.subr.bf16.mxu0 0
  %8975 = vmatpush1.bf16.msra.mxu0 0
  %8976 = vmatprep.subr.bf16.mxu0 0
  %8977 = vmatpush1.bf16.msra.mxu0 0
  %8978 = vmatprep.mubr.bf16.mxu0 0
  %8979 = vmatmul.mubr.bf16.gmra.mrb[0].mxu0 %v8212
  %v8980 = vpop.f32.mrb[0].mxu0
  %v8981 = vadd.f32 0.0, %v8980
  %v8982 = vpop.f32.mrb[0].mxu0
  %v8983 = vpop.f32.mrb[0].mxu0
  %v8984 = vadd.f32 0.0, %v8983
  %v8985 = vpop.f32.mrb[0].mxu0
  %8986 = vmatprep.mubr.bf16.mxu0 0
  %8987 = vmatmul.mubr.bf16.gmra.mrb[0].mxu0 %v8215
  %v8988 = vpop.f32.mrb[0].mxu0
  %v8989 = vadd.f32 0.0, %v8988
  %v8990 = vpop.f32.mrb[0].mxu0
  %v8991 = vpop.f32.mrb[0].mxu0
  %v8992 = vadd.f32 0.0, %v8991
  %v8993 = vpop.f32.mrb[0].mxu0
  %8994 = vdwg.mxu0
  %v8995 = vadd.f32 %v8942, %v8981
  %v8996 = vadd.f32 %v8943, %v8984
  %v8997 = vadd.f32 %v8944, %v8989
  %v8998 = vadd.f32 %v8945, %v8992
  %v8999 = vadd.f32 %v8995, %v454
  %v9000 = vadd.f32 %v8996, %v454
  %v9001 = vadd.f32 %v8997, %v454
  %v9002 = vadd.f32 %v8998, %v454
  %v9003 = vxor.u32 %v8999, 2147483648
  %v9004 = vxor.u32 %v9000, 2147483648
  %v9005 = vxor.u32 %v9001, 2147483648
  %v9006 = vxor.u32 %v9002, 2147483648
  %v9007 = vmul.f32 %v9003, 1.442695
  %v9008 = vpow.pop %v9007
  %v9009 = vmul.f32 %v9004, 1.442695
  %v9010 = vpow.pop %v9009
  %v9011 = vmul.f32 %v9005, 1.442695
  %v9012 = vpow.pop %v9011
  %v9013 = vmul.f32 %v9006, 1.442695
  %v9014 = vpow.pop %v9013
  %v9015 = vadd.f32 %v9008, 1.0
  %v9016 = vadd.f32 %v9010, 1.0
  %v9017 = vadd.f32 %v9012, 1.0
  %v9018 = vadd.f32 %v9014, 1.0
  %v9019 = vrcp.pop %v9015
  %v9020 = vmul.f32 1.0, %v9019
  %v9021 = vrcp.pop %v9016
  %v9022 = vmul.f32 1.0, %v9021
  %v9023 = vrcp.pop %v9017
  %v9024 = vmul.f32 1.0, %v9023
  %v9025 = vrcp.pop %v9018
  %v9026 = vmul.f32 1.0, %v9025
  %v9027 = vmul.f32 %v9020, %v8154
  %v9028 = vmul.f32 %v9022, %v8156
  %v9029 = vmul.f32 %v9024, %v8158
  %v9030 = vmul.f32 %v9026, %v8160
  %v9031 = vpack.c.bf16 %v9028, %v9027
  %v9032 = vpack.c.bf16 %v9030, %v9029
  %9033 = vmatprep.subr.bf16.mxu0 0
  %9034 = vmatpush1.bf16.msra.mxu0 %v9031
  %9035 = vmatprep.subr.bf16.mxu0 0
  %9036 = vmatpush1.bf16.msra.mxu0 0
  %9037 = vmatprep.subr.bf16.mxu0 0
  %9038 = vmatpush1.bf16.msra.mxu0 0
  %9039 = vmatprep.subr.bf16.mxu0 0
  %9040 = vmatpush1.bf16.msra.mxu0 0
  %9041 = vmatprep.subr.bf16.mxu0 0
  %9042 = vmatpush1.bf16.msra.mxu0 0
  %9043 = vmatprep.subr.bf16.mxu0 0
  %9044 = vmatpush1.bf16.msra.mxu0 0
  %9045 = vmatprep.subr.bf16.mxu0 0
  %9046 = vmatpush1.bf16.msra.mxu0 0
  %9047 = vmatprep.subr.bf16.mxu0 0
  %9048 = vmatpush1.bf16.msra.mxu0 0
  %9049 = vmatprep.subr.bf16.mxu0 0
  %9050 = vmatpush1.bf16.msra.mxu0 0
  %9051 = vmatprep.subr.bf16.mxu0 0
  %9052 = vmatpush1.bf16.msra.mxu0 0
  %9053 = vmatprep.subr.bf16.mxu0 0
  %9054 = vmatpush1.bf16.msra.mxu0 0
  %9055 = vmatprep.subr.bf16.mxu0 0
  %9056 = vmatpush1.bf16.msra.mxu0 0
  %9057 = vmatprep.subr.bf16.mxu0 0
  %9058 = vmatpush1.bf16.msra.mxu0 0
  %9059 = vmatprep.subr.bf16.mxu0 0
  %9060 = vmatpush1.bf16.msra.mxu0 0
  %9061 = vmatprep.subr.bf16.mxu0 0
  %9062 = vmatpush1.bf16.msra.mxu0 0
  %9063 = vmatprep.subr.bf16.mxu0 0
  %9064 = vmatpush1.bf16.msra.mxu0 0
  %9065 = vmatprep.mubr.bf16.mxu0 0
  %9066 = vmatmul.mubr.bf16.gmra.mrb[0].mxu0 %v126
  %v9067 = vpop.f32.mrb[0].mxu0
  %v9068 = vadd.f32 0.0, %v9067
  %v9069 = vpop.f32.mrb[0].mxu0
  %v9070 = vpop.f32.mrb[0].mxu0
  %v9071 = vadd.f32 0.0, %v9070
  %v9072 = vpop.f32.mrb[0].mxu0
  %9073 = vdwg.mxu0
  %9074 = vmatprep.subr.bf16.mxu0 0
  %9075 = vmatpush1.bf16.msra.mxu0 %v9032
  %9076 = vmatprep.subr.bf16.mxu0 0
  %9077 = vmatpush1.bf16.msra.mxu0 0
  %9078 = vmatprep.subr.bf16.mxu0 0
  %9079 = vmatpush1.bf16.msra.mxu0 0
  %9080 = vmatprep.subr.bf16.mxu0 0
  %9081 = vmatpush1.bf16.msra.mxu0 0
  %9082 = vmatprep.subr.bf16.mxu0 0
  %9083 = vmatpush1.bf16.msra.mxu0 0
  %9084 = vmatprep.subr.bf16.mxu0 0
  %9085 = vmatpush1.bf16.msra.mxu0 0
  %9086 = vmatprep.subr.bf16.mxu0 0
  %9087 = vmatpush1.bf16.msra.mxu0 0
  %9088 = vmatprep.subr.bf16.mxu0 0
  %9089 = vmatpush1.bf16.msra.mxu0 0
  %9090 = vmatprep.subr.bf16.mxu0 0
  %9091 = vmatpush1.bf16.msra.mxu0 0
  %9092 = vmatprep.subr.bf16.mxu0 0
  %9093 = vmatpush1.bf16.msra.mxu0 0
  %9094 = vmatprep.subr.bf16.mxu0 0
  %9095 = vmatpush1.bf16.msra.mxu0 0
  %9096 = vmatprep.subr.bf16.mxu0 0
  %9097 = vmatpush1.bf16.msra.mxu0 0
  %9098 = vmatprep.subr.bf16.mxu0 0
  %9099 = vmatpush1.bf16.msra.mxu0 0
  %9100 = vmatprep.subr.bf16.mxu0 0
  %9101 = vmatpush1.bf16.msra.mxu0 0
  %9102 = vmatprep.subr.bf16.mxu0 0
  %9103 = vmatpush1.bf16.msra.mxu0 0
  %9104 = vmatprep.subr.bf16.mxu0 0
  %9105 = vmatpush1.bf16.msra.mxu0 0
  %9106 = vmatprep.mubr.bf16.mxu0 0
  %9107 = vmatmul.mubr.bf16.gmra.mrb[0].mxu0 %v175
  %v9108 = vpop.f32.mrb[0].mxu0
  %v9109 = vadd.f32 0.0, %v9108
  %v9110 = vpop.f32.mrb[0].mxu0
  %v9111 = vpop.f32.mrb[0].mxu0
  %v9112 = vadd.f32 0.0, %v9111
  %v9113 = vpop.f32.mrb[0].mxu0
  %9114 = vdwg.mxu0
  %v9115 = vpack.c.bf16 %v9071, %v9068
  %v9116 = vpack.c.bf16 %v9112, %v9109
  %9117 = vmatprep.subr.bf16.mxu0 0
  %9118 = vmatpush1.bf16.msra.mxu0 %v9115
  %9119 = vmatprep.subr.bf16.mxu0 0
  %9120 = vmatpush1.bf16.msra.mxu0 0
  %9121 = vmatprep.subr.bf16.mxu0 0
  %9122 = vmatpush1.bf16.msra.mxu0 0
  %9123 = vmatprep.subr.bf16.mxu0 0
  %9124 = vmatpush1.bf16.msra.mxu0 0
  %9125 = vmatprep.subr.bf16.mxu0 0
  %9126 = vmatpush1.bf16.msra.mxu0 0
  %9127 = vmatprep.subr.bf16.mxu0 0
  %9128 = vmatpush1.bf16.msra.mxu0 0
  %9129 = vmatprep.subr.bf16.mxu0 0
  %9130 = vmatpush1.bf16.msra.mxu0 0
  %9131 = vmatprep.subr.bf16.mxu0 0
  %9132 = vmatpush1.bf16.msra.mxu0 0
  %9133 = vmatprep.subr.bf16.mxu0 0
  %9134 = vmatpush1.bf16.msra.mxu0 0
  %9135 = vmatprep.subr.bf16.mxu0 0
  %9136 = vmatpush1.bf16.msra.mxu0 0
  %9137 = vmatprep.subr.bf16.mxu0 0
  %9138 = vmatpush1.bf16.msra.mxu0 0
  %9139 = vmatprep.subr.bf16.mxu0 0
  %9140 = vmatpush1.bf16.msra.mxu0 0
  %9141 = vmatprep.subr.bf16.mxu0 0
  %9142 = vmatpush1.bf16.msra.mxu0 0
  %9143 = vmatprep.subr.bf16.mxu0 0
  %9144 = vmatpush1.bf16.msra.mxu0 0
  %9145 = vmatprep.subr.bf16.mxu0 0
  %9146 = vmatpush1.bf16.msra.mxu0 0
  %9147 = vmatprep.subr.bf16.mxu0 0
  %9148 = vmatpush1.bf16.msra.mxu0 0
  %9149 = vmatprep.mubr.bf16.mxu0 0
  %9150 = vmatmul.mubr.bf16.gmra.mrb[0].mxu0 %v126
  %v9151 = vpop.f32.mrb[0].mxu0
  %v9152 = vadd.f32 0.0, %v9151
  %v9153 = vpop.f32.mrb[0].mxu0
  %v9154 = vpop.f32.mrb[0].mxu0
  %v9155 = vadd.f32 0.0, %v9154
  %v9156 = vpop.f32.mrb[0].mxu0
  %9157 = vdwg.mxu0
  %9158 = vmatprep.subr.bf16.mxu0 0
  %9159 = vmatpush1.bf16.msra.mxu0 %v9116
  %9160 = vmatprep.subr.bf16.mxu0 0
  %9161 = vmatpush1.bf16.msra.mxu0 0
  %9162 = vmatprep.subr.bf16.mxu0 0
  %9163 = vmatpush1.bf16.msra.mxu0 0
  %9164 = vmatprep.subr.bf16.mxu0 0
  %9165 = vmatpush1.bf16.msra.mxu0 0
  %9166 = vmatprep.subr.bf16.mxu0 0
  %9167 = vmatpush1.bf16.msra.mxu0 0
  %9168 = vmatprep.subr.bf16.mxu0 0
  %9169 = vmatpush1.bf16.msra.mxu0 0
  %9170 = vmatprep.subr.bf16.mxu0 0
  %9171 = vmatpush1.bf16.msra.mxu0 0
  %9172 = vmatprep.subr.bf16.mxu0 0
  %9173 = vmatpush1.bf16.msra.mxu0 0
  %9174 = vmatprep.subr.bf16.mxu0 0
  %9175 = vmatpush1.bf16.msra.mxu0 0
  %9176 = vmatprep.subr.bf16.mxu0 0
  %9177 = vmatpush1.bf16.msra.mxu0 0
  %9178 = vmatprep.subr.bf16.mxu0 0
  %9179 = vmatpush1.bf16.msra.mxu0 0
  %9180 = vmatprep.subr.bf16.mxu0 0
  %9181 = vmatpush1.bf16.msra.mxu0 0
  %9182 = vmatprep.subr.bf16.mxu0 0
  %9183 = vmatpush1.bf16.msra.mxu0 0
  %9184 = vmatprep.subr.bf16.mxu0 0
  %9185 = vmatpush1.bf16.msra.mxu0 0
  %9186 = vmatprep.subr.bf16.mxu0 0
  %9187 = vmatpush1.bf16.msra.mxu0 0
  %9188 = vmatprep.subr.bf16.mxu0 0
  %9189 = vmatpush1.bf16.msra.mxu0 0
  %9190 = vmatprep.mubr.bf16.mxu0 0
  %9191 = vmatmul.mubr.bf16.gmra.mrb[0].mxu0 %v175
  %v9192 = vpop.f32.mrb[0].mxu0
  %v9193 = vadd.f32 0.0, %v9192
  %v9194 = vpop.f32.mrb[0].mxu0
  %v9195 = vpop.f32.mrb[0].mxu0
  %v9196 = vadd.f32 0.0, %v9195
  %v9197 = vpop.f32.mrb[0].mxu0
  %9198 = vdwg.mxu0
  %v9199 = vmul.f32 %v9152, 2.0
  %v9200 = vmul.f32 %v9155, 2.0
  %v9201 = vmul.f32 %v9193, 2.0
  %v9202 = vmul.f32 %v9196, 2.0
  %v9203 = vsub.f32 %v9199, %v9027
  %v9204 = vsub.f32 %v9200, %v9028
  %v9205 = vsub.f32 %v9201, %v9029
  %v9206 = vsub.f32 %v9202, %v9030
  %9211 = vrot.lane.b32.xlu0 %v9068, 32
  %v9212 = vpop.permute.xlu0 %9211
  %9213 = vrot.lane.b32.xlu0 %v9071, 32
  %v9214 = vpop.permute.xlu0 %9213
  %9215 = vrot.lane.b32.xlu0 %v9109, 32
  %v9216 = vpop.permute.xlu0 %9215
  %9217 = vrot.lane.b32.xlu0 %v9112, 32
  %v9218 = vpop.permute.xlu0 %9217
  %9227 = vrot.lane.b32.xlu0 %v9203, 64
  %v9228 = vpop.permute.xlu0 %9227
  %9229 = vrot.lane.b32.xlu0 %v9204, 64
  %v9230 = vpop.permute.xlu0 %9229
  %9231 = vrot.lane.b32.xlu0 %v9205, 64
  %v9232 = vpop.permute.xlu0 %9231
  %9233 = vrot.lane.b32.xlu0 %v9206, 64
  %v9234 = vpop.permute.xlu0 %9233
  %v9239 = vsel %vm342, %v9027, %v9212
  %v9240 = vsel %vm342, %v9028, %v9214
  %v9241 = vsel %vm342, %v9029, %v9216
  %v9242 = vsel %vm342, %v9030, %v9218
  %v9243 = vsel %vm347, %v9239, %v9228
  %v9244 = vsel %vm347, %v9240, %v9230
  %v9245 = vsel %vm347, %v9241, %v9232
  %v9246 = vsel %vm347, %v9242, %v9234
  %v9247 = vpack.c.bf16 %v9244, %v9243
  %v9248 = vpack.c.bf16 %v9246, %v9245
  %v9250 = vsel %vm390, %v9247, 0
  %v9253 = vsel %vm390, %v9248, 0
  %9255 = vmatprep.subr.bf16.mxu0 0
  %9256 = vmatpush1.bf16.msra.mxu0 %v730
  %9257 = vmatprep.subr.bf16.mxu0 0
  %9258 = vmatpush1.bf16.msra.mxu0 %v731
  %9259 = vmatprep.subr.bf16.mxu0 0
  %9260 = vmatpush1.bf16.msra.mxu0 %v732
  %9261 = vmatprep.subr.bf16.mxu0 0
  %9262 = vmatpush1.bf16.msra.mxu0 %v733
  %9263 = vmatprep.subr.bf16.mxu0 0
  %9264 = vmatpush1.bf16.msra.mxu0 %v734
  %9265 = vmatprep.subr.bf16.mxu0 0
  %9266 = vmatpush1.bf16.msra.mxu0 %v735
  %9267 = vmatprep.subr.bf16.mxu0 0
  %9268 = vmatpush1.bf16.msra.mxu0 0
  %9269 = vmatprep.subr.bf16.mxu0 0
  %9270 = vmatpush1.bf16.msra.mxu0 0
  %9271 = vmatprep.subr.bf16.mxu0 0
  %9272 = vmatpush1.bf16.msra.mxu0 0
  %9273 = vmatprep.subr.bf16.mxu0 0
  %9274 = vmatpush1.bf16.msra.mxu0 0
  %9275 = vmatprep.subr.bf16.mxu0 0
  %9276 = vmatpush1.bf16.msra.mxu0 0
  %9277 = vmatprep.subr.bf16.mxu0 0
  %9278 = vmatpush1.bf16.msra.mxu0 0
  %9279 = vmatprep.subr.bf16.mxu0 0
  %9280 = vmatpush1.bf16.msra.mxu0 0
  %9281 = vmatprep.subr.bf16.mxu0 0
  %9282 = vmatpush1.bf16.msra.mxu0 0
  %9283 = vmatprep.subr.bf16.mxu0 0
  %9284 = vmatpush1.bf16.msra.mxu0 0
  %9285 = vmatprep.subr.bf16.mxu0 0
  %9286 = vmatpush1.bf16.msra.mxu0 0
  %9287 = vmatprep.mubr.bf16.mxu0 0
  %9288 = vmatmul.mubr.bf16.gmra.mrb[0].mxu0 %v9250
  %v9289 = vpop.f32.mrb[0].mxu0
  %v9290 = vadd.f32 0.0, %v9289
  %v9291 = vpop.f32.mrb[0].mxu0
  %v9292 = vpop.f32.mrb[0].mxu0
  %v9293 = vadd.f32 0.0, %v9292
  %v9294 = vpop.f32.mrb[0].mxu0
  %9295 = vmatprep.mubr.bf16.mxu0 0
  %9296 = vmatmul.mubr.bf16.gmra.mrb[0].mxu0 %v9253
  %v9297 = vpop.f32.mrb[0].mxu0
  %v9298 = vadd.f32 0.0, %v9297
  %v9299 = vpop.f32.mrb[0].mxu0
  %v9300 = vpop.f32.mrb[0].mxu0
  %v9301 = vadd.f32 0.0, %v9300
  %v9302 = vpop.f32.mrb[0].mxu0
  %9303 = vdwg.mxu0
  %9308 = vrot.lane.b32.xlu0 %v9290, 64
  %v9309 = vpop.permute.xlu0 %9308
  %9310 = vrot.lane.b32.xlu0 %v9293, 64
  %v9311 = vpop.permute.xlu0 %9310
  %9312 = vrot.lane.b32.xlu0 %v9298, 64
  %v9313 = vpop.permute.xlu0 %9312
  %9314 = vrot.lane.b32.xlu0 %v9301, 64
  %v9315 = vpop.permute.xlu0 %9314
  %v9320 = vadd.f32 %v8942, %v9309
  %v9321 = vadd.f32 %v8943, %v9311
  %v9322 = vadd.f32 %v8944, %v9313
  %v9323 = vadd.f32 %v8945, %v9315
  %v9324 = vadd.f32 %v9320, %v454
  %v9325 = vadd.f32 %v9321, %v454
  %v9326 = vadd.f32 %v9322, %v454
  %v9327 = vadd.f32 %v9323, %v454
  %v9328 = vtanh.pop %v9324
  %v9329 = vtanh.pop %v9325
  %v9330 = vtanh.pop %v9326
  %v9331 = vtanh.pop %v9327
  %v9332 = vmul.f32 %v9020, %v7965
  %v9333 = vmul.f32 %v9022, %v7966
  %v9334 = vmul.f32 %v9024, %v7967
  %v9335 = vmul.f32 %v9026, %v7968
  %v9336 = vsub.f32 1.0, %v9020
  %v9337 = vsub.f32 1.0, %v9022
  %v9338 = vsub.f32 1.0, %v9024
  %v9339 = vsub.f32 1.0, %v9026
  %9344 = vrot.lane.b32.xlu0 %v9328, 96
  %v9345 = vpop.permute.xlu0 %9344
  %9346 = vrot.lane.b32.xlu0 %v9329, 96
  %v9347 = vpop.permute.xlu0 %9346
  %9348 = vrot.lane.b32.xlu0 %v9330, 96
  %v9349 = vpop.permute.xlu0 %9348
  %9350 = vrot.lane.b32.xlu0 %v9331, 96
  %v9351 = vpop.permute.xlu0 %9350
  %v9356 = vmul.f32 %v9336, %v9345
  %v9357 = vmul.f32 %v9337, %v9347
  %v9358 = vmul.f32 %v9338, %v9349
  %v9359 = vmul.f32 %v9339, %v9351
  %v9360 = vadd.f32 %v9332, %v9356
  %v9361 = vadd.f32 %v9333, %v9357
  %v9362 = vadd.f32 %v9334, %v9358
  %v9363 = vadd.f32 %v9335, %v9359
  %v9364 = vpack.c.bf16 %v9361, %v9360
  %v9365 = vpack.c.bf16 %v9363, %v9362
  %9367 = vrot.lane.b32.xlu0 %v9364, 96
  %v9368 = vpop.permute.xlu0 %9367
  %9370 = vmatprep.subr.bf16.mxu0 0
  %9371 = vmatpush1.bf16.msra.mxu0 %v9368
  %9372 = vmatprep.subr.bf16.mxu0 0
  %9373 = vmatpush1.bf16.msra.mxu0 0
  %9374 = vmatprep.subr.bf16.mxu0 0
  %9375 = vmatpush1.bf16.msra.mxu0 0
  %9376 = vmatprep.subr.bf16.mxu0 0
  %9377 = vmatpush1.bf16.msra.mxu0 0
  %9378 = vmatprep.subr.bf16.mxu0 0
  %9379 = vmatpush1.bf16.msra.mxu0 0
  %9380 = vmatprep.subr.bf16.mxu0 0
  %9381 = vmatpush1.bf16.msra.mxu0 0
  %9382 = vmatprep.subr.bf16.mxu0 0
  %9383 = vmatpush1.bf16.msra.mxu0 0
  %9384 = vmatprep.subr.bf16.mxu0 0
  %9385 = vmatpush1.bf16.msra.mxu0 0
  %9386 = vmatprep.subr.bf16.mxu0 0
  %9387 = vmatpush1.bf16.msra.mxu0 0
  %9388 = vmatprep.subr.bf16.mxu0 0
  %9389 = vmatpush1.bf16.msra.mxu0 0
  %9390 = vmatprep.subr.bf16.mxu0 0
  %9391 = vmatpush1.bf16.msra.mxu0 0
  %9392 = vmatprep.subr.bf16.mxu0 0
  %9393 = vmatpush1.bf16.msra.mxu0 0
  %9394 = vmatprep.subr.bf16.mxu0 0
  %9395 = vmatpush1.bf16.msra.mxu0 0
  %9396 = vmatprep.subr.bf16.mxu0 0
  %9397 = vmatpush1.bf16.msra.mxu0 0
  %9398 = vmatprep.subr.bf16.mxu0 0
  %9399 = vmatpush1.bf16.msra.mxu0 0
  %9400 = vmatprep.subr.bf16.mxu0 0
  %9401 = vmatpush1.bf16.msra.mxu0 0
  %9402 = vmatprep.mubr.bf16.mxu0 0
  %9403 = vmatmul.mubr.bf16.gmra.mrb[0].mxu0 %v126
  %v9404 = vpop.f32.mrb[0].mxu0
  %v9405 = vadd.f32 0.0, %v9404
  %v9406 = vpop.f32.mrb[0].mxu0
  %v9407 = vpop.f32.mrb[0].mxu0
  %v9408 = vadd.f32 0.0, %v9407
  %v9409 = vpop.f32.mrb[0].mxu0
  %9410 = vdwg.mxu0
  %9412 = vrot.lane.b32.xlu0 %v9365, 96
  %v9413 = vpop.permute.xlu0 %9412
  %9415 = vmatprep.subr.bf16.mxu0 0
  %9416 = vmatpush1.bf16.msra.mxu0 %v9413
  %9417 = vmatprep.subr.bf16.mxu0 0
  %9418 = vmatpush1.bf16.msra.mxu0 0
  %9419 = vmatprep.subr.bf16.mxu0 0
  %9420 = vmatpush1.bf16.msra.mxu0 0
  %9421 = vmatprep.subr.bf16.mxu0 0
  %9422 = vmatpush1.bf16.msra.mxu0 0
  %9423 = vmatprep.subr.bf16.mxu0 0
  %9424 = vmatpush1.bf16.msra.mxu0 0
  %9425 = vmatprep.subr.bf16.mxu0 0
  %9426 = vmatpush1.bf16.msra.mxu0 0
  %9427 = vmatprep.subr.bf16.mxu0 0
  %9428 = vmatpush1.bf16.msra.mxu0 0
  %9429 = vmatprep.subr.bf16.mxu0 0
  %9430 = vmatpush1.bf16.msra.mxu0 0
  %9431 = vmatprep.subr.bf16.mxu0 0
  %9432 = vmatpush1.bf16.msra.mxu0 0
  %9433 = vmatprep.subr.bf16.mxu0 0
  %9434 = vmatpush1.bf16.msra.mxu0 0
  %9435 = vmatprep.subr.bf16.mxu0 0
  %9436 = vmatpush1.bf16.msra.mxu0 0
  %9437 = vmatprep.subr.bf16.mxu0 0
  %9438 = vmatpush1.bf16.msra.mxu0 0
  %9439 = vmatprep.subr.bf16.mxu0 0
  %9440 = vmatpush1.bf16.msra.mxu0 0
  %9441 = vmatprep.subr.bf16.mxu0 0
  %9442 = vmatpush1.bf16.msra.mxu0 0
  %9443 = vmatprep.subr.bf16.mxu0 0
  %9444 = vmatpush1.bf16.msra.mxu0 0
  %9445 = vmatprep.subr.bf16.mxu0 0
  %9446 = vmatpush1.bf16.msra.mxu0 0
  %9447 = vmatprep.mubr.bf16.mxu0 0
  %9448 = vmatmul.mubr.bf16.gmra.mrb[0].mxu0 %v175
  %v9449 = vpop.f32.mrb[0].mxu0
  %v9450 = vadd.f32 0.0, %v9449
  %v9451 = vpop.f32.mrb[0].mxu0
  %v9452 = vpop.f32.mrb[0].mxu0
  %v9453 = vadd.f32 0.0, %v9452
  %v9454 = vpop.f32.mrb[0].mxu0
  %9455 = vdwg.mxu0
  %v9456 = vpack.c.bf16 %v9408, %v9405
  %v9457 = vpack.c.bf16 %v9453, %v9450
  %9458 = vmatprep.subr.bf16.mxu0 0
  %9459 = vmatpush1.bf16.msra.mxu0 %v9456
  %9460 = vmatprep.subr.bf16.mxu0 0
  %9461 = vmatpush1.bf16.msra.mxu0 0
  %9462 = vmatprep.subr.bf16.mxu0 0
  %9463 = vmatpush1.bf16.msra.mxu0 0
  %9464 = vmatprep.subr.bf16.mxu0 0
  %9465 = vmatpush1.bf16.msra.mxu0 0
  %9466 = vmatprep.subr.bf16.mxu0 0
  %9467 = vmatpush1.bf16.msra.mxu0 0
  %9468 = vmatprep.subr.bf16.mxu0 0
  %9469 = vmatpush1.bf16.msra.mxu0 0
  %9470 = vmatprep.subr.bf16.mxu0 0
  %9471 = vmatpush1.bf16.msra.mxu0 0
  %9472 = vmatprep.subr.bf16.mxu0 0
  %9473 = vmatpush1.bf16.msra.mxu0 0
  %9474 = vmatprep.subr.bf16.mxu0 0
  %9475 = vmatpush1.bf16.msra.mxu0 0
  %9476 = vmatprep.subr.bf16.mxu0 0
  %9477 = vmatpush1.bf16.msra.mxu0 0
  %9478 = vmatprep.subr.bf16.mxu0 0
  %9479 = vmatpush1.bf16.msra.mxu0 0
  %9480 = vmatprep.subr.bf16.mxu0 0
  %9481 = vmatpush1.bf16.msra.mxu0 0
  %9482 = vmatprep.subr.bf16.mxu0 0
  %9483 = vmatpush1.bf16.msra.mxu0 0
  %9484 = vmatprep.subr.bf16.mxu0 0
  %9485 = vmatpush1.bf16.msra.mxu0 0
  %9486 = vmatprep.subr.bf16.mxu0 0
  %9487 = vmatpush1.bf16.msra.mxu0 0
  %9488 = vmatprep.subr.bf16.mxu0 0
  %9489 = vmatpush1.bf16.msra.mxu0 0
  %9490 = vmatprep.mubr.bf16.mxu0 0
  %9491 = vmatmul.mubr.bf16.gmra.mrb[0].mxu0 %v126
  %v9492 = vpop.f32.mrb[0].mxu0
  %v9493 = vadd.f32 0.0, %v9492
  %v9494 = vpop.f32.mrb[0].mxu0
  %v9495 = vpop.f32.mrb[0].mxu0
  %v9496 = vadd.f32 0.0, %v9495
  %v9497 = vpop.f32.mrb[0].mxu0
  %9498 = vdwg.mxu0
  %9499 = vmatprep.subr.bf16.mxu0 0
  %9500 = vmatpush1.bf16.msra.mxu0 %v9457
  %9501 = vmatprep.subr.bf16.mxu0 0
  %9502 = vmatpush1.bf16.msra.mxu0 0
  %9503 = vmatprep.subr.bf16.mxu0 0
  %9504 = vmatpush1.bf16.msra.mxu0 0
  %9505 = vmatprep.subr.bf16.mxu0 0
  %9506 = vmatpush1.bf16.msra.mxu0 0
  %9507 = vmatprep.subr.bf16.mxu0 0
  %9508 = vmatpush1.bf16.msra.mxu0 0
  %9509 = vmatprep.subr.bf16.mxu0 0
  %9510 = vmatpush1.bf16.msra.mxu0 0
  %9511 = vmatprep.subr.bf16.mxu0 0
  %9512 = vmatpush1.bf16.msra.mxu0 0
  %9513 = vmatprep.subr.bf16.mxu0 0
  %9514 = vmatpush1.bf16.msra.mxu0 0
  %9515 = vmatprep.subr.bf16.mxu0 0
  %9516 = vmatpush1.bf16.msra.mxu0 0
  %9517 = vmatprep.subr.bf16.mxu0 0
  %9518 = vmatpush1.bf16.msra.mxu0 0
  %9519 = vmatprep.subr.bf16.mxu0 0
  %9520 = vmatpush1.bf16.msra.mxu0 0
  %9521 = vmatprep.subr.bf16.mxu0 0
  %9522 = vmatpush1.bf16.msra.mxu0 0
  %9523 = vmatprep.subr.bf16.mxu0 0
  %9524 = vmatpush1.bf16.msra.mxu0 0
  %9525 = vmatprep.subr.bf16.mxu0 0
  %9526 = vmatpush1.bf16.msra.mxu0 0
  %9527 = vmatprep.subr.bf16.mxu0 0
  %9528 = vmatpush1.bf16.msra.mxu0 0
  %9529 = vmatprep.subr.bf16.mxu0 0
  %9530 = vmatpush1.bf16.msra.mxu0 0
  %9531 = vmatprep.mubr.bf16.mxu0 0
  %9532 = vmatmul.mubr.bf16.gmra.mrb[0].mxu0 %v175
  %v9533 = vpop.f32.mrb[0].mxu0
  %v9534 = vadd.f32 0.0, %v9533
  %v9535 = vpop.f32.mrb[0].mxu0
  %v9536 = vpop.f32.mrb[0].mxu0
  %v9537 = vadd.f32 0.0, %v9536
  %v9538 = vpop.f32.mrb[0].mxu0
  %9539 = vdwg.mxu0
  %v9540 = vmul.f32 %v9493, 2.0
  %v9541 = vmul.f32 %v9496, 2.0
  %v9542 = vmul.f32 %v9534, 2.0
  %v9543 = vmul.f32 %v9537, 2.0
  %9548 = vrot.lane.b32.xlu0 %v9360, 96
  %v9549 = vpop.permute.xlu0 %9548
  %9550 = vrot.lane.b32.xlu0 %v9361, 96
  %v9551 = vpop.permute.xlu0 %9550
  %9552 = vrot.lane.b32.xlu0 %v9362, 96
  %v9553 = vpop.permute.xlu0 %9552
  %9554 = vrot.lane.b32.xlu0 %v9363, 96
  %v9555 = vpop.permute.xlu0 %9554
  %v9560 = vsub.f32 %v9540, %v9549
  %v9561 = vsub.f32 %v9541, %v9551
  %v9562 = vsub.f32 %v9542, %v9553
  %v9563 = vsub.f32 %v9543, %v9555
  %9568 = vrot.lane.b32.xlu0 %v9405, 32
  %v9569 = vpop.permute.xlu0 %9568
  %9570 = vrot.lane.b32.xlu0 %v9408, 32
  %v9571 = vpop.permute.xlu0 %9570
  %9572 = vrot.lane.b32.xlu0 %v9450, 32
  %v9573 = vpop.permute.xlu0 %9572
  %9574 = vrot.lane.b32.xlu0 %v9453, 32
  %v9575 = vpop.permute.xlu0 %9574
  %9584 = vrot.lane.b32.xlu0 %v9560, 64
  %v9585 = vpop.permute.xlu0 %9584
  %9586 = vrot.lane.b32.xlu0 %v9561, 64
  %v9587 = vpop.permute.xlu0 %9586
  %9588 = vrot.lane.b32.xlu0 %v9562, 64
  %v9589 = vpop.permute.xlu0 %9588
  %9590 = vrot.lane.b32.xlu0 %v9563, 64
  %v9591 = vpop.permute.xlu0 %9590
  %v9596 = vsel %vm342, %v9549, %v9569
  %v9597 = vsel %vm342, %v9551, %v9571
  %v9598 = vsel %vm342, %v9553, %v9573
  %v9599 = vsel %vm342, %v9555, %v9575
  %v9600 = vsel %vm347, %v9596, %v9585
  %v9601 = vsel %vm347, %v9597, %v9587
  %v9602 = vsel %vm347, %v9598, %v9589
  %v9603 = vsel %vm347, %v9599, %v9591
  %v9604 = vpack.c.bf16 %v9601, %v9600
  %v9605 = vpack.c.bf16 %v9603, %v9602
  %v9607 = vsel %vm390, %v9604, 0
  %v9610 = vsel %vm390, %v9605, 0
  %9612 = vmatprep.subr.bf16.mxu0 0
  %9613 = vmatpush1.bf16.msra.mxu0 %v1139
  %9614 = vmatprep.subr.bf16.mxu0 0
  %9615 = vmatpush1.bf16.msra.mxu0 %v1140
  %9616 = vmatprep.subr.bf16.mxu0 0
  %9617 = vmatpush1.bf16.msra.mxu0 %v1141
  %9618 = vmatprep.subr.bf16.mxu0 0
  %9619 = vmatpush1.bf16.msra.mxu0 %v1142
  %9620 = vmatprep.subr.bf16.mxu0 0
  %9621 = vmatpush1.bf16.msra.mxu0 %v1143
  %9622 = vmatprep.subr.bf16.mxu0 0
  %9623 = vmatpush1.bf16.msra.mxu0 %v1144
  %9624 = vmatprep.subr.bf16.mxu0 0
  %9625 = vmatpush1.bf16.msra.mxu0 0
  %9626 = vmatprep.subr.bf16.mxu0 0
  %9627 = vmatpush1.bf16.msra.mxu0 0
  %9628 = vmatprep.subr.bf16.mxu0 0
  %9629 = vmatpush1.bf16.msra.mxu0 0
  %9630 = vmatprep.subr.bf16.mxu0 0
  %9631 = vmatpush1.bf16.msra.mxu0 0
  %9632 = vmatprep.subr.bf16.mxu0 0
  %9633 = vmatpush1.bf16.msra.mxu0 0
  %9634 = vmatprep.subr.bf16.mxu0 0
  %9635 = vmatpush1.bf16.msra.mxu0 0
  %9636 = vmatprep.subr.bf16.mxu0 0
  %9637 = vmatpush1.bf16.msra.mxu0 0
  %9638 = vmatprep.subr.bf16.mxu0 0
  %9639 = vmatpush1.bf16.msra.mxu0 0
  %9640 = vmatprep.subr.bf16.mxu0 0
  %9641 = vmatpush1.bf16.msra.mxu0 0
  %9642 = vmatprep.subr.bf16.mxu0 0
  %9643 = vmatpush1.bf16.msra.mxu0 0
  %9644 = vmatprep.mubr.bf16.mxu0 0
  %9645 = vmatmul.mubr.bf16.gmra.mrb[0].mxu0 %v9607
  %v9646 = vpop.f32.mrb[0].mxu0
  %v9647 = vadd.f32 0.0, %v9646
  %v9648 = vpop.f32.mrb[0].mxu0
  %v9649 = vpop.f32.mrb[0].mxu0
  %v9650 = vadd.f32 0.0, %v9649
  %v9651 = vpop.f32.mrb[0].mxu0
  %9652 = vmatprep.mubr.bf16.mxu0 0
  %9653 = vmatmul.mubr.bf16.gmra.mrb[0].mxu0 %v9610
  %v9654 = vpop.f32.mrb[0].mxu0
  %v9655 = vadd.f32 0.0, %v9654
  %v9656 = vpop.f32.mrb[0].mxu0
  %v9657 = vpop.f32.mrb[0].mxu0
  %v9658 = vadd.f32 0.0, %v9657
  %v9659 = vpop.f32.mrb[0].mxu0
  %9660 = vdwg.mxu0
  %v9661 = vpack.c.bf16 %v8913, %v8912
  %v9662 = vpack.c.bf16 %v8915, %v8914
  %9664 = vrot.lane.b32.xlu0 %v9661, 96
  %v9665 = vpop.permute.xlu0 %9664
  %9667 = vmatprep.subr.bf16.mxu0 0
  %9668 = vmatpush1.bf16.msra.mxu0 %v9665
  %9669 = vmatprep.subr.bf16.mxu0 0
  %9670 = vmatpush1.bf16.msra.mxu0 0
  %9671 = vmatprep.subr.bf16.mxu0 0
  %9672 = vmatpush1.bf16.msra.mxu0 0
  %9673 = vmatprep.subr.bf16.mxu0 0
  %9674 = vmatpush1.bf16.msra.mxu0 0
  %9675 = vmatprep.subr.bf16.mxu0 0
  %9676 = vmatpush1.bf16.msra.mxu0 0
  %9677 = vmatprep.subr.bf16.mxu0 0
  %9678 = vmatpush1.bf16.msra.mxu0 0
  %9679 = vmatprep.subr.bf16.mxu0 0
  %9680 = vmatpush1.bf16.msra.mxu0 0
  %9681 = vmatprep.subr.bf16.mxu0 0
  %9682 = vmatpush1.bf16.msra.mxu0 0
  %9683 = vmatprep.subr.bf16.mxu0 0
  %9684 = vmatpush1.bf16.msra.mxu0 0
  %9685 = vmatprep.subr.bf16.mxu0 0
  %9686 = vmatpush1.bf16.msra.mxu0 0
  %9687 = vmatprep.subr.bf16.mxu0 0
  %9688 = vmatpush1.bf16.msra.mxu0 0
  %9689 = vmatprep.subr.bf16.mxu0 0
  %9690 = vmatpush1.bf16.msra.mxu0 0
  %9691 = vmatprep.subr.bf16.mxu0 0
  %9692 = vmatpush1.bf16.msra.mxu0 0
  %9693 = vmatprep.subr.bf16.mxu0 0
  %9694 = vmatpush1.bf16.msra.mxu0 0
  %9695 = vmatprep.subr.bf16.mxu0 0
  %9696 = vmatpush1.bf16.msra.mxu0 0
  %9697 = vmatprep.subr.bf16.mxu0 0
  %9698 = vmatpush1.bf16.msra.mxu0 0
  %9699 = vmatprep.mubr.bf16.mxu0 0
  %9700 = vmatmul.mubr.bf16.gmra.mrb[0].mxu0 %v126
  %v9701 = vpop.f32.mrb[0].mxu0
  %v9702 = vadd.f32 0.0, %v9701
  %v9703 = vpop.f32.mrb[0].mxu0
  %v9704 = vpop.f32.mrb[0].mxu0
  %v9705 = vadd.f32 0.0, %v9704
  %v9706 = vpop.f32.mrb[0].mxu0
  %9707 = vdwg.mxu0
  %9709 = vrot.lane.b32.xlu0 %v9662, 96
  %v9710 = vpop.permute.xlu0 %9709
  %9712 = vmatprep.subr.bf16.mxu0 0
  %9713 = vmatpush1.bf16.msra.mxu0 %v9710
  %9714 = vmatprep.subr.bf16.mxu0 0
  %9715 = vmatpush1.bf16.msra.mxu0 0
  %9716 = vmatprep.subr.bf16.mxu0 0
  %9717 = vmatpush1.bf16.msra.mxu0 0
  %9718 = vmatprep.subr.bf16.mxu0 0
  %9719 = vmatpush1.bf16.msra.mxu0 0
  %9720 = vmatprep.subr.bf16.mxu0 0
  %9721 = vmatpush1.bf16.msra.mxu0 0
  %9722 = vmatprep.subr.bf16.mxu0 0
  %9723 = vmatpush1.bf16.msra.mxu0 0
  %9724 = vmatprep.subr.bf16.mxu0 0
  %9725 = vmatpush1.bf16.msra.mxu0 0
  %9726 = vmatprep.subr.bf16.mxu0 0
  %9727 = vmatpush1.bf16.msra.mxu0 0
  %9728 = vmatprep.subr.bf16.mxu0 0
  %9729 = vmatpush1.bf16.msra.mxu0 0
  %9730 = vmatprep.subr.bf16.mxu0 0
  %9731 = vmatpush1.bf16.msra.mxu0 0
  %9732 = vmatprep.subr.bf16.mxu0 0
  %9733 = vmatpush1.bf16.msra.mxu0 0
  %9734 = vmatprep.subr.bf16.mxu0 0
  %9735 = vmatpush1.bf16.msra.mxu0 0
  %9736 = vmatprep.subr.bf16.mxu0 0
  %9737 = vmatpush1.bf16.msra.mxu0 0
  %9738 = vmatprep.subr.bf16.mxu0 0
  %9739 = vmatpush1.bf16.msra.mxu0 0
  %9740 = vmatprep.subr.bf16.mxu0 0
  %9741 = vmatpush1.bf16.msra.mxu0 0
  %9742 = vmatprep.subr.bf16.mxu0 0
  %9743 = vmatpush1.bf16.msra.mxu0 0
  %9744 = vmatprep.mubr.bf16.mxu0 0
  %9745 = vmatmul.mubr.bf16.gmra.mrb[0].mxu0 %v175
  %v9746 = vpop.f32.mrb[0].mxu0
  %v9747 = vadd.f32 0.0, %v9746
  %v9748 = vpop.f32.mrb[0].mxu0
  %v9749 = vpop.f32.mrb[0].mxu0
  %v9750 = vadd.f32 0.0, %v9749
  %v9751 = vpop.f32.mrb[0].mxu0
  %9752 = vdwg.mxu0
  %v9753 = vpack.c.bf16 %v9705, %v9702
  %v9754 = vpack.c.bf16 %v9750, %v9747
  %9755 = vmatprep.subr.bf16.mxu0 0
  %9756 = vmatpush1.bf16.msra.mxu0 %v9753
  %9757 = vmatprep.subr.bf16.mxu0 0
  %9758 = vmatpush1.bf16.msra.mxu0 0
  %9759 = vmatprep.subr.bf16.mxu0 0
  %9760 = vmatpush1.bf16.msra.mxu0 0
  %9761 = vmatprep.subr.bf16.mxu0 0
  %9762 = vmatpush1.bf16.msra.mxu0 0
  %9763 = vmatprep.subr.bf16.mxu0 0
  %9764 = vmatpush1.bf16.msra.mxu0 0
  %9765 = vmatprep.subr.bf16.mxu0 0
  %9766 = vmatpush1.bf16.msra.mxu0 0
  %9767 = vmatprep.subr.bf16.mxu0 0
  %9768 = vmatpush1.bf16.msra.mxu0 0
  %9769 = vmatprep.subr.bf16.mxu0 0
  %9770 = vmatpush1.bf16.msra.mxu0 0
  %9771 = vmatprep.subr.bf16.mxu0 0
  %9772 = vmatpush1.bf16.msra.mxu0 0
  %9773 = vmatprep.subr.bf16.mxu0 0
  %9774 = vmatpush1.bf16.msra.mxu0 0
  %9775 = vmatprep.subr.bf16.mxu0 0
  %9776 = vmatpush1.bf16.msra.mxu0 0
  %9777 = vmatprep.subr.bf16.mxu0 0
  %9778 = vmatpush1.bf16.msra.mxu0 0
  %9779 = vmatprep.subr.bf16.mxu0 0
  %9780 = vmatpush1.bf16.msra.mxu0 0
  %9781 = vmatprep.subr.bf16.mxu0 0
  %9782 = vmatpush1.bf16.msra.mxu0 0
  %9783 = vmatprep.subr.bf16.mxu0 0
  %9784 = vmatpush1.bf16.msra.mxu0 0
  %9785 = vmatprep.subr.bf16.mxu0 0
  %9786 = vmatpush1.bf16.msra.mxu0 0
  %9787 = vmatprep.mubr.bf16.mxu0 0
  %9788 = vmatmul.mubr.bf16.gmra.mrb[0].mxu0 %v126
  %v9789 = vpop.f32.mrb[0].mxu0
  %v9790 = vadd.f32 0.0, %v9789
  %v9791 = vpop.f32.mrb[0].mxu0
  %v9792 = vpop.f32.mrb[0].mxu0
  %v9793 = vadd.f32 0.0, %v9792
  %v9794 = vpop.f32.mrb[0].mxu0
  %9795 = vdwg.mxu0
  %9796 = vmatprep.subr.bf16.mxu0 0
  %9797 = vmatpush1.bf16.msra.mxu0 %v9754
  %9798 = vmatprep.subr.bf16.mxu0 0
  %9799 = vmatpush1.bf16.msra.mxu0 0
  %9800 = vmatprep.subr.bf16.mxu0 0
  %9801 = vmatpush1.bf16.msra.mxu0 0
  %9802 = vmatprep.subr.bf16.mxu0 0
  %9803 = vmatpush1.bf16.msra.mxu0 0
  %9804 = vmatprep.subr.bf16.mxu0 0
  %9805 = vmatpush1.bf16.msra.mxu0 0
  %9806 = vmatprep.subr.bf16.mxu0 0
  %9807 = vmatpush1.bf16.msra.mxu0 0
  %9808 = vmatprep.subr.bf16.mxu0 0
  %9809 = vmatpush1.bf16.msra.mxu0 0
  %9810 = vmatprep.subr.bf16.mxu0 0
  %9811 = vmatpush1.bf16.msra.mxu0 0
  %9812 = vmatprep.subr.bf16.mxu0 0
  %9813 = vmatpush1.bf16.msra.mxu0 0
  %9814 = vmatprep.subr.bf16.mxu0 0
  %9815 = vmatpush1.bf16.msra.mxu0 0
  %9816 = vmatprep.subr.bf16.mxu0 0
  %9817 = vmatpush1.bf16.msra.mxu0 0
  %9818 = vmatprep.subr.bf16.mxu0 0
  %9819 = vmatpush1.bf16.msra.mxu0 0
  %9820 = vmatprep.subr.bf16.mxu0 0
  %9821 = vmatpush1.bf16.msra.mxu0 0
  %9822 = vmatprep.subr.bf16.mxu0 0
  %9823 = vmatpush1.bf16.msra.mxu0 0
  %9824 = vmatprep.subr.bf16.mxu0 0
  %9825 = vmatpush1.bf16.msra.mxu0 0
  %9826 = vmatprep.subr.bf16.mxu0 0
  %9827 = vmatpush1.bf16.msra.mxu0 0
  %9828 = vmatprep.mubr.bf16.mxu0 0
  %9829 = vmatmul.mubr.bf16.gmra.mrb[0].mxu0 %v175
  %v9830 = vpop.f32.mrb[0].mxu0
  %v9831 = vadd.f32 0.0, %v9830
  %v9832 = vpop.f32.mrb[0].mxu0
  %v9833 = vpop.f32.mrb[0].mxu0
  %v9834 = vadd.f32 0.0, %v9833
  %v9835 = vpop.f32.mrb[0].mxu0
  %9836 = vdwg.mxu0
  %v9837 = vmul.f32 %v9790, 2.0
  %v9838 = vmul.f32 %v9793, 2.0
  %v9839 = vmul.f32 %v9831, 2.0
  %v9840 = vmul.f32 %v9834, 2.0
  %v9841 = vsub.f32 %v9837, %v8921
  %v9842 = vsub.f32 %v9838, %v8923
  %v9843 = vsub.f32 %v9839, %v8925
  %v9844 = vsub.f32 %v9840, %v8927
  %9849 = vrot.lane.b32.xlu0 %v9702, 32
  %v9850 = vpop.permute.xlu0 %9849
  %9851 = vrot.lane.b32.xlu0 %v9705, 32
  %v9852 = vpop.permute.xlu0 %9851
  %9853 = vrot.lane.b32.xlu0 %v9747, 32
  %v9854 = vpop.permute.xlu0 %9853
  %9855 = vrot.lane.b32.xlu0 %v9750, 32
  %v9856 = vpop.permute.xlu0 %9855
  %9865 = vrot.lane.b32.xlu0 %v9841, 64
  %v9866 = vpop.permute.xlu0 %9865
  %9867 = vrot.lane.b32.xlu0 %v9842, 64
  %v9868 = vpop.permute.xlu0 %9867
  %9869 = vrot.lane.b32.xlu0 %v9843, 64
  %v9870 = vpop.permute.xlu0 %9869
  %9871 = vrot.lane.b32.xlu0 %v9844, 64
  %v9872 = vpop.permute.xlu0 %9871
  %v9877 = vsel %vm342, %v8921, %v9850
  %v9878 = vsel %vm342, %v8923, %v9852
  %v9879 = vsel %vm342, %v8925, %v9854
  %v9880 = vsel %vm342, %v8927, %v9856
  %v9881 = vsel %vm347, %v9877, %v9866
  %v9882 = vsel %vm347, %v9878, %v9868
  %v9883 = vsel %vm347, %v9879, %v9870
  %v9884 = vsel %vm347, %v9880, %v9872
  %v9885 = vpack.c.bf16 %v9882, %v9881
  %v9886 = vpack.c.bf16 %v9884, %v9883
  %v9888 = vsel %vm390, %v9885, 0
  %v9891 = vsel %vm390, %v9886, 0
  %9893 = vmatprep.subr.bf16.mxu0 0
  %9894 = vmatpush1.bf16.msra.mxu0 %v1448
  %9895 = vmatprep.subr.bf16.mxu0 0
  %9896 = vmatpush1.bf16.msra.mxu0 %v1449
  %9897 = vmatprep.subr.bf16.mxu0 0
  %9898 = vmatpush1.bf16.msra.mxu0 %v1450
  %9899 = vmatprep.subr.bf16.mxu0 0
  %9900 = vmatpush1.bf16.msra.mxu0 %v1451
  %9901 = vmatprep.subr.bf16.mxu0 0
  %9902 = vmatpush1.bf16.msra.mxu0 %v1452
  %9903 = vmatprep.subr.bf16.mxu0 0
  %9904 = vmatpush1.bf16.msra.mxu0 %v1453
  %9905 = vmatprep.subr.bf16.mxu0 0
  %9906 = vmatpush1.bf16.msra.mxu0 0
  %9907 = vmatprep.subr.bf16.mxu0 0
  %9908 = vmatpush1.bf16.msra.mxu0 0
  %9909 = vmatprep.subr.bf16.mxu0 0
  %9910 = vmatpush1.bf16.msra.mxu0 0
  %9911 = vmatprep.subr.bf16.mxu0 0
  %9912 = vmatpush1.bf16.msra.mxu0 0
  %9913 = vmatprep.subr.bf16.mxu0 0
  %9914 = vmatpush1.bf16.msra.mxu0 0
  %9915 = vmatprep.subr.bf16.mxu0 0
  %9916 = vmatpush1.bf16.msra.mxu0 0
  %9917 = vmatprep.subr.bf16.mxu0 0
  %9918 = vmatpush1.bf16.msra.mxu0 0
  %9919 = vmatprep.subr.bf16.mxu0 0
  %9920 = vmatpush1.bf16.msra.mxu0 0
  %9921 = vmatprep.subr.bf16.mxu0 0
  %9922 = vmatpush1.bf16.msra.mxu0 0
  %9923 = vmatprep.subr.bf16.mxu0 0
  %9924 = vmatpush1.bf16.msra.mxu0 0
  %9925 = vmatprep.mubr.bf16.mxu0 0
  %9926 = vmatmul.mubr.bf16.gmra.mrb[0].mxu0 %v9888
  %v9927 = vpop.f32.mrb[0].mxu0
  %v9928 = vadd.f32 0.0, %v9927
  %v9929 = vpop.f32.mrb[0].mxu0
  %v9930 = vpop.f32.mrb[0].mxu0
  %v9931 = vadd.f32 0.0, %v9930
  %v9932 = vpop.f32.mrb[0].mxu0
  %9933 = vmatprep.mubr.bf16.mxu0 0
  %9934 = vmatmul.mubr.bf16.gmra.mrb[0].mxu0 %v9891
  %v9935 = vpop.f32.mrb[0].mxu0
  %v9936 = vadd.f32 0.0, %v9935
  %v9937 = vpop.f32.mrb[0].mxu0
  %v9938 = vpop.f32.mrb[0].mxu0
  %v9939 = vadd.f32 0.0, %v9938
  %v9940 = vpop.f32.mrb[0].mxu0
  %9941 = vdwg.mxu0
  %v9942 = vadd.f32 %v9647, %v9928
  %v9943 = vadd.f32 %v9650, %v9931
  %v9944 = vadd.f32 %v9655, %v9936
  %v9945 = vadd.f32 %v9658, %v9939
  %v9946 = vadd.f32 %v9942, %v1523
  %v9947 = vadd.f32 %v9943, %v1523
  %v9948 = vadd.f32 %v9944, %v1523
  %v9949 = vadd.f32 %v9945, %v1523
  %v9950 = vxor.u32 %v9946, 2147483648
  %v9951 = vxor.u32 %v9947, 2147483648
  %v9952 = vxor.u32 %v9948, 2147483648
  %v9953 = vxor.u32 %v9949, 2147483648
  %v9954 = vmul.f32 %v9950, 1.442695
  %v9955 = vpow.pop %v9954
  %v9956 = vmul.f32 %v9951, 1.442695
  %v9957 = vpow.pop %v9956
  %v9958 = vmul.f32 %v9952, 1.442695
  %v9959 = vpow.pop %v9958
  %v9960 = vmul.f32 %v9953, 1.442695
  %v9961 = vpow.pop %v9960
  %v9962 = vadd.f32 %v9955, 1.0
  %v9963 = vadd.f32 %v9957, 1.0
  %v9964 = vadd.f32 %v9959, 1.0
  %v9965 = vadd.f32 %v9961, 1.0
  %v9966 = vrcp.pop %v9962
  %v9967 = vmul.f32 1.0, %v9966
  %v9968 = vrcp.pop %v9963
  %v9969 = vmul.f32 1.0, %v9968
  %v9970 = vrcp.pop %v9964
  %v9971 = vmul.f32 1.0, %v9970
  %v9972 = vrcp.pop %v9965
  %v9973 = vmul.f32 1.0, %v9972
  %v9974 = vmul.f32 %v9967, %v8921
  %v9975 = vmul.f32 %v9969, %v8923
  %v9976 = vmul.f32 %v9971, %v8925
  %v9977 = vmul.f32 %v9973, %v8927
  %v9978 = vpack.c.bf16 %v9975, %v9974
  %v9979 = vpack.c.bf16 %v9977, %v9976
  %9980 = vmatprep.subr.bf16.mxu0 0
  %9981 = vmatpush1.bf16.msra.mxu0 %v9978
  %9982 = vmatprep.subr.bf16.mxu0 0
  %9983 = vmatpush1.bf16.msra.mxu0 0
  %9984 = vmatprep.subr.bf16.mxu0 0
  %9985 = vmatpush1.bf16.msra.mxu0 0
  %9986 = vmatprep.subr.bf16.mxu0 0
  %9987 = vmatpush1.bf16.msra.mxu0 0
  %9988 = vmatprep.subr.bf16.mxu0 0
  %9989 = vmatpush1.bf16.msra.mxu0 0
  %9990 = vmatprep.subr.bf16.mxu0 0
  %9991 = vmatpush1.bf16.msra.mxu0 0
  %9992 = vmatprep.subr.bf16.mxu0 0
  %9993 = vmatpush1.bf16.msra.mxu0 0
  %9994 = vmatprep.subr.bf16.mxu0 0
  %9995 = vmatpush1.bf16.msra.mxu0 0
  %9996 = vmatprep.subr.bf16.mxu0 0
  %9997 = vmatpush1.bf16.msra.mxu0 0
  %9998 = vmatprep.subr.bf16.mxu0 0
  %9999 = vmatpush1.bf16.msra.mxu0 0
  %10000 = vmatprep.subr.bf16.mxu0 0
  %10001 = vmatpush1.bf16.msra.mxu0 0
  %10002 = vmatprep.subr.bf16.mxu0 0
  %10003 = vmatpush1.bf16.msra.mxu0 0
  %10004 = vmatprep.subr.bf16.mxu0 0
  %10005 = vmatpush1.bf16.msra.mxu0 0
  %10006 = vmatprep.subr.bf16.mxu0 0
  %10007 = vmatpush1.bf16.msra.mxu0 0
  %10008 = vmatprep.subr.bf16.mxu0 0
  %10009 = vmatpush1.bf16.msra.mxu0 0
  %10010 = vmatprep.subr.bf16.mxu0 0
  %10011 = vmatpush1.bf16.msra.mxu0 0
  %10012 = vmatprep.mubr.bf16.mxu0 0
  %10013 = vmatmul.mubr.bf16.gmra.mrb[0].mxu0 %v126
  %v10014 = vpop.f32.mrb[0].mxu0
  %v10015 = vadd.f32 0.0, %v10014
  %v10016 = vpop.f32.mrb[0].mxu0
  %v10017 = vpop.f32.mrb[0].mxu0
  %v10018 = vadd.f32 0.0, %v10017
  %v10019 = vpop.f32.mrb[0].mxu0
  %10020 = vdwg.mxu0
  %10021 = vmatprep.subr.bf16.mxu0 0
  %10022 = vmatpush1.bf16.msra.mxu0 %v9979
  %10023 = vmatprep.subr.bf16.mxu0 0
  %10024 = vmatpush1.bf16.msra.mxu0 0
  %10025 = vmatprep.subr.bf16.mxu0 0
  %10026 = vmatpush1.bf16.msra.mxu0 0
  %10027 = vmatprep.subr.bf16.mxu0 0
  %10028 = vmatpush1.bf16.msra.mxu0 0
  %10029 = vmatprep.subr.bf16.mxu0 0
  %10030 = vmatpush1.bf16.msra.mxu0 0
  %10031 = vmatprep.subr.bf16.mxu0 0
  %10032 = vmatpush1.bf16.msra.mxu0 0
  %10033 = vmatprep.subr.bf16.mxu0 0
  %10034 = vmatpush1.bf16.msra.mxu0 0
  %10035 = vmatprep.subr.bf16.mxu0 0
  %10036 = vmatpush1.bf16.msra.mxu0 0
  %10037 = vmatprep.subr.bf16.mxu0 0
  %10038 = vmatpush1.bf16.msra.mxu0 0
  %10039 = vmatprep.subr.bf16.mxu0 0
  %10040 = vmatpush1.bf16.msra.mxu0 0
  %10041 = vmatprep.subr.bf16.mxu0 0
  %10042 = vmatpush1.bf16.msra.mxu0 0
  %10043 = vmatprep.subr.bf16.mxu0 0
  %10044 = vmatpush1.bf16.msra.mxu0 0
  %10045 = vmatprep.subr.bf16.mxu0 0
  %10046 = vmatpush1.bf16.msra.mxu0 0
  %10047 = vmatprep.subr.bf16.mxu0 0
  %10048 = vmatpush1.bf16.msra.mxu0 0
  %10049 = vmatprep.subr.bf16.mxu0 0
  %10050 = vmatpush1.bf16.msra.mxu0 0
  %10051 = vmatprep.subr.bf16.mxu0 0
  %10052 = vmatpush1.bf16.msra.mxu0 0
  %10053 = vmatprep.mubr.bf16.mxu0 0
  %10054 = vmatmul.mubr.bf16.gmra.mrb[0].mxu0 %v175
  %v10055 = vpop.f32.mrb[0].mxu0
  %v10056 = vadd.f32 0.0, %v10055
  %v10057 = vpop.f32.mrb[0].mxu0
  %v10058 = vpop.f32.mrb[0].mxu0
  %v10059 = vadd.f32 0.0, %v10058
  %v10060 = vpop.f32.mrb[0].mxu0
  %10061 = vdwg.mxu0
  %v10062 = vpack.c.bf16 %v10018, %v10015
  %v10063 = vpack.c.bf16 %v10059, %v10056
  %10064 = vmatprep.subr.bf16.mxu0 0
  %10065 = vmatpush1.bf16.msra.mxu0 %v10062
  %10066 = vmatprep.subr.bf16.mxu0 0
  %10067 = vmatpush1.bf16.msra.mxu0 0
  %10068 = vmatprep.subr.bf16.mxu0 0
  %10069 = vmatpush1.bf16.msra.mxu0 0
  %10070 = vmatprep.subr.bf16.mxu0 0
  %10071 = vmatpush1.bf16.msra.mxu0 0
  %10072 = vmatprep.subr.bf16.mxu0 0
  %10073 = vmatpush1.bf16.msra.mxu0 0
  %10074 = vmatprep.subr.bf16.mxu0 0
  %10075 = vmatpush1.bf16.msra.mxu0 0
  %10076 = vmatprep.subr.bf16.mxu0 0
  %10077 = vmatpush1.bf16.msra.mxu0 0
  %10078 = vmatprep.subr.bf16.mxu0 0
  %10079 = vmatpush1.bf16.msra.mxu0 0
  %10080 = vmatprep.subr.bf16.mxu0 0
  %10081 = vmatpush1.bf16.msra.mxu0 0
  %10082 = vmatprep.subr.bf16.mxu0 0
  %10083 = vmatpush1.bf16.msra.mxu0 0
  %10084 = vmatprep.subr.bf16.mxu0 0
  %10085 = vmatpush1.bf16.msra.mxu0 0
  %10086 = vmatprep.subr.bf16.mxu0 0
  %10087 = vmatpush1.bf16.msra.mxu0 0
  %10088 = vmatprep.subr.bf16.mxu0 0
  %10089 = vmatpush1.bf16.msra.mxu0 0
  %10090 = vmatprep.subr.bf16.mxu0 0
  %10091 = vmatpush1.bf16.msra.mxu0 0
  %10092 = vmatprep.subr.bf16.mxu0 0
  %10093 = vmatpush1.bf16.msra.mxu0 0
  %10094 = vmatprep.subr.bf16.mxu0 0
  %10095 = vmatpush1.bf16.msra.mxu0 0
  %10096 = vmatprep.mubr.bf16.mxu0 0
  %10097 = vmatmul.mubr.bf16.gmra.mrb[0].mxu0 %v126
  %v10098 = vpop.f32.mrb[0].mxu0
  %v10099 = vadd.f32 0.0, %v10098
  %v10100 = vpop.f32.mrb[0].mxu0
  %v10101 = vpop.f32.mrb[0].mxu0
  %v10102 = vadd.f32 0.0, %v10101
  %v10103 = vpop.f32.mrb[0].mxu0
  %10104 = vdwg.mxu0
  %10105 = vmatprep.subr.bf16.mxu0 0
  %10106 = vmatpush1.bf16.msra.mxu0 %v10063
  %10107 = vmatprep.subr.bf16.mxu0 0
  %10108 = vmatpush1.bf16.msra.mxu0 0
  %10109 = vmatprep.subr.bf16.mxu0 0
  %10110 = vmatpush1.bf16.msra.mxu0 0
  %10111 = vmatprep.subr.bf16.mxu0 0
  %10112 = vmatpush1.bf16.msra.mxu0 0
  %10113 = vmatprep.subr.bf16.mxu0 0
  %10114 = vmatpush1.bf16.msra.mxu0 0
  %10115 = vmatprep.subr.bf16.mxu0 0
  %10116 = vmatpush1.bf16.msra.mxu0 0
  %10117 = vmatprep.subr.bf16.mxu0 0
  %10118 = vmatpush1.bf16.msra.mxu0 0
  %10119 = vmatprep.subr.bf16.mxu0 0
  %10120 = vmatpush1.bf16.msra.mxu0 0
  %10121 = vmatprep.subr.bf16.mxu0 0
  %10122 = vmatpush1.bf16.msra.mxu0 0
  %10123 = vmatprep.subr.bf16.mxu0 0
  %10124 = vmatpush1.bf16.msra.mxu0 0
  %10125 = vmatprep.subr.bf16.mxu0 0
  %10126 = vmatpush1.bf16.msra.mxu0 0
  %10127 = vmatprep.subr.bf16.mxu0 0
  %10128 = vmatpush1.bf16.msra.mxu0 0
  %10129 = vmatprep.subr.bf16.mxu0 0
  %10130 = vmatpush1.bf16.msra.mxu0 0
  %10131 = vmatprep.subr.bf16.mxu0 0
  %10132 = vmatpush1.bf16.msra.mxu0 0
  %10133 = vmatprep.subr.bf16.mxu0 0
  %10134 = vmatpush1.bf16.msra.mxu0 0
  %10135 = vmatprep.subr.bf16.mxu0 0
  %10136 = vmatpush1.bf16.msra.mxu0 0
  %10137 = vmatprep.mubr.bf16.mxu0 0
  %10138 = vmatmul.mubr.bf16.gmra.mrb[0].mxu0 %v175
  %v10139 = vpop.f32.mrb[0].mxu0
  %v10140 = vadd.f32 0.0, %v10139
  %v10141 = vpop.f32.mrb[0].mxu0
  %v10142 = vpop.f32.mrb[0].mxu0
  %v10143 = vadd.f32 0.0, %v10142
  %v10144 = vpop.f32.mrb[0].mxu0
  %10145 = vdwg.mxu0
  %v10146 = vmul.f32 %v10099, 2.0
  %v10147 = vmul.f32 %v10102, 2.0
  %v10148 = vmul.f32 %v10140, 2.0
  %v10149 = vmul.f32 %v10143, 2.0
  %v10150 = vsub.f32 %v10146, %v9974
  %v10151 = vsub.f32 %v10147, %v9975
  %v10152 = vsub.f32 %v10148, %v9976
  %v10153 = vsub.f32 %v10149, %v9977
  %10158 = vrot.lane.b32.xlu0 %v10015, 32
  %v10159 = vpop.permute.xlu0 %10158
  %10160 = vrot.lane.b32.xlu0 %v10018, 32
  %v10161 = vpop.permute.xlu0 %10160
  %10162 = vrot.lane.b32.xlu0 %v10056, 32
  %v10163 = vpop.permute.xlu0 %10162
  %10164 = vrot.lane.b32.xlu0 %v10059, 32
  %v10165 = vpop.permute.xlu0 %10164
  %10174 = vrot.lane.b32.xlu0 %v10150, 64
  %v10175 = vpop.permute.xlu0 %10174
  %10176 = vrot.lane.b32.xlu0 %v10151, 64
  %v10177 = vpop.permute.xlu0 %10176
  %10178 = vrot.lane.b32.xlu0 %v10152, 64
  %v10179 = vpop.permute.xlu0 %10178
  %10180 = vrot.lane.b32.xlu0 %v10153, 64
  %v10181 = vpop.permute.xlu0 %10180
  %v10186 = vsel %vm342, %v9974, %v10159
  %v10187 = vsel %vm342, %v9975, %v10161
  %v10188 = vsel %vm342, %v9976, %v10163
  %v10189 = vsel %vm342, %v9977, %v10165
  %v10190 = vsel %vm347, %v10186, %v10175
  %v10191 = vsel %vm347, %v10187, %v10177
  %v10192 = vsel %vm347, %v10188, %v10179
  %v10193 = vsel %vm347, %v10189, %v10181
  %v10194 = vpack.c.bf16 %v10191, %v10190
  %v10195 = vpack.c.bf16 %v10193, %v10192
  %v10197 = vsel %vm390, %v10194, 0
  %v10200 = vsel %vm390, %v10195, 0
  %10202 = vmatprep.subr.bf16.mxu0 0
  %10203 = vmatpush1.bf16.msra.mxu0 %v1799
  %10204 = vmatprep.subr.bf16.mxu0 0
  %10205 = vmatpush1.bf16.msra.mxu0 %v1800
  %10206 = vmatprep.subr.bf16.mxu0 0
  %10207 = vmatpush1.bf16.msra.mxu0 %v1801
  %10208 = vmatprep.subr.bf16.mxu0 0
  %10209 = vmatpush1.bf16.msra.mxu0 %v1802
  %10210 = vmatprep.subr.bf16.mxu0 0
  %10211 = vmatpush1.bf16.msra.mxu0 %v1803
  %10212 = vmatprep.subr.bf16.mxu0 0
  %10213 = vmatpush1.bf16.msra.mxu0 %v1804
  %10214 = vmatprep.subr.bf16.mxu0 0
  %10215 = vmatpush1.bf16.msra.mxu0 0
  %10216 = vmatprep.subr.bf16.mxu0 0
  %10217 = vmatpush1.bf16.msra.mxu0 0
  %10218 = vmatprep.subr.bf16.mxu0 0
  %10219 = vmatpush1.bf16.msra.mxu0 0
  %10220 = vmatprep.subr.bf16.mxu0 0
  %10221 = vmatpush1.bf16.msra.mxu0 0
  %10222 = vmatprep.subr.bf16.mxu0 0
  %10223 = vmatpush1.bf16.msra.mxu0 0
  %10224 = vmatprep.subr.bf16.mxu0 0
  %10225 = vmatpush1.bf16.msra.mxu0 0
  %10226 = vmatprep.subr.bf16.mxu0 0
  %10227 = vmatpush1.bf16.msra.mxu0 0
  %10228 = vmatprep.subr.bf16.mxu0 0
  %10229 = vmatpush1.bf16.msra.mxu0 0
  %10230 = vmatprep.subr.bf16.mxu0 0
  %10231 = vmatpush1.bf16.msra.mxu0 0
  %10232 = vmatprep.subr.bf16.mxu0 0
  %10233 = vmatpush1.bf16.msra.mxu0 0
  %10234 = vmatprep.mubr.bf16.mxu0 0
  %10235 = vmatmul.mubr.bf16.gmra.mrb[0].mxu0 %v10197
  %v10236 = vpop.f32.mrb[0].mxu0
  %v10237 = vadd.f32 0.0, %v10236
  %v10238 = vpop.f32.mrb[0].mxu0
  %v10239 = vpop.f32.mrb[0].mxu0
  %v10240 = vadd.f32 0.0, %v10239
  %v10241 = vpop.f32.mrb[0].mxu0
  %10242 = vmatprep.mubr.bf16.mxu0 0
  %10243 = vmatmul.mubr.bf16.gmra.mrb[0].mxu0 %v10200
  %v10244 = vpop.f32.mrb[0].mxu0
  %v10245 = vadd.f32 0.0, %v10244
  %v10246 = vpop.f32.mrb[0].mxu0
  %v10247 = vpop.f32.mrb[0].mxu0
  %v10248 = vadd.f32 0.0, %v10247
  %v10249 = vpop.f32.mrb[0].mxu0
  %10250 = vdwg.mxu0
  %10255 = vrot.lane.b32.xlu0 %v10237, 64
  %v10256 = vpop.permute.xlu0 %10255
  %10257 = vrot.lane.b32.xlu0 %v10240, 64
  %v10258 = vpop.permute.xlu0 %10257
  %10259 = vrot.lane.b32.xlu0 %v10245, 64
  %v10260 = vpop.permute.xlu0 %10259
  %10261 = vrot.lane.b32.xlu0 %v10248, 64
  %v10262 = vpop.permute.xlu0 %10261
  %v10267 = vadd.f32 %v9647, %v10256
  %v10268 = vadd.f32 %v9650, %v10258
  %v10269 = vadd.f32 %v9655, %v10260
  %v10270 = vadd.f32 %v9658, %v10262
  %v10271 = vadd.f32 %v10267, %v1523
  %v10272 = vadd.f32 %v10268, %v1523
  %v10273 = vadd.f32 %v10269, %v1523
  %v10274 = vadd.f32 %v10270, %v1523
  %v10275 = vtanh.pop %v10271
  %v10276 = vtanh.pop %v10272
  %v10277 = vtanh.pop %v10273
  %v10278 = vtanh.pop %v10274
  %v10279 = vmul.f32 %v9967, %v8912
  %v10280 = vmul.f32 %v9969, %v8913
  %v10281 = vmul.f32 %v9971, %v8914
  %v10282 = vmul.f32 %v9973, %v8915
  %v10283 = vsub.f32 1.0, %v9967
  %v10284 = vsub.f32 1.0, %v9969
  %v10285 = vsub.f32 1.0, %v9971
  %v10286 = vsub.f32 1.0, %v9973
  %10291 = vrot.lane.b32.xlu0 %v10275, 96
  %v10292 = vpop.permute.xlu0 %10291
  %10293 = vrot.lane.b32.xlu0 %v10276, 96
  %v10294 = vpop.permute.xlu0 %10293
  %10295 = vrot.lane.b32.xlu0 %v10277, 96
  %v10296 = vpop.permute.xlu0 %10295
  %10297 = vrot.lane.b32.xlu0 %v10278, 96
  %v10298 = vpop.permute.xlu0 %10297
  %v10303 = vmul.f32 %v10283, %v10292
  %v10304 = vmul.f32 %v10284, %v10294
  %v10305 = vmul.f32 %v10285, %v10296
  %v10306 = vmul.f32 %v10286, %v10298
  %v10307 = vadd.f32 %v10279, %v10303
  %v10308 = vadd.f32 %v10280, %v10304
  %v10309 = vadd.f32 %v10281, %v10305
  %v10310 = vadd.f32 %v10282, %v10306
  %10315 = vrot.lane.b32.xlu0 %v10307, 96
  %v10316 = vpop.permute.xlu0 %10315
  %10317 = vrot.lane.b32.xlu0 %v10308, 96
  %v10318 = vpop.permute.xlu0 %10317
  %10319 = vrot.lane.b32.xlu0 %v10309, 96
  %v10320 = vpop.permute.xlu0 %10319
  %10321 = vrot.lane.b32.xlu0 %v10310, 96
  %v10322 = vpop.permute.xlu0 %10321
  %s10327 = scalar_lea.vmem %s9, 192
  %10328 = vst.msk [vmem:[%s10327] sm:$0xff] %vm342, %v10316
  %10329 = vst.msk [vmem:[%s10327 + $0x8] sm:$0xff] %vm342, %v10318
  %10330 = vst.msk [vmem:[%s10327 + $0x10] sm:$0xff] %vm342, %v10320
  %10331 = vst.msk [vmem:[%s10327 + $0x18] sm:$0xff] %vm342, %v10322
  // Predicated region
  $region38: #{_lambda_.1} parent=0 // pred_check
    _
  $region39: #{_lambda_.1} parent=0 // pred_check_branch
    %10333 = sbr.rel (0) target = $region41
  $region40: #{_lambda_.1} parent=0 // pred_region
    _
  $region41: #{_lambda_.1} parent=0 // pred_fallthru
    _
  // Predicated region
  $region42: #{_lambda_.1} parent=0 // pred_check
    _
  $region43: #{_lambda_.1} parent=0 // pred_check_branch
    %10335 = sbr.rel (0) target = $region45
  $region44: #{_lambda_.1} parent=0 // pred_region
    _
  $region45: #{_lambda_.1} parent=0 // pred_fallthru
    _

</llo_original>
